<compile_context>
chip_gen: v7x
topology: tpu7x:2x2x1
jax: 0.10.0
libtpu: 0.0.40
codegen_flags: <defaults>
</compile_context>

<pallas_src>
import math
from functools import partial

import jax
import jax.numpy as jnp
from jax.experimental import pallas as pl
from jax.experimental.pallas import tpu as pltpu


# ------------------------- parameters (deterministic) ----------------------

def _init_conv(key, kh, kw, cin, cout):
    k_w, k_b = jax.random.split(key)
    bound = 1.0 / math.sqrt(kh * kw * cin)  # PyTorch Conv2d default init scale
    w = jax.random.uniform(k_w, (kh, kw, cin, cout), jnp.float32, -bound, bound)
    b = jax.random.uniform(k_b, (cout,), jnp.float32, -bound, bound)
    return {"w": w, "b": b}


def _init_res_block(key, cin, cinter, cout, k):
    keys = jax.random.split(key, 4)
    blk = {
        "conv1": _init_conv(keys[0], 1, 1, cin, cinter),     # 1x1 in->inter
        "conv2": _init_conv(keys[1], k, k, cinter, cinter),  # kxk inter->inter
        "conv3": _init_conv(keys[2], 1, 1, cinter, cout),    # 1x1 inter->out
    }
    if cin != cout:
        blk["skip"] = _init_conv(keys[3], 1, 1, cin, cout)   # projection skip
    return blk


def init_backbone_params(key, in_channels, structure):
    f = structure[0][0]
    n_blocks = sum(s[3] for s in structure)
    keys = iter(jax.random.split(key, 2 + n_blocks))
    params = {
        "input": [
            _init_conv(next(keys), 7, 7, in_channels, f),  # conv 7x7 'same'
            _init_conv(next(keys), 3, 3, f, f),            # conv 3x3 'same'
        ],
        "stages": [],
    }
    prev = f
    for (inp, inter, k, n) in structure:
        blocks = [_init_res_block(next(keys), prev, inter, inp, k)]
        for _ in range(1, n):
            blocks.append(_init_res_block(next(keys), inp, inter, inp, k))
        prev = inp
        params["stages"].append(blocks)
    return params


# ------------------ weight pre-expansion (wrapper side, once) ---------------
# Slab layout used by the kernel: X[(n*H + h), (w*C + c)] == NHWC[n, h, w, c].

def _block_diag(n, mat):
    """kron(I_n, mat) -> (n*a, n*b)."""
    a, b = mat.shape
    return jnp.einsum("ij,ab->iajb", jnp.eye(n, dtype=mat.dtype), mat
                      ).reshape(n * a, n * b)


def _prep_conv1x1(w, b, width):
    """1x1 conv on an (N*H, W*Cin) slab == matmul with a block-diagonal matrix."""
    cin, cout = int(w.shape[-2]), int(w.shape[-1])
    bd = _block_diag(width, w.reshape(cin, cout))          # (W*Cin, W*Cout)
    bias = jnp.tile(b, width)[None, :]                     # (1, W*Cout)
    return bd, bias


def _prep_convk(w, b, n, h, width):
    """KxK 'same' conv on an (N*H, W*Cin) slab.

    out = sum_ky (R[ky] @ X) @ BW[ky] + bias
      R[ky][(n,h), (n,h')]            = 1  iff h' == h + ky - ph   (else 0)
      BW[ky][wi*Cin+ci, wo*Cout+co]   = w[ky, kx, ci, co]  where wi = wo+kx-pw
    """
    kh, kw, cin, cout = (int(d) for d in w.shape)
    ph, pw = (kh - 1) // 2, (kw - 1) // 2
    h_out = jnp.arange(h)[:, None]
    h_in = jnp.arange(h)[None, :]
    w_in = jnp.arange(width)[:, None]
    w_out = jnp.arange(width)[None, :]
    r_list, bw_list = [], []
    for ky in range(kh):
        sel_h = (h_in == h_out + (ky - ph)).astype(w.dtype)        # (H, H)
        r_list.append(_block_diag(n, sel_h))                        # (N*H, N*H)
        acc = jnp.zeros((width, cin, width, cout), w.dtype)
        for kx in range(kw):
            sel_w = (w_in == w_out + (kx - pw)).astype(w.dtype)     # (Win, Wout)
            acc = acc + sel_w[:, None, :, None] * w[ky, kx][None, :, None, :]
        bw_list.append(acc.reshape(width * cin, width * cout))
    bias = jnp.tile(b, width)[None, :]                              # (1, W*Cout)
    return jnp.stack(r_list), jnp.stack(bw_list), bias


def _prep_pool(n, h, width, c, s):
    """MaxPool(s, s) on an (N*H, W*C) slab via 0/1 row / column selectors."""
    ho, wo = h // s, width // s
    h_o = jnp.arange(ho)[:, None]
    h_i = jnp.arange(h)[None, :]
    p = jnp.stack([_block_diag(n, (h_i == h_o * s + dy).astype(jnp.float32))
                   for dy in range(s)])                             # (s, N*Ho, N*H)
    w_i = jnp.arange(width)[:, None]
    w_o = jnp.arange(wo)[None, :]
    eye_c = jnp.eye(c, dtype=jnp.float32)
    q = jnp.stack([
        jnp.einsum("ab,cd->acbd",
                   (w_i == w_o * s + dx).astype(jnp.float32), eye_c
                   ).reshape(width * c, wo * c)
        for dx in range(s)])                                        # (s, W*C, Wo*C)
    return p, q


def build_plan(params, n, h0, w0, maxpool_structure):
    """Walk the backbone once; emit (static plan, flat operand list, out dims).

    The kernel walks `plan` in the exact same order, consuming operand refs."""
    plan, operands = [], []

    def emit_conv(layer, h, w):
        kh, kw, _, cout = (int(d) for d in layer["w"].shape)
        if kh == 1 and kw == 1:
            bd, bias = _prep_conv1x1(layer["w"], layer["b"], w)
            plan.append(("conv1x1",))
            operands.extend([bd, bias])
        else:
            r, bw, bias = _prep_convk(layer["w"], layer["b"], n, h, w)
            plan.append(("convk", kh))
            operands.extend([r, bw, bias])
        return cout

    def emit_pool(s, h, w, c):
        p, q = _prep_pool(n, h, w, c, s)
        plan.append(("pool", s))
        operands.extend([p, q])
        return h // s, w // s

    h, w, c = h0, w0, None
    for layer in params["input"]:            # conv7x7 -> Identity -> conv3x3 -> Identity
        c = emit_conv(layer, h, w)
    h, w = emit_pool(2, h, w, c)             # first_pooling = MaxPool2d(2, 2)
    for blocks, mp in zip(params["stages"], maxpool_structure):
        for blk in blocks:
            plan.append(("res_save",))
            c = emit_conv(blk["conv1"], h, w)
            c = emit_conv(blk["conv2"], h, w)
            c = emit_conv(blk["conv3"], h, w)
            if "skip" in blk:                # 1x1 projection applied to saved input
                bd, bias = _prep_conv1x1(blk["skip"]["w"], blk["skip"]["b"], w)
                plan.append(("res_add_proj",))
                operands.extend([bd, bias])
            else:
                plan.append(("res_add",))
        h, w = emit_pool(mp, h, w, c)
    return tuple(plan), operands, (h, w, c)


# ------------------------------ Pallas kernel -------------------------------

def _mm(a, b):
    return jnp.dot(a, b, preferred_element_type=jnp.float32)


def make_backbone_kernel(plan):
    """Single fused kernel: whole backbone, all intermediates live in VMEM."""
    def kernel(*refs):
        x_ref, out_ref = refs[0], refs[-1]
        op_refs = iter(refs[1:-1])
        x = x_ref[...]
        saved = None
        for op in plan:
            kind = op[0]
            if kind == "conv1x1":
                bd_ref, bias_ref = next(op_refs), next(op_refs)
                x = _mm(x, bd_ref[...]) + bias_ref[...]
            elif kind == "convk":
                kh = op[1]
                r_ref, bw_ref, bias_ref = next(op_refs), next(op_refs), next(op_refs)
                acc = _mm(_mm(r_ref[0], x), bw_ref[0])
                for ky in range(1, kh):
                    acc = acc + _mm(_mm(r_ref[ky], x), bw_ref[ky])
                x = acc + bias_ref[...]
            elif kind == "pool":
                s = op[1]
                p_ref, q_ref = next(op_refs), next(op_refs)
                rows = _mm(p_ref[0], x)
                for dy in range(1, s):
                    rows = jnp.maximum(rows, _mm(p_ref[dy], x))
                y = _mm(rows, q_ref[0])
                for dx in range(1, s):
                    y = jnp.maximum(y, _mm(rows, q_ref[dx]))
                x = y
            elif kind == "res_save":
                saved = x
            elif kind == "res_add":
                x = x + saved
            elif kind == "res_add_proj":
                bd_ref, bias_ref = next(op_refs), next(op_refs)
                x = x + _mm(saved, bd_ref[...]) + bias_ref[...]
        out_ref[...] = x.astype(out_ref.dtype)
    return kernel


def backbone_forward(x_nchw, operands, *, plan, out_hwc):
    n, cin, h, w = x_nchw.shape
    # NCHW -> lane-dense slab (N*H, W*Cin); layout glue stays outside the kernel.
    x_slab = jnp.transpose(x_nchw, (0, 2, 3, 1)).reshape(n * h, w * cin)
    hf, wf, cf = out_hwc
    vmem = pl.BlockSpec(memory_space=pltpu.MemorySpace.VMEM)
    out_slab = pl.pallas_call(
        make_backbone_kernel(plan),
        out_shape=jax.ShapeDtypeStruct((n * hf, wf * cf), jnp.float32),
        in_specs=[vmem] * (1 + len(operands)),
        out_specs=vmem,
    )(x_slab, *operands)
    return jnp.transpose(out_slab.reshape(n, hf, wf, cf), (0, 3, 1, 2))


# ------------------------- plain-JAX reference (check) ----------------------

def reference_forward(params, x_nchw, maxpool_structure):
    def conv(x, layer):
        y = jax.lax.conv_general_dilated(
            x, layer["w"], (1, 1), "SAME",
            dimension_numbers=("NHWC", "HWIO", "NHWC"),
            precision=jax.lax.Precision.HIGHEST)
        return y + layer["b"]

    def pool(x, s):
        return jax.lax.reduce_window(x, -jnp.inf, jax.lax.max,
                                     (1, s, s, 1), (1, s, s, 1), "VALID")

    x = jnp.transpose(x_nchw, (0, 2, 3, 1))
    for layer in params["input"]:
        x = conv(x, layer)
    x = pool(x, 2)
    for blocks, mp in zip(params["stages"], maxpool_structure):
        for blk in blocks:
            y = conv(x, blk["conv1"])
            y = conv(y, blk["conv2"])
            y = conv(y, blk["conv3"])
            skip = conv(x, blk["skip"]) if "skip" in blk else x
            x = y + skip
        x = pool(x, mp)
    return jnp.transpose(x, (0, 3, 1, 2))


# --------------------------------- main -------------------------------------

if __name__ == "__main__":
    # Module config: spatial_dim=2, in_channels=4,
    # structure=[(8,8,3,2),(16,8,3,1)], maxpool_structure=[2,2]
    in_channels = 4
    structure = [(8, 8, 3, 2), (16, 8, 3, 1)]
    maxpool_structure = [2, 2]

    key = jax.random.PRNGKey(0)
    pkey, xkey = jax.random.split(key)
    params = init_backbone_params(pkey, in_channels, structure)
    x = jax.random.normal(xkey, (2, in_channels, 16, 16), jnp.float32)

    n, _, h0, w0 = x.shape
    # Weight pre-expansion runs once, outside the hot path.
    plan, operands, out_hwc = build_plan(params, n, h0, w0, maxpool_structure)

    fwd = jax.jit(partial(backbone_forward, plan=plan, out_hwc=out_hwc))
    out = jax.block_until_ready(fwd(x, operands))

    # (2,4,16,16) -> input_layer -> (2,8,16,16) -> pool -> (2,8,8,8)
    # -> stage1 -> (2,8,8,8) -> pool -> (2,8,4,4)
    # -> stage2 -> (2,16,4,4) -> pool -> (2,16,2,2)
    assert out.shape == (2, 16, 2, 2), out.shape
    assert out.dtype == jnp.float32
    assert bool(jnp.all(jnp.isfinite(out)))

    # Numerical check of the fused kernel against a plain-JAX/XLA reference of
    # the same module (tolerance is generous to absorb MXU precision modes).
    ref = jax.block_until_ready(
        jax.jit(lambda p, xx: reference_forward(p, xx, maxpool_structure))(params, x))
    assert jnp.allclose(out, ref, rtol=5e-2, atol=5e-2), \
        float(jnp.max(jnp.abs(out - ref)))

    print("KERNEL_OK")
</pallas_src>

<mosaic_0001>
module attributes {stable_mosaic.version = 11 : i64} {
  func.func @kernel(%arg0: memref<32x64xf32, #tpu.memory_space<vmem>>, %arg1: memref<7x32x32xf32, #tpu.memory_space<vmem>>, %arg2: memref<7x64x128xf32, #tpu.memory_space<vmem>>, %arg3: memref<1x128xf32, #tpu.memory_space<vmem>>, %arg4: memref<3x32x32xf32, #tpu.memory_space<vmem>>, %arg5: memref<3x128x128xf32, #tpu.memory_space<vmem>>, %arg6: memref<1x128xf32, #tpu.memory_space<vmem>>, %arg7: memref<2x16x32xf32, #tpu.memory_space<vmem>>, %arg8: memref<2x128x64xf32, #tpu.memory_space<vmem>>, %arg9: memref<64x64xf32, #tpu.memory_space<vmem>>, %arg10: memref<1x64xf32, #tpu.memory_space<vmem>>, %arg11: memref<3x16x16xf32, #tpu.memory_space<vmem>>, %arg12: memref<3x64x64xf32, #tpu.memory_space<vmem>>, %arg13: memref<1x64xf32, #tpu.memory_space<vmem>>, %arg14: memref<64x64xf32, #tpu.memory_space<vmem>>, %arg15: memref<1x64xf32, #tpu.memory_space<vmem>>, %arg16: memref<64x64xf32, #tpu.memory_space<vmem>>, %arg17: memref<1x64xf32, #tpu.memory_space<vmem>>, %arg18: memref<3x16x16xf32, #tpu.memory_space<vmem>>, %arg19: memref<3x64x64xf32, #tpu.memory_space<vmem>>, %arg20: memref<1x64xf32, #tpu.memory_space<vmem>>, %arg21: memref<64x64xf32, #tpu.memory_space<vmem>>, %arg22: memref<1x64xf32, #tpu.memory_space<vmem>>, %arg23: memref<2x8x16xf32, #tpu.memory_space<vmem>>, %arg24: memref<2x64x32xf32, #tpu.memory_space<vmem>>, %arg25: memref<32x32xf32, #tpu.memory_space<vmem>>, %arg26: memref<1x32xf32, #tpu.memory_space<vmem>>, %arg27: memref<3x8x8xf32, #tpu.memory_space<vmem>>, %arg28: memref<3x32x32xf32, #tpu.memory_space<vmem>>, %arg29: memref<1x32xf32, #tpu.memory_space<vmem>>, %arg30: memref<32x64xf32, #tpu.memory_space<vmem>>, %arg31: memref<1x64xf32, #tpu.memory_space<vmem>>, %arg32: memref<32x64xf32, #tpu.memory_space<vmem>>, %arg33: memref<1x64xf32, #tpu.memory_space<vmem>>, %arg34: memref<2x4x8xf32, #tpu.memory_space<vmem>>, %arg35: memref<2x64x32xf32, #tpu.memory_space<vmem>>, %arg36: memref<4x32xf32, #tpu.memory_space<vmem>>) attributes {dimension_semantics = [], scalar_prefetch = 0 : i64, scratch_operands = 0 : i64, tpu.core_type = #tpu.core_type<tc>} {
    %c0 = arith.constant 0 : index
    %c0_0 = arith.constant 0 : index
    %0 = vector.load %arg0[%c0, %c0_0] : memref<32x64xf32, #tpu.memory_space<vmem>>, vector<32x64xf32>
    %c0_1 = arith.constant 0 : index
    %c0_2 = arith.constant 0 : index
    %c0_3 = arith.constant 0 : index
    %1 = vector.load %arg1[%c0_1, %c0_2, %c0_3] : memref<7x32x32xf32, #tpu.memory_space<vmem>>, vector<1x32x32xf32>
    %2 = vector.shape_cast %1 : vector<1x32x32xf32> to vector<32x32xf32>
    %cst = arith.constant dense<0.000000e+00> : vector<32x64xf32>
    %3 = tpu.matmul %2, %0, %cst {dimension_numbers = #tpu.dot_dimension_numbers<[1], [0], [0], [1], [0, 0, 1, 1], [], []>} : vector<32x32xf32>, vector<32x64xf32>, vector<32x64xf32> -> vector<32x64xf32>
    %c0_4 = arith.constant 0 : index
    %c0_5 = arith.constant 0 : index
    %c0_6 = arith.constant 0 : index
    %4 = vector.load %arg2[%c0_4, %c0_5, %c0_6] : memref<7x64x128xf32, #tpu.memory_space<vmem>>, vector<1x64x128xf32>
    %5 = vector.shape_cast %4 : vector<1x64x128xf32> to vector<64x128xf32>
    %cst_7 = arith.constant dense<0.000000e+00> : vector<32x128xf32>
    %6 = tpu.matmul %3, %5, %cst_7 {dimension_numbers = #tpu.dot_dimension_numbers<[1], [0], [0], [1], [0, 0, 1, 1], [], []>} : vector<32x64xf32>, vector<64x128xf32>, vector<32x128xf32> -> vector<32x128xf32>
    %c1 = arith.constant 1 : index
    %c0_8 = arith.constant 0 : index
    %c0_9 = arith.constant 0 : index
    %7 = vector.load %arg1[%c1, %c0_8, %c0_9] : memref<7x32x32xf32, #tpu.memory_space<vmem>>, vector<1x32x32xf32>
    %8 = vector.shape_cast %7 : vector<1x32x32xf32> to vector<32x32xf32>
    %cst_10 = arith.constant dense<0.000000e+00> : vector<32x64xf32>
    %9 = tpu.matmul %8, %0, %cst_10 {dimension_numbers = #tpu.dot_dimension_numbers<[1], [0], [0], [1], [0, 0, 1, 1], [], []>} : vector<32x32xf32>, vector<32x64xf32>, vector<32x64xf32> -> vector<32x64xf32>
    %c1_11 = arith.constant 1 : index
    %c0_12 = arith.constant 0 : index
    %c0_13 = arith.constant 0 : index
    %10 = vector.load %arg2[%c1_11, %c0_12, %c0_13] : memref<7x64x128xf32, #tpu.memory_space<vmem>>, vector<1x64x128xf32>
    %11 = vector.shape_cast %10 : vector<1x64x128xf32> to vector<64x128xf32>
    %cst_14 = arith.constant dense<0.000000e+00> : vector<32x128xf32>
    %12 = tpu.matmul %9, %11, %cst_14 {dimension_numbers = #tpu.dot_dimension_numbers<[1], [0], [0], [1], [0, 0, 1, 1], [], []>} : vector<32x64xf32>, vector<64x128xf32>, vector<32x128xf32> -> vector<32x128xf32>
    %13 = arith.addf %6, %12 : vector<32x128xf32>
    %c2 = arith.constant 2 : index
    %c0_15 = arith.constant 0 : index
    %c0_16 = arith.constant 0 : index
    %14 = vector.load %arg1[%c2, %c0_15, %c0_16] : memref<7x32x32xf32, #tpu.memory_space<vmem>>, vector<1x32x32xf32>
    %15 = vector.shape_cast %14 : vector<1x32x32xf32> to vector<32x32xf32>
    %cst_17 = arith.constant dense<0.000000e+00> : vector<32x64xf32>
    %16 = tpu.matmul %15, %0, %cst_17 {dimension_numbers = #tpu.dot_dimension_numbers<[1], [0], [0], [1], [0, 0, 1, 1], [], []>} : vector<32x32xf32>, vector<32x64xf32>, vector<32x64xf32> -> vector<32x64xf32>
    %c2_18 = arith.constant 2 : index
    %c0_19 = arith.constant 0 : index
    %c0_20 = arith.constant 0 : index
    %17 = vector.load %arg2[%c2_18, %c0_19, %c0_20] : memref<7x64x128xf32, #tpu.memory_space<vmem>>, vector<1x64x128xf32>
    %18 = vector.shape_cast %17 : vector<1x64x128xf32> to vector<64x128xf32>
    %cst_21 = arith.constant dense<0.000000e+00> : vector<32x128xf32>
    %19 = tpu.matmul %16, %18, %cst_21 {dimension_numbers = #tpu.dot_dimension_numbers<[1], [0], [0], [1], [0, 0, 1, 1], [], []>} : vector<32x64xf32>, vector<64x128xf32>, vector<32x128xf32> -> vector<32x128xf32>
    %20 = arith.addf %13, %19 : vector<32x128xf32>
    %c3 = arith.constant 3 : index
    %c0_22 = arith.constant 0 : index
    %c0_23 = arith.constant 0 : index
    %21 = vector.load %arg1[%c3, %c0_22, %c0_23] : memref<7x32x32xf32, #tpu.memory_space<vmem>>, vector<1x32x32xf32>
    %22 = vector.shape_cast %21 : vector<1x32x32xf32> to vector<32x32xf32>
    %cst_24 = arith.constant dense<0.000000e+00> : vector<32x64xf32>
    %23 = tpu.matmul %22, %0, %cst_24 {dimension_numbers = #tpu.dot_dimension_numbers<[1], [0], [0], [1], [0, 0, 1, 1], [], []>} : vector<32x32xf32>, vector<32x64xf32>, vector<32x64xf32> -> vector<32x64xf32>
    %c3_25 = arith.constant 3 : index
    %c0_26 = arith.constant 0 : index
    %c0_27 = arith.constant 0 : index
    %24 = vector.load %arg2[%c3_25, %c0_26, %c0_27] : memref<7x64x128xf32, #tpu.memory_space<vmem>>, vector<1x64x128xf32>
    %25 = vector.shape_cast %24 : vector<1x64x128xf32> to vector<64x128xf32>
    %cst_28 = arith.constant dense<0.000000e+00> : vector<32x128xf32>
    %26 = tpu.matmul %23, %25, %cst_28 {dimension_numbers = #tpu.dot_dimension_numbers<[1], [0], [0], [1], [0, 0, 1, 1], [], []>} : vector<32x64xf32>, vector<64x128xf32>, vector<32x128xf32> -> vector<32x128xf32>
    %27 = arith.addf %20, %26 : vector<32x128xf32>
    %c4 = arith.constant 4 : index
    %c0_29 = arith.constant 0 : index
    %c0_30 = arith.constant 0 : index
    %28 = vector.load %arg1[%c4, %c0_29, %c0_30] : memref<7x32x32xf32, #tpu.memory_space<vmem>>, vector<1x32x32xf32>
    %29 = vector.shape_cast %28 : vector<1x32x32xf32> to vector<32x32xf32>
    %cst_31 = arith.constant dense<0.000000e+00> : vector<32x64xf32>
    %30 = tpu.matmul %29, %0, %cst_31 {dimension_numbers = #tpu.dot_dimension_numbers<[1], [0], [0], [1], [0, 0, 1, 1], [], []>} : vector<32x32xf32>, vector<32x64xf32>, vector<32x64xf32> -> vector<32x64xf32>
    %c4_32 = arith.constant 4 : index
    %c0_33 = arith.constant 0 : index
    %c0_34 = arith.constant 0 : index
    %31 = vector.load %arg2[%c4_32, %c0_33, %c0_34] : memref<7x64x128xf32, #tpu.memory_space<vmem>>, vector<1x64x128xf32>
    %32 = vector.shape_cast %31 : vector<1x64x128xf32> to vector<64x128xf32>
    %cst_35 = arith.constant dense<0.000000e+00> : vector<32x128xf32>
    %33 = tpu.matmul %30, %32, %cst_35 {dimension_numbers = #tpu.dot_dimension_numbers<[1], [0], [0], [1], [0, 0, 1, 1], [], []>} : vector<32x64xf32>, vector<64x128xf32>, vector<32x128xf32> -> vector<32x128xf32>
    %34 = arith.addf %27, %33 : vector<32x128xf32>
    %c5 = arith.constant 5 : index
    %c0_36 = arith.constant 0 : index
    %c0_37 = arith.constant 0 : index
    %35 = vector.load %arg1[%c5, %c0_36, %c0_37] : memref<7x32x32xf32, #tpu.memory_space<vmem>>, vector<1x32x32xf32>
    %36 = vector.shape_cast %35 : vector<1x32x32xf32> to vector<32x32xf32>
    %cst_38 = arith.constant dense<0.000000e+00> : vector<32x64xf32>
    %37 = tpu.matmul %36, %0, %cst_38 {dimension_numbers = #tpu.dot_dimension_numbers<[1], [0], [0], [1], [0, 0, 1, 1], [], []>} : vector<32x32xf32>, vector<32x64xf32>, vector<32x64xf32> -> vector<32x64xf32>
    %c5_39 = arith.constant 5 : index
    %c0_40 = arith.constant 0 : index
    %c0_41 = arith.constant 0 : index
    %38 = vector.load %arg2[%c5_39, %c0_40, %c0_41] : memref<7x64x128xf32, #tpu.memory_space<vmem>>, vector<1x64x128xf32>
    %39 = vector.shape_cast %38 : vector<1x64x128xf32> to vector<64x128xf32>
    %cst_42 = arith.constant dense<0.000000e+00> : vector<32x128xf32>
    %40 = tpu.matmul %37, %39, %cst_42 {dimension_numbers = #tpu.dot_dimension_numbers<[1], [0], [0], [1], [0, 0, 1, 1], [], []>} : vector<32x64xf32>, vector<64x128xf32>, vector<32x128xf32> -> vector<32x128xf32>
    %41 = arith.addf %34, %40 : vector<32x128xf32>
    %c6 = arith.constant 6 : index
    %c0_43 = arith.constant 0 : index
    %c0_44 = arith.constant 0 : index
    %42 = vector.load %arg1[%c6, %c0_43, %c0_44] : memref<7x32x32xf32, #tpu.memory_space<vmem>>, vector<1x32x32xf32>
    %43 = vector.shape_cast %42 : vector<1x32x32xf32> to vector<32x32xf32>
    %cst_45 = arith.constant dense<0.000000e+00> : vector<32x64xf32>
    %44 = tpu.matmul %43, %0, %cst_45 {dimension_numbers = #tpu.dot_dimension_numbers<[1], [0], [0], [1], [0, 0, 1, 1], [], []>} : vector<32x32xf32>, vector<32x64xf32>, vector<32x64xf32> -> vector<32x64xf32>
    %c6_46 = arith.constant 6 : index
    %c0_47 = arith.constant 0 : index
    %c0_48 = arith.constant 0 : index
    %45 = vector.load %arg2[%c6_46, %c0_47, %c0_48] : memref<7x64x128xf32, #tpu.memory_space<vmem>>, vector<1x64x128xf32>
    %46 = vector.shape_cast %45 : vector<1x64x128xf32> to vector<64x128xf32>
    %cst_49 = arith.constant dense<0.000000e+00> : vector<32x128xf32>
    %47 = tpu.matmul %44, %46, %cst_49 {dimension_numbers = #tpu.dot_dimension_numbers<[1], [0], [0], [1], [0, 0, 1, 1], [], []>} : vector<32x64xf32>, vector<64x128xf32>, vector<32x128xf32> -> vector<32x128xf32>
    %48 = arith.addf %41, %47 : vector<32x128xf32>
    %c0_50 = arith.constant 0 : index
    %c0_51 = arith.constant 0 : index
    %49 = vector.load %arg3[%c0_50, %c0_51] : memref<1x128xf32, #tpu.memory_space<vmem>>, vector<1x128xf32>
    %50 = vector.broadcast %49 : vector<1x128xf32> to vector<32x128xf32>
    %51 = arith.addf %48, %50 : vector<32x128xf32>
    %c0_52 = arith.constant 0 : index
    %c0_53 = arith.constant 0 : index
    %c0_54 = arith.constant 0 : index
    %52 = vector.load %arg4[%c0_52, %c0_53, %c0_54] : memref<3x32x32xf32, #tpu.memory_space<vmem>>, vector<1x32x32xf32>
    %53 = vector.shape_cast %52 : vector<1x32x32xf32> to vector<32x32xf32>
    %cst_55 = arith.constant dense<0.000000e+00> : vector<32x128xf32>
    %54 = tpu.matmul %53, %51, %cst_55 {dimension_numbers = #tpu.dot_dimension_numbers<[1], [0], [0], [1], [0, 0, 1, 1], [], []>} : vector<32x32xf32>, vector<32x128xf32>, vector<32x128xf32> -> vector<32x128xf32>
    %c0_56 = arith.constant 0 : index
    %c0_57 = arith.constant 0 : index
    %c0_58 = arith.constant 0 : index
    %55 = vector.load %arg5[%c0_56, %c0_57, %c0_58] : memref<3x128x128xf32, #tpu.memory_space<vmem>>, vector<1x128x128xf32>
    %56 = vector.shape_cast %55 : vector<1x128x128xf32> to vector<128x128xf32>
    %cst_59 = arith.constant dense<0.000000e+00> : vector<32x128xf32>
    %57 = tpu.matmul %54, %56, %cst_59 {dimension_numbers = #tpu.dot_dimension_numbers<[1], [0], [0], [1], [0, 0, 1, 1], [], []>} : vector<32x128xf32>, vector<128x128xf32>, vector<32x128xf32> -> vector<32x128xf32>
    %c1_60 = arith.constant 1 : index
    %c0_61 = arith.constant 0 : index
    %c0_62 = arith.constant 0 : index
    %58 = vector.load %arg4[%c1_60, %c0_61, %c0_62] : memref<3x32x32xf32, #tpu.memory_space<vmem>>, vector<1x32x32xf32>
    %59 = vector.shape_cast %58 : vector<1x32x32xf32> to vector<32x32xf32>
    %cst_63 = arith.constant dense<0.000000e+00> : vector<32x128xf32>
    %60 = tpu.matmul %59, %51, %cst_63 {dimension_numbers = #tpu.dot_dimension_numbers<[1], [0], [0], [1], [0, 0, 1, 1], [], []>} : vector<32x32xf32>, vector<32x128xf32>, vector<32x128xf32> -> vector<32x128xf32>
    %c1_64 = arith.constant 1 : index
    %c0_65 = arith.constant 0 : index
    %c0_66 = arith.constant 0 : index
    %61 = vector.load %arg5[%c1_64, %c0_65, %c0_66] : memref<3x128x128xf32, #tpu.memory_space<vmem>>, vector<1x128x128xf32>
    %62 = vector.shape_cast %61 : vector<1x128x128xf32> to vector<128x128xf32>
    %cst_67 = arith.constant dense<0.000000e+00> : vector<32x128xf32>
    %63 = tpu.matmul %60, %62, %cst_67 {dimension_numbers = #tpu.dot_dimension_numbers<[1], [0], [0], [1], [0, 0, 1, 1], [], []>} : vector<32x128xf32>, vector<128x128xf32>, vector<32x128xf32> -> vector<32x128xf32>
    %64 = arith.addf %57, %63 : vector<32x128xf32>
    %c2_68 = arith.constant 2 : index
    %c0_69 = arith.constant 0 : index
    %c0_70 = arith.constant 0 : index
    %65 = vector.load %arg4[%c2_68, %c0_69, %c0_70] : memref<3x32x32xf32, #tpu.memory_space<vmem>>, vector<1x32x32xf32>
    %66 = vector.shape_cast %65 : vector<1x32x32xf32> to vector<32x32xf32>
    %cst_71 = arith.constant dense<0.000000e+00> : vector<32x128xf32>
    %67 = tpu.matmul %66, %51, %cst_71 {dimension_numbers = #tpu.dot_dimension_numbers<[1], [0], [0], [1], [0, 0, 1, 1], [], []>} : vector<32x32xf32>, vector<32x128xf32>, vector<32x128xf32> -> vector<32x128xf32>
    %c2_72 = arith.constant 2 : index
    %c0_73 = arith.constant 0 : index
    %c0_74 = arith.constant 0 : index
    %68 = vector.load %arg5[%c2_72, %c0_73, %c0_74] : memref<3x128x128xf32, #tpu.memory_space<vmem>>, vector<1x128x128xf32>
    %69 = vector.shape_cast %68 : vector<1x128x128xf32> to vector<128x128xf32>
    %cst_75 = arith.constant dense<0.000000e+00> : vector<32x128xf32>
    %70 = tpu.matmul %67, %69, %cst_75 {dimension_numbers = #tpu.dot_dimension_numbers<[1], [0], [0], [1], [0, 0, 1, 1], [], []>} : vector<32x128xf32>, vector<128x128xf32>, vector<32x128xf32> -> vector<32x128xf32>
    %71 = arith.addf %64, %70 : vector<32x128xf32>
    %c0_76 = arith.constant 0 : index
    %c0_77 = arith.constant 0 : index
    %72 = vector.load %arg6[%c0_76, %c0_77] : memref<1x128xf32, #tpu.memory_space<vmem>>, vector<1x128xf32>
    %73 = vector.broadcast %72 : vector<1x128xf32> to vector<32x128xf32>
    %74 = arith.addf %71, %73 : vector<32x128xf32>
    %c0_78 = arith.constant 0 : index
    %c0_79 = arith.constant 0 : index
    %c0_80 = arith.constant 0 : index
    %75 = vector.load %arg7[%c0_78, %c0_79, %c0_80] : memref<2x16x32xf32, #tpu.memory_space<vmem>>, vector<1x16x32xf32>
    %76 = vector.shape_cast %75 : vector<1x16x32xf32> to vector<16x32xf32>
    %cst_81 = arith.constant dense<0.000000e+00> : vector<16x128xf32>
    %77 = tpu.matmul %76, %74, %cst_81 {dimension_numbers = #tpu.dot_dimension_numbers<[1], [0], [0], [1], [0, 0, 1, 1], [], []>} : vector<16x32xf32>, vector<32x128xf32>, vector<16x128xf32> -> vector<16x128xf32>
    %c1_82 = arith.constant 1 : index
    %c0_83 = arith.constant 0 : index
    %c0_84 = arith.constant 0 : index
    %78 = vector.load %arg7[%c1_82, %c0_83, %c0_84] : memref<2x16x32xf32, #tpu.memory_space<vmem>>, vector<1x16x32xf32>
    %79 = vector.shape_cast %78 : vector<1x16x32xf32> to vector<16x32xf32>
    %cst_85 = arith.constant dense<0.000000e+00> : vector<16x128xf32>
    %80 = tpu.matmul %79, %74, %cst_85 {dimension_numbers = #tpu.dot_dimension_numbers<[1], [0], [0], [1], [0, 0, 1, 1], [], []>} : vector<16x32xf32>, vector<32x128xf32>, vector<16x128xf32> -> vector<16x128xf32>
    %81 = arith.maximumf %77, %80 : vector<16x128xf32>
    %c0_86 = arith.constant 0 : index
    %c0_87 = arith.constant 0 : index
    %c0_88 = arith.constant 0 : index
    %82 = vector.load %arg8[%c0_86, %c0_87, %c0_88] : memref<2x128x64xf32, #tpu.memory_space<vmem>>, vector<1x128x64xf32>
    %83 = vector.shape_cast %82 : vector<1x128x64xf32> to vector<128x64xf32>
    %cst_89 = arith.constant dense<0.000000e+00> : vector<16x64xf32>
    %84 = tpu.matmul %81, %83, %cst_89 {dimension_numbers = #tpu.dot_dimension_numbers<[1], [0], [0], [1], [0, 0, 1, 1], [], []>} : vector<16x128xf32>, vector<128x64xf32>, vector<16x64xf32> -> vector<16x64xf32>
    %c1_90 = arith.constant 1 : index
    %c0_91 = arith.constant 0 : index
    %c0_92 = arith.constant 0 : index
    %85 = vector.load %arg8[%c1_90, %c0_91, %c0_92] : memref<2x128x64xf32, #tpu.memory_space<vmem>>, vector<1x128x64xf32>
    %86 = vector.shape_cast %85 : vector<1x128x64xf32> to vector<128x64xf32>
    %cst_93 = arith.constant dense<0.000000e+00> : vector<16x64xf32>
    %87 = tpu.matmul %81, %86, %cst_93 {dimension_numbers = #tpu.dot_dimension_numbers<[1], [0], [0], [1], [0, 0, 1, 1], [], []>} : vector<16x128xf32>, vector<128x64xf32>, vector<16x64xf32> -> vector<16x64xf32>
    %88 = arith.maximumf %84, %87 : vector<16x64xf32>
    %c0_94 = arith.constant 0 : index
    %c0_95 = arith.constant 0 : index
    %89 = vector.load %arg9[%c0_94, %c0_95] : memref<64x64xf32, #tpu.memory_space<vmem>>, vector<64x64xf32>
    %cst_96 = arith.constant dense<0.000000e+00> : vector<16x64xf32>
    %90 = tpu.matmul %88, %89, %cst_96 {dimension_numbers = #tpu.dot_dimension_numbers<[1], [0], [0], [1], [0, 0, 1, 1], [], []>} : vector<16x64xf32>, vector<64x64xf32>, vector<16x64xf32> -> vector<16x64xf32>
    %c0_97 = arith.constant 0 : index
    %c0_98 = arith.constant 0 : index
    %91 = vector.load %arg10[%c0_97, %c0_98] : memref<1x64xf32, #tpu.memory_space<vmem>>, vector<1x64xf32>
    %92 = vector.broadcast %91 : vector<1x64xf32> to vector<16x64xf32>
    %93 = arith.addf %90, %92 : vector<16x64xf32>
    %c0_99 = arith.constant 0 : index
    %c0_100 = arith.constant 0 : index
    %c0_101 = arith.constant 0 : index
    %94 = vector.load %arg11[%c0_99, %c0_100, %c0_101] : memref<3x16x16xf32, #tpu.memory_space<vmem>>, vector<1x16x16xf32>
    %95 = vector.shape_cast %94 : vector<1x16x16xf32> to vector<16x16xf32>
    %cst_102 = arith.constant dense<0.000000e+00> : vector<16x64xf32>
    %96 = tpu.matmul %95, %93, %cst_102 {dimension_numbers = #tpu.dot_dimension_numbers<[1], [0], [0], [1], [0, 0, 1, 1], [], []>} : vector<16x16xf32>, vector<16x64xf32>, vector<16x64xf32> -> vector<16x64xf32>
    %c0_103 = arith.constant 0 : index
    %c0_104 = arith.constant 0 : index
    %c0_105 = arith.constant 0 : index
    %97 = vector.load %arg12[%c0_103, %c0_104, %c0_105] : memref<3x64x64xf32, #tpu.memory_space<vmem>>, vector<1x64x64xf32>
    %98 = vector.shape_cast %97 : vector<1x64x64xf32> to vector<64x64xf32>
    %cst_106 = arith.constant dense<0.000000e+00> : vector<16x64xf32>
    %99 = tpu.matmul %96, %98, %cst_106 {dimension_numbers = #tpu.dot_dimension_numbers<[1], [0], [0], [1], [0, 0, 1, 1], [], []>} : vector<16x64xf32>, vector<64x64xf32>, vector<16x64xf32> -> vector<16x64xf32>
    %c1_107 = arith.constant 1 : index
    %c0_108 = arith.constant 0 : index
    %c0_109 = arith.constant 0 : index
    %100 = vector.load %arg11[%c1_107, %c0_108, %c0_109] : memref<3x16x16xf32, #tpu.memory_space<vmem>>, vector<1x16x16xf32>
    %101 = vector.shape_cast %100 : vector<1x16x16xf32> to vector<16x16xf32>
    %cst_110 = arith.constant dense<0.000000e+00> : vector<16x64xf32>
    %102 = tpu.matmul %101, %93, %cst_110 {dimension_numbers = #tpu.dot_dimension_numbers<[1], [0], [0], [1], [0, 0, 1, 1], [], []>} : vector<16x16xf32>, vector<16x64xf32>, vector<16x64xf32> -> vector<16x64xf32>
    %c1_111 = arith.constant 1 : index
    %c0_112 = arith.constant 0 : index
    %c0_113 = arith.constant 0 : index
    %103 = vector.load %arg12[%c1_111, %c0_112, %c0_113] : memref<3x64x64xf32, #tpu.memory_space<vmem>>, vector<1x64x64xf32>
    %104 = vector.shape_cast %103 : vector<1x64x64xf32> to vector<64x64xf32>
    %cst_114 = arith.constant dense<0.000000e+00> : vector<16x64xf32>
    %105 = tpu.matmul %102, %104, %cst_114 {dimension_numbers = #tpu.dot_dimension_numbers<[1], [0], [0], [1], [0, 0, 1, 1], [], []>} : vector<16x64xf32>, vector<64x64xf32>, vector<16x64xf32> -> vector<16x64xf32>
    %106 = arith.addf %99, %105 : vector<16x64xf32>
    %c2_115 = arith.constant 2 : index
    %c0_116 = arith.constant 0 : index
    %c0_117 = arith.constant 0 : index
    %107 = vector.load %arg11[%c2_115, %c0_116, %c0_117] : memref<3x16x16xf32, #tpu.memory_space<vmem>>, vector<1x16x16xf32>
    %108 = vector.shape_cast %107 : vector<1x16x16xf32> to vector<16x16xf32>
    %cst_118 = arith.constant dense<0.000000e+00> : vector<16x64xf32>
    %109 = tpu.matmul %108, %93, %cst_118 {dimension_numbers = #tpu.dot_dimension_numbers<[1], [0], [0], [1], [0, 0, 1, 1], [], []>} : vector<16x16xf32>, vector<16x64xf32>, vector<16x64xf32> -> vector<16x64xf32>
    %c2_119 = arith.constant 2 : index
    %c0_120 = arith.constant 0 : index
    %c0_121 = arith.constant 0 : index
    %110 = vector.load %arg12[%c2_119, %c0_120, %c0_121] : memref<3x64x64xf32, #tpu.memory_space<vmem>>, vector<1x64x64xf32>
    %111 = vector.shape_cast %110 : vector<1x64x64xf32> to vector<64x64xf32>
    %cst_122 = arith.constant dense<0.000000e+00> : vector<16x64xf32>
    %112 = tpu.matmul %109, %111, %cst_122 {dimension_numbers = #tpu.dot_dimension_numbers<[1], [0], [0], [1], [0, 0, 1, 1], [], []>} : vector<16x64xf32>, vector<64x64xf32>, vector<16x64xf32> -> vector<16x64xf32>
    %113 = arith.addf %106, %112 : vector<16x64xf32>
    %c0_123 = arith.constant 0 : index
    %c0_124 = arith.constant 0 : index
    %114 = vector.load %arg13[%c0_123, %c0_124] : memref<1x64xf32, #tpu.memory_space<vmem>>, vector<1x64xf32>
    %115 = vector.broadcast %114 : vector<1x64xf32> to vector<16x64xf32>
    %116 = arith.addf %113, %115 : vector<16x64xf32>
    %c0_125 = arith.constant 0 : index
    %c0_126 = arith.constant 0 : index
    %117 = vector.load %arg14[%c0_125, %c0_126] : memref<64x64xf32, #tpu.memory_space<vmem>>, vector<64x64xf32>
    %cst_127 = arith.constant dense<0.000000e+00> : vector<16x64xf32>
    %118 = tpu.matmul %116, %117, %cst_127 {dimension_numbers = #tpu.dot_dimension_numbers<[1], [0], [0], [1], [0, 0, 1, 1], [], []>} : vector<16x64xf32>, vector<64x64xf32>, vector<16x64xf32> -> vector<16x64xf32>
    %c0_128 = arith.constant 0 : index
    %c0_129 = arith.constant 0 : index
    %119 = vector.load %arg15[%c0_128, %c0_129] : memref<1x64xf32, #tpu.memory_space<vmem>>, vector<1x64xf32>
    %120 = vector.broadcast %119 : vector<1x64xf32> to vector<16x64xf32>
    %121 = arith.addf %118, %120 : vector<16x64xf32>
    %122 = arith.addf %121, %88 : vector<16x64xf32>
    %c0_130 = arith.constant 0 : index
    %c0_131 = arith.constant 0 : index
    %123 = vector.load %arg16[%c0_130, %c0_131] : memref<64x64xf32, #tpu.memory_space<vmem>>, vector<64x64xf32>
    %cst_132 = arith.constant dense<0.000000e+00> : vector<16x64xf32>
    %124 = tpu.matmul %122, %123, %cst_132 {dimension_numbers = #tpu.dot_dimension_numbers<[1], [0], [0], [1], [0, 0, 1, 1], [], []>} : vector<16x64xf32>, vector<64x64xf32>, vector<16x64xf32> -> vector<16x64xf32>
    %c0_133 = arith.constant 0 : index
    %c0_134 = arith.constant 0 : index
    %125 = vector.load %arg17[%c0_133, %c0_134] : memref<1x64xf32, #tpu.memory_space<vmem>>, vector<1x64xf32>
    %126 = vector.broadcast %125 : vector<1x64xf32> to vector<16x64xf32>
    %127 = arith.addf %124, %126 : vector<16x64xf32>
    %c0_135 = arith.constant 0 : index
    %c0_136 = arith.constant 0 : index
    %c0_137 = arith.constant 0 : index
    %128 = vector.load %arg18[%c0_135, %c0_136, %c0_137] : memref<3x16x16xf32, #tpu.memory_space<vmem>>, vector<1x16x16xf32>
    %129 = vector.shape_cast %128 : vector<1x16x16xf32> to vector<16x16xf32>
    %cst_138 = arith.constant dense<0.000000e+00> : vector<16x64xf32>
    %130 = tpu.matmul %129, %127, %cst_138 {dimension_numbers = #tpu.dot_dimension_numbers<[1], [0], [0], [1], [0, 0, 1, 1], [], []>} : vector<16x16xf32>, vector<16x64xf32>, vector<16x64xf32> -> vector<16x64xf32>
    %c0_139 = arith.constant 0 : index
    %c0_140 = arith.constant 0 : index
    %c0_141 = arith.constant 0 : index
    %131 = vector.load %arg19[%c0_139, %c0_140, %c0_141] : memref<3x64x64xf32, #tpu.memory_space<vmem>>, vector<1x64x64xf32>
    %132 = vector.shape_cast %131 : vector<1x64x64xf32> to vector<64x64xf32>
    %cst_142 = arith.constant dense<0.000000e+00> : vector<16x64xf32>
    %133 = tpu.matmul %130, %132, %cst_142 {dimension_numbers = #tpu.dot_dimension_numbers<[1], [0], [0], [1], [0, 0, 1, 1], [], []>} : vector<16x64xf32>, vector<64x64xf32>, vector<16x64xf32> -> vector<16x64xf32>
    %c1_143 = arith.constant 1 : index
    %c0_144 = arith.constant 0 : index
    %c0_145 = arith.constant 0 : index
    %134 = vector.load %arg18[%c1_143, %c0_144, %c0_145] : memref<3x16x16xf32, #tpu.memory_space<vmem>>, vector<1x16x16xf32>
    %135 = vector.shape_cast %134 : vector<1x16x16xf32> to vector<16x16xf32>
    %cst_146 = arith.constant dense<0.000000e+00> : vector<16x64xf32>
    %136 = tpu.matmul %135, %127, %cst_146 {dimension_numbers = #tpu.dot_dimension_numbers<[1], [0], [0], [1], [0, 0, 1, 1], [], []>} : vector<16x16xf32>, vector<16x64xf32>, vector<16x64xf32> -> vector<16x64xf32>
    %c1_147 = arith.constant 1 : index
    %c0_148 = arith.constant 0 : index
    %c0_149 = arith.constant 0 : index
    %137 = vector.load %arg19[%c1_147, %c0_148, %c0_149] : memref<3x64x64xf32, #tpu.memory_space<vmem>>, vector<1x64x64xf32>
    %138 = vector.shape_cast %137 : vector<1x64x64xf32> to vector<64x64xf32>
    %cst_150 = arith.constant dense<0.000000e+00> : vector<16x64xf32>
    %139 = tpu.matmul %136, %138, %cst_150 {dimension_numbers = #tpu.dot_dimension_numbers<[1], [0], [0], [1], [0, 0, 1, 1], [], []>} : vector<16x64xf32>, vector<64x64xf32>, vector<16x64xf32> -> vector<16x64xf32>
    %140 = arith.addf %133, %139 : vector<16x64xf32>
    %c2_151 = arith.constant 2 : index
    %c0_152 = arith.constant 0 : index
    %c0_153 = arith.constant 0 : index
    %141 = vector.load %arg18[%c2_151, %c0_152, %c0_153] : memref<3x16x16xf32, #tpu.memory_space<vmem>>, vector<1x16x16xf32>
    %142 = vector.shape_cast %141 : vector<1x16x16xf32> to vector<16x16xf32>
    %cst_154 = arith.constant dense<0.000000e+00> : vector<16x64xf32>
    %143 = tpu.matmul %142, %127, %cst_154 {dimension_numbers = #tpu.dot_dimension_numbers<[1], [0], [0], [1], [0, 0, 1, 1], [], []>} : vector<16x16xf32>, vector<16x64xf32>, vector<16x64xf32> -> vector<16x64xf32>
    %c2_155 = arith.constant 2 : index
    %c0_156 = arith.constant 0 : index
    %c0_157 = arith.constant 0 : index
    %144 = vector.load %arg19[%c2_155, %c0_156, %c0_157] : memref<3x64x64xf32, #tpu.memory_space<vmem>>, vector<1x64x64xf32>
    %145 = vector.shape_cast %144 : vector<1x64x64xf32> to vector<64x64xf32>
    %cst_158 = arith.constant dense<0.000000e+00> : vector<16x64xf32>
    %146 = tpu.matmul %143, %145, %cst_158 {dimension_numbers = #tpu.dot_dimension_numbers<[1], [0], [0], [1], [0, 0, 1, 1], [], []>} : vector<16x64xf32>, vector<64x64xf32>, vector<16x64xf32> -> vector<16x64xf32>
    %147 = arith.addf %140, %146 : vector<16x64xf32>
    %c0_159 = arith.constant 0 : index
    %c0_160 = arith.constant 0 : index
    %148 = vector.load %arg20[%c0_159, %c0_160] : memref<1x64xf32, #tpu.memory_space<vmem>>, vector<1x64xf32>
    %149 = vector.broadcast %148 : vector<1x64xf32> to vector<16x64xf32>
    %150 = arith.addf %147, %149 : vector<16x64xf32>
    %c0_161 = arith.constant 0 : index
    %c0_162 = arith.constant 0 : index
    %151 = vector.load %arg21[%c0_161, %c0_162] : memref<64x64xf32, #tpu.memory_space<vmem>>, vector<64x64xf32>
    %cst_163 = arith.constant dense<0.000000e+00> : vector<16x64xf32>
    %152 = tpu.matmul %150, %151, %cst_163 {dimension_numbers = #tpu.dot_dimension_numbers<[1], [0], [0], [1], [0, 0, 1, 1], [], []>} : vector<16x64xf32>, vector<64x64xf32>, vector<16x64xf32> -> vector<16x64xf32>
    %c0_164 = arith.constant 0 : index
    %c0_165 = arith.constant 0 : index
    %153 = vector.load %arg22[%c0_164, %c0_165] : memref<1x64xf32, #tpu.memory_space<vmem>>, vector<1x64xf32>
    %154 = vector.broadcast %153 : vector<1x64xf32> to vector<16x64xf32>
    %155 = arith.addf %152, %154 : vector<16x64xf32>
    %156 = arith.addf %155, %122 : vector<16x64xf32>
    %c0_166 = arith.constant 0 : index
    %c0_167 = arith.constant 0 : index
    %c0_168 = arith.constant 0 : index
    %157 = vector.load %arg23[%c0_166, %c0_167, %c0_168] : memref<2x8x16xf32, #tpu.memory_space<vmem>>, vector<1x8x16xf32>
    %158 = vector.shape_cast %157 : vector<1x8x16xf32> to vector<8x16xf32>
    %cst_169 = arith.constant dense<0.000000e+00> : vector<8x64xf32>
    %159 = tpu.matmul %158, %156, %cst_169 {dimension_numbers = #tpu.dot_dimension_numbers<[1], [0], [0], [1], [0, 0, 1, 1], [], []>} : vector<8x16xf32>, vector<16x64xf32>, vector<8x64xf32> -> vector<8x64xf32>
    %c1_170 = arith.constant 1 : index
    %c0_171 = arith.constant 0 : index
    %c0_172 = arith.constant 0 : index
    %160 = vector.load %arg23[%c1_170, %c0_171, %c0_172] : memref<2x8x16xf32, #tpu.memory_space<vmem>>, vector<1x8x16xf32>
    %161 = vector.shape_cast %160 : vector<1x8x16xf32> to vector<8x16xf32>
    %cst_173 = arith.constant dense<0.000000e+00> : vector<8x64xf32>
    %162 = tpu.matmul %161, %156, %cst_173 {dimension_numbers = #tpu.dot_dimension_numbers<[1], [0], [0], [1], [0, 0, 1, 1], [], []>} : vector<8x16xf32>, vector<16x64xf32>, vector<8x64xf32> -> vector<8x64xf32>
    %163 = arith.maximumf %159, %162 : vector<8x64xf32>
    %c0_174 = arith.constant 0 : index
    %c0_175 = arith.constant 0 : index
    %c0_176 = arith.constant 0 : index
    %164 = vector.load %arg24[%c0_174, %c0_175, %c0_176] : memref<2x64x32xf32, #tpu.memory_space<vmem>>, vector<1x64x32xf32>
    %165 = vector.shape_cast %164 : vector<1x64x32xf32> to vector<64x32xf32>
    %cst_177 = arith.constant dense<0.000000e+00> : vector<8x32xf32>
    %166 = tpu.matmul %163, %165, %cst_177 {dimension_numbers = #tpu.dot_dimension_numbers<[1], [0], [0], [1], [0, 0, 1, 1], [], []>} : vector<8x64xf32>, vector<64x32xf32>, vector<8x32xf32> -> vector<8x32xf32>
    %c1_178 = arith.constant 1 : index
    %c0_179 = arith.constant 0 : index
    %c0_180 = arith.constant 0 : index
    %167 = vector.load %arg24[%c1_178, %c0_179, %c0_180] : memref<2x64x32xf32, #tpu.memory_space<vmem>>, vector<1x64x32xf32>
    %168 = vector.shape_cast %167 : vector<1x64x32xf32> to vector<64x32xf32>
    %cst_181 = arith.constant dense<0.000000e+00> : vector<8x32xf32>
    %169 = tpu.matmul %163, %168, %cst_181 {dimension_numbers = #tpu.dot_dimension_numbers<[1], [0], [0], [1], [0, 0, 1, 1], [], []>} : vector<8x64xf32>, vector<64x32xf32>, vector<8x32xf32> -> vector<8x32xf32>
    %170 = arith.maximumf %166, %169 : vector<8x32xf32>
    %c0_182 = arith.constant 0 : index
    %c0_183 = arith.constant 0 : index
    %171 = vector.load %arg25[%c0_182, %c0_183] : memref<32x32xf32, #tpu.memory_space<vmem>>, vector<32x32xf32>
    %cst_184 = arith.constant dense<0.000000e+00> : vector<8x32xf32>
    %172 = tpu.matmul %170, %171, %cst_184 {dimension_numbers = #tpu.dot_dimension_numbers<[1], [0], [0], [1], [0, 0, 1, 1], [], []>} : vector<8x32xf32>, vector<32x32xf32>, vector<8x32xf32> -> vector<8x32xf32>
    %c0_185 = arith.constant 0 : index
    %c0_186 = arith.constant 0 : index
    %173 = vector.load %arg26[%c0_185, %c0_186] : memref<1x32xf32, #tpu.memory_space<vmem>>, vector<1x32xf32>
    %174 = vector.broadcast %173 : vector<1x32xf32> to vector<8x32xf32>
    %175 = arith.addf %172, %174 : vector<8x32xf32>
    %c0_187 = arith.constant 0 : index
    %c0_188 = arith.constant 0 : index
    %c0_189 = arith.constant 0 : index
    %176 = vector.load %arg27[%c0_187, %c0_188, %c0_189] : memref<3x8x8xf32, #tpu.memory_space<vmem>>, vector<1x8x8xf32>
    %177 = vector.shape_cast %176 : vector<1x8x8xf32> to vector<8x8xf32>
    %cst_190 = arith.constant dense<0.000000e+00> : vector<8x32xf32>
    %178 = tpu.matmul %177, %175, %cst_190 {dimension_numbers = #tpu.dot_dimension_numbers<[1], [0], [0], [1], [0, 0, 1, 1], [], []>} : vector<8x8xf32>, vector<8x32xf32>, vector<8x32xf32> -> vector<8x32xf32>
    %c0_191 = arith.constant 0 : index
    %c0_192 = arith.constant 0 : index
    %c0_193 = arith.constant 0 : index
    %179 = vector.load %arg28[%c0_191, %c0_192, %c0_193] : memref<3x32x32xf32, #tpu.memory_space<vmem>>, vector<1x32x32xf32>
    %180 = vector.shape_cast %179 : vector<1x32x32xf32> to vector<32x32xf32>
    %cst_194 = arith.constant dense<0.000000e+00> : vector<8x32xf32>
    %181 = tpu.matmul %178, %180, %cst_194 {dimension_numbers = #tpu.dot_dimension_numbers<[1], [0], [0], [1], [0, 0, 1, 1], [], []>} : vector<8x32xf32>, vector<32x32xf32>, vector<8x32xf32> -> vector<8x32xf32>
    %c1_195 = arith.constant 1 : index
    %c0_196 = arith.constant 0 : index
    %c0_197 = arith.constant 0 : index
    %182 = vector.load %arg27[%c1_195, %c0_196, %c0_197] : memref<3x8x8xf32, #tpu.memory_space<vmem>>, vector<1x8x8xf32>
    %183 = vector.shape_cast %182 : vector<1x8x8xf32> to vector<8x8xf32>
    %cst_198 = arith.constant dense<0.000000e+00> : vector<8x32xf32>
    %184 = tpu.matmul %183, %175, %cst_198 {dimension_numbers = #tpu.dot_dimension_numbers<[1], [0], [0], [1], [0, 0, 1, 1], [], []>} : vector<8x8xf32>, vector<8x32xf32>, vector<8x32xf32> -> vector<8x32xf32>
    %c1_199 = arith.constant 1 : index
    %c0_200 = arith.constant 0 : index
    %c0_201 = arith.constant 0 : index
    %185 = vector.load %arg28[%c1_199, %c0_200, %c0_201] : memref<3x32x32xf32, #tpu.memory_space<vmem>>, vector<1x32x32xf32>
    %186 = vector.shape_cast %185 : vector<1x32x32xf32> to vector<32x32xf32>
    %cst_202 = arith.constant dense<0.000000e+00> : vector<8x32xf32>
    %187 = tpu.matmul %184, %186, %cst_202 {dimension_numbers = #tpu.dot_dimension_numbers<[1], [0], [0], [1], [0, 0, 1, 1], [], []>} : vector<8x32xf32>, vector<32x32xf32>, vector<8x32xf32> -> vector<8x32xf32>
    %188 = arith.addf %181, %187 : vector<8x32xf32>
    %c2_203 = arith.constant 2 : index
    %c0_204 = arith.constant 0 : index
    %c0_205 = arith.constant 0 : index
    %189 = vector.load %arg27[%c2_203, %c0_204, %c0_205] : memref<3x8x8xf32, #tpu.memory_space<vmem>>, vector<1x8x8xf32>
    %190 = vector.shape_cast %189 : vector<1x8x8xf32> to vector<8x8xf32>
    %cst_206 = arith.constant dense<0.000000e+00> : vector<8x32xf32>
    %191 = tpu.matmul %190, %175, %cst_206 {dimension_numbers = #tpu.dot_dimension_numbers<[1], [0], [0], [1], [0, 0, 1, 1], [], []>} : vector<8x8xf32>, vector<8x32xf32>, vector<8x32xf32> -> vector<8x32xf32>
    %c2_207 = arith.constant 2 : index
    %c0_208 = arith.constant 0 : index
    %c0_209 = arith.constant 0 : index
    %192 = vector.load %arg28[%c2_207, %c0_208, %c0_209] : memref<3x32x32xf32, #tpu.memory_space<vmem>>, vector<1x32x32xf32>
    %193 = vector.shape_cast %192 : vector<1x32x32xf32> to vector<32x32xf32>
    %cst_210 = arith.constant dense<0.000000e+00> : vector<8x32xf32>
    %194 = tpu.matmul %191, %193, %cst_210 {dimension_numbers = #tpu.dot_dimension_numbers<[1], [0], [0], [1], [0, 0, 1, 1], [], []>} : vector<8x32xf32>, vector<32x32xf32>, vector<8x32xf32> -> vector<8x32xf32>
    %195 = arith.addf %188, %194 : vector<8x32xf32>
    %c0_211 = arith.constant 0 : index
    %c0_212 = arith.constant 0 : index
    %196 = vector.load %arg29[%c0_211, %c0_212] : memref<1x32xf32, #tpu.memory_space<vmem>>, vector<1x32xf32>
    %197 = vector.broadcast %196 : vector<1x32xf32> to vector<8x32xf32>
    %198 = arith.addf %195, %197 : vector<8x32xf32>
    %c0_213 = arith.constant 0 : index
    %c0_214 = arith.constant 0 : index
    %199 = vector.load %arg30[%c0_213, %c0_214] : memref<32x64xf32, #tpu.memory_space<vmem>>, vector<32x64xf32>
    %cst_215 = arith.constant dense<0.000000e+00> : vector<8x64xf32>
    %200 = tpu.matmul %198, %199, %cst_215 {dimension_numbers = #tpu.dot_dimension_numbers<[1], [0], [0], [1], [0, 0, 1, 1], [], []>} : vector<8x32xf32>, vector<32x64xf32>, vector<8x64xf32> -> vector<8x64xf32>
    %c0_216 = arith.constant 0 : index
    %c0_217 = arith.constant 0 : index
    %201 = vector.load %arg31[%c0_216, %c0_217] : memref<1x64xf32, #tpu.memory_space<vmem>>, vector<1x64xf32>
    %202 = vector.broadcast %201 : vector<1x64xf32> to vector<8x64xf32>
    %203 = arith.addf %200, %202 : vector<8x64xf32>
    %c0_218 = arith.constant 0 : index
    %c0_219 = arith.constant 0 : index
    %204 = vector.load %arg32[%c0_218, %c0_219] : memref<32x64xf32, #tpu.memory_space<vmem>>, vector<32x64xf32>
    %cst_220 = arith.constant dense<0.000000e+00> : vector<8x64xf32>
    %205 = tpu.matmul %170, %204, %cst_220 {dimension_numbers = #tpu.dot_dimension_numbers<[1], [0], [0], [1], [0, 0, 1, 1], [], []>} : vector<8x32xf32>, vector<32x64xf32>, vector<8x64xf32> -> vector<8x64xf32>
    %206 = arith.addf %203, %205 : vector<8x64xf32>
    %c0_221 = arith.constant 0 : index
    %c0_222 = arith.constant 0 : index
    %207 = vector.load %arg33[%c0_221, %c0_222] : memref<1x64xf32, #tpu.memory_space<vmem>>, vector<1x64xf32>
    %208 = vector.broadcast %207 : vector<1x64xf32> to vector<8x64xf32>
    %209 = arith.addf %206, %208 : vector<8x64xf32>
    %c0_223 = arith.constant 0 : index
    %c0_224 = arith.constant 0 : index
    %c0_225 = arith.constant 0 : index
    %210 = vector.load %arg34[%c0_223, %c0_224, %c0_225] : memref<2x4x8xf32, #tpu.memory_space<vmem>>, vector<1x4x8xf32>
    %211 = vector.shape_cast %210 : vector<1x4x8xf32> to vector<4x8xf32>
    %cst_226 = arith.constant dense<0.000000e+00> : vector<4x64xf32>
    %212 = tpu.matmul %211, %209, %cst_226 {dimension_numbers = #tpu.dot_dimension_numbers<[1], [0], [0], [1], [0, 0, 1, 1], [], []>} : vector<4x8xf32>, vector<8x64xf32>, vector<4x64xf32> -> vector<4x64xf32>
    %c1_227 = arith.constant 1 : index
    %c0_228 = arith.constant 0 : index
    %c0_229 = arith.constant 0 : index
    %213 = vector.load %arg34[%c1_227, %c0_228, %c0_229] : memref<2x4x8xf32, #tpu.memory_space<vmem>>, vector<1x4x8xf32>
    %214 = vector.shape_cast %213 : vector<1x4x8xf32> to vector<4x8xf32>
    %cst_230 = arith.constant dense<0.000000e+00> : vector<4x64xf32>
    %215 = tpu.matmul %214, %209, %cst_230 {dimension_numbers = #tpu.dot_dimension_numbers<[1], [0], [0], [1], [0, 0, 1, 1], [], []>} : vector<4x8xf32>, vector<8x64xf32>, vector<4x64xf32> -> vector<4x64xf32>
    %216 = arith.maximumf %212, %215 : vector<4x64xf32>
    %c0_231 = arith.constant 0 : index
    %c0_232 = arith.constant 0 : index
    %c0_233 = arith.constant 0 : index
    %217 = vector.load %arg35[%c0_231, %c0_232, %c0_233] : memref<2x64x32xf32, #tpu.memory_space<vmem>>, vector<1x64x32xf32>
    %218 = vector.shape_cast %217 : vector<1x64x32xf32> to vector<64x32xf32>
    %cst_234 = arith.constant dense<0.000000e+00> : vector<4x32xf32>
    %219 = tpu.matmul %216, %218, %cst_234 {dimension_numbers = #tpu.dot_dimension_numbers<[1], [0], [0], [1], [0, 0, 1, 1], [], []>} : vector<4x64xf32>, vector<64x32xf32>, vector<4x32xf32> -> vector<4x32xf32>
    %c1_235 = arith.constant 1 : index
    %c0_236 = arith.constant 0 : index
    %c0_237 = arith.constant 0 : index
    %220 = vector.load %arg35[%c1_235, %c0_236, %c0_237] : memref<2x64x32xf32, #tpu.memory_space<vmem>>, vector<1x64x32xf32>
    %221 = vector.shape_cast %220 : vector<1x64x32xf32> to vector<64x32xf32>
    %cst_238 = arith.constant dense<0.000000e+00> : vector<4x32xf32>
    %222 = tpu.matmul %216, %221, %cst_238 {dimension_numbers = #tpu.dot_dimension_numbers<[1], [0], [0], [1], [0, 0, 1, 1], [], []>} : vector<4x64xf32>, vector<64x32xf32>, vector<4x32xf32> -> vector<4x32xf32>
    %223 = arith.maximumf %219, %222 : vector<4x32xf32>
    %c0_239 = arith.constant 0 : index
    %c0_240 = arith.constant 0 : index
    %224 = vector.load %arg36[%c0_239, %c0_240] : memref<4x32xf32, #tpu.memory_space<vmem>>, vector<4x32xf32>
    tpu.vector_store %arg36[%c0_239, %c0_240], %223 {strides = array<i32>} : memref<4x32xf32, #tpu.memory_space<vmem>>, vector<4x32xf32>,
    return
  }
}

</mosaic_0001>

<llo_original>
// kernel: backbone_forward.1
$region0: #{backbone_forward.1}
  #allocation0 [shape = 'u32[]', space=smem, size = 0x4, offset = 0x4, fixed_abs, tag = 'smem constant byte address 0x4 - core index']
  #allocation1 [shape = 'u32[144,128]{1,0:T(1,128)}', space=vmem, size = 0x12000, scoped, tag = 'internal scratch']
  %s0 = inlined_call_operand.smem [shape: u32[37], index: -1, kind: input, shape index: {}]
  %s1 = sld [smem:[%s0]]
  %s2 = scalar_lea.smem %s0, 1
  %s3 = sld [smem:[%s2]]
  %s4 = scalar_lea.smem %s0, 2
  %s5 = sld [smem:[%s4]]
  %s6 = scalar_lea.smem %s0, 3
  %s7 = sld [smem:[%s6]]
  %s8 = scalar_lea.smem %s0, 4
  %s9 = sld [smem:[%s8]]
  %s10 = scalar_lea.smem %s0, 5
  %s11 = sld [smem:[%s10]]
  %s12 = scalar_lea.smem %s0, 6
  %s13 = sld [smem:[%s12]]
  %s14 = scalar_lea.smem %s0, 7
  %s15 = sld [smem:[%s14]]
  %s16 = scalar_lea.smem %s0, 8
  %s17 = sld [smem:[%s16]]
  %s18 = scalar_lea.smem %s0, 9
  %s19 = sld [smem:[%s18]]
  %s20 = scalar_lea.smem %s0, 10
  %s21 = sld [smem:[%s20]]
  %s22 = scalar_lea.smem %s0, 11
  %s23 = sld [smem:[%s22]]
  %s24 = scalar_lea.smem %s0, 12
  %s25 = sld [smem:[%s24]]
  %s26 = scalar_lea.smem %s0, 13
  %s27 = sld [smem:[%s26]]
  %s28 = scalar_lea.smem %s0, 14
  %s29 = sld [smem:[%s28]]
  %s30 = scalar_lea.smem %s0, 15
  %s31 = sld [smem:[%s30]]
  %s32 = scalar_lea.smem %s0, 16
  %s33 = sld [smem:[%s32]]
  %s34 = scalar_lea.smem %s0, 17
  %s35 = sld [smem:[%s34]]
  %s36 = scalar_lea.smem %s0, 18
  %s37 = sld [smem:[%s36]]
  %s38 = scalar_lea.smem %s0, 19
  %s39 = sld [smem:[%s38]]
  %s40 = scalar_lea.smem %s0, 20
  %s41 = sld [smem:[%s40]]
  %s42 = scalar_lea.smem %s0, 21
  %s43 = sld [smem:[%s42]]
  %s44 = scalar_lea.smem %s0, 22
  %s45 = sld [smem:[%s44]]
  %s46 = scalar_lea.smem %s0, 23
  %s47 = sld [smem:[%s46]]
  %s48 = scalar_lea.smem %s0, 24
  %s49 = sld [smem:[%s48]]
  %s50 = scalar_lea.smem %s0, 25
  %s51 = sld [smem:[%s50]]
  %s52 = scalar_lea.smem %s0, 26
  %s53 = sld [smem:[%s52]]
  %s54 = scalar_lea.smem %s0, 27
  %s55 = sld [smem:[%s54]]
  %s56 = scalar_lea.smem %s0, 28
  %s57 = sld [smem:[%s56]]
  %s58 = scalar_lea.smem %s0, 29
  %s59 = sld [smem:[%s58]]
  %s60 = scalar_lea.smem %s0, 30
  %s61 = sld [smem:[%s60]]
  %s62 = scalar_lea.smem %s0, 31
  %s63 = sld [smem:[%s62]]
  %s64 = scalar_lea.smem %s0, 32
  %s65 = sld [smem:[%s64]]
  %s66 = scalar_lea.smem %s0, 33
  %s67 = sld [smem:[%s66]]
  %s68 = scalar_lea.smem %s0, 34
  %s69 = sld [smem:[%s68]]
  %s70 = scalar_lea.smem %s0, 35
  %s71 = sld [smem:[%s70]]
  %s72 = scalar_lea.smem %s0, 36
  %s73 = sld [smem:[%s72]]
  %s74 = sld [smem:[#allocation0]]
  $region246: #{backbone_forward.1} parent=0
    _
  %s76 = ssub.s32 1, %s74
  %s77 = scalar_select 0, %s76, %s74
  $region1: #{backbone_forward.1} parent=0
    #allocation2 [shape = 'u8[49152]{0}', space=vmem, size = 0xc000, scoped, tag = 'input window, operand 4, single buffered']
    #allocation3 [shape = 's32[1]{0}', space=sflag, size = 0x4, scoped, tag = 'scoped memory for backbone_forward.1']
    #allocation4 [shape = 'u8[512]{0}', space=vmem, size = 0x400, scoped, tag = 'input window, operand 6, single buffered']
    #allocation5 [shape = 's32[1]{0}', space=sflag, size = 0x4, scoped, tag = 'scoped memory for backbone_forward.1']
    #allocation6 [shape = 'u8[16384]{0}', space=vmem, size = 0x4000, scoped, tag = 'input window, operand 7, single buffered']
    #allocation7 [shape = 'u8[32768]{0}', space=vmem, size = 0x8000, scoped, tag = 'input window, operand 9, single buffered']
    #allocation8 [shape = 's32[1]{0}', space=sflag, size = 0x4, scoped, tag = 'scoped memory for backbone_forward.1']
    #allocation9 [shape = 'u8[512]{0}', space=vmem, size = 0x400, scoped, tag = 'input window, operand 10, single buffered']
    #allocation10 [shape = 'u8[24576]{0}', space=vmem, size = 0x6000, scoped, tag = 'input window, operand 11, single buffered']
    #allocation11 [shape = 's32[1]{0}', space=sflag, size = 0x4, scoped, tag = 'scoped memory for backbone_forward.1']
    #allocation12 [shape = 'u8[512]{0}', space=vmem, size = 0x400, scoped, tag = 'input window, operand 13, single buffered']
    #allocation13 [shape = 'u8[32768]{0}', space=vmem, size = 0x8000, scoped, tag = 'input window, operand 14, single buffered']
    #allocation14 [shape = 's32[1]{0}', space=sflag, size = 0x4, scoped, tag = 'scoped memory for backbone_forward.1']
    #allocation15 [shape = 'u8[512]{0}', space=vmem, size = 0x400, scoped, tag = 'input window, operand 15, single buffered']
    #allocation16 [shape = 'u8[32768]{0}', space=vmem, size = 0x8000, scoped, tag = 'input window, operand 16, single buffered']
    #allocation17 [shape = 's32[1]{0}', space=sflag, size = 0x4, scoped, tag = 'scoped memory for backbone_forward.1']
    #allocation18 [shape = 'u8[512]{0}', space=vmem, size = 0x400, scoped, tag = 'input window, operand 17, single buffered']
    #allocation19 [shape = 'u8[24576]{0}', space=vmem, size = 0x6000, scoped, tag = 'input window, operand 18, single buffered']
    #allocation20 [shape = 's32[1]{0}', space=sflag, size = 0x4, scoped, tag = 'scoped memory for backbone_forward.1']
    #allocation21 [shape = 'u8[98304]{0}', space=vmem, size = 0x18000, scoped, tag = 'input window, operand 19, single buffered']
    #allocation22 [shape = 'u8[512]{0}', space=vmem, size = 0x400, scoped, tag = 'input window, operand 20, single buffered']
    #allocation23 [shape = 's32[1]{0}', space=sflag, size = 0x4, scoped, tag = 'scoped memory for backbone_forward.1']
    #allocation24 [shape = 'u8[32768]{0}', space=vmem, size = 0x8000, scoped, tag = 'input window, operand 21, single buffered']
    #allocation25 [shape = 'u8[512]{0}', space=vmem, size = 0x400, scoped, tag = 'input window, operand 22, single buffered']
    #allocation26 [shape = 's32[1]{0}', space=sflag, size = 0x4, scoped, tag = 'scoped memory for backbone_forward.1']
    #allocation27 [shape = 'u8[8192]{0}', space=vmem, size = 0x2000, scoped, tag = 'input window, operand 23, single buffered']
    #allocation28 [shape = 'u8[16384]{0}', space=vmem, size = 0x4000, scoped, tag = 'input window, operand 25, single buffered']
    #allocation29 [shape = 's32[1]{0}', space=sflag, size = 0x4, scoped, tag = 'scoped memory for backbone_forward.1']
    #allocation30 [shape = 'u8[512]{0}', space=vmem, size = 0x400, scoped, tag = 'input window, operand 26, single buffered']
    #allocation31 [shape = 'u8[12288]{0}', space=vmem, size = 0x3000, scoped, tag = 'input window, operand 27, single buffered']
    #allocation32 [shape = 's32[1]{0}', space=sflag, size = 0x4, scoped, tag = 'scoped memory for backbone_forward.1']
    #allocation33 [shape = 'u8[512]{0}', space=vmem, size = 0x400, scoped, tag = 'input window, operand 29, single buffered']
    #allocation34 [shape = 'u8[16384]{0}', space=vmem, size = 0x4000, scoped, tag = 'input window, operand 30, single buffered']
    #allocation35 [shape = 's32[1]{0}', space=sflag, size = 0x4, scoped, tag = 'scoped memory for backbone_forward.1']
    #allocation36 [shape = 'u8[16384]{0}', space=vmem, size = 0x4000, scoped, tag = 'input window, operand 32, single buffered']
    %78 = vsyncpa [#allocation3], 0
    %79 = vsyncpa [#allocation5], 0
    %80 = vsyncpa [#allocation8], 0
    %81 = vsyncpa [#allocation11], 0
    %82 = vsyncpa [#allocation14], 0
    %83 = vsyncpa [#allocation17], 0
    %84 = vsyncpa [#allocation20], 0
    %85 = vsyncpa [#allocation23], 0
    %86 = vsyncpa [#allocation26], 0
    %87 = vsyncpa [#allocation29], 0
    %88 = vsyncpa [#allocation32], 0
    %89 = vsyncpa [#allocation35], 0
    // Predicated region
    $region2: #{backbone_forward.1} parent=1 // pred_check
      _
    $region3: #{backbone_forward.1} parent=1 // pred_check_branch
      %91 = sbr.rel (0) target = $region5
    $region4: #{backbone_forward.1} parent=1 // pred_region
      _
    $region5: #{backbone_forward.1} parent=1 // pred_fallthru
      _
    // Predicated region
    $region6: #{backbone_forward.1} parent=1 // pred_check
      _
    $region7: #{backbone_forward.1} parent=1 // pred_check_branch
      %93 = sbr.rel (0) target = $region9
    $region8: #{backbone_forward.1} parent=1 // pred_region
      _
    $region9: #{backbone_forward.1} parent=1 // pred_fallthru
      _
    // Predicated region
    $region10: #{backbone_forward.1} parent=1 // pred_check
      _
    $region11: #{backbone_forward.1} parent=1 // pred_check_branch
      %95 = sbr.rel (0) target = $region13
    $region12: #{backbone_forward.1} parent=1 // pred_region
      _
    $region13: #{backbone_forward.1} parent=1 // pred_fallthru
      _
    // Predicated region
    $region14: #{backbone_forward.1} parent=1 // pred_check
      _
    $region15: #{backbone_forward.1} parent=1 // pred_check_branch
      %97 = sbr.rel (0) target = $region17
    $region16: #{backbone_forward.1} parent=1 // pred_region
      _
    $region17: #{backbone_forward.1} parent=1 // pred_fallthru
      _
    // Predicated region
    $region18: #{backbone_forward.1} parent=1 // pred_check
      _
    $region19: #{backbone_forward.1} parent=1 // pred_check_branch
      %99 = sbr.rel (0) target = $region21
    $region20: #{backbone_forward.1} parent=1 // pred_region
      %s101 = ssub.s32 1536, 1536
      %102 = vsyncadd [#allocation3], %s101
      %s103 = sshll.u32 [#allocation2], 4
      %s104 = int_to_ptr.vmem [resolvable:$true] %s103
      %109 = dma.hbm_to_vmem [thread:$0]  %s9, 1536, %s104, [#allocation3], 128, 128, 8
    $region21: #{backbone_forward.1} parent=1 // pred_fallthru
      _
    // Predicated region
    $region22: #{backbone_forward.1} parent=1 // pred_check
      _
    $region23: #{backbone_forward.1} parent=1 // pred_check_branch
      %111 = sbr.rel (0) target = $region25
    $region24: #{backbone_forward.1} parent=1 // pred_region
      _
    $region25: #{backbone_forward.1} parent=1 // pred_fallthru
      _
    // Predicated region
    $region26: #{backbone_forward.1} parent=1 // pred_check
      _
    $region27: #{backbone_forward.1} parent=1 // pred_check_branch
      %113 = sbr.rel (0) target = $region29
    $region28: #{backbone_forward.1} parent=1 // pred_region
      %s115 = ssub.s32 16, 16
      %116 = vsyncadd [#allocation5], %s115
      %s118 = sshll.u32 [#allocation4], 4
      %s119 = int_to_ptr.vmem [resolvable:$true] %s118
      %121 = dma.hbm_to_vmem [thread:$0]  %s13, 16, %s119, [#allocation5]
    $region29: #{backbone_forward.1} parent=1 // pred_fallthru
      _
    // Predicated region
    $region30: #{backbone_forward.1} parent=1 // pred_check
      _
    $region31: #{backbone_forward.1} parent=1 // pred_check_branch
      %123 = sbr.rel (0) target = $region33
    $region32: #{backbone_forward.1} parent=1 // pred_region
      %s125 = ssub.s32 512, 512
      %126 = vsyncadd [#allocation5], %s125
      %s127 = sshll.u32 [#allocation6], 4
      %s128 = int_to_ptr.vmem [resolvable:$true] %s127
      %133 = dma.hbm_to_vmem [thread:$0]  %s15, 512, %s128, [#allocation5], 128, 128, 8
    $region33: #{backbone_forward.1} parent=1 // pred_fallthru
      _
    // Predicated region
    $region34: #{backbone_forward.1} parent=1 // pred_check
      _
    $region35: #{backbone_forward.1} parent=1 // pred_check_branch
      %135 = sbr.rel (0) target = $region37
    $region36: #{backbone_forward.1} parent=1 // pred_region
      _
    $region37: #{backbone_forward.1} parent=1 // pred_fallthru
      _
    // Predicated region
    $region38: #{backbone_forward.1} parent=1 // pred_check
      _
    $region39: #{backbone_forward.1} parent=1 // pred_check_branch
      %137 = sbr.rel (0) target = $region41
    $region40: #{backbone_forward.1} parent=1 // pred_region
      %s139 = ssub.s32 1024, 1024
      %140 = vsyncadd [#allocation8], %s139
      %s141 = sshll.u32 [#allocation7], 4
      %s142 = int_to_ptr.vmem [resolvable:$true] %s141
      %147 = dma.hbm_to_vmem [thread:$0]  %s19, 1024, %s142, [#allocation8], 128, 128, 8
    $region41: #{backbone_forward.1} parent=1 // pred_fallthru
      _
    // Predicated region
    $region42: #{backbone_forward.1} parent=1 // pred_check
      _
    $region43: #{backbone_forward.1} parent=1 // pred_check_branch
      %149 = sbr.rel (0) target = $region45
    $region44: #{backbone_forward.1} parent=1 // pred_region
      %s151 = ssub.s32 16, 16
      %152 = vsyncadd [#allocation8], %s151
      %s154 = sshll.u32 [#allocation9], 4
      %s155 = int_to_ptr.vmem [resolvable:$true] %s154
      %157 = dma.hbm_to_vmem [thread:$0]  %s21, 16, %s155, [#allocation8]
    $region45: #{backbone_forward.1} parent=1 // pred_fallthru
      _
    // Predicated region
    $region46: #{backbone_forward.1} parent=1 // pred_check
      _
    $region47: #{backbone_forward.1} parent=1 // pred_check_branch
      %159 = sbr.rel (0) target = $region49
    $region48: #{backbone_forward.1} parent=1 // pred_region
      %s161 = ssub.s32 768, 768
      %162 = vsyncadd [#allocation11], %s161
      %s163 = sshll.u32 [#allocation10], 4
      %s164 = int_to_ptr.vmem [resolvable:$true] %s163
      %169 = dma.hbm_to_vmem [thread:$0]  %s23, 768, %s164, [#allocation11], 128, 128, 8
    $region49: #{backbone_forward.1} parent=1 // pred_fallthru
      _
    // Predicated region
    $region50: #{backbone_forward.1} parent=1 // pred_check
      _
    $region51: #{backbone_forward.1} parent=1 // pred_check_branch
      %171 = sbr.rel (0) target = $region53
    $region52: #{backbone_forward.1} parent=1 // pred_region
      _
    $region53: #{backbone_forward.1} parent=1 // pred_fallthru
      _
    // Predicated region
    $region54: #{backbone_forward.1} parent=1 // pred_check
      _
    $region55: #{backbone_forward.1} parent=1 // pred_check_branch
      %173 = sbr.rel (0) target = $region57
    $region56: #{backbone_forward.1} parent=1 // pred_region
      %s175 = ssub.s32 16, 16
      %176 = vsyncadd [#allocation11], %s175
      %s178 = sshll.u32 [#allocation12], 4
      %s179 = int_to_ptr.vmem [resolvable:$true] %s178
      %181 = dma.hbm_to_vmem [thread:$0]  %s27, 16, %s179, [#allocation11]
    $region57: #{backbone_forward.1} parent=1 // pred_fallthru
      _
    // Predicated region
    $region58: #{backbone_forward.1} parent=1 // pred_check
      _
    $region59: #{backbone_forward.1} parent=1 // pred_check_branch
      %183 = sbr.rel (0) target = $region61
    $region60: #{backbone_forward.1} parent=1 // pred_region
      %s185 = ssub.s32 1024, 1024
      %186 = vsyncadd [#allocation14], %s185
      %s187 = sshll.u32 [#allocation13], 4
      %s188 = int_to_ptr.vmem [resolvable:$true] %s187
      %193 = dma.hbm_to_vmem [thread:$0]  %s29, 1024, %s188, [#allocation14], 128, 128, 8
    $region61: #{backbone_forward.1} parent=1 // pred_fallthru
      _
    // Predicated region
    $region62: #{backbone_forward.1} parent=1 // pred_check
      _
    $region63: #{backbone_forward.1} parent=1 // pred_check_branch
      %195 = sbr.rel (0) target = $region65
    $region64: #{backbone_forward.1} parent=1 // pred_region
      %s197 = ssub.s32 16, 16
      %198 = vsyncadd [#allocation14], %s197
      %s200 = sshll.u32 [#allocation15], 4
      %s201 = int_to_ptr.vmem [resolvable:$true] %s200
      %203 = dma.hbm_to_vmem [thread:$0]  %s31, 16, %s201, [#allocation14]
    $region65: #{backbone_forward.1} parent=1 // pred_fallthru
      _
    // Predicated region
    $region66: #{backbone_forward.1} parent=1 // pred_check
      _
    $region67: #{backbone_forward.1} parent=1 // pred_check_branch
      %205 = sbr.rel (0) target = $region69
    $region68: #{backbone_forward.1} parent=1 // pred_region
      %s207 = ssub.s32 1024, 1024
      %208 = vsyncadd [#allocation17], %s207
      %s209 = sshll.u32 [#allocation16], 4
      %s210 = int_to_ptr.vmem [resolvable:$true] %s209
      %215 = dma.hbm_to_vmem [thread:$0]  %s33, 1024, %s210, [#allocation17], 128, 128, 8
    $region69: #{backbone_forward.1} parent=1 // pred_fallthru
      _
    // Predicated region
    $region70: #{backbone_forward.1} parent=1 // pred_check
      _
    $region71: #{backbone_forward.1} parent=1 // pred_check_branch
      %217 = sbr.rel (0) target = $region73
    $region72: #{backbone_forward.1} parent=1 // pred_region
      %s219 = ssub.s32 16, 16
      %220 = vsyncadd [#allocation17], %s219
      %s222 = sshll.u32 [#allocation18], 4
      %s223 = int_to_ptr.vmem [resolvable:$true] %s222
      %225 = dma.hbm_to_vmem [thread:$0]  %s35, 16, %s223, [#allocation17]
    $region73: #{backbone_forward.1} parent=1 // pred_fallthru
      _
    // Predicated region
    $region74: #{backbone_forward.1} parent=1 // pred_check
      _
    $region75: #{backbone_forward.1} parent=1 // pred_check_branch
      %227 = sbr.rel (0) target = $region77
    $region76: #{backbone_forward.1} parent=1 // pred_region
      %s229 = ssub.s32 768, 768
      %230 = vsyncadd [#allocation20], %s229
      %s231 = sshll.u32 [#allocation19], 4
      %s232 = int_to_ptr.vmem [resolvable:$true] %s231
      %237 = dma.hbm_to_vmem [thread:$0]  %s37, 768, %s232, [#allocation20], 128, 128, 8
    $region77: #{backbone_forward.1} parent=1 // pred_fallthru
      _
    // Predicated region
    $region78: #{backbone_forward.1} parent=1 // pred_check
      _
    $region79: #{backbone_forward.1} parent=1 // pred_check_branch
      %239 = sbr.rel (0) target = $region81
    $region80: #{backbone_forward.1} parent=1 // pred_region
      %s241 = ssub.s32 3072, 3072
      %242 = vsyncadd [#allocation20], %s241
      %s243 = sshll.u32 [#allocation21], 4
      %s244 = int_to_ptr.vmem [resolvable:$true] %s243
      %249 = dma.hbm_to_vmem [thread:$0]  %s39, 3072, %s244, [#allocation20], 128, 128, 8
    $region81: #{backbone_forward.1} parent=1 // pred_fallthru
      _
    // Predicated region
    $region82: #{backbone_forward.1} parent=1 // pred_check
      _
    $region83: #{backbone_forward.1} parent=1 // pred_check_branch
      %251 = sbr.rel (0) target = $region85
    $region84: #{backbone_forward.1} parent=1 // pred_region
      %s253 = ssub.s32 16, 16
      %254 = vsyncadd [#allocation23], %s253
      %s256 = sshll.u32 [#allocation22], 4
      %s257 = int_to_ptr.vmem [resolvable:$true] %s256
      %259 = dma.hbm_to_vmem [thread:$0]  %s41, 16, %s257, [#allocation23]
    $region85: #{backbone_forward.1} parent=1 // pred_fallthru
      _
    // Predicated region
    $region86: #{backbone_forward.1} parent=1 // pred_check
      _
    $region87: #{backbone_forward.1} parent=1 // pred_check_branch
      %261 = sbr.rel (0) target = $region89
    $region88: #{backbone_forward.1} parent=1 // pred_region
      %s263 = ssub.s32 1024, 1024
      %264 = vsyncadd [#allocation23], %s263
      %s265 = sshll.u32 [#allocation24], 4
      %s266 = int_to_ptr.vmem [resolvable:$true] %s265
      %271 = dma.hbm_to_vmem [thread:$0]  %s43, 1024, %s266, [#allocation23], 128, 128, 8
    $region89: #{backbone_forward.1} parent=1 // pred_fallthru
      _
    // Predicated region
    $region90: #{backbone_forward.1} parent=1 // pred_check
      _
    $region91: #{backbone_forward.1} parent=1 // pred_check_branch
      %273 = sbr.rel (0) target = $region93
    $region92: #{backbone_forward.1} parent=1 // pred_region
      %s275 = ssub.s32 16, 16
      %276 = vsyncadd [#allocation26], %s275
      %s278 = sshll.u32 [#allocation25], 4
      %s279 = int_to_ptr.vmem [resolvable:$true] %s278
      %281 = dma.hbm_to_vmem [thread:$0]  %s45, 16, %s279, [#allocation26]
    $region93: #{backbone_forward.1} parent=1 // pred_fallthru
      _
    // Predicated region
    $region94: #{backbone_forward.1} parent=1 // pred_check
      _
    $region95: #{backbone_forward.1} parent=1 // pred_check_branch
      %283 = sbr.rel (0) target = $region97
    $region96: #{backbone_forward.1} parent=1 // pred_region
      %s285 = ssub.s32 256, 256
      %286 = vsyncadd [#allocation26], %s285
      %s287 = sshll.u32 [#allocation27], 4
      %s288 = int_to_ptr.vmem [resolvable:$true] %s287
      %293 = dma.hbm_to_vmem [thread:$0]  %s47, 256, %s288, [#allocation26], 128, 128, 8
    $region97: #{backbone_forward.1} parent=1 // pred_fallthru
      _
    // Predicated region
    $region98: #{backbone_forward.1} parent=1 // pred_check
      _
    $region99: #{backbone_forward.1} parent=1 // pred_check_branch
      %295 = sbr.rel (0) target = $region101
    $region100: #{backbone_forward.1} parent=1 // pred_region
      _
    $region101: #{backbone_forward.1} parent=1 // pred_fallthru
      _
    // Predicated region
    $region102: #{backbone_forward.1} parent=1 // pred_check
      _
    $region103: #{backbone_forward.1} parent=1 // pred_check_branch
      %297 = sbr.rel (0) target = $region105
    $region104: #{backbone_forward.1} parent=1 // pred_region
      %s299 = ssub.s32 512, 512
      %300 = vsyncadd [#allocation29], %s299
      %s301 = sshll.u32 [#allocation28], 4
      %s302 = int_to_ptr.vmem [resolvable:$true] %s301
      %307 = dma.hbm_to_vmem [thread:$0]  %s51, 512, %s302, [#allocation29], 128, 128, 8
    $region105: #{backbone_forward.1} parent=1 // pred_fallthru
      _
    // Predicated region
    $region106: #{backbone_forward.1} parent=1 // pred_check
      _
    $region107: #{backbone_forward.1} parent=1 // pred_check_branch
      %309 = sbr.rel (0) target = $region109
    $region108: #{backbone_forward.1} parent=1 // pred_region
      %s311 = ssub.s32 16, 16
      %312 = vsyncadd [#allocation29], %s311
      %s314 = sshll.u32 [#allocation30], 4
      %s315 = int_to_ptr.vmem [resolvable:$true] %s314
      %317 = dma.hbm_to_vmem [thread:$0]  %s53, 16, %s315, [#allocation29]
    $region109: #{backbone_forward.1} parent=1 // pred_fallthru
      _
    // Predicated region
    $region110: #{backbone_forward.1} parent=1 // pred_check
      _
    $region111: #{backbone_forward.1} parent=1 // pred_check_branch
      %319 = sbr.rel (0) target = $region113
    $region112: #{backbone_forward.1} parent=1 // pred_region
      %s321 = ssub.s32 384, 384
      %322 = vsyncadd [#allocation32], %s321
      %s323 = sshll.u32 [#allocation31], 4
      %s324 = int_to_ptr.vmem [resolvable:$true] %s323
      %329 = dma.hbm_to_vmem [thread:$0]  %s55, 384, %s324, [#allocation32], 128, 128, 8
    $region113: #{backbone_forward.1} parent=1 // pred_fallthru
      _
    // Predicated region
    $region114: #{backbone_forward.1} parent=1 // pred_check
      _
    $region115: #{backbone_forward.1} parent=1 // pred_check_branch
      %331 = sbr.rel (0) target = $region117
    $region116: #{backbone_forward.1} parent=1 // pred_region
      _
    $region117: #{backbone_forward.1} parent=1 // pred_fallthru
      _
    // Predicated region
    $region118: #{backbone_forward.1} parent=1 // pred_check
      _
    $region119: #{backbone_forward.1} parent=1 // pred_check_branch
      %333 = sbr.rel (0) target = $region121
    $region120: #{backbone_forward.1} parent=1 // pred_region
      %s335 = ssub.s32 16, 16
      %336 = vsyncadd [#allocation32], %s335
      %s338 = sshll.u32 [#allocation33], 4
      %s339 = int_to_ptr.vmem [resolvable:$true] %s338
      %341 = dma.hbm_to_vmem [thread:$0]  %s59, 16, %s339, [#allocation32]
    $region121: #{backbone_forward.1} parent=1 // pred_fallthru
      _
    // Predicated region
    $region122: #{backbone_forward.1} parent=1 // pred_check
      _
    $region123: #{backbone_forward.1} parent=1 // pred_check_branch
      %343 = sbr.rel (0) target = $region125
    $region124: #{backbone_forward.1} parent=1 // pred_region
      %s345 = ssub.s32 512, 512
      %346 = vsyncadd [#allocation35], %s345
      %s347 = sshll.u32 [#allocation34], 4
      %s348 = int_to_ptr.vmem [resolvable:$true] %s347
      %353 = dma.hbm_to_vmem [thread:$0]  %s61, 512, %s348, [#allocation35], 128, 128, 8
    $region125: #{backbone_forward.1} parent=1 // pred_fallthru
      _
    // Predicated region
    $region126: #{backbone_forward.1} parent=1 // pred_check
      _
    $region127: #{backbone_forward.1} parent=1 // pred_check_branch
      %355 = sbr.rel (0) target = $region129
    $region128: #{backbone_forward.1} parent=1 // pred_region
      _
    $region129: #{backbone_forward.1} parent=1 // pred_fallthru
      _
    // Predicated region
    $region130: #{backbone_forward.1} parent=1 // pred_check
      _
    $region131: #{backbone_forward.1} parent=1 // pred_check_branch
      %357 = sbr.rel (0) target = $region133
    $region132: #{backbone_forward.1} parent=1 // pred_region
      %s359 = ssub.s32 512, 512
      %360 = vsyncadd [#allocation35], %s359
      %s361 = sshll.u32 [#allocation36], 4
      %s362 = int_to_ptr.vmem [resolvable:$true] %s361
      %367 = dma.hbm_to_vmem [thread:$0]  %s65, 512, %s362, [#allocation35], 128, 128, 8
    $region133: #{backbone_forward.1} parent=1 // pred_fallthru
      _
    // Predicated region
    $region134: #{backbone_forward.1} parent=1 // pred_check
      _
    $region135: #{backbone_forward.1} parent=1 // pred_check_branch
      %369 = sbr.rel (0) target = $region137
    $region136: #{backbone_forward.1} parent=1 // pred_region
      _
    $region137: #{backbone_forward.1} parent=1 // pred_fallthru
      _
    // Predicated region
    $region138: #{backbone_forward.1} parent=1 // pred_check
      _
    $region139: #{backbone_forward.1} parent=1 // pred_check_branch
      %371 = sbr.rel (0) target = $region141
    $region140: #{backbone_forward.1} parent=1 // pred_region
      _
    $region141: #{backbone_forward.1} parent=1 // pred_fallthru
      _
    // Predicated region
    $region142: #{backbone_forward.1} parent=1 // pred_check
      _
    $region143: #{backbone_forward.1} parent=1 // pred_check_branch
      %373 = sbr.rel (0) target = $region145
    $region144: #{backbone_forward.1} parent=1 // pred_region
      _
    $region145: #{backbone_forward.1} parent=1 // pred_fallthru
      _
    // Predicated region
    $region146: #{backbone_forward.1} parent=1 // pred_check
      _
    $region147: #{backbone_forward.1} parent=1 // pred_check_branch
      %375 = sbr.rel (0) target = $region149
    $region148: #{backbone_forward.1} parent=1 // pred_region
      %376 = dma.done [#allocation3], 1536
    $region149: #{backbone_forward.1} parent=1 // pred_fallthru
      _
    // Predicated region
    $region150: #{backbone_forward.1} parent=1 // pred_check
      _
    $region151: #{backbone_forward.1} parent=1 // pred_check_branch
      %378 = sbr.rel (0) target = $region153
    $region152: #{backbone_forward.1} parent=1 // pred_region
      %379 = dma.done [#allocation5], 16
    $region153: #{backbone_forward.1} parent=1 // pred_fallthru
      _
    // Predicated region
    $region154: #{backbone_forward.1} parent=1 // pred_check
      _
    $region155: #{backbone_forward.1} parent=1 // pred_check_branch
      %381 = sbr.rel (0) target = $region157
    $region156: #{backbone_forward.1} parent=1 // pred_region
      %382 = dma.done [#allocation5], 512
    $region157: #{backbone_forward.1} parent=1 // pred_fallthru
      _
    // Predicated region
    $region158: #{backbone_forward.1} parent=1 // pred_check
      _
    $region159: #{backbone_forward.1} parent=1 // pred_check_branch
      %384 = sbr.rel (0) target = $region161
    $region160: #{backbone_forward.1} parent=1 // pred_region
      %385 = dma.done [#allocation8], 1024
    $region161: #{backbone_forward.1} parent=1 // pred_fallthru
      _
    // Predicated region
    $region162: #{backbone_forward.1} parent=1 // pred_check
      _
    $region163: #{backbone_forward.1} parent=1 // pred_check_branch
      %387 = sbr.rel (0) target = $region165
    $region164: #{backbone_forward.1} parent=1 // pred_region
      %388 = dma.done [#allocation8], 16
    $region165: #{backbone_forward.1} parent=1 // pred_fallthru
      _
    // Predicated region
    $region166: #{backbone_forward.1} parent=1 // pred_check
      _
    $region167: #{backbone_forward.1} parent=1 // pred_check_branch
      %390 = sbr.rel (0) target = $region169
    $region168: #{backbone_forward.1} parent=1 // pred_region
      %391 = dma.done [#allocation11], 768
    $region169: #{backbone_forward.1} parent=1 // pred_fallthru
      _
    // Predicated region
    $region170: #{backbone_forward.1} parent=1 // pred_check
      _
    $region171: #{backbone_forward.1} parent=1 // pred_check_branch
      %393 = sbr.rel (0) target = $region173
    $region172: #{backbone_forward.1} parent=1 // pred_region
      %394 = dma.done [#allocation11], 16
    $region173: #{backbone_forward.1} parent=1 // pred_fallthru
      _
    // Predicated region
    $region174: #{backbone_forward.1} parent=1 // pred_check
      _
    $region175: #{backbone_forward.1} parent=1 // pred_check_branch
      %396 = sbr.rel (0) target = $region177
    $region176: #{backbone_forward.1} parent=1 // pred_region
      %397 = dma.done [#allocation14], 1024
    $region177: #{backbone_forward.1} parent=1 // pred_fallthru
      _
    // Predicated region
    $region178: #{backbone_forward.1} parent=1 // pred_check
      _
    $region179: #{backbone_forward.1} parent=1 // pred_check_branch
      %399 = sbr.rel (0) target = $region181
    $region180: #{backbone_forward.1} parent=1 // pred_region
      %400 = dma.done [#allocation14], 16
    $region181: #{backbone_forward.1} parent=1 // pred_fallthru
      _
    // Predicated region
    $region182: #{backbone_forward.1} parent=1 // pred_check
      _
    $region183: #{backbone_forward.1} parent=1 // pred_check_branch
      %402 = sbr.rel (0) target = $region185
    $region184: #{backbone_forward.1} parent=1 // pred_region
      %403 = dma.done [#allocation17], 1024
    $region185: #{backbone_forward.1} parent=1 // pred_fallthru
      _
    // Predicated region
    $region186: #{backbone_forward.1} parent=1 // pred_check
      _
    $region187: #{backbone_forward.1} parent=1 // pred_check_branch
      %405 = sbr.rel (0) target = $region189
    $region188: #{backbone_forward.1} parent=1 // pred_region
      %406 = dma.done [#allocation17], 16
    $region189: #{backbone_forward.1} parent=1 // pred_fallthru
      _
    // Predicated region
    $region190: #{backbone_forward.1} parent=1 // pred_check
      _
    $region191: #{backbone_forward.1} parent=1 // pred_check_branch
      %408 = sbr.rel (0) target = $region193
    $region192: #{backbone_forward.1} parent=1 // pred_region
      %409 = dma.done [#allocation20], 768
    $region193: #{backbone_forward.1} parent=1 // pred_fallthru
      _
    // Predicated region
    $region194: #{backbone_forward.1} parent=1 // pred_check
      _
    $region195: #{backbone_forward.1} parent=1 // pred_check_branch
      %411 = sbr.rel (0) target = $region197
    $region196: #{backbone_forward.1} parent=1 // pred_region
      %412 = dma.done [#allocation20], 3072
    $region197: #{backbone_forward.1} parent=1 // pred_fallthru
      _
    // Predicated region
    $region198: #{backbone_forward.1} parent=1 // pred_check
      _
    $region199: #{backbone_forward.1} parent=1 // pred_check_branch
      %414 = sbr.rel (0) target = $region201
    $region200: #{backbone_forward.1} parent=1 // pred_region
      %415 = dma.done [#allocation23], 16
    $region201: #{backbone_forward.1} parent=1 // pred_fallthru
      _
    // Predicated region
    $region202: #{backbone_forward.1} parent=1 // pred_check
      _
    $region203: #{backbone_forward.1} parent=1 // pred_check_branch
      %417 = sbr.rel (0) target = $region205
    $region204: #{backbone_forward.1} parent=1 // pred_region
      %418 = dma.done [#allocation23], 1024
    $region205: #{backbone_forward.1} parent=1 // pred_fallthru
      _
    // Predicated region
    $region206: #{backbone_forward.1} parent=1 // pred_check
      _
    $region207: #{backbone_forward.1} parent=1 // pred_check_branch
      %420 = sbr.rel (0) target = $region209
    $region208: #{backbone_forward.1} parent=1 // pred_region
      %421 = dma.done [#allocation26], 16
    $region209: #{backbone_forward.1} parent=1 // pred_fallthru
      _
    // Predicated region
    $region210: #{backbone_forward.1} parent=1 // pred_check
      _
    $region211: #{backbone_forward.1} parent=1 // pred_check_branch
      %423 = sbr.rel (0) target = $region213
    $region212: #{backbone_forward.1} parent=1 // pred_region
      %424 = dma.done [#allocation26], 256
    $region213: #{backbone_forward.1} parent=1 // pred_fallthru
      _
    // Predicated region
    $region214: #{backbone_forward.1} parent=1 // pred_check
      _
    $region215: #{backbone_forward.1} parent=1 // pred_check_branch
      %426 = sbr.rel (0) target = $region217
    $region216: #{backbone_forward.1} parent=1 // pred_region
      %427 = dma.done [#allocation29], 512
    $region217: #{backbone_forward.1} parent=1 // pred_fallthru
      _
    // Predicated region
    $region218: #{backbone_forward.1} parent=1 // pred_check
      _
    $region219: #{backbone_forward.1} parent=1 // pred_check_branch
      %429 = sbr.rel (0) target = $region221
    $region220: #{backbone_forward.1} parent=1 // pred_region
      %430 = dma.done [#allocation29], 16
    $region221: #{backbone_forward.1} parent=1 // pred_fallthru
      _
    // Predicated region
    $region222: #{backbone_forward.1} parent=1 // pred_check
      _
    $region223: #{backbone_forward.1} parent=1 // pred_check_branch
      %432 = sbr.rel (0) target = $region225
    $region224: #{backbone_forward.1} parent=1 // pred_region
      %433 = dma.done [#allocation32], 384
    $region225: #{backbone_forward.1} parent=1 // pred_fallthru
      _
    // Predicated region
    $region226: #{backbone_forward.1} parent=1 // pred_check
      _
    $region227: #{backbone_forward.1} parent=1 // pred_check_branch
      %435 = sbr.rel (0) target = $region229
    $region228: #{backbone_forward.1} parent=1 // pred_region
      %436 = dma.done [#allocation32], 16
    $region229: #{backbone_forward.1} parent=1 // pred_fallthru
      _
    // Predicated region
    $region230: #{backbone_forward.1} parent=1 // pred_check
      _
    $region231: #{backbone_forward.1} parent=1 // pred_check_branch
      %438 = sbr.rel (0) target = $region233
    $region232: #{backbone_forward.1} parent=1 // pred_region
      %439 = dma.done [#allocation35], 512
    $region233: #{backbone_forward.1} parent=1 // pred_fallthru
      _
    // Predicated region
    $region234: #{backbone_forward.1} parent=1 // pred_check
      _
    $region235: #{backbone_forward.1} parent=1 // pred_check_branch
      %441 = sbr.rel (0) target = $region237
    $region236: #{backbone_forward.1} parent=1 // pred_region
      %442 = dma.done [#allocation35], 512
    $region237: #{backbone_forward.1} parent=1 // pred_fallthru
      _
    %v443 = vld [vmem:[%s1] sm:$0xff]
    %v444 = vld [vmem:[%s1 + $0x8] sm:$0xff]
    %v445 = vld [vmem:[%s1 + $0x10] sm:$0xff]
    %v446 = vld [vmem:[%s1 + $0x18] sm:$0xff]
    %v447 = vld [vmem:[%s3] sm:$0xff]
    %v448 = vld [vmem:[%s3 + $0x8] sm:$0xff]
    %v449 = vld [vmem:[%s3 + $0x10] sm:$0xff]
    %v450 = vld [vmem:[%s3 + $0x18] sm:$0xff]
    %vm451 = vcmask 261120
    %v453 = vsel %vm451, %v447, 0
    %v456 = vsel %vm451, %v448, 0
    %v459 = vsel %vm451, %v449, 0
    %v462 = vsel %vm451, %v450, 0
    %464 = vmatprep.subr.mxu0 0.0
    %465 = vmatpush1.msra.mxu0 %v443
    %466 = vmatprep.subr.mxu0 0.0
    %467 = vmatpush1.msra.mxu0 %v444
    %468 = vmatprep.subr.mxu0 0.0
    %469 = vmatpush1.msra.mxu0 %v445
    %470 = vmatprep.subr.mxu0 0.0
    %471 = vmatpush1.msra.mxu0 %v446
    %472 = vmatprep.subr.mxu0 0.0
    %473 = vmatpush1.msra.mxu0 0.0
    %474 = vmatprep.subr.mxu0 0.0
    %475 = vmatpush1.msra.mxu0 0.0
    %476 = vmatprep.subr.mxu0 0.0
    %477 = vmatpush1.msra.mxu0 0.0
    %478 = vmatprep.subr.mxu0 0.0
    %479 = vmatpush1.msra.mxu0 0.0
    %480 = vmatprep.subr.mxu0 0.0
    %481 = vmatpush1.msra.mxu0 0.0
    %482 = vmatprep.subr.mxu0 0.0
    %483 = vmatpush1.msra.mxu0 0.0
    %484 = vmatprep.subr.mxu0 0.0
    %485 = vmatpush1.msra.mxu0 0.0
    %486 = vmatprep.subr.mxu0 0.0
    %487 = vmatpush1.msra.mxu0 0.0
    %488 = vmatprep.subr.mxu0 0.0
    %489 = vmatpush1.msra.mxu0 0.0
    %490 = vmatprep.subr.mxu0 0.0
    %491 = vmatpush1.msra.mxu0 0.0
    %492 = vmatprep.subr.mxu0 0.0
    %493 = vmatpush1.msra.mxu0 0.0
    %494 = vmatprep.subr.mxu0 0.0
    %495 = vmatpush1.msra.mxu0 0.0
    %496 = vmatprep.subr.mxu0 0.0
    %497 = vmatpush1.msra.mxu0 0.0
    %498 = vmatprep.subr.mxu0 0.0
    %499 = vmatpush1.msra.mxu0 0.0
    %500 = vmatprep.subr.mxu0 0.0
    %501 = vmatpush1.msra.mxu0 0.0
    %502 = vmatprep.subr.mxu0 0.0
    %503 = vmatpush1.msra.mxu0 0.0
    %504 = vmatprep.subr.mxu0 0.0
    %505 = vmatpush1.msra.mxu0 0.0
    %506 = vmatprep.subr.mxu0 0.0
    %507 = vmatpush1.msra.mxu0 0.0
    %508 = vmatprep.subr.mxu0 0.0
    %509 = vmatpush1.msra.mxu0 0.0
    %510 = vmatprep.subr.mxu0 0.0
    %511 = vmatpush1.msra.mxu0 0.0
    %512 = vmatprep.subr.mxu0 0.0
    %513 = vmatpush1.msra.mxu0 0.0
    %514 = vmatprep.subr.mxu0 0.0
    %515 = vmatpush1.msra.mxu0 0.0
    %516 = vmatprep.subr.mxu0 0.0
    %517 = vmatpush1.msra.mxu0 0.0
    %518 = vmatprep.subr.mxu0 0.0
    %519 = vmatpush1.msra.mxu0 0.0
    %520 = vmatprep.subr.mxu0 0.0
    %521 = vmatpush1.msra.mxu0 0.0
    %522 = vmatprep.subr.mxu0 0.0
    %523 = vmatpush1.msra.mxu0 0.0
    %524 = vmatprep.subr.mxu0 0.0
    %525 = vmatpush1.msra.mxu0 0.0
    %526 = vmatprep.subr.mxu0 0.0
    %527 = vmatpush1.msra.mxu0 0.0
    %528 = vmatprep.mubr.f32.mxu0 0.0
    %529 = vmatmul.mubr.f32.gmra.mrb[0].mxu0 %v453
    %v530 = vpop.f32.mrb[0].mxu0
    %v531 = vadd.f32 0.0, %v530
    %v532 = vpop.f32.mrb[0].mxu0
    %533 = vmatprep.mubr.f32.mxu0 0.0
    %534 = vmatmul.mubr.f32.gmra.mrb[0].mxu0 %v456
    %v535 = vpop.f32.mrb[0].mxu0
    %v536 = vadd.f32 0.0, %v535
    %v537 = vpop.f32.mrb[0].mxu0
    %538 = vmatprep.mubr.f32.mxu0 0.0
    %539 = vmatmul.mubr.f32.gmra.mrb[0].mxu0 %v459
    %v540 = vpop.f32.mrb[0].mxu0
    %v541 = vadd.f32 0.0, %v540
    %v542 = vpop.f32.mrb[0].mxu0
    %543 = vmatprep.mubr.f32.mxu0 0.0
    %544 = vmatmul.mubr.f32.gmra.mrb[0].mxu0 %v462
    %v545 = vpop.f32.mrb[0].mxu0
    %v546 = vadd.f32 0.0, %v545
    %v547 = vpop.f32.mrb[0].mxu0
    %548 = vdwg.mxu0
    %v549 = vld [vmem:[%s5] sm:$0xff]
    %v550 = vld [vmem:[%s5 + $0x8] sm:$0xff]
    %v551 = vld [vmem:[%s5 + $0x10] sm:$0xff]
    %v552 = vld [vmem:[%s5 + $0x18] sm:$0xff]
    %v553 = vld [vmem:[%s5 + $0x20] sm:$0xff]
    %v554 = vld [vmem:[%s5 + $0x28] sm:$0xff]
    %v555 = vld [vmem:[%s5 + $0x30] sm:$0xff]
    %v556 = vld [vmem:[%s5 + $0x38] sm:$0xff]
    %s557 = scalar_lea.vmem %s3, 32
    %v558 = vld [vmem:[%s557] sm:$0xff]
    %v559 = vld [vmem:[%s557 + $0x8] sm:$0xff]
    %v560 = vld [vmem:[%s557 + $0x10] sm:$0xff]
    %v561 = vld [vmem:[%s557 + $0x18] sm:$0xff]
    %v563 = vsel %vm451, %v558, 0
    %v566 = vsel %vm451, %v559, 0
    %v569 = vsel %vm451, %v560, 0
    %v572 = vsel %vm451, %v561, 0
    %574 = vmatprep.subr.mxu0 0.0
    %575 = vmatpush1.msra.mxu0 %v443
    %576 = vmatprep.subr.mxu0 0.0
    %577 = vmatpush1.msra.mxu0 %v444
    %578 = vmatprep.subr.mxu0 0.0
    %579 = vmatpush1.msra.mxu0 %v445
    %580 = vmatprep.subr.mxu0 0.0
    %581 = vmatpush1.msra.mxu0 %v446
    %582 = vmatprep.subr.mxu0 0.0
    %583 = vmatpush1.msra.mxu0 0.0
    %584 = vmatprep.subr.mxu0 0.0
    %585 = vmatpush1.msra.mxu0 0.0
    %586 = vmatprep.subr.mxu0 0.0
    %587 = vmatpush1.msra.mxu0 0.0
    %588 = vmatprep.subr.mxu0 0.0
    %589 = vmatpush1.msra.mxu0 0.0
    %590 = vmatprep.subr.mxu0 0.0
    %591 = vmatpush1.msra.mxu0 0.0
    %592 = vmatprep.subr.mxu0 0.0
    %593 = vmatpush1.msra.mxu0 0.0
    %594 = vmatprep.subr.mxu0 0.0
    %595 = vmatpush1.msra.mxu0 0.0
    %596 = vmatprep.subr.mxu0 0.0
    %597 = vmatpush1.msra.mxu0 0.0
    %598 = vmatprep.subr.mxu0 0.0
    %599 = vmatpush1.msra.mxu0 0.0
    %600 = vmatprep.subr.mxu0 0.0
    %601 = vmatpush1.msra.mxu0 0.0
    %602 = vmatprep.subr.mxu0 0.0
    %603 = vmatpush1.msra.mxu0 0.0
    %604 = vmatprep.subr.mxu0 0.0
    %605 = vmatpush1.msra.mxu0 0.0
    %606 = vmatprep.subr.mxu0 0.0
    %607 = vmatpush1.msra.mxu0 0.0
    %608 = vmatprep.subr.mxu0 0.0
    %609 = vmatpush1.msra.mxu0 0.0
    %610 = vmatprep.subr.mxu0 0.0
    %611 = vmatpush1.msra.mxu0 0.0
    %612 = vmatprep.subr.mxu0 0.0
    %613 = vmatpush1.msra.mxu0 0.0
    %614 = vmatprep.subr.mxu0 0.0
    %615 = vmatpush1.msra.mxu0 0.0
    %616 = vmatprep.subr.mxu0 0.0
    %617 = vmatpush1.msra.mxu0 0.0
    %618 = vmatprep.subr.mxu0 0.0
    %619 = vmatpush1.msra.mxu0 0.0
    %620 = vmatprep.subr.mxu0 0.0
    %621 = vmatpush1.msra.mxu0 0.0
    %622 = vmatprep.subr.mxu0 0.0
    %623 = vmatpush1.msra.mxu0 0.0
    %624 = vmatprep.subr.mxu0 0.0
    %625 = vmatpush1.msra.mxu0 0.0
    %626 = vmatprep.subr.mxu0 0.0
    %627 = vmatpush1.msra.mxu0 0.0
    %628 = vmatprep.subr.mxu0 0.0
    %629 = vmatpush1.msra.mxu0 0.0
    %630 = vmatprep.subr.mxu0 0.0
    %631 = vmatpush1.msra.mxu0 0.0
    %632 = vmatprep.subr.mxu0 0.0
    %633 = vmatpush1.msra.mxu0 0.0
    %634 = vmatprep.subr.mxu0 0.0
    %635 = vmatpush1.msra.mxu0 0.0
    %636 = vmatprep.subr.mxu0 0.0
    %637 = vmatpush1.msra.mxu0 0.0
    %638 = vmatprep.mubr.f32.mxu0 0.0
    %639 = vmatmul.mubr.f32.gmra.mrb[0].mxu0 %v563
    %v640 = vpop.f32.mrb[0].mxu0
    %v641 = vadd.f32 0.0, %v640
    %v642 = vpop.f32.mrb[0].mxu0
    %643 = vmatprep.mubr.f32.mxu0 0.0
    %644 = vmatmul.mubr.f32.gmra.mrb[0].mxu0 %v566
    %v645 = vpop.f32.mrb[0].mxu0
    %v646 = vadd.f32 0.0, %v645
    %v647 = vpop.f32.mrb[0].mxu0
    %648 = vmatprep.mubr.f32.mxu0 0.0
    %649 = vmatmul.mubr.f32.gmra.mrb[0].mxu0 %v569
    %v650 = vpop.f32.mrb[0].mxu0
    %v651 = vadd.f32 0.0, %v650
    %v652 = vpop.f32.mrb[0].mxu0
    %653 = vmatprep.mubr.f32.mxu0 0.0
    %654 = vmatmul.mubr.f32.gmra.mrb[0].mxu0 %v572
    %v655 = vpop.f32.mrb[0].mxu0
    %v656 = vadd.f32 0.0, %v655
    %v657 = vpop.f32.mrb[0].mxu0
    %658 = vdwg.mxu0
    %s659 = scalar_lea.vmem %s5, 64
    %v660 = vld [vmem:[%s659] sm:$0xff]
    %v661 = vld [vmem:[%s659 + $0x8] sm:$0xff]
    %v662 = vld [vmem:[%s659 + $0x10] sm:$0xff]
    %v663 = vld [vmem:[%s659 + $0x18] sm:$0xff]
    %v664 = vld [vmem:[%s659 + $0x20] sm:$0xff]
    %v665 = vld [vmem:[%s659 + $0x28] sm:$0xff]
    %v666 = vld [vmem:[%s659 + $0x30] sm:$0xff]
    %v667 = vld [vmem:[%s659 + $0x38] sm:$0xff]
    %vm668 = vcmask 523264
    %v670 = vsel %vm668, %v641, 0
    %v673 = vsel %vm668, %v646, 0
    %v676 = vsel %vm668, %v651, 0
    %v679 = vsel %vm668, %v656, 0
    %681 = vmatprep.subr.mxu0 0.0
    %682 = vmatpush1.msra.mxu0 %v660
    %683 = vmatprep.subr.mxu0 0.0
    %684 = vmatpush1.msra.mxu0 %v661
    %685 = vmatprep.subr.mxu0 0.0
    %686 = vmatpush1.msra.mxu0 %v662
    %687 = vmatprep.subr.mxu0 0.0
    %688 = vmatpush1.msra.mxu0 %v663
    %689 = vmatprep.subr.mxu0 0.0
    %690 = vmatpush1.msra.mxu0 %v664
    %691 = vmatprep.subr.mxu0 0.0
    %692 = vmatpush1.msra.mxu0 %v665
    %693 = vmatprep.subr.mxu0 0.0
    %694 = vmatpush1.msra.mxu0 %v666
    %695 = vmatprep.subr.mxu0 0.0
    %696 = vmatpush1.msra.mxu0 %v667
    %697 = vmatprep.subr.mxu0 0.0
    %698 = vmatpush1.msra.mxu0 0.0
    %699 = vmatprep.subr.mxu0 0.0
    %700 = vmatpush1.msra.mxu0 0.0
    %701 = vmatprep.subr.mxu0 0.0
    %702 = vmatpush1.msra.mxu0 0.0
    %703 = vmatprep.subr.mxu0 0.0
    %704 = vmatpush1.msra.mxu0 0.0
    %705 = vmatprep.subr.mxu0 0.0
    %706 = vmatpush1.msra.mxu0 0.0
    %707 = vmatprep.subr.mxu0 0.0
    %708 = vmatpush1.msra.mxu0 0.0
    %709 = vmatprep.subr.mxu0 0.0
    %710 = vmatpush1.msra.mxu0 0.0
    %711 = vmatprep.subr.mxu0 0.0
    %712 = vmatpush1.msra.mxu0 0.0
    %713 = vmatprep.subr.mxu0 0.0
    %714 = vmatpush1.msra.mxu0 0.0
    %715 = vmatprep.subr.mxu0 0.0
    %716 = vmatpush1.msra.mxu0 0.0
    %717 = vmatprep.subr.mxu0 0.0
    %718 = vmatpush1.msra.mxu0 0.0
    %719 = vmatprep.subr.mxu0 0.0
    %720 = vmatpush1.msra.mxu0 0.0
    %721 = vmatprep.subr.mxu0 0.0
    %722 = vmatpush1.msra.mxu0 0.0
    %723 = vmatprep.subr.mxu0 0.0
    %724 = vmatpush1.msra.mxu0 0.0
    %725 = vmatprep.subr.mxu0 0.0
    %726 = vmatpush1.msra.mxu0 0.0
    %727 = vmatprep.subr.mxu0 0.0
    %728 = vmatpush1.msra.mxu0 0.0
    %729 = vmatprep.subr.mxu0 0.0
    %730 = vmatpush1.msra.mxu0 0.0
    %731 = vmatprep.subr.mxu0 0.0
    %732 = vmatpush1.msra.mxu0 0.0
    %733 = vmatprep.subr.mxu0 0.0
    %734 = vmatpush1.msra.mxu0 0.0
    %735 = vmatprep.subr.mxu0 0.0
    %736 = vmatpush1.msra.mxu0 0.0
    %737 = vmatprep.subr.mxu0 0.0
    %738 = vmatpush1.msra.mxu0 0.0
    %739 = vmatprep.subr.mxu0 0.0
    %740 = vmatpush1.msra.mxu0 0.0
    %741 = vmatprep.subr.mxu0 0.0
    %742 = vmatpush1.msra.mxu0 0.0
    %743 = vmatprep.subr.mxu0 0.0
    %744 = vmatpush1.msra.mxu0 0.0
    %745 = vmatprep.mubr.f32.mxu0 0.0
    %746 = vmatmul.mubr.f32.gmra.mrb[0].mxu0 %v670
    %v747 = vpop.f32.mrb[0].mxu0
    %v748 = vadd.f32 0.0, %v747
    %v749 = vpop.f32.mrb[0].mxu0
    %750 = vmatprep.mubr.f32.mxu0 0.0
    %751 = vmatmul.mubr.f32.gmra.mrb[0].mxu0 %v673
    %v752 = vpop.f32.mrb[0].mxu0
    %v753 = vadd.f32 0.0, %v752
    %v754 = vpop.f32.mrb[0].mxu0
    %755 = vmatprep.mubr.f32.mxu0 0.0
    %756 = vmatmul.mubr.f32.gmra.mrb[0].mxu0 %v676
    %v757 = vpop.f32.mrb[0].mxu0
    %v758 = vadd.f32 0.0, %v757
    %v759 = vpop.f32.mrb[0].mxu0
    %760 = vmatprep.mubr.f32.mxu0 0.0
    %761 = vmatmul.mubr.f32.gmra.mrb[0].mxu0 %v679
    %v762 = vpop.f32.mrb[0].mxu0
    %v763 = vadd.f32 0.0, %v762
    %v764 = vpop.f32.mrb[0].mxu0
    %765 = vdwg.mxu0
    %v767 = vsel %vm668, %v531, 0
    %v770 = vsel %vm668, %v536, 0
    %v773 = vsel %vm668, %v541, 0
    %v776 = vsel %vm668, %v546, 0
    %778 = vmatprep.subr.mxu0 0.0
    %779 = vmatpush1.msra.mxu0 %v549
    %780 = vmatprep.subr.mxu0 0.0
    %781 = vmatpush1.msra.mxu0 %v550
    %782 = vmatprep.subr.mxu0 0.0
    %783 = vmatpush1.msra.mxu0 %v551
    %784 = vmatprep.subr.mxu0 0.0
    %785 = vmatpush1.msra.mxu0 %v552
    %786 = vmatprep.subr.mxu0 0.0
    %787 = vmatpush1.msra.mxu0 %v553
    %788 = vmatprep.subr.mxu0 0.0
    %789 = vmatpush1.msra.mxu0 %v554
    %790 = vmatprep.subr.mxu0 0.0
    %791 = vmatpush1.msra.mxu0 %v555
    %792 = vmatprep.subr.mxu0 0.0
    %793 = vmatpush1.msra.mxu0 %v556
    %794 = vmatprep.subr.mxu0 0.0
    %795 = vmatpush1.msra.mxu0 0.0
    %796 = vmatprep.subr.mxu0 0.0
    %797 = vmatpush1.msra.mxu0 0.0
    %798 = vmatprep.subr.mxu0 0.0
    %799 = vmatpush1.msra.mxu0 0.0
    %800 = vmatprep.subr.mxu0 0.0
    %801 = vmatpush1.msra.mxu0 0.0
    %802 = vmatprep.subr.mxu0 0.0
    %803 = vmatpush1.msra.mxu0 0.0
    %804 = vmatprep.subr.mxu0 0.0
    %805 = vmatpush1.msra.mxu0 0.0
    %806 = vmatprep.subr.mxu0 0.0
    %807 = vmatpush1.msra.mxu0 0.0
    %808 = vmatprep.subr.mxu0 0.0
    %809 = vmatpush1.msra.mxu0 0.0
    %810 = vmatprep.subr.mxu0 0.0
    %811 = vmatpush1.msra.mxu0 0.0
    %812 = vmatprep.subr.mxu0 0.0
    %813 = vmatpush1.msra.mxu0 0.0
    %814 = vmatprep.subr.mxu0 0.0
    %815 = vmatpush1.msra.mxu0 0.0
    %816 = vmatprep.subr.mxu0 0.0
    %817 = vmatpush1.msra.mxu0 0.0
    %818 = vmatprep.subr.mxu0 0.0
    %819 = vmatpush1.msra.mxu0 0.0
    %820 = vmatprep.subr.mxu0 0.0
    %821 = vmatpush1.msra.mxu0 0.0
    %822 = vmatprep.subr.mxu0 0.0
    %823 = vmatpush1.msra.mxu0 0.0
    %824 = vmatprep.subr.mxu0 0.0
    %825 = vmatpush1.msra.mxu0 0.0
    %826 = vmatprep.subr.mxu0 0.0
    %827 = vmatpush1.msra.mxu0 0.0
    %828 = vmatprep.subr.mxu0 0.0
    %829 = vmatpush1.msra.mxu0 0.0
    %830 = vmatprep.subr.mxu0 0.0
    %831 = vmatpush1.msra.mxu0 0.0
    %832 = vmatprep.subr.mxu0 0.0
    %833 = vmatpush1.msra.mxu0 0.0
    %834 = vmatprep.subr.mxu0 0.0
    %835 = vmatpush1.msra.mxu0 0.0
    %836 = vmatprep.subr.mxu0 0.0
    %837 = vmatpush1.msra.mxu0 0.0
    %838 = vmatprep.subr.mxu0 0.0
    %839 = vmatpush1.msra.mxu0 0.0
    %840 = vmatprep.subr.mxu0 0.0
    %841 = vmatpush1.msra.mxu0 0.0
    %842 = vmatprep.mubr.f32.mxu0 0.0
    %843 = vmatmul.mubr.f32.gmra.mrb[0].mxu0 %v767
    %v844 = vpop.f32.mrb[0].mxu0
    %v845 = vadd.f32 %v748, %v844
    %v846 = vpop.f32.mrb[0].mxu0
    %847 = vmatprep.mubr.f32.mxu0 0.0
    %848 = vmatmul.mubr.f32.gmra.mrb[0].mxu0 %v770
    %v849 = vpop.f32.mrb[0].mxu0
    %v850 = vadd.f32 %v753, %v849
    %v851 = vpop.f32.mrb[0].mxu0
    %852 = vmatprep.mubr.f32.mxu0 0.0
    %853 = vmatmul.mubr.f32.gmra.mrb[0].mxu0 %v773
    %v854 = vpop.f32.mrb[0].mxu0
    %v855 = vadd.f32 %v758, %v854
    %v856 = vpop.f32.mrb[0].mxu0
    %857 = vmatprep.mubr.f32.mxu0 0.0
    %858 = vmatmul.mubr.f32.gmra.mrb[0].mxu0 %v776
    %v859 = vpop.f32.mrb[0].mxu0
    %v860 = vadd.f32 %v763, %v859
    %v861 = vpop.f32.mrb[0].mxu0
    %862 = vdwg.mxu0
    %s863 = scalar_lea.vmem %s3, 64
    %v864 = vld [vmem:[%s863] sm:$0xff]
    %v865 = vld [vmem:[%s863 + $0x8] sm:$0xff]
    %v866 = vld [vmem:[%s863 + $0x10] sm:$0xff]
    %v867 = vld [vmem:[%s863 + $0x18] sm:$0xff]
    %v869 = vsel %vm451, %v864, 0
    %v872 = vsel %vm451, %v865, 0
    %v875 = vsel %vm451, %v866, 0
    %v878 = vsel %vm451, %v867, 0
    %880 = vmatprep.subr.mxu0 0.0
    %881 = vmatpush1.msra.mxu0 %v443
    %882 = vmatprep.subr.mxu0 0.0
    %883 = vmatpush1.msra.mxu0 %v444
    %884 = vmatprep.subr.mxu0 0.0
    %885 = vmatpush1.msra.mxu0 %v445
    %886 = vmatprep.subr.mxu0 0.0
    %887 = vmatpush1.msra.mxu0 %v446
    %888 = vmatprep.subr.mxu0 0.0
    %889 = vmatpush1.msra.mxu0 0.0
    %890 = vmatprep.subr.mxu0 0.0
    %891 = vmatpush1.msra.mxu0 0.0
    %892 = vmatprep.subr.mxu0 0.0
    %893 = vmatpush1.msra.mxu0 0.0
    %894 = vmatprep.subr.mxu0 0.0
    %895 = vmatpush1.msra.mxu0 0.0
    %896 = vmatprep.subr.mxu0 0.0
    %897 = vmatpush1.msra.mxu0 0.0
    %898 = vmatprep.subr.mxu0 0.0
    %899 = vmatpush1.msra.mxu0 0.0
    %900 = vmatprep.subr.mxu0 0.0
    %901 = vmatpush1.msra.mxu0 0.0
    %902 = vmatprep.subr.mxu0 0.0
    %903 = vmatpush1.msra.mxu0 0.0
    %904 = vmatprep.subr.mxu0 0.0
    %905 = vmatpush1.msra.mxu0 0.0
    %906 = vmatprep.subr.mxu0 0.0
    %907 = vmatpush1.msra.mxu0 0.0
    %908 = vmatprep.subr.mxu0 0.0
    %909 = vmatpush1.msra.mxu0 0.0
    %910 = vmatprep.subr.mxu0 0.0
    %911 = vmatpush1.msra.mxu0 0.0
    %912 = vmatprep.subr.mxu0 0.0
    %913 = vmatpush1.msra.mxu0 0.0
    %914 = vmatprep.subr.mxu0 0.0
    %915 = vmatpush1.msra.mxu0 0.0
    %916 = vmatprep.subr.mxu0 0.0
    %917 = vmatpush1.msra.mxu0 0.0
    %918 = vmatprep.subr.mxu0 0.0
    %919 = vmatpush1.msra.mxu0 0.0
    %920 = vmatprep.subr.mxu0 0.0
    %921 = vmatpush1.msra.mxu0 0.0
    %922 = vmatprep.subr.mxu0 0.0
    %923 = vmatpush1.msra.mxu0 0.0
    %924 = vmatprep.subr.mxu0 0.0
    %925 = vmatpush1.msra.mxu0 0.0
    %926 = vmatprep.subr.mxu0 0.0
    %927 = vmatpush1.msra.mxu0 0.0
    %928 = vmatprep.subr.mxu0 0.0
    %929 = vmatpush1.msra.mxu0 0.0
    %930 = vmatprep.subr.mxu0 0.0
    %931 = vmatpush1.msra.mxu0 0.0
    %932 = vmatprep.subr.mxu0 0.0
    %933 = vmatpush1.msra.mxu0 0.0
    %934 = vmatprep.subr.mxu0 0.0
    %935 = vmatpush1.msra.mxu0 0.0
    %936 = vmatprep.subr.mxu0 0.0
    %937 = vmatpush1.msra.mxu0 0.0
    %938 = vmatprep.subr.mxu0 0.0
    %939 = vmatpush1.msra.mxu0 0.0
    %940 = vmatprep.subr.mxu0 0.0
    %941 = vmatpush1.msra.mxu0 0.0
    %942 = vmatprep.subr.mxu0 0.0
    %943 = vmatpush1.msra.mxu0 0.0
    %944 = vmatprep.mubr.f32.mxu0 0.0
    %945 = vmatmul.mubr.f32.gmra.mrb[0].mxu0 %v869
    %v946 = vpop.f32.mrb[0].mxu0
    %v947 = vadd.f32 0.0, %v946
    %v948 = vpop.f32.mrb[0].mxu0
    %949 = vmatprep.mubr.f32.mxu0 0.0
    %950 = vmatmul.mubr.f32.gmra.mrb[0].mxu0 %v872
    %v951 = vpop.f32.mrb[0].mxu0
    %v952 = vadd.f32 0.0, %v951
    %v953 = vpop.f32.mrb[0].mxu0
    %954 = vmatprep.mubr.f32.mxu0 0.0
    %955 = vmatmul.mubr.f32.gmra.mrb[0].mxu0 %v875
    %v956 = vpop.f32.mrb[0].mxu0
    %v957 = vadd.f32 0.0, %v956
    %v958 = vpop.f32.mrb[0].mxu0
    %959 = vmatprep.mubr.f32.mxu0 0.0
    %960 = vmatmul.mubr.f32.gmra.mrb[0].mxu0 %v878
    %v961 = vpop.f32.mrb[0].mxu0
    %v962 = vadd.f32 0.0, %v961
    %v963 = vpop.f32.mrb[0].mxu0
    %964 = vdwg.mxu0
    %s965 = scalar_lea.vmem %s5, 128
    %v966 = vld [vmem:[%s965] sm:$0xff]
    %v967 = vld [vmem:[%s965 + $0x8] sm:$0xff]
    %v968 = vld [vmem:[%s965 + $0x10] sm:$0xff]
    %v969 = vld [vmem:[%s965 + $0x18] sm:$0xff]
    %v970 = vld [vmem:[%s965 + $0x20] sm:$0xff]
    %v971 = vld [vmem:[%s965 + $0x28] sm:$0xff]
    %v972 = vld [vmem:[%s965 + $0x30] sm:$0xff]
    %v973 = vld [vmem:[%s965 + $0x38] sm:$0xff]
    %v975 = vsel %vm668, %v947, 0
    %v978 = vsel %vm668, %v952, 0
    %v981 = vsel %vm668, %v957, 0
    %v984 = vsel %vm668, %v962, 0
    %986 = vmatprep.subr.mxu0 0.0
    %987 = vmatpush1.msra.mxu0 %v966
    %988 = vmatprep.subr.mxu0 0.0
    %989 = vmatpush1.msra.mxu0 %v967
    %990 = vmatprep.subr.mxu0 0.0
    %991 = vmatpush1.msra.mxu0 %v968
    %992 = vmatprep.subr.mxu0 0.0
    %993 = vmatpush1.msra.mxu0 %v969
    %994 = vmatprep.subr.mxu0 0.0
    %995 = vmatpush1.msra.mxu0 %v970
    %996 = vmatprep.subr.mxu0 0.0
    %997 = vmatpush1.msra.mxu0 %v971
    %998 = vmatprep.subr.mxu0 0.0
    %999 = vmatpush1.msra.mxu0 %v972
    %1000 = vmatprep.subr.mxu0 0.0
    %1001 = vmatpush1.msra.mxu0 %v973
    %1002 = vmatprep.subr.mxu0 0.0
    %1003 = vmatpush1.msra.mxu0 0.0
    %1004 = vmatprep.subr.mxu0 0.0
    %1005 = vmatpush1.msra.mxu0 0.0
    %1006 = vmatprep.subr.mxu0 0.0
    %1007 = vmatpush1.msra.mxu0 0.0
    %1008 = vmatprep.subr.mxu0 0.0
    %1009 = vmatpush1.msra.mxu0 0.0
    %1010 = vmatprep.subr.mxu0 0.0
    %1011 = vmatpush1.msra.mxu0 0.0
    %1012 = vmatprep.subr.mxu0 0.0
    %1013 = vmatpush1.msra.mxu0 0.0
    %1014 = vmatprep.subr.mxu0 0.0
    %1015 = vmatpush1.msra.mxu0 0.0
    %1016 = vmatprep.subr.mxu0 0.0
    %1017 = vmatpush1.msra.mxu0 0.0
    %1018 = vmatprep.subr.mxu0 0.0
    %1019 = vmatpush1.msra.mxu0 0.0
    %1020 = vmatprep.subr.mxu0 0.0
    %1021 = vmatpush1.msra.mxu0 0.0
    %1022 = vmatprep.subr.mxu0 0.0
    %1023 = vmatpush1.msra.mxu0 0.0
    %1024 = vmatprep.subr.mxu0 0.0
    %1025 = vmatpush1.msra.mxu0 0.0
    %1026 = vmatprep.subr.mxu0 0.0
    %1027 = vmatpush1.msra.mxu0 0.0
    %1028 = vmatprep.subr.mxu0 0.0
    %1029 = vmatpush1.msra.mxu0 0.0
    %1030 = vmatprep.subr.mxu0 0.0
    %1031 = vmatpush1.msra.mxu0 0.0
    %1032 = vmatprep.subr.mxu0 0.0
    %1033 = vmatpush1.msra.mxu0 0.0
    %1034 = vmatprep.subr.mxu0 0.0
    %1035 = vmatpush1.msra.mxu0 0.0
    %1036 = vmatprep.subr.mxu0 0.0
    %1037 = vmatpush1.msra.mxu0 0.0
    %1038 = vmatprep.subr.mxu0 0.0
    %1039 = vmatpush1.msra.mxu0 0.0
    %1040 = vmatprep.subr.mxu0 0.0
    %1041 = vmatpush1.msra.mxu0 0.0
    %1042 = vmatprep.subr.mxu0 0.0
    %1043 = vmatpush1.msra.mxu0 0.0
    %1044 = vmatprep.subr.mxu0 0.0
    %1045 = vmatpush1.msra.mxu0 0.0
    %1046 = vmatprep.subr.mxu0 0.0
    %1047 = vmatpush1.msra.mxu0 0.0
    %1048 = vmatprep.subr.mxu0 0.0
    %1049 = vmatpush1.msra.mxu0 0.0
    %1050 = vmatprep.mubr.f32.mxu0 0.0
    %1051 = vmatmul.mubr.f32.gmra.mrb[0].mxu0 %v975
    %v1052 = vpop.f32.mrb[0].mxu0
    %v1053 = vadd.f32 0.0, %v1052
    %v1054 = vpop.f32.mrb[0].mxu0
    %1055 = vmatprep.mubr.f32.mxu0 0.0
    %1056 = vmatmul.mubr.f32.gmra.mrb[0].mxu0 %v978
    %v1057 = vpop.f32.mrb[0].mxu0
    %v1058 = vadd.f32 0.0, %v1057
    %v1059 = vpop.f32.mrb[0].mxu0
    %1060 = vmatprep.mubr.f32.mxu0 0.0
    %1061 = vmatmul.mubr.f32.gmra.mrb[0].mxu0 %v981
    %v1062 = vpop.f32.mrb[0].mxu0
    %v1063 = vadd.f32 0.0, %v1062
    %v1064 = vpop.f32.mrb[0].mxu0
    %1065 = vmatprep.mubr.f32.mxu0 0.0
    %1066 = vmatmul.mubr.f32.gmra.mrb[0].mxu0 %v984
    %v1067 = vpop.f32.mrb[0].mxu0
    %v1068 = vadd.f32 0.0, %v1067
    %v1069 = vpop.f32.mrb[0].mxu0
    %1070 = vdwg.mxu0
    %v1071 = vadd.f32 %v845, %v1053
    %v1072 = vadd.f32 %v850, %v1058
    %v1073 = vadd.f32 %v855, %v1063
    %v1074 = vadd.f32 %v860, %v1068
    %s1075 = scalar_lea.vmem %s3, 96
    %v1076 = vld [vmem:[%s1075] sm:$0xff]
    %v1077 = vld [vmem:[%s1075 + $0x8] sm:$0xff]
    %v1078 = vld [vmem:[%s1075 + $0x10] sm:$0xff]
    %v1079 = vld [vmem:[%s1075 + $0x18] sm:$0xff]
    %v1081 = vsel %vm451, %v1076, 0
    %v1084 = vsel %vm451, %v1077, 0
    %v1087 = vsel %vm451, %v1078, 0
    %v1090 = vsel %vm451, %v1079, 0
    %1092 = vmatprep.subr.mxu0 0.0
    %1093 = vmatpush1.msra.mxu0 %v443
    %1094 = vmatprep.subr.mxu0 0.0
    %1095 = vmatpush1.msra.mxu0 %v444
    %1096 = vmatprep.subr.mxu0 0.0
    %1097 = vmatpush1.msra.mxu0 %v445
    %1098 = vmatprep.subr.mxu0 0.0
    %1099 = vmatpush1.msra.mxu0 %v446
    %1100 = vmatprep.subr.mxu0 0.0
    %1101 = vmatpush1.msra.mxu0 0.0
    %1102 = vmatprep.subr.mxu0 0.0
    %1103 = vmatpush1.msra.mxu0 0.0
    %1104 = vmatprep.subr.mxu0 0.0
    %1105 = vmatpush1.msra.mxu0 0.0
    %1106 = vmatprep.subr.mxu0 0.0
    %1107 = vmatpush1.msra.mxu0 0.0
    %1108 = vmatprep.subr.mxu0 0.0
    %1109 = vmatpush1.msra.mxu0 0.0
    %1110 = vmatprep.subr.mxu0 0.0
    %1111 = vmatpush1.msra.mxu0 0.0
    %1112 = vmatprep.subr.mxu0 0.0
    %1113 = vmatpush1.msra.mxu0 0.0
    %1114 = vmatprep.subr.mxu0 0.0
    %1115 = vmatpush1.msra.mxu0 0.0
    %1116 = vmatprep.subr.mxu0 0.0
    %1117 = vmatpush1.msra.mxu0 0.0
    %1118 = vmatprep.subr.mxu0 0.0
    %1119 = vmatpush1.msra.mxu0 0.0
    %1120 = vmatprep.subr.mxu0 0.0
    %1121 = vmatpush1.msra.mxu0 0.0
    %1122 = vmatprep.subr.mxu0 0.0
    %1123 = vmatpush1.msra.mxu0 0.0
    %1124 = vmatprep.subr.mxu0 0.0
    %1125 = vmatpush1.msra.mxu0 0.0
    %1126 = vmatprep.subr.mxu0 0.0
    %1127 = vmatpush1.msra.mxu0 0.0
    %1128 = vmatprep.subr.mxu0 0.0
    %1129 = vmatpush1.msra.mxu0 0.0
    %1130 = vmatprep.subr.mxu0 0.0
    %1131 = vmatpush1.msra.mxu0 0.0
    %1132 = vmatprep.subr.mxu0 0.0
    %1133 = vmatpush1.msra.mxu0 0.0
    %1134 = vmatprep.subr.mxu0 0.0
    %1135 = vmatpush1.msra.mxu0 0.0
    %1136 = vmatprep.subr.mxu0 0.0
    %1137 = vmatpush1.msra.mxu0 0.0
    %1138 = vmatprep.subr.mxu0 0.0
    %1139 = vmatpush1.msra.mxu0 0.0
    %1140 = vmatprep.subr.mxu0 0.0
    %1141 = vmatpush1.msra.mxu0 0.0
    %1142 = vmatprep.subr.mxu0 0.0
    %1143 = vmatpush1.msra.mxu0 0.0
    %1144 = vmatprep.subr.mxu0 0.0
    %1145 = vmatpush1.msra.mxu0 0.0
    %1146 = vmatprep.subr.mxu0 0.0
    %1147 = vmatpush1.msra.mxu0 0.0
    %1148 = vmatprep.subr.mxu0 0.0
    %1149 = vmatpush1.msra.mxu0 0.0
    %1150 = vmatprep.subr.mxu0 0.0
    %1151 = vmatpush1.msra.mxu0 0.0
    %1152 = vmatprep.subr.mxu0 0.0
    %1153 = vmatpush1.msra.mxu0 0.0
    %1154 = vmatprep.subr.mxu0 0.0
    %1155 = vmatpush1.msra.mxu0 0.0
    %1156 = vmatprep.mubr.f32.mxu0 0.0
    %1157 = vmatmul.mubr.f32.gmra.mrb[0].mxu0 %v1081
    %v1158 = vpop.f32.mrb[0].mxu0
    %v1159 = vadd.f32 0.0, %v1158
    %v1160 = vpop.f32.mrb[0].mxu0
    %1161 = vmatprep.mubr.f32.mxu0 0.0
    %1162 = vmatmul.mubr.f32.gmra.mrb[0].mxu0 %v1084
    %v1163 = vpop.f32.mrb[0].mxu0
    %v1164 = vadd.f32 0.0, %v1163
    %v1165 = vpop.f32.mrb[0].mxu0
    %1166 = vmatprep.mubr.f32.mxu0 0.0
    %1167 = vmatmul.mubr.f32.gmra.mrb[0].mxu0 %v1087
    %v1168 = vpop.f32.mrb[0].mxu0
    %v1169 = vadd.f32 0.0, %v1168
    %v1170 = vpop.f32.mrb[0].mxu0
    %1171 = vmatprep.mubr.f32.mxu0 0.0
    %1172 = vmatmul.mubr.f32.gmra.mrb[0].mxu0 %v1090
    %v1173 = vpop.f32.mrb[0].mxu0
    %v1174 = vadd.f32 0.0, %v1173
    %v1175 = vpop.f32.mrb[0].mxu0
    %1176 = vdwg.mxu0
    %s1177 = scalar_lea.vmem %s5, 192
    %v1178 = vld [vmem:[%s1177] sm:$0xff]
    %v1179 = vld [vmem:[%s1177 + $0x8] sm:$0xff]
    %v1180 = vld [vmem:[%s1177 + $0x10] sm:$0xff]
    %v1181 = vld [vmem:[%s1177 + $0x18] sm:$0xff]
    %v1182 = vld [vmem:[%s1177 + $0x20] sm:$0xff]
    %v1183 = vld [vmem:[%s1177 + $0x28] sm:$0xff]
    %v1184 = vld [vmem:[%s1177 + $0x30] sm:$0xff]
    %v1185 = vld [vmem:[%s1177 + $0x38] sm:$0xff]
    %v1187 = vsel %vm668, %v1159, 0
    %v1190 = vsel %vm668, %v1164, 0
    %v1193 = vsel %vm668, %v1169, 0
    %v1196 = vsel %vm668, %v1174, 0
    %1198 = vmatprep.subr.mxu0 0.0
    %1199 = vmatpush1.msra.mxu0 %v1178
    %1200 = vmatprep.subr.mxu0 0.0
    %1201 = vmatpush1.msra.mxu0 %v1179
    %1202 = vmatprep.subr.mxu0 0.0
    %1203 = vmatpush1.msra.mxu0 %v1180
    %1204 = vmatprep.subr.mxu0 0.0
    %1205 = vmatpush1.msra.mxu0 %v1181
    %1206 = vmatprep.subr.mxu0 0.0
    %1207 = vmatpush1.msra.mxu0 %v1182
    %1208 = vmatprep.subr.mxu0 0.0
    %1209 = vmatpush1.msra.mxu0 %v1183
    %1210 = vmatprep.subr.mxu0 0.0
    %1211 = vmatpush1.msra.mxu0 %v1184
    %1212 = vmatprep.subr.mxu0 0.0
    %1213 = vmatpush1.msra.mxu0 %v1185
    %1214 = vmatprep.subr.mxu0 0.0
    %1215 = vmatpush1.msra.mxu0 0.0
    %1216 = vmatprep.subr.mxu0 0.0
    %1217 = vmatpush1.msra.mxu0 0.0
    %1218 = vmatprep.subr.mxu0 0.0
    %1219 = vmatpush1.msra.mxu0 0.0
    %1220 = vmatprep.subr.mxu0 0.0
    %1221 = vmatpush1.msra.mxu0 0.0
    %1222 = vmatprep.subr.mxu0 0.0
    %1223 = vmatpush1.msra.mxu0 0.0
    %1224 = vmatprep.subr.mxu0 0.0
    %1225 = vmatpush1.msra.mxu0 0.0
    %1226 = vmatprep.subr.mxu0 0.0
    %1227 = vmatpush1.msra.mxu0 0.0
    %1228 = vmatprep.subr.mxu0 0.0
    %1229 = vmatpush1.msra.mxu0 0.0
    %1230 = vmatprep.subr.mxu0 0.0
    %1231 = vmatpush1.msra.mxu0 0.0
    %1232 = vmatprep.subr.mxu0 0.0
    %1233 = vmatpush1.msra.mxu0 0.0
    %1234 = vmatprep.subr.mxu0 0.0
    %1235 = vmatpush1.msra.mxu0 0.0
    %1236 = vmatprep.subr.mxu0 0.0
    %1237 = vmatpush1.msra.mxu0 0.0
    %1238 = vmatprep.subr.mxu0 0.0
    %1239 = vmatpush1.msra.mxu0 0.0
    %1240 = vmatprep.subr.mxu0 0.0
    %1241 = vmatpush1.msra.mxu0 0.0
    %1242 = vmatprep.subr.mxu0 0.0
    %1243 = vmatpush1.msra.mxu0 0.0
    %1244 = vmatprep.subr.mxu0 0.0
    %1245 = vmatpush1.msra.mxu0 0.0
    %1246 = vmatprep.subr.mxu0 0.0
    %1247 = vmatpush1.msra.mxu0 0.0
    %1248 = vmatprep.subr.mxu0 0.0
    %1249 = vmatpush1.msra.mxu0 0.0
    %1250 = vmatprep.subr.mxu0 0.0
    %1251 = vmatpush1.msra.mxu0 0.0
    %1252 = vmatprep.subr.mxu0 0.0
    %1253 = vmatpush1.msra.mxu0 0.0
    %1254 = vmatprep.subr.mxu0 0.0
    %1255 = vmatpush1.msra.mxu0 0.0
    %1256 = vmatprep.subr.mxu0 0.0
    %1257 = vmatpush1.msra.mxu0 0.0
    %1258 = vmatprep.subr.mxu0 0.0
    %1259 = vmatpush1.msra.mxu0 0.0
    %1260 = vmatprep.subr.mxu0 0.0
    %1261 = vmatpush1.msra.mxu0 0.0
    %1262 = vmatprep.mubr.f32.mxu0 0.0
    %1263 = vmatmul.mubr.f32.gmra.mrb[0].mxu0 %v1187
    %v1264 = vpop.f32.mrb[0].mxu0
    %v1265 = vadd.f32 0.0, %v1264
    %v1266 = vpop.f32.mrb[0].mxu0
    %1267 = vmatprep.mubr.f32.mxu0 0.0
    %1268 = vmatmul.mubr.f32.gmra.mrb[0].mxu0 %v1190
    %v1269 = vpop.f32.mrb[0].mxu0
    %v1270 = vadd.f32 0.0, %v1269
    %v1271 = vpop.f32.mrb[0].mxu0
    %1272 = vmatprep.mubr.f32.mxu0 0.0
    %1273 = vmatmul.mubr.f32.gmra.mrb[0].mxu0 %v1193
    %v1274 = vpop.f32.mrb[0].mxu0
    %v1275 = vadd.f32 0.0, %v1274
    %v1276 = vpop.f32.mrb[0].mxu0
    %1277 = vmatprep.mubr.f32.mxu0 0.0
    %1278 = vmatmul.mubr.f32.gmra.mrb[0].mxu0 %v1196
    %v1279 = vpop.f32.mrb[0].mxu0
    %v1280 = vadd.f32 0.0, %v1279
    %v1281 = vpop.f32.mrb[0].mxu0
    %1282 = vdwg.mxu0
    %v1283 = vadd.f32 %v1071, %v1265
    %v1284 = vadd.f32 %v1072, %v1270
    %v1285 = vadd.f32 %v1073, %v1275
    %v1286 = vadd.f32 %v1074, %v1280
    %s1287 = scalar_lea.vmem %s3, 128
    %v1288 = vld [vmem:[%s1287] sm:$0xff]
    %v1289 = vld [vmem:[%s1287 + $0x8] sm:$0xff]
    %v1290 = vld [vmem:[%s1287 + $0x10] sm:$0xff]
    %v1291 = vld [vmem:[%s1287 + $0x18] sm:$0xff]
    %v1293 = vsel %vm451, %v1288, 0
    %v1296 = vsel %vm451, %v1289, 0
    %v1299 = vsel %vm451, %v1290, 0
    %v1302 = vsel %vm451, %v1291, 0
    %1304 = vmatprep.subr.mxu0 0.0
    %1305 = vmatpush1.msra.mxu0 %v443
    %1306 = vmatprep.subr.mxu0 0.0
    %1307 = vmatpush1.msra.mxu0 %v444
    %1308 = vmatprep.subr.mxu0 0.0
    %1309 = vmatpush1.msra.mxu0 %v445
    %1310 = vmatprep.subr.mxu0 0.0
    %1311 = vmatpush1.msra.mxu0 %v446
    %1312 = vmatprep.subr.mxu0 0.0
    %1313 = vmatpush1.msra.mxu0 0.0
    %1314 = vmatprep.subr.mxu0 0.0
    %1315 = vmatpush1.msra.mxu0 0.0
    %1316 = vmatprep.subr.mxu0 0.0
    %1317 = vmatpush1.msra.mxu0 0.0
    %1318 = vmatprep.subr.mxu0 0.0
    %1319 = vmatpush1.msra.mxu0 0.0
    %1320 = vmatprep.subr.mxu0 0.0
    %1321 = vmatpush1.msra.mxu0 0.0
    %1322 = vmatprep.subr.mxu0 0.0
    %1323 = vmatpush1.msra.mxu0 0.0
    %1324 = vmatprep.subr.mxu0 0.0
    %1325 = vmatpush1.msra.mxu0 0.0
    %1326 = vmatprep.subr.mxu0 0.0
    %1327 = vmatpush1.msra.mxu0 0.0
    %1328 = vmatprep.subr.mxu0 0.0
    %1329 = vmatpush1.msra.mxu0 0.0
    %1330 = vmatprep.subr.mxu0 0.0
    %1331 = vmatpush1.msra.mxu0 0.0
    %1332 = vmatprep.subr.mxu0 0.0
    %1333 = vmatpush1.msra.mxu0 0.0
    %1334 = vmatprep.subr.mxu0 0.0
    %1335 = vmatpush1.msra.mxu0 0.0
    %1336 = vmatprep.subr.mxu0 0.0
    %1337 = vmatpush1.msra.mxu0 0.0
    %1338 = vmatprep.subr.mxu0 0.0
    %1339 = vmatpush1.msra.mxu0 0.0
    %1340 = vmatprep.subr.mxu0 0.0
    %1341 = vmatpush1.msra.mxu0 0.0
    %1342 = vmatprep.subr.mxu0 0.0
    %1343 = vmatpush1.msra.mxu0 0.0
    %1344 = vmatprep.subr.mxu0 0.0
    %1345 = vmatpush1.msra.mxu0 0.0
    %1346 = vmatprep.subr.mxu0 0.0
    %1347 = vmatpush1.msra.mxu0 0.0
    %1348 = vmatprep.subr.mxu0 0.0
    %1349 = vmatpush1.msra.mxu0 0.0
    %1350 = vmatprep.subr.mxu0 0.0
    %1351 = vmatpush1.msra.mxu0 0.0
    %1352 = vmatprep.subr.mxu0 0.0
    %1353 = vmatpush1.msra.mxu0 0.0
    %1354 = vmatprep.subr.mxu0 0.0
    %1355 = vmatpush1.msra.mxu0 0.0
    %1356 = vmatprep.subr.mxu0 0.0
    %1357 = vmatpush1.msra.mxu0 0.0
    %1358 = vmatprep.subr.mxu0 0.0
    %1359 = vmatpush1.msra.mxu0 0.0
    %1360 = vmatprep.subr.mxu0 0.0
    %1361 = vmatpush1.msra.mxu0 0.0
    %1362 = vmatprep.subr.mxu0 0.0
    %1363 = vmatpush1.msra.mxu0 0.0
    %1364 = vmatprep.subr.mxu0 0.0
    %1365 = vmatpush1.msra.mxu0 0.0
    %1366 = vmatprep.subr.mxu0 0.0
    %1367 = vmatpush1.msra.mxu0 0.0
    %1368 = vmatprep.mubr.f32.mxu0 0.0
    %1369 = vmatmul.mubr.f32.gmra.mrb[0].mxu0 %v1293
    %v1370 = vpop.f32.mrb[0].mxu0
    %v1371 = vadd.f32 0.0, %v1370
    %v1372 = vpop.f32.mrb[0].mxu0
    %1373 = vmatprep.mubr.f32.mxu0 0.0
    %1374 = vmatmul.mubr.f32.gmra.mrb[0].mxu0 %v1296
    %v1375 = vpop.f32.mrb[0].mxu0
    %v1376 = vadd.f32 0.0, %v1375
    %v1377 = vpop.f32.mrb[0].mxu0
    %1378 = vmatprep.mubr.f32.mxu0 0.0
    %1379 = vmatmul.mubr.f32.gmra.mrb[0].mxu0 %v1299
    %v1380 = vpop.f32.mrb[0].mxu0
    %v1381 = vadd.f32 0.0, %v1380
    %v1382 = vpop.f32.mrb[0].mxu0
    %1383 = vmatprep.mubr.f32.mxu0 0.0
    %1384 = vmatmul.mubr.f32.gmra.mrb[0].mxu0 %v1302
    %v1385 = vpop.f32.mrb[0].mxu0
    %v1386 = vadd.f32 0.0, %v1385
    %v1387 = vpop.f32.mrb[0].mxu0
    %1388 = vdwg.mxu0
    %s1389 = scalar_lea.vmem %s5, 256
    %v1390 = vld [vmem:[%s1389] sm:$0xff]
    %v1391 = vld [vmem:[%s1389 + $0x8] sm:$0xff]
    %v1392 = vld [vmem:[%s1389 + $0x10] sm:$0xff]
    %v1393 = vld [vmem:[%s1389 + $0x18] sm:$0xff]
    %v1394 = vld [vmem:[%s1389 + $0x20] sm:$0xff]
    %v1395 = vld [vmem:[%s1389 + $0x28] sm:$0xff]
    %v1396 = vld [vmem:[%s1389 + $0x30] sm:$0xff]
    %v1397 = vld [vmem:[%s1389 + $0x38] sm:$0xff]
    %v1399 = vsel %vm668, %v1371, 0
    %v1402 = vsel %vm668, %v1376, 0
    %v1405 = vsel %vm668, %v1381, 0
    %v1408 = vsel %vm668, %v1386, 0
    %1410 = vmatprep.subr.mxu0 0.0
    %1411 = vmatpush1.msra.mxu0 %v1390
    %1412 = vmatprep.subr.mxu0 0.0
    %1413 = vmatpush1.msra.mxu0 %v1391
    %1414 = vmatprep.subr.mxu0 0.0
    %1415 = vmatpush1.msra.mxu0 %v1392
    %1416 = vmatprep.subr.mxu0 0.0
    %1417 = vmatpush1.msra.mxu0 %v1393
    %1418 = vmatprep.subr.mxu0 0.0
    %1419 = vmatpush1.msra.mxu0 %v1394
    %1420 = vmatprep.subr.mxu0 0.0
    %1421 = vmatpush1.msra.mxu0 %v1395
    %1422 = vmatprep.subr.mxu0 0.0
    %1423 = vmatpush1.msra.mxu0 %v1396
    %1424 = vmatprep.subr.mxu0 0.0
    %1425 = vmatpush1.msra.mxu0 %v1397
    %1426 = vmatprep.subr.mxu0 0.0
    %1427 = vmatpush1.msra.mxu0 0.0
    %1428 = vmatprep.subr.mxu0 0.0
    %1429 = vmatpush1.msra.mxu0 0.0
    %1430 = vmatprep.subr.mxu0 0.0
    %1431 = vmatpush1.msra.mxu0 0.0
    %1432 = vmatprep.subr.mxu0 0.0
    %1433 = vmatpush1.msra.mxu0 0.0
    %1434 = vmatprep.subr.mxu0 0.0
    %1435 = vmatpush1.msra.mxu0 0.0
    %1436 = vmatprep.subr.mxu0 0.0
    %1437 = vmatpush1.msra.mxu0 0.0
    %1438 = vmatprep.subr.mxu0 0.0
    %1439 = vmatpush1.msra.mxu0 0.0
    %1440 = vmatprep.subr.mxu0 0.0
    %1441 = vmatpush1.msra.mxu0 0.0
    %1442 = vmatprep.subr.mxu0 0.0
    %1443 = vmatpush1.msra.mxu0 0.0
    %1444 = vmatprep.subr.mxu0 0.0
    %1445 = vmatpush1.msra.mxu0 0.0
    %1446 = vmatprep.subr.mxu0 0.0
    %1447 = vmatpush1.msra.mxu0 0.0
    %1448 = vmatprep.subr.mxu0 0.0
    %1449 = vmatpush1.msra.mxu0 0.0
    %1450 = vmatprep.subr.mxu0 0.0
    %1451 = vmatpush1.msra.mxu0 0.0
    %1452 = vmatprep.subr.mxu0 0.0
    %1453 = vmatpush1.msra.mxu0 0.0
    %1454 = vmatprep.subr.mxu0 0.0
    %1455 = vmatpush1.msra.mxu0 0.0
    %1456 = vmatprep.subr.mxu0 0.0
    %1457 = vmatpush1.msra.mxu0 0.0
    %1458 = vmatprep.subr.mxu0 0.0
    %1459 = vmatpush1.msra.mxu0 0.0
    %1460 = vmatprep.subr.mxu0 0.0
    %1461 = vmatpush1.msra.mxu0 0.0
    %1462 = vmatprep.subr.mxu0 0.0
    %1463 = vmatpush1.msra.mxu0 0.0
    %1464 = vmatprep.subr.mxu0 0.0
    %1465 = vmatpush1.msra.mxu0 0.0
    %1466 = vmatprep.subr.mxu0 0.0
    %1467 = vmatpush1.msra.mxu0 0.0
    %1468 = vmatprep.subr.mxu0 0.0
    %1469 = vmatpush1.msra.mxu0 0.0
    %1470 = vmatprep.subr.mxu0 0.0
    %1471 = vmatpush1.msra.mxu0 0.0
    %1472 = vmatprep.subr.mxu0 0.0
    %1473 = vmatpush1.msra.mxu0 0.0
    %1474 = vmatprep.mubr.f32.mxu0 0.0
    %1475 = vmatmul.mubr.f32.gmra.mrb[0].mxu0 %v1399
    %v1476 = vpop.f32.mrb[0].mxu0
    %v1477 = vadd.f32 0.0, %v1476
    %v1478 = vpop.f32.mrb[0].mxu0
    %1479 = vmatprep.mubr.f32.mxu0 0.0
    %1480 = vmatmul.mubr.f32.gmra.mrb[0].mxu0 %v1402
    %v1481 = vpop.f32.mrb[0].mxu0
    %v1482 = vadd.f32 0.0, %v1481
    %v1483 = vpop.f32.mrb[0].mxu0
    %1484 = vmatprep.mubr.f32.mxu0 0.0
    %1485 = vmatmul.mubr.f32.gmra.mrb[0].mxu0 %v1405
    %v1486 = vpop.f32.mrb[0].mxu0
    %v1487 = vadd.f32 0.0, %v1486
    %v1488 = vpop.f32.mrb[0].mxu0
    %1489 = vmatprep.mubr.f32.mxu0 0.0
    %1490 = vmatmul.mubr.f32.gmra.mrb[0].mxu0 %v1408
    %v1491 = vpop.f32.mrb[0].mxu0
    %v1492 = vadd.f32 0.0, %v1491
    %v1493 = vpop.f32.mrb[0].mxu0
    %1494 = vdwg.mxu0
    %v1495 = vadd.f32 %v1283, %v1477
    %v1496 = vadd.f32 %v1284, %v1482
    %v1497 = vadd.f32 %v1285, %v1487
    %v1498 = vadd.f32 %v1286, %v1492
    %s1499 = scalar_lea.vmem %s3, 160
    %v1500 = vld [vmem:[%s1499] sm:$0xff]
    %v1501 = vld [vmem:[%s1499 + $0x8] sm:$0xff]
    %v1502 = vld [vmem:[%s1499 + $0x10] sm:$0xff]
    %v1503 = vld [vmem:[%s1499 + $0x18] sm:$0xff]
    %v1505 = vsel %vm451, %v1500, 0
    %v1508 = vsel %vm451, %v1501, 0
    %v1511 = vsel %vm451, %v1502, 0
    %v1514 = vsel %vm451, %v1503, 0
    %1516 = vmatprep.subr.mxu0 0.0
    %1517 = vmatpush1.msra.mxu0 %v443
    %1518 = vmatprep.subr.mxu0 0.0
    %1519 = vmatpush1.msra.mxu0 %v444
    %1520 = vmatprep.subr.mxu0 0.0
    %1521 = vmatpush1.msra.mxu0 %v445
    %1522 = vmatprep.subr.mxu0 0.0
    %1523 = vmatpush1.msra.mxu0 %v446
    %1524 = vmatprep.subr.mxu0 0.0
    %1525 = vmatpush1.msra.mxu0 0.0
    %1526 = vmatprep.subr.mxu0 0.0
    %1527 = vmatpush1.msra.mxu0 0.0
    %1528 = vmatprep.subr.mxu0 0.0
    %1529 = vmatpush1.msra.mxu0 0.0
    %1530 = vmatprep.subr.mxu0 0.0
    %1531 = vmatpush1.msra.mxu0 0.0
    %1532 = vmatprep.subr.mxu0 0.0
    %1533 = vmatpush1.msra.mxu0 0.0
    %1534 = vmatprep.subr.mxu0 0.0
    %1535 = vmatpush1.msra.mxu0 0.0
    %1536 = vmatprep.subr.mxu0 0.0
    %1537 = vmatpush1.msra.mxu0 0.0
    %1538 = vmatprep.subr.mxu0 0.0
    %1539 = vmatpush1.msra.mxu0 0.0
    %1540 = vmatprep.subr.mxu0 0.0
    %1541 = vmatpush1.msra.mxu0 0.0
    %1542 = vmatprep.subr.mxu0 0.0
    %1543 = vmatpush1.msra.mxu0 0.0
    %1544 = vmatprep.subr.mxu0 0.0
    %1545 = vmatpush1.msra.mxu0 0.0
    %1546 = vmatprep.subr.mxu0 0.0
    %1547 = vmatpush1.msra.mxu0 0.0
    %1548 = vmatprep.subr.mxu0 0.0
    %1549 = vmatpush1.msra.mxu0 0.0
    %1550 = vmatprep.subr.mxu0 0.0
    %1551 = vmatpush1.msra.mxu0 0.0
    %1552 = vmatprep.subr.mxu0 0.0
    %1553 = vmatpush1.msra.mxu0 0.0
    %1554 = vmatprep.subr.mxu0 0.0
    %1555 = vmatpush1.msra.mxu0 0.0
    %1556 = vmatprep.subr.mxu0 0.0
    %1557 = vmatpush1.msra.mxu0 0.0
    %1558 = vmatprep.subr.mxu0 0.0
    %1559 = vmatpush1.msra.mxu0 0.0
    %1560 = vmatprep.subr.mxu0 0.0
    %1561 = vmatpush1.msra.mxu0 0.0
    %1562 = vmatprep.subr.mxu0 0.0
    %1563 = vmatpush1.msra.mxu0 0.0
    %1564 = vmatprep.subr.mxu0 0.0
    %1565 = vmatpush1.msra.mxu0 0.0
    %1566 = vmatprep.subr.mxu0 0.0
    %1567 = vmatpush1.msra.mxu0 0.0
    %1568 = vmatprep.subr.mxu0 0.0
    %1569 = vmatpush1.msra.mxu0 0.0
    %1570 = vmatprep.subr.mxu0 0.0
    %1571 = vmatpush1.msra.mxu0 0.0
    %1572 = vmatprep.subr.mxu0 0.0
    %1573 = vmatpush1.msra.mxu0 0.0
    %1574 = vmatprep.subr.mxu0 0.0
    %1575 = vmatpush1.msra.mxu0 0.0
    %1576 = vmatprep.subr.mxu0 0.0
    %1577 = vmatpush1.msra.mxu0 0.0
    %1578 = vmatprep.subr.mxu0 0.0
    %1579 = vmatpush1.msra.mxu0 0.0
    %1580 = vmatprep.mubr.f32.mxu0 0.0
    %1581 = vmatmul.mubr.f32.gmra.mrb[0].mxu0 %v1505
    %v1582 = vpop.f32.mrb[0].mxu0
    %v1583 = vadd.f32 0.0, %v1582
    %v1584 = vpop.f32.mrb[0].mxu0
    %1585 = vmatprep.mubr.f32.mxu0 0.0
    %1586 = vmatmul.mubr.f32.gmra.mrb[0].mxu0 %v1508
    %v1587 = vpop.f32.mrb[0].mxu0
    %v1588 = vadd.f32 0.0, %v1587
    %v1589 = vpop.f32.mrb[0].mxu0
    %1590 = vmatprep.mubr.f32.mxu0 0.0
    %1591 = vmatmul.mubr.f32.gmra.mrb[0].mxu0 %v1511
    %v1592 = vpop.f32.mrb[0].mxu0
    %v1593 = vadd.f32 0.0, %v1592
    %v1594 = vpop.f32.mrb[0].mxu0
    %1595 = vmatprep.mubr.f32.mxu0 0.0
    %1596 = vmatmul.mubr.f32.gmra.mrb[0].mxu0 %v1514
    %v1597 = vpop.f32.mrb[0].mxu0
    %v1598 = vadd.f32 0.0, %v1597
    %v1599 = vpop.f32.mrb[0].mxu0
    %1600 = vdwg.mxu0
    %s1601 = scalar_lea.vmem %s5, 320
    %v1602 = vld [vmem:[%s1601] sm:$0xff]
    %v1603 = vld [vmem:[%s1601 + $0x8] sm:$0xff]
    %v1604 = vld [vmem:[%s1601 + $0x10] sm:$0xff]
    %v1605 = vld [vmem:[%s1601 + $0x18] sm:$0xff]
    %v1606 = vld [vmem:[%s1601 + $0x20] sm:$0xff]
    %v1607 = vld [vmem:[%s1601 + $0x28] sm:$0xff]
    %v1608 = vld [vmem:[%s1601 + $0x30] sm:$0xff]
    %v1609 = vld [vmem:[%s1601 + $0x38] sm:$0xff]
    %v1611 = vsel %vm668, %v1583, 0
    %v1614 = vsel %vm668, %v1588, 0
    %v1617 = vsel %vm668, %v1593, 0
    %v1620 = vsel %vm668, %v1598, 0
    %1622 = vmatprep.subr.mxu0 0.0
    %1623 = vmatpush1.msra.mxu0 %v1602
    %1624 = vmatprep.subr.mxu0 0.0
    %1625 = vmatpush1.msra.mxu0 %v1603
    %1626 = vmatprep.subr.mxu0 0.0
    %1627 = vmatpush1.msra.mxu0 %v1604
    %1628 = vmatprep.subr.mxu0 0.0
    %1629 = vmatpush1.msra.mxu0 %v1605
    %1630 = vmatprep.subr.mxu0 0.0
    %1631 = vmatpush1.msra.mxu0 %v1606
    %1632 = vmatprep.subr.mxu0 0.0
    %1633 = vmatpush1.msra.mxu0 %v1607
    %1634 = vmatprep.subr.mxu0 0.0
    %1635 = vmatpush1.msra.mxu0 %v1608
    %1636 = vmatprep.subr.mxu0 0.0
    %1637 = vmatpush1.msra.mxu0 %v1609
    %1638 = vmatprep.subr.mxu0 0.0
    %1639 = vmatpush1.msra.mxu0 0.0
    %1640 = vmatprep.subr.mxu0 0.0
    %1641 = vmatpush1.msra.mxu0 0.0
    %1642 = vmatprep.subr.mxu0 0.0
    %1643 = vmatpush1.msra.mxu0 0.0
    %1644 = vmatprep.subr.mxu0 0.0
    %1645 = vmatpush1.msra.mxu0 0.0
    %1646 = vmatprep.subr.mxu0 0.0
    %1647 = vmatpush1.msra.mxu0 0.0
    %1648 = vmatprep.subr.mxu0 0.0
    %1649 = vmatpush1.msra.mxu0 0.0
    %1650 = vmatprep.subr.mxu0 0.0
    %1651 = vmatpush1.msra.mxu0 0.0
    %1652 = vmatprep.subr.mxu0 0.0
    %1653 = vmatpush1.msra.mxu0 0.0
    %1654 = vmatprep.subr.mxu0 0.0
    %1655 = vmatpush1.msra.mxu0 0.0
    %1656 = vmatprep.subr.mxu0 0.0
    %1657 = vmatpush1.msra.mxu0 0.0
    %1658 = vmatprep.subr.mxu0 0.0
    %1659 = vmatpush1.msra.mxu0 0.0
    %1660 = vmatprep.subr.mxu0 0.0
    %1661 = vmatpush1.msra.mxu0 0.0
    %1662 = vmatprep.subr.mxu0 0.0
    %1663 = vmatpush1.msra.mxu0 0.0
    %1664 = vmatprep.subr.mxu0 0.0
    %1665 = vmatpush1.msra.mxu0 0.0
    %1666 = vmatprep.subr.mxu0 0.0
    %1667 = vmatpush1.msra.mxu0 0.0
    %1668 = vmatprep.subr.mxu0 0.0
    %1669 = vmatpush1.msra.mxu0 0.0
    %1670 = vmatprep.subr.mxu0 0.0
    %1671 = vmatpush1.msra.mxu0 0.0
    %1672 = vmatprep.subr.mxu0 0.0
    %1673 = vmatpush1.msra.mxu0 0.0
    %1674 = vmatprep.subr.mxu0 0.0
    %1675 = vmatpush1.msra.mxu0 0.0
    %1676 = vmatprep.subr.mxu0 0.0
    %1677 = vmatpush1.msra.mxu0 0.0
    %1678 = vmatprep.subr.mxu0 0.0
    %1679 = vmatpush1.msra.mxu0 0.0
    %1680 = vmatprep.subr.mxu0 0.0
    %1681 = vmatpush1.msra.mxu0 0.0
    %1682 = vmatprep.subr.mxu0 0.0
    %1683 = vmatpush1.msra.mxu0 0.0
    %1684 = vmatprep.subr.mxu0 0.0
    %1685 = vmatpush1.msra.mxu0 0.0
    %1686 = vmatprep.mubr.f32.mxu0 0.0
    %1687 = vmatmul.mubr.f32.gmra.mrb[0].mxu0 %v1611
    %v1688 = vpop.f32.mrb[0].mxu0
    %v1689 = vadd.f32 0.0, %v1688
    %v1690 = vpop.f32.mrb[0].mxu0
    %1691 = vmatprep.mubr.f32.mxu0 0.0
    %1692 = vmatmul.mubr.f32.gmra.mrb[0].mxu0 %v1614
    %v1693 = vpop.f32.mrb[0].mxu0
    %v1694 = vadd.f32 0.0, %v1693
    %v1695 = vpop.f32.mrb[0].mxu0
    %1696 = vmatprep.mubr.f32.mxu0 0.0
    %1697 = vmatmul.mubr.f32.gmra.mrb[0].mxu0 %v1617
    %v1698 = vpop.f32.mrb[0].mxu0
    %v1699 = vadd.f32 0.0, %v1698
    %v1700 = vpop.f32.mrb[0].mxu0
    %1701 = vmatprep.mubr.f32.mxu0 0.0
    %1702 = vmatmul.mubr.f32.gmra.mrb[0].mxu0 %v1620
    %v1703 = vpop.f32.mrb[0].mxu0
    %v1704 = vadd.f32 0.0, %v1703
    %v1705 = vpop.f32.mrb[0].mxu0
    %1706 = vdwg.mxu0
    %v1707 = vadd.f32 %v1495, %v1689
    %v1708 = vadd.f32 %v1496, %v1694
    %v1709 = vadd.f32 %v1497, %v1699
    %v1710 = vadd.f32 %v1498, %v1704
    %s1711 = scalar_lea.vmem %s3, 192
    %v1712 = vld [vmem:[%s1711] sm:$0xff]
    %v1713 = vld [vmem:[%s1711 + $0x8] sm:$0xff]
    %v1714 = vld [vmem:[%s1711 + $0x10] sm:$0xff]
    %v1715 = vld [vmem:[%s1711 + $0x18] sm:$0xff]
    %v1717 = vsel %vm451, %v1712, 0
    %v1720 = vsel %vm451, %v1713, 0
    %v1723 = vsel %vm451, %v1714, 0
    %v1726 = vsel %vm451, %v1715, 0
    %1728 = vmatprep.subr.mxu0 0.0
    %1729 = vmatpush1.msra.mxu0 %v443
    %1730 = vmatprep.subr.mxu0 0.0
    %1731 = vmatpush1.msra.mxu0 %v444
    %1732 = vmatprep.subr.mxu0 0.0
    %1733 = vmatpush1.msra.mxu0 %v445
    %1734 = vmatprep.subr.mxu0 0.0
    %1735 = vmatpush1.msra.mxu0 %v446
    %1736 = vmatprep.subr.mxu0 0.0
    %1737 = vmatpush1.msra.mxu0 0.0
    %1738 = vmatprep.subr.mxu0 0.0
    %1739 = vmatpush1.msra.mxu0 0.0
    %1740 = vmatprep.subr.mxu0 0.0
    %1741 = vmatpush1.msra.mxu0 0.0
    %1742 = vmatprep.subr.mxu0 0.0
    %1743 = vmatpush1.msra.mxu0 0.0
    %1744 = vmatprep.subr.mxu0 0.0
    %1745 = vmatpush1.msra.mxu0 0.0
    %1746 = vmatprep.subr.mxu0 0.0
    %1747 = vmatpush1.msra.mxu0 0.0
    %1748 = vmatprep.subr.mxu0 0.0
    %1749 = vmatpush1.msra.mxu0 0.0
    %1750 = vmatprep.subr.mxu0 0.0
    %1751 = vmatpush1.msra.mxu0 0.0
    %1752 = vmatprep.subr.mxu0 0.0
    %1753 = vmatpush1.msra.mxu0 0.0
    %1754 = vmatprep.subr.mxu0 0.0
    %1755 = vmatpush1.msra.mxu0 0.0
    %1756 = vmatprep.subr.mxu0 0.0
    %1757 = vmatpush1.msra.mxu0 0.0
    %1758 = vmatprep.subr.mxu0 0.0
    %1759 = vmatpush1.msra.mxu0 0.0
    %1760 = vmatprep.subr.mxu0 0.0
    %1761 = vmatpush1.msra.mxu0 0.0
    %1762 = vmatprep.subr.mxu0 0.0
    %1763 = vmatpush1.msra.mxu0 0.0
    %1764 = vmatprep.subr.mxu0 0.0
    %1765 = vmatpush1.msra.mxu0 0.0
    %1766 = vmatprep.subr.mxu0 0.0
    %1767 = vmatpush1.msra.mxu0 0.0
    %1768 = vmatprep.subr.mxu0 0.0
    %1769 = vmatpush1.msra.mxu0 0.0
    %1770 = vmatprep.subr.mxu0 0.0
    %1771 = vmatpush1.msra.mxu0 0.0
    %1772 = vmatprep.subr.mxu0 0.0
    %1773 = vmatpush1.msra.mxu0 0.0
    %1774 = vmatprep.subr.mxu0 0.0
    %1775 = vmatpush1.msra.mxu0 0.0
    %1776 = vmatprep.subr.mxu0 0.0
    %1777 = vmatpush1.msra.mxu0 0.0
    %1778 = vmatprep.subr.mxu0 0.0
    %1779 = vmatpush1.msra.mxu0 0.0
    %1780 = vmatprep.subr.mxu0 0.0
    %1781 = vmatpush1.msra.mxu0 0.0
    %1782 = vmatprep.subr.mxu0 0.0
    %1783 = vmatpush1.msra.mxu0 0.0
    %1784 = vmatprep.subr.mxu0 0.0
    %1785 = vmatpush1.msra.mxu0 0.0
    %1786 = vmatprep.subr.mxu0 0.0
    %1787 = vmatpush1.msra.mxu0 0.0
    %1788 = vmatprep.subr.mxu0 0.0
    %1789 = vmatpush1.msra.mxu0 0.0
    %1790 = vmatprep.subr.mxu0 0.0
    %1791 = vmatpush1.msra.mxu0 0.0
    %1792 = vmatprep.mubr.f32.mxu0 0.0
    %1793 = vmatmul.mubr.f32.gmra.mrb[0].mxu0 %v1717
    %v1794 = vpop.f32.mrb[0].mxu0
    %v1795 = vadd.f32 0.0, %v1794
    %v1796 = vpop.f32.mrb[0].mxu0
    %1797 = vmatprep.mubr.f32.mxu0 0.0
    %1798 = vmatmul.mubr.f32.gmra.mrb[0].mxu0 %v1720
    %v1799 = vpop.f32.mrb[0].mxu0
    %v1800 = vadd.f32 0.0, %v1799
    %v1801 = vpop.f32.mrb[0].mxu0
    %1802 = vmatprep.mubr.f32.mxu0 0.0
    %1803 = vmatmul.mubr.f32.gmra.mrb[0].mxu0 %v1723
    %v1804 = vpop.f32.mrb[0].mxu0
    %v1805 = vadd.f32 0.0, %v1804
    %v1806 = vpop.f32.mrb[0].mxu0
    %1807 = vmatprep.mubr.f32.mxu0 0.0
    %1808 = vmatmul.mubr.f32.gmra.mrb[0].mxu0 %v1726
    %v1809 = vpop.f32.mrb[0].mxu0
    %v1810 = vadd.f32 0.0, %v1809
    %v1811 = vpop.f32.mrb[0].mxu0
    %1812 = vdwg.mxu0
    %s1813 = scalar_lea.vmem %s5, 384
    %v1814 = vld [vmem:[%s1813] sm:$0xff]
    %v1815 = vld [vmem:[%s1813 + $0x8] sm:$0xff]
    %v1816 = vld [vmem:[%s1813 + $0x10] sm:$0xff]
    %v1817 = vld [vmem:[%s1813 + $0x18] sm:$0xff]
    %v1818 = vld [vmem:[%s1813 + $0x20] sm:$0xff]
    %v1819 = vld [vmem:[%s1813 + $0x28] sm:$0xff]
    %v1820 = vld [vmem:[%s1813 + $0x30] sm:$0xff]
    %v1821 = vld [vmem:[%s1813 + $0x38] sm:$0xff]
    %v1823 = vsel %vm668, %v1795, 0
    %v1826 = vsel %vm668, %v1800, 0
    %v1829 = vsel %vm668, %v1805, 0
    %v1832 = vsel %vm668, %v1810, 0
    %1834 = vmatprep.subr.mxu0 0.0
    %1835 = vmatpush1.msra.mxu0 %v1814
    %1836 = vmatprep.subr.mxu0 0.0
    %1837 = vmatpush1.msra.mxu0 %v1815
    %1838 = vmatprep.subr.mxu0 0.0
    %1839 = vmatpush1.msra.mxu0 %v1816
    %1840 = vmatprep.subr.mxu0 0.0
    %1841 = vmatpush1.msra.mxu0 %v1817
    %1842 = vmatprep.subr.mxu0 0.0
    %1843 = vmatpush1.msra.mxu0 %v1818
    %1844 = vmatprep.subr.mxu0 0.0
    %1845 = vmatpush1.msra.mxu0 %v1819
    %1846 = vmatprep.subr.mxu0 0.0
    %1847 = vmatpush1.msra.mxu0 %v1820
    %1848 = vmatprep.subr.mxu0 0.0
    %1849 = vmatpush1.msra.mxu0 %v1821
    %1850 = vmatprep.subr.mxu0 0.0
    %1851 = vmatpush1.msra.mxu0 0.0
    %1852 = vmatprep.subr.mxu0 0.0
    %1853 = vmatpush1.msra.mxu0 0.0
    %1854 = vmatprep.subr.mxu0 0.0
    %1855 = vmatpush1.msra.mxu0 0.0
    %1856 = vmatprep.subr.mxu0 0.0
    %1857 = vmatpush1.msra.mxu0 0.0
    %1858 = vmatprep.subr.mxu0 0.0
    %1859 = vmatpush1.msra.mxu0 0.0
    %1860 = vmatprep.subr.mxu0 0.0
    %1861 = vmatpush1.msra.mxu0 0.0
    %1862 = vmatprep.subr.mxu0 0.0
    %1863 = vmatpush1.msra.mxu0 0.0
    %1864 = vmatprep.subr.mxu0 0.0
    %1865 = vmatpush1.msra.mxu0 0.0
    %1866 = vmatprep.subr.mxu0 0.0
    %1867 = vmatpush1.msra.mxu0 0.0
    %1868 = vmatprep.subr.mxu0 0.0
    %1869 = vmatpush1.msra.mxu0 0.0
    %1870 = vmatprep.subr.mxu0 0.0
    %1871 = vmatpush1.msra.mxu0 0.0
    %1872 = vmatprep.subr.mxu0 0.0
    %1873 = vmatpush1.msra.mxu0 0.0
    %1874 = vmatprep.subr.mxu0 0.0
    %1875 = vmatpush1.msra.mxu0 0.0
    %1876 = vmatprep.subr.mxu0 0.0
    %1877 = vmatpush1.msra.mxu0 0.0
    %1878 = vmatprep.subr.mxu0 0.0
    %1879 = vmatpush1.msra.mxu0 0.0
    %1880 = vmatprep.subr.mxu0 0.0
    %1881 = vmatpush1.msra.mxu0 0.0
    %1882 = vmatprep.subr.mxu0 0.0
    %1883 = vmatpush1.msra.mxu0 0.0
    %1884 = vmatprep.subr.mxu0 0.0
    %1885 = vmatpush1.msra.mxu0 0.0
    %1886 = vmatprep.subr.mxu0 0.0
    %1887 = vmatpush1.msra.mxu0 0.0
    %1888 = vmatprep.subr.mxu0 0.0
    %1889 = vmatpush1.msra.mxu0 0.0
    %1890 = vmatprep.subr.mxu0 0.0
    %1891 = vmatpush1.msra.mxu0 0.0
    %1892 = vmatprep.subr.mxu0 0.0
    %1893 = vmatpush1.msra.mxu0 0.0
    %1894 = vmatprep.subr.mxu0 0.0
    %1895 = vmatpush1.msra.mxu0 0.0
    %1896 = vmatprep.subr.mxu0 0.0
    %1897 = vmatpush1.msra.mxu0 0.0
    %1898 = vmatprep.mubr.f32.mxu0 0.0
    %1899 = vmatmul.mubr.f32.gmra.mrb[0].mxu0 %v1823
    %v1900 = vpop.f32.mrb[0].mxu0
    %v1901 = vadd.f32 0.0, %v1900
    %v1902 = vpop.f32.mrb[0].mxu0
    %1903 = vmatprep.mubr.f32.mxu0 0.0
    %1904 = vmatmul.mubr.f32.gmra.mrb[0].mxu0 %v1826
    %v1905 = vpop.f32.mrb[0].mxu0
    %v1906 = vadd.f32 0.0, %v1905
    %v1907 = vpop.f32.mrb[0].mxu0
    %1908 = vmatprep.mubr.f32.mxu0 0.0
    %1909 = vmatmul.mubr.f32.gmra.mrb[0].mxu0 %v1829
    %v1910 = vpop.f32.mrb[0].mxu0
    %v1911 = vadd.f32 0.0, %v1910
    %v1912 = vpop.f32.mrb[0].mxu0
    %1913 = vmatprep.mubr.f32.mxu0 0.0
    %1914 = vmatmul.mubr.f32.gmra.mrb[0].mxu0 %v1832
    %v1915 = vpop.f32.mrb[0].mxu0
    %v1916 = vadd.f32 0.0, %v1915
    %v1917 = vpop.f32.mrb[0].mxu0
    %1918 = vdwg.mxu0
    %v1919 = vadd.f32 %v1707, %v1901
    %v1920 = vadd.f32 %v1708, %v1906
    %v1921 = vadd.f32 %v1709, %v1911
    %v1922 = vadd.f32 %v1710, %v1916
    %v1923 = vld [vmem:[%s7] sm:$0x1]
    %v1925 = vlaneseq
    %v1926 = vshrl.u32 %v1925, 7
    %v1927 = vsub.s32 0, %v1926
    %v1928 = vrot.slane %v1923, %v1927
    %v1930 = vadd.f32 %v1919, %v1928
    %v1931 = vadd.f32 %v1920, %v1928
    %v1932 = vadd.f32 %v1921, %v1928
    %v1933 = vadd.f32 %v1922, %v1928
    %v1934 = vld [vmem:[#allocation2] sm:$0xff]
    %v1935 = vld [vmem:[#allocation2 + $0x8] sm:$0xff]
    %v1936 = vld [vmem:[#allocation2 + $0x10] sm:$0xff]
    %v1937 = vld [vmem:[#allocation2 + $0x18] sm:$0xff]
    %v1939 = vsel %vm451, %v1934, 0
    %v1942 = vsel %vm451, %v1935, 0
    %v1945 = vsel %vm451, %v1936, 0
    %v1948 = vsel %vm451, %v1937, 0
    %1950 = vmatprep.subr.mxu0 0.0
    %1951 = vmatpush1.msra.mxu0 %v1930
    %1952 = vmatprep.subr.mxu0 0.0
    %1953 = vmatpush1.msra.mxu0 %v1931
    %1954 = vmatprep.subr.mxu0 0.0
    %1955 = vmatpush1.msra.mxu0 %v1932
    %1956 = vmatprep.subr.mxu0 0.0
    %1957 = vmatpush1.msra.mxu0 %v1933
    %1958 = vmatprep.subr.mxu0 0.0
    %1959 = vmatpush1.msra.mxu0 0.0
    %1960 = vmatprep.subr.mxu0 0.0
    %1961 = vmatpush1.msra.mxu0 0.0
    %1962 = vmatprep.subr.mxu0 0.0
    %1963 = vmatpush1.msra.mxu0 0.0
    %1964 = vmatprep.subr.mxu0 0.0
    %1965 = vmatpush1.msra.mxu0 0.0
    %1966 = vmatprep.subr.mxu0 0.0
    %1967 = vmatpush1.msra.mxu0 0.0
    %1968 = vmatprep.subr.mxu0 0.0
    %1969 = vmatpush1.msra.mxu0 0.0
    %1970 = vmatprep.subr.mxu0 0.0
    %1971 = vmatpush1.msra.mxu0 0.0
    %1972 = vmatprep.subr.mxu0 0.0
    %1973 = vmatpush1.msra.mxu0 0.0
    %1974 = vmatprep.subr.mxu0 0.0
    %1975 = vmatpush1.msra.mxu0 0.0
    %1976 = vmatprep.subr.mxu0 0.0
    %1977 = vmatpush1.msra.mxu0 0.0
    %1978 = vmatprep.subr.mxu0 0.0
    %1979 = vmatpush1.msra.mxu0 0.0
    %1980 = vmatprep.subr.mxu0 0.0
    %1981 = vmatpush1.msra.mxu0 0.0
    %1982 = vmatprep.subr.mxu0 0.0
    %1983 = vmatpush1.msra.mxu0 0.0
    %1984 = vmatprep.subr.mxu0 0.0
    %1985 = vmatpush1.msra.mxu0 0.0
    %1986 = vmatprep.subr.mxu0 0.0
    %1987 = vmatpush1.msra.mxu0 0.0
    %1988 = vmatprep.subr.mxu0 0.0
    %1989 = vmatpush1.msra.mxu0 0.0
    %1990 = vmatprep.subr.mxu0 0.0
    %1991 = vmatpush1.msra.mxu0 0.0
    %1992 = vmatprep.subr.mxu0 0.0
    %1993 = vmatpush1.msra.mxu0 0.0
    %1994 = vmatprep.subr.mxu0 0.0
    %1995 = vmatpush1.msra.mxu0 0.0
    %1996 = vmatprep.subr.mxu0 0.0
    %1997 = vmatpush1.msra.mxu0 0.0
    %1998 = vmatprep.subr.mxu0 0.0
    %1999 = vmatpush1.msra.mxu0 0.0
    %2000 = vmatprep.subr.mxu0 0.0
    %2001 = vmatpush1.msra.mxu0 0.0
    %2002 = vmatprep.subr.mxu0 0.0
    %2003 = vmatpush1.msra.mxu0 0.0
    %2004 = vmatprep.subr.mxu0 0.0
    %2005 = vmatpush1.msra.mxu0 0.0
    %2006 = vmatprep.subr.mxu0 0.0
    %2007 = vmatpush1.msra.mxu0 0.0
    %2008 = vmatprep.subr.mxu0 0.0
    %2009 = vmatpush1.msra.mxu0 0.0
    %2010 = vmatprep.subr.mxu0 0.0
    %2011 = vmatpush1.msra.mxu0 0.0
    %2012 = vmatprep.subr.mxu0 0.0
    %2013 = vmatpush1.msra.mxu0 0.0
    %2014 = vmatprep.mubr.f32.mxu0 0.0
    %2015 = vmatmul.mubr.f32.gmra.mrb[0].mxu0 %v1939
    %v2016 = vpop.f32.mrb[0].mxu0
    %v2017 = vadd.f32 0.0, %v2016
    %v2018 = vpop.f32.mrb[0].mxu0
    %2019 = vmatprep.mubr.f32.mxu0 0.0
    %2020 = vmatmul.mubr.f32.gmra.mrb[0].mxu0 %v1942
    %v2021 = vpop.f32.mrb[0].mxu0
    %v2022 = vadd.f32 0.0, %v2021
    %v2023 = vpop.f32.mrb[0].mxu0
    %2024 = vmatprep.mubr.f32.mxu0 0.0
    %2025 = vmatmul.mubr.f32.gmra.mrb[0].mxu0 %v1945
    %v2026 = vpop.f32.mrb[0].mxu0
    %v2027 = vadd.f32 0.0, %v2026
    %v2028 = vpop.f32.mrb[0].mxu0
    %2029 = vmatprep.mubr.f32.mxu0 0.0
    %2030 = vmatmul.mubr.f32.gmra.mrb[0].mxu0 %v1948
    %v2031 = vpop.f32.mrb[0].mxu0
    %v2032 = vadd.f32 0.0, %v2031
    %v2033 = vpop.f32.mrb[0].mxu0
    %2034 = vdwg.mxu0
    %v2035 = vld [vmem:[%s11] sm:$0xff]
    %v2036 = vld [vmem:[%s11 + $0x8] sm:$0xff]
    %v2037 = vld [vmem:[%s11 + $0x10] sm:$0xff]
    %v2038 = vld [vmem:[%s11 + $0x18] sm:$0xff]
    %v2039 = vld [vmem:[%s11 + $0x20] sm:$0xff]
    %v2040 = vld [vmem:[%s11 + $0x28] sm:$0xff]
    %v2041 = vld [vmem:[%s11 + $0x30] sm:$0xff]
    %v2042 = vld [vmem:[%s11 + $0x38] sm:$0xff]
    %v2043 = vld [vmem:[%s11 + $0x40] sm:$0xff]
    %v2044 = vld [vmem:[%s11 + $0x48] sm:$0xff]
    %v2045 = vld [vmem:[%s11 + $0x50] sm:$0xff]
    %v2046 = vld [vmem:[%s11 + $0x58] sm:$0xff]
    %v2047 = vld [vmem:[%s11 + $0x60] sm:$0xff]
    %v2048 = vld [vmem:[%s11 + $0x68] sm:$0xff]
    %v2049 = vld [vmem:[%s11 + $0x70] sm:$0xff]
    %v2050 = vld [vmem:[%s11 + $0x78] sm:$0xff]
    %s2051 = scalar_lea.vmem [#allocation2], 32
    %v2052 = vld [vmem:[%s2051] sm:$0xff]
    %v2053 = vld [vmem:[%s2051 + $0x8] sm:$0xff]
    %v2054 = vld [vmem:[%s2051 + $0x10] sm:$0xff]
    %v2055 = vld [vmem:[%s2051 + $0x18] sm:$0xff]
    %v2057 = vsel %vm451, %v2052, 0
    %v2060 = vsel %vm451, %v2053, 0
    %v2063 = vsel %vm451, %v2054, 0
    %v2066 = vsel %vm451, %v2055, 0
    %2068 = vmatprep.subr.mxu0 0.0
    %2069 = vmatpush1.msra.mxu0 %v1930
    %2070 = vmatprep.subr.mxu0 0.0
    %2071 = vmatpush1.msra.mxu0 %v1931
    %2072 = vmatprep.subr.mxu0 0.0
    %2073 = vmatpush1.msra.mxu0 %v1932
    %2074 = vmatprep.subr.mxu0 0.0
    %2075 = vmatpush1.msra.mxu0 %v1933
    %2076 = vmatprep.subr.mxu0 0.0
    %2077 = vmatpush1.msra.mxu0 0.0
    %2078 = vmatprep.subr.mxu0 0.0
    %2079 = vmatpush1.msra.mxu0 0.0
    %2080 = vmatprep.subr.mxu0 0.0
    %2081 = vmatpush1.msra.mxu0 0.0
    %2082 = vmatprep.subr.mxu0 0.0
    %2083 = vmatpush1.msra.mxu0 0.0
    %2084 = vmatprep.subr.mxu0 0.0
    %2085 = vmatpush1.msra.mxu0 0.0
    %2086 = vmatprep.subr.mxu0 0.0
    %2087 = vmatpush1.msra.mxu0 0.0
    %2088 = vmatprep.subr.mxu0 0.0
    %2089 = vmatpush1.msra.mxu0 0.0
    %2090 = vmatprep.subr.mxu0 0.0
    %2091 = vmatpush1.msra.mxu0 0.0
    %2092 = vmatprep.subr.mxu0 0.0
    %2093 = vmatpush1.msra.mxu0 0.0
    %2094 = vmatprep.subr.mxu0 0.0
    %2095 = vmatpush1.msra.mxu0 0.0
    %2096 = vmatprep.subr.mxu0 0.0
    %2097 = vmatpush1.msra.mxu0 0.0
    %2098 = vmatprep.subr.mxu0 0.0
    %2099 = vmatpush1.msra.mxu0 0.0
    %2100 = vmatprep.subr.mxu0 0.0
    %2101 = vmatpush1.msra.mxu0 0.0
    %2102 = vmatprep.subr.mxu0 0.0
    %2103 = vmatpush1.msra.mxu0 0.0
    %2104 = vmatprep.subr.mxu0 0.0
    %2105 = vmatpush1.msra.mxu0 0.0
    %2106 = vmatprep.subr.mxu0 0.0
    %2107 = vmatpush1.msra.mxu0 0.0
    %2108 = vmatprep.subr.mxu0 0.0
    %2109 = vmatpush1.msra.mxu0 0.0
    %2110 = vmatprep.subr.mxu0 0.0
    %2111 = vmatpush1.msra.mxu0 0.0
    %2112 = vmatprep.subr.mxu0 0.0
    %2113 = vmatpush1.msra.mxu0 0.0
    %2114 = vmatprep.subr.mxu0 0.0
    %2115 = vmatpush1.msra.mxu0 0.0
    %2116 = vmatprep.subr.mxu0 0.0
    %2117 = vmatpush1.msra.mxu0 0.0
    %2118 = vmatprep.subr.mxu0 0.0
    %2119 = vmatpush1.msra.mxu0 0.0
    %2120 = vmatprep.subr.mxu0 0.0
    %2121 = vmatpush1.msra.mxu0 0.0
    %2122 = vmatprep.subr.mxu0 0.0
    %2123 = vmatpush1.msra.mxu0 0.0
    %2124 = vmatprep.subr.mxu0 0.0
    %2125 = vmatpush1.msra.mxu0 0.0
    %2126 = vmatprep.subr.mxu0 0.0
    %2127 = vmatpush1.msra.mxu0 0.0
    %2128 = vmatprep.subr.mxu0 0.0
    %2129 = vmatpush1.msra.mxu0 0.0
    %2130 = vmatprep.subr.mxu0 0.0
    %2131 = vmatpush1.msra.mxu0 0.0
    %2132 = vmatprep.mubr.f32.mxu0 0.0
    %2133 = vmatmul.mubr.f32.gmra.mrb[0].mxu0 %v2057
    %v2134 = vpop.f32.mrb[0].mxu0
    %v2135 = vadd.f32 0.0, %v2134
    %v2136 = vpop.f32.mrb[0].mxu0
    %2137 = vmatprep.mubr.f32.mxu0 0.0
    %2138 = vmatmul.mubr.f32.gmra.mrb[0].mxu0 %v2060
    %v2139 = vpop.f32.mrb[0].mxu0
    %v2140 = vadd.f32 0.0, %v2139
    %v2141 = vpop.f32.mrb[0].mxu0
    %2142 = vmatprep.mubr.f32.mxu0 0.0
    %2143 = vmatmul.mubr.f32.gmra.mrb[0].mxu0 %v2063
    %v2144 = vpop.f32.mrb[0].mxu0
    %v2145 = vadd.f32 0.0, %v2144
    %v2146 = vpop.f32.mrb[0].mxu0
    %2147 = vmatprep.mubr.f32.mxu0 0.0
    %2148 = vmatmul.mubr.f32.gmra.mrb[0].mxu0 %v2066
    %v2149 = vpop.f32.mrb[0].mxu0
    %v2150 = vadd.f32 0.0, %v2149
    %v2151 = vpop.f32.mrb[0].mxu0
    %2152 = vdwg.mxu0
    %s2153 = scalar_lea.vmem %s11, 128
    %v2154 = vld [vmem:[%s2153] sm:$0xff]
    %v2155 = vld [vmem:[%s2153 + $0x8] sm:$0xff]
    %v2156 = vld [vmem:[%s2153 + $0x10] sm:$0xff]
    %v2157 = vld [vmem:[%s2153 + $0x18] sm:$0xff]
    %v2158 = vld [vmem:[%s2153 + $0x20] sm:$0xff]
    %v2159 = vld [vmem:[%s2153 + $0x28] sm:$0xff]
    %v2160 = vld [vmem:[%s2153 + $0x30] sm:$0xff]
    %v2161 = vld [vmem:[%s2153 + $0x38] sm:$0xff]
    %v2162 = vld [vmem:[%s2153 + $0x40] sm:$0xff]
    %v2163 = vld [vmem:[%s2153 + $0x48] sm:$0xff]
    %v2164 = vld [vmem:[%s2153 + $0x50] sm:$0xff]
    %v2165 = vld [vmem:[%s2153 + $0x58] sm:$0xff]
    %v2166 = vld [vmem:[%s2153 + $0x60] sm:$0xff]
    %v2167 = vld [vmem:[%s2153 + $0x68] sm:$0xff]
    %v2168 = vld [vmem:[%s2153 + $0x70] sm:$0xff]
    %v2169 = vld [vmem:[%s2153 + $0x78] sm:$0xff]
    %2170 = vmatprep.subr.mxu0 0.0
    %2171 = vmatpush1.msra.mxu0 %v2154
    %2172 = vmatprep.subr.mxu0 0.0
    %2173 = vmatpush1.msra.mxu0 %v2155
    %2174 = vmatprep.subr.mxu0 0.0
    %2175 = vmatpush1.msra.mxu0 %v2156
    %2176 = vmatprep.subr.mxu0 0.0
    %2177 = vmatpush1.msra.mxu0 %v2157
    %2178 = vmatprep.subr.mxu0 0.0
    %2179 = vmatpush1.msra.mxu0 %v2158
    %2180 = vmatprep.subr.mxu0 0.0
    %2181 = vmatpush1.msra.mxu0 %v2159
    %2182 = vmatprep.subr.mxu0 0.0
    %2183 = vmatpush1.msra.mxu0 %v2160
    %2184 = vmatprep.subr.mxu0 0.0
    %2185 = vmatpush1.msra.mxu0 %v2161
    %2186 = vmatprep.subr.mxu0 0.0
    %2187 = vmatpush1.msra.mxu0 %v2162
    %2188 = vmatprep.subr.mxu0 0.0
    %2189 = vmatpush1.msra.mxu0 %v2163
    %2190 = vmatprep.subr.mxu0 0.0
    %2191 = vmatpush1.msra.mxu0 %v2164
    %2192 = vmatprep.subr.mxu0 0.0
    %2193 = vmatpush1.msra.mxu0 %v2165
    %2194 = vmatprep.subr.mxu0 0.0
    %2195 = vmatpush1.msra.mxu0 %v2166
    %2196 = vmatprep.subr.mxu0 0.0
    %2197 = vmatpush1.msra.mxu0 %v2167
    %2198 = vmatprep.subr.mxu0 0.0
    %2199 = vmatpush1.msra.mxu0 %v2168
    %2200 = vmatprep.subr.mxu0 0.0
    %2201 = vmatpush1.msra.mxu0 %v2169
    %2202 = vmatprep.subr.mxu0 0.0
    %2203 = vmatpush1.msra.mxu0 0.0
    %2204 = vmatprep.subr.mxu0 0.0
    %2205 = vmatpush1.msra.mxu0 0.0
    %2206 = vmatprep.subr.mxu0 0.0
    %2207 = vmatpush1.msra.mxu0 0.0
    %2208 = vmatprep.subr.mxu0 0.0
    %2209 = vmatpush1.msra.mxu0 0.0
    %2210 = vmatprep.subr.mxu0 0.0
    %2211 = vmatpush1.msra.mxu0 0.0
    %2212 = vmatprep.subr.mxu0 0.0
    %2213 = vmatpush1.msra.mxu0 0.0
    %2214 = vmatprep.subr.mxu0 0.0
    %2215 = vmatpush1.msra.mxu0 0.0
    %2216 = vmatprep.subr.mxu0 0.0
    %2217 = vmatpush1.msra.mxu0 0.0
    %2218 = vmatprep.subr.mxu0 0.0
    %2219 = vmatpush1.msra.mxu0 0.0
    %2220 = vmatprep.subr.mxu0 0.0
    %2221 = vmatpush1.msra.mxu0 0.0
    %2222 = vmatprep.subr.mxu0 0.0
    %2223 = vmatpush1.msra.mxu0 0.0
    %2224 = vmatprep.subr.mxu0 0.0
    %2225 = vmatpush1.msra.mxu0 0.0
    %2226 = vmatprep.subr.mxu0 0.0
    %2227 = vmatpush1.msra.mxu0 0.0
    %2228 = vmatprep.subr.mxu0 0.0
    %2229 = vmatpush1.msra.mxu0 0.0
    %2230 = vmatprep.subr.mxu0 0.0
    %2231 = vmatpush1.msra.mxu0 0.0
    %2232 = vmatprep.subr.mxu0 0.0
    %2233 = vmatpush1.msra.mxu0 0.0
    %2234 = vmatprep.mubr.f32.mxu0 0.0
    %2235 = vmatmul.mubr.f32.gmra.mrb[0].mxu0 %v2135
    %v2236 = vpop.f32.mrb[0].mxu0
    %v2237 = vadd.f32 0.0, %v2236
    %v2238 = vpop.f32.mrb[0].mxu0
    %2239 = vmatprep.mubr.f32.mxu0 0.0
    %2240 = vmatmul.mubr.f32.gmra.mrb[0].mxu0 %v2140
    %v2241 = vpop.f32.mrb[0].mxu0
    %v2242 = vadd.f32 0.0, %v2241
    %v2243 = vpop.f32.mrb[0].mxu0
    %2244 = vmatprep.mubr.f32.mxu0 0.0
    %2245 = vmatmul.mubr.f32.gmra.mrb[0].mxu0 %v2145
    %v2246 = vpop.f32.mrb[0].mxu0
    %v2247 = vadd.f32 0.0, %v2246
    %v2248 = vpop.f32.mrb[0].mxu0
    %2249 = vmatprep.mubr.f32.mxu0 0.0
    %2250 = vmatmul.mubr.f32.gmra.mrb[0].mxu0 %v2150
    %v2251 = vpop.f32.mrb[0].mxu0
    %v2252 = vadd.f32 0.0, %v2251
    %v2253 = vpop.f32.mrb[0].mxu0
    %2254 = vdwg.mxu0
    %2255 = vmatprep.subr.mxu0 0.0
    %2256 = vmatpush1.msra.mxu0 %v2035
    %2257 = vmatprep.subr.mxu0 0.0
    %2258 = vmatpush1.msra.mxu0 %v2036
    %2259 = vmatprep.subr.mxu0 0.0
    %2260 = vmatpush1.msra.mxu0 %v2037
    %2261 = vmatprep.subr.mxu0 0.0
    %2262 = vmatpush1.msra.mxu0 %v2038
    %2263 = vmatprep.subr.mxu0 0.0
    %2264 = vmatpush1.msra.mxu0 %v2039
    %2265 = vmatprep.subr.mxu0 0.0
    %2266 = vmatpush1.msra.mxu0 %v2040
    %2267 = vmatprep.subr.mxu0 0.0
    %2268 = vmatpush1.msra.mxu0 %v2041
    %2269 = vmatprep.subr.mxu0 0.0
    %2270 = vmatpush1.msra.mxu0 %v2042
    %2271 = vmatprep.subr.mxu0 0.0
    %2272 = vmatpush1.msra.mxu0 %v2043
    %2273 = vmatprep.subr.mxu0 0.0
    %2274 = vmatpush1.msra.mxu0 %v2044
    %2275 = vmatprep.subr.mxu0 0.0
    %2276 = vmatpush1.msra.mxu0 %v2045
    %2277 = vmatprep.subr.mxu0 0.0
    %2278 = vmatpush1.msra.mxu0 %v2046
    %2279 = vmatprep.subr.mxu0 0.0
    %2280 = vmatpush1.msra.mxu0 %v2047
    %2281 = vmatprep.subr.mxu0 0.0
    %2282 = vmatpush1.msra.mxu0 %v2048
    %2283 = vmatprep.subr.mxu0 0.0
    %2284 = vmatpush1.msra.mxu0 %v2049
    %2285 = vmatprep.subr.mxu0 0.0
    %2286 = vmatpush1.msra.mxu0 %v2050
    %2287 = vmatprep.subr.mxu0 0.0
    %2288 = vmatpush1.msra.mxu0 0.0
    %2289 = vmatprep.subr.mxu0 0.0
    %2290 = vmatpush1.msra.mxu0 0.0
    %2291 = vmatprep.subr.mxu0 0.0
    %2292 = vmatpush1.msra.mxu0 0.0
    %2293 = vmatprep.subr.mxu0 0.0
    %2294 = vmatpush1.msra.mxu0 0.0
    %2295 = vmatprep.subr.mxu0 0.0
    %2296 = vmatpush1.msra.mxu0 0.0
    %2297 = vmatprep.subr.mxu0 0.0
    %2298 = vmatpush1.msra.mxu0 0.0
    %2299 = vmatprep.subr.mxu0 0.0
    %2300 = vmatpush1.msra.mxu0 0.0
    %2301 = vmatprep.subr.mxu0 0.0
    %2302 = vmatpush1.msra.mxu0 0.0
    %2303 = vmatprep.subr.mxu0 0.0
    %2304 = vmatpush1.msra.mxu0 0.0
    %2305 = vmatprep.subr.mxu0 0.0
    %2306 = vmatpush1.msra.mxu0 0.0
    %2307 = vmatprep.subr.mxu0 0.0
    %2308 = vmatpush1.msra.mxu0 0.0
    %2309 = vmatprep.subr.mxu0 0.0
    %2310 = vmatpush1.msra.mxu0 0.0
    %2311 = vmatprep.subr.mxu0 0.0
    %2312 = vmatpush1.msra.mxu0 0.0
    %2313 = vmatprep.subr.mxu0 0.0
    %2314 = vmatpush1.msra.mxu0 0.0
    %2315 = vmatprep.subr.mxu0 0.0
    %2316 = vmatpush1.msra.mxu0 0.0
    %2317 = vmatprep.subr.mxu0 0.0
    %2318 = vmatpush1.msra.mxu0 0.0
    %2319 = vmatprep.mubr.f32.mxu0 0.0
    %2320 = vmatmul.mubr.f32.gmra.mrb[0].mxu0 %v2017
    %v2321 = vpop.f32.mrb[0].mxu0
    %v2322 = vadd.f32 %v2237, %v2321
    %v2323 = vpop.f32.mrb[0].mxu0
    %2324 = vmatprep.mubr.f32.mxu0 0.0
    %2325 = vmatmul.mubr.f32.gmra.mrb[0].mxu0 %v2022
    %v2326 = vpop.f32.mrb[0].mxu0
    %v2327 = vadd.f32 %v2242, %v2326
    %v2328 = vpop.f32.mrb[0].mxu0
    %2329 = vmatprep.mubr.f32.mxu0 0.0
    %2330 = vmatmul.mubr.f32.gmra.mrb[0].mxu0 %v2027
    %v2331 = vpop.f32.mrb[0].mxu0
    %v2332 = vadd.f32 %v2247, %v2331
    %v2333 = vpop.f32.mrb[0].mxu0
    %2334 = vmatprep.mubr.f32.mxu0 0.0
    %2335 = vmatmul.mubr.f32.gmra.mrb[0].mxu0 %v2032
    %v2336 = vpop.f32.mrb[0].mxu0
    %v2337 = vadd.f32 %v2252, %v2336
    %v2338 = vpop.f32.mrb[0].mxu0
    %2339 = vdwg.mxu0
    %s2340 = scalar_lea.vmem [#allocation2], 64
    %v2341 = vld [vmem:[%s2340] sm:$0xff]
    %v2342 = vld [vmem:[%s2340 + $0x8] sm:$0xff]
    %v2343 = vld [vmem:[%s2340 + $0x10] sm:$0xff]
    %v2344 = vld [vmem:[%s2340 + $0x18] sm:$0xff]
    %v2346 = vsel %vm451, %v2341, 0
    %v2349 = vsel %vm451, %v2342, 0
    %v2352 = vsel %vm451, %v2343, 0
    %v2355 = vsel %vm451, %v2344, 0
    %2357 = vmatprep.subr.mxu0 0.0
    %2358 = vmatpush1.msra.mxu0 %v1930
    %2359 = vmatprep.subr.mxu0 0.0
    %2360 = vmatpush1.msra.mxu0 %v1931
    %2361 = vmatprep.subr.mxu0 0.0
    %2362 = vmatpush1.msra.mxu0 %v1932
    %2363 = vmatprep.subr.mxu0 0.0
    %2364 = vmatpush1.msra.mxu0 %v1933
    %2365 = vmatprep.subr.mxu0 0.0
    %2366 = vmatpush1.msra.mxu0 0.0
    %2367 = vmatprep.subr.mxu0 0.0
    %2368 = vmatpush1.msra.mxu0 0.0
    %2369 = vmatprep.subr.mxu0 0.0
    %2370 = vmatpush1.msra.mxu0 0.0
    %2371 = vmatprep.subr.mxu0 0.0
    %2372 = vmatpush1.msra.mxu0 0.0
    %2373 = vmatprep.subr.mxu0 0.0
    %2374 = vmatpush1.msra.mxu0 0.0
    %2375 = vmatprep.subr.mxu0 0.0
    %2376 = vmatpush1.msra.mxu0 0.0
    %2377 = vmatprep.subr.mxu0 0.0
    %2378 = vmatpush1.msra.mxu0 0.0
    %2379 = vmatprep.subr.mxu0 0.0
    %2380 = vmatpush1.msra.mxu0 0.0
    %2381 = vmatprep.subr.mxu0 0.0
    %2382 = vmatpush1.msra.mxu0 0.0
    %2383 = vmatprep.subr.mxu0 0.0
    %2384 = vmatpush1.msra.mxu0 0.0
    %2385 = vmatprep.subr.mxu0 0.0
    %2386 = vmatpush1.msra.mxu0 0.0
    %2387 = vmatprep.subr.mxu0 0.0
    %2388 = vmatpush1.msra.mxu0 0.0
    %2389 = vmatprep.subr.mxu0 0.0
    %2390 = vmatpush1.msra.mxu0 0.0
    %2391 = vmatprep.subr.mxu0 0.0
    %2392 = vmatpush1.msra.mxu0 0.0
    %2393 = vmatprep.subr.mxu0 0.0
    %2394 = vmatpush1.msra.mxu0 0.0
    %2395 = vmatprep.subr.mxu0 0.0
    %2396 = vmatpush1.msra.mxu0 0.0
    %2397 = vmatprep.subr.mxu0 0.0
    %2398 = vmatpush1.msra.mxu0 0.0
    %2399 = vmatprep.subr.mxu0 0.0
    %2400 = vmatpush1.msra.mxu0 0.0
    %2401 = vmatprep.subr.mxu0 0.0
    %2402 = vmatpush1.msra.mxu0 0.0
    %2403 = vmatprep.subr.mxu0 0.0
    %2404 = vmatpush1.msra.mxu0 0.0
    %2405 = vmatprep.subr.mxu0 0.0
    %2406 = vmatpush1.msra.mxu0 0.0
    %2407 = vmatprep.subr.mxu0 0.0
    %2408 = vmatpush1.msra.mxu0 0.0
    %2409 = vmatprep.subr.mxu0 0.0
    %2410 = vmatpush1.msra.mxu0 0.0
    %2411 = vmatprep.subr.mxu0 0.0
    %2412 = vmatpush1.msra.mxu0 0.0
    %2413 = vmatprep.subr.mxu0 0.0
    %2414 = vmatpush1.msra.mxu0 0.0
    %2415 = vmatprep.subr.mxu0 0.0
    %2416 = vmatpush1.msra.mxu0 0.0
    %2417 = vmatprep.subr.mxu0 0.0
    %2418 = vmatpush1.msra.mxu0 0.0
    %2419 = vmatprep.subr.mxu0 0.0
    %2420 = vmatpush1.msra.mxu0 0.0
    %2421 = vmatprep.mubr.f32.mxu0 0.0
    %2422 = vmatmul.mubr.f32.gmra.mrb[0].mxu0 %v2346
    %v2423 = vpop.f32.mrb[0].mxu0
    %v2424 = vadd.f32 0.0, %v2423
    %v2425 = vpop.f32.mrb[0].mxu0
    %2426 = vmatprep.mubr.f32.mxu0 0.0
    %2427 = vmatmul.mubr.f32.gmra.mrb[0].mxu0 %v2349
    %v2428 = vpop.f32.mrb[0].mxu0
    %v2429 = vadd.f32 0.0, %v2428
    %v2430 = vpop.f32.mrb[0].mxu0
    %2431 = vmatprep.mubr.f32.mxu0 0.0
    %2432 = vmatmul.mubr.f32.gmra.mrb[0].mxu0 %v2352
    %v2433 = vpop.f32.mrb[0].mxu0
    %v2434 = vadd.f32 0.0, %v2433
    %v2435 = vpop.f32.mrb[0].mxu0
    %2436 = vmatprep.mubr.f32.mxu0 0.0
    %2437 = vmatmul.mubr.f32.gmra.mrb[0].mxu0 %v2355
    %v2438 = vpop.f32.mrb[0].mxu0
    %v2439 = vadd.f32 0.0, %v2438
    %v2440 = vpop.f32.mrb[0].mxu0
    %2441 = vdwg.mxu0
    %s2442 = scalar_lea.vmem %s11, 256
    %v2443 = vld [vmem:[%s2442] sm:$0xff]
    %v2444 = vld [vmem:[%s2442 + $0x8] sm:$0xff]
    %v2445 = vld [vmem:[%s2442 + $0x10] sm:$0xff]
    %v2446 = vld [vmem:[%s2442 + $0x18] sm:$0xff]
    %v2447 = vld [vmem:[%s2442 + $0x20] sm:$0xff]
    %v2448 = vld [vmem:[%s2442 + $0x28] sm:$0xff]
    %v2449 = vld [vmem:[%s2442 + $0x30] sm:$0xff]
    %v2450 = vld [vmem:[%s2442 + $0x38] sm:$0xff]
    %v2451 = vld [vmem:[%s2442 + $0x40] sm:$0xff]
    %v2452 = vld [vmem:[%s2442 + $0x48] sm:$0xff]
    %v2453 = vld [vmem:[%s2442 + $0x50] sm:$0xff]
    %v2454 = vld [vmem:[%s2442 + $0x58] sm:$0xff]
    %v2455 = vld [vmem:[%s2442 + $0x60] sm:$0xff]
    %v2456 = vld [vmem:[%s2442 + $0x68] sm:$0xff]
    %v2457 = vld [vmem:[%s2442 + $0x70] sm:$0xff]
    %v2458 = vld [vmem:[%s2442 + $0x78] sm:$0xff]
    %2459 = vmatprep.subr.mxu0 0.0
    %2460 = vmatpush1.msra.mxu0 %v2443
    %2461 = vmatprep.subr.mxu0 0.0
    %2462 = vmatpush1.msra.mxu0 %v2444
    %2463 = vmatprep.subr.mxu0 0.0
    %2464 = vmatpush1.msra.mxu0 %v2445
    %2465 = vmatprep.subr.mxu0 0.0
    %2466 = vmatpush1.msra.mxu0 %v2446
    %2467 = vmatprep.subr.mxu0 0.0
    %2468 = vmatpush1.msra.mxu0 %v2447
    %2469 = vmatprep.subr.mxu0 0.0
    %2470 = vmatpush1.msra.mxu0 %v2448
    %2471 = vmatprep.subr.mxu0 0.0
    %2472 = vmatpush1.msra.mxu0 %v2449
    %2473 = vmatprep.subr.mxu0 0.0
    %2474 = vmatpush1.msra.mxu0 %v2450
    %2475 = vmatprep.subr.mxu0 0.0
    %2476 = vmatpush1.msra.mxu0 %v2451
    %2477 = vmatprep.subr.mxu0 0.0
    %2478 = vmatpush1.msra.mxu0 %v2452
    %2479 = vmatprep.subr.mxu0 0.0
    %2480 = vmatpush1.msra.mxu0 %v2453
    %2481 = vmatprep.subr.mxu0 0.0
    %2482 = vmatpush1.msra.mxu0 %v2454
    %2483 = vmatprep.subr.mxu0 0.0
    %2484 = vmatpush1.msra.mxu0 %v2455
    %2485 = vmatprep.subr.mxu0 0.0
    %2486 = vmatpush1.msra.mxu0 %v2456
    %2487 = vmatprep.subr.mxu0 0.0
    %2488 = vmatpush1.msra.mxu0 %v2457
    %2489 = vmatprep.subr.mxu0 0.0
    %2490 = vmatpush1.msra.mxu0 %v2458
    %2491 = vmatprep.subr.mxu0 0.0
    %2492 = vmatpush1.msra.mxu0 0.0
    %2493 = vmatprep.subr.mxu0 0.0
    %2494 = vmatpush1.msra.mxu0 0.0
    %2495 = vmatprep.subr.mxu0 0.0
    %2496 = vmatpush1.msra.mxu0 0.0
    %2497 = vmatprep.subr.mxu0 0.0
    %2498 = vmatpush1.msra.mxu0 0.0
    %2499 = vmatprep.subr.mxu0 0.0
    %2500 = vmatpush1.msra.mxu0 0.0
    %2501 = vmatprep.subr.mxu0 0.0
    %2502 = vmatpush1.msra.mxu0 0.0
    %2503 = vmatprep.subr.mxu0 0.0
    %2504 = vmatpush1.msra.mxu0 0.0
    %2505 = vmatprep.subr.mxu0 0.0
    %2506 = vmatpush1.msra.mxu0 0.0
    %2507 = vmatprep.subr.mxu0 0.0
    %2508 = vmatpush1.msra.mxu0 0.0
    %2509 = vmatprep.subr.mxu0 0.0
    %2510 = vmatpush1.msra.mxu0 0.0
    %2511 = vmatprep.subr.mxu0 0.0
    %2512 = vmatpush1.msra.mxu0 0.0
    %2513 = vmatprep.subr.mxu0 0.0
    %2514 = vmatpush1.msra.mxu0 0.0
    %2515 = vmatprep.subr.mxu0 0.0
    %2516 = vmatpush1.msra.mxu0 0.0
    %2517 = vmatprep.subr.mxu0 0.0
    %2518 = vmatpush1.msra.mxu0 0.0
    %2519 = vmatprep.subr.mxu0 0.0
    %2520 = vmatpush1.msra.mxu0 0.0
    %2521 = vmatprep.subr.mxu0 0.0
    %2522 = vmatpush1.msra.mxu0 0.0
    %2523 = vmatprep.mubr.f32.mxu0 0.0
    %2524 = vmatmul.mubr.f32.gmra.mrb[0].mxu0 %v2424
    %v2525 = vpop.f32.mrb[0].mxu0
    %v2526 = vadd.f32 0.0, %v2525
    %v2527 = vpop.f32.mrb[0].mxu0
    %2528 = vmatprep.mubr.f32.mxu0 0.0
    %2529 = vmatmul.mubr.f32.gmra.mrb[0].mxu0 %v2429
    %v2530 = vpop.f32.mrb[0].mxu0
    %v2531 = vadd.f32 0.0, %v2530
    %v2532 = vpop.f32.mrb[0].mxu0
    %2533 = vmatprep.mubr.f32.mxu0 0.0
    %2534 = vmatmul.mubr.f32.gmra.mrb[0].mxu0 %v2434
    %v2535 = vpop.f32.mrb[0].mxu0
    %v2536 = vadd.f32 0.0, %v2535
    %v2537 = vpop.f32.mrb[0].mxu0
    %2538 = vmatprep.mubr.f32.mxu0 0.0
    %2539 = vmatmul.mubr.f32.gmra.mrb[0].mxu0 %v2439
    %v2540 = vpop.f32.mrb[0].mxu0
    %v2541 = vadd.f32 0.0, %v2540
    %v2542 = vpop.f32.mrb[0].mxu0
    %2543 = vdwg.mxu0
    %v2544 = vadd.f32 %v2322, %v2526
    %v2545 = vadd.f32 %v2327, %v2531
    %v2546 = vadd.f32 %v2332, %v2536
    %v2547 = vadd.f32 %v2337, %v2541
    %v2548 = vld [vmem:[#allocation4] sm:$0x1]
    %v2550 = vlaneseq
    %v2551 = vshrl.u32 %v2550, 7
    %v2552 = vsub.s32 0, %v2551
    %v2553 = vrot.slane %v2548, %v2552
    %v2555 = vadd.f32 %v2544, %v2553
    %v2556 = vadd.f32 %v2545, %v2553
    %v2557 = vadd.f32 %v2546, %v2553
    %v2558 = vadd.f32 %v2547, %v2553
    %v2559 = vld [vmem:[#allocation6] sm:$0xff]
    %v2560 = vld [vmem:[#allocation6 + $0x8] sm:$0xff]
    %v2562 = vsel %vm451, %v2559, 0
    %v2565 = vsel %vm451, %v2560, 0
    %2567 = vmatprep.subr.mxu0 0.0
    %2568 = vmatpush1.msra.mxu0 %v2555
    %2569 = vmatprep.subr.mxu0 0.0
    %2570 = vmatpush1.msra.mxu0 %v2556
    %2571 = vmatprep.subr.mxu0 0.0
    %2572 = vmatpush1.msra.mxu0 %v2557
    %2573 = vmatprep.subr.mxu0 0.0
    %2574 = vmatpush1.msra.mxu0 %v2558
    %2575 = vmatprep.subr.mxu0 0.0
    %2576 = vmatpush1.msra.mxu0 0.0
    %2577 = vmatprep.subr.mxu0 0.0
    %2578 = vmatpush1.msra.mxu0 0.0
    %2579 = vmatprep.subr.mxu0 0.0
    %2580 = vmatpush1.msra.mxu0 0.0
    %2581 = vmatprep.subr.mxu0 0.0
    %2582 = vmatpush1.msra.mxu0 0.0
    %2583 = vmatprep.subr.mxu0 0.0
    %2584 = vmatpush1.msra.mxu0 0.0
    %2585 = vmatprep.subr.mxu0 0.0
    %2586 = vmatpush1.msra.mxu0 0.0
    %2587 = vmatprep.subr.mxu0 0.0
    %2588 = vmatpush1.msra.mxu0 0.0
    %2589 = vmatprep.subr.mxu0 0.0
    %2590 = vmatpush1.msra.mxu0 0.0
    %2591 = vmatprep.subr.mxu0 0.0
    %2592 = vmatpush1.msra.mxu0 0.0
    %2593 = vmatprep.subr.mxu0 0.0
    %2594 = vmatpush1.msra.mxu0 0.0
    %2595 = vmatprep.subr.mxu0 0.0
    %2596 = vmatpush1.msra.mxu0 0.0
    %2597 = vmatprep.subr.mxu0 0.0
    %2598 = vmatpush1.msra.mxu0 0.0
    %2599 = vmatprep.subr.mxu0 0.0
    %2600 = vmatpush1.msra.mxu0 0.0
    %2601 = vmatprep.subr.mxu0 0.0
    %2602 = vmatpush1.msra.mxu0 0.0
    %2603 = vmatprep.subr.mxu0 0.0
    %2604 = vmatpush1.msra.mxu0 0.0
    %2605 = vmatprep.subr.mxu0 0.0
    %2606 = vmatpush1.msra.mxu0 0.0
    %2607 = vmatprep.subr.mxu0 0.0
    %2608 = vmatpush1.msra.mxu0 0.0
    %2609 = vmatprep.subr.mxu0 0.0
    %2610 = vmatpush1.msra.mxu0 0.0
    %2611 = vmatprep.subr.mxu0 0.0
    %2612 = vmatpush1.msra.mxu0 0.0
    %2613 = vmatprep.subr.mxu0 0.0
    %2614 = vmatpush1.msra.mxu0 0.0
    %2615 = vmatprep.subr.mxu0 0.0
    %2616 = vmatpush1.msra.mxu0 0.0
    %2617 = vmatprep.subr.mxu0 0.0
    %2618 = vmatpush1.msra.mxu0 0.0
    %2619 = vmatprep.subr.mxu0 0.0
    %2620 = vmatpush1.msra.mxu0 0.0
    %2621 = vmatprep.subr.mxu0 0.0
    %2622 = vmatpush1.msra.mxu0 0.0
    %2623 = vmatprep.subr.mxu0 0.0
    %2624 = vmatpush1.msra.mxu0 0.0
    %2625 = vmatprep.subr.mxu0 0.0
    %2626 = vmatpush1.msra.mxu0 0.0
    %2627 = vmatprep.subr.mxu0 0.0
    %2628 = vmatpush1.msra.mxu0 0.0
    %2629 = vmatprep.subr.mxu0 0.0
    %2630 = vmatpush1.msra.mxu0 0.0
    %2631 = vmatprep.mubr.f32.mxu0 0.0
    %2632 = vmatmul.mubr.f32.gmra.mrb[0].mxu0 %v2562
    %v2633 = vpop.f32.mrb[0].mxu0
    %v2634 = vadd.f32 0.0, %v2633
    %v2635 = vpop.f32.mrb[0].mxu0
    %2636 = vmatprep.mubr.f32.mxu0 0.0
    %2637 = vmatmul.mubr.f32.gmra.mrb[0].mxu0 %v2565
    %v2638 = vpop.f32.mrb[0].mxu0
    %v2639 = vadd.f32 0.0, %v2638
    %v2640 = vpop.f32.mrb[0].mxu0
    %2641 = vdwg.mxu0
    %s2642 = scalar_lea.vmem [#allocation6], 16
    %v2643 = vld [vmem:[%s2642] sm:$0xff]
    %v2644 = vld [vmem:[%s2642 + $0x8] sm:$0xff]
    %v2646 = vsel %vm451, %v2643, 0
    %v2649 = vsel %vm451, %v2644, 0
    %2651 = vmatprep.subr.mxu0 0.0
    %2652 = vmatpush1.msra.mxu0 %v2555
    %2653 = vmatprep.subr.mxu0 0.0
    %2654 = vmatpush1.msra.mxu0 %v2556
    %2655 = vmatprep.subr.mxu0 0.0
    %2656 = vmatpush1.msra.mxu0 %v2557
    %2657 = vmatprep.subr.mxu0 0.0
    %2658 = vmatpush1.msra.mxu0 %v2558
    %2659 = vmatprep.subr.mxu0 0.0
    %2660 = vmatpush1.msra.mxu0 0.0
    %2661 = vmatprep.subr.mxu0 0.0
    %2662 = vmatpush1.msra.mxu0 0.0
    %2663 = vmatprep.subr.mxu0 0.0
    %2664 = vmatpush1.msra.mxu0 0.0
    %2665 = vmatprep.subr.mxu0 0.0
    %2666 = vmatpush1.msra.mxu0 0.0
    %2667 = vmatprep.subr.mxu0 0.0
    %2668 = vmatpush1.msra.mxu0 0.0
    %2669 = vmatprep.subr.mxu0 0.0
    %2670 = vmatpush1.msra.mxu0 0.0
    %2671 = vmatprep.subr.mxu0 0.0
    %2672 = vmatpush1.msra.mxu0 0.0
    %2673 = vmatprep.subr.mxu0 0.0
    %2674 = vmatpush1.msra.mxu0 0.0
    %2675 = vmatprep.subr.mxu0 0.0
    %2676 = vmatpush1.msra.mxu0 0.0
    %2677 = vmatprep.subr.mxu0 0.0
    %2678 = vmatpush1.msra.mxu0 0.0
    %2679 = vmatprep.subr.mxu0 0.0
    %2680 = vmatpush1.msra.mxu0 0.0
    %2681 = vmatprep.subr.mxu0 0.0
    %2682 = vmatpush1.msra.mxu0 0.0
    %2683 = vmatprep.subr.mxu0 0.0
    %2684 = vmatpush1.msra.mxu0 0.0
    %2685 = vmatprep.subr.mxu0 0.0
    %2686 = vmatpush1.msra.mxu0 0.0
    %2687 = vmatprep.subr.mxu0 0.0
    %2688 = vmatpush1.msra.mxu0 0.0
    %2689 = vmatprep.subr.mxu0 0.0
    %2690 = vmatpush1.msra.mxu0 0.0
    %2691 = vmatprep.subr.mxu0 0.0
    %2692 = vmatpush1.msra.mxu0 0.0
    %2693 = vmatprep.subr.mxu0 0.0
    %2694 = vmatpush1.msra.mxu0 0.0
    %2695 = vmatprep.subr.mxu0 0.0
    %2696 = vmatpush1.msra.mxu0 0.0
    %2697 = vmatprep.subr.mxu0 0.0
    %2698 = vmatpush1.msra.mxu0 0.0
    %2699 = vmatprep.subr.mxu0 0.0
    %2700 = vmatpush1.msra.mxu0 0.0
    %2701 = vmatprep.subr.mxu0 0.0
    %2702 = vmatpush1.msra.mxu0 0.0
    %2703 = vmatprep.subr.mxu0 0.0
    %2704 = vmatpush1.msra.mxu0 0.0
    %2705 = vmatprep.subr.mxu0 0.0
    %2706 = vmatpush1.msra.mxu0 0.0
    %2707 = vmatprep.subr.mxu0 0.0
    %2708 = vmatpush1.msra.mxu0 0.0
    %2709 = vmatprep.subr.mxu0 0.0
    %2710 = vmatpush1.msra.mxu0 0.0
    %2711 = vmatprep.subr.mxu0 0.0
    %2712 = vmatpush1.msra.mxu0 0.0
    %2713 = vmatprep.subr.mxu0 0.0
    %2714 = vmatpush1.msra.mxu0 0.0
    %2715 = vmatprep.mubr.f32.mxu0 0.0
    %2716 = vmatmul.mubr.f32.gmra.mrb[0].mxu0 %v2646
    %v2717 = vpop.f32.mrb[0].mxu0
    %v2718 = vadd.f32 0.0, %v2717
    %v2719 = vpop.f32.mrb[0].mxu0
    %2720 = vmatprep.mubr.f32.mxu0 0.0
    %2721 = vmatmul.mubr.f32.gmra.mrb[0].mxu0 %v2649
    %v2722 = vpop.f32.mrb[0].mxu0
    %v2723 = vadd.f32 0.0, %v2722
    %v2724 = vpop.f32.mrb[0].mxu0
    %2725 = vdwg.mxu0
    %v2726 = vmax.f32 %v2634, %v2718
    %v2727 = vmax.f32 %v2639, %v2723
    %v2728 = vld [vmem:[%s17] sm:$0xff]
    %v2729 = vld [vmem:[%s17 + $0x8] sm:$0xff]
    %v2730 = vld [vmem:[%s17 + $0x10] sm:$0xff]
    %v2731 = vld [vmem:[%s17 + $0x18] sm:$0xff]
    %v2732 = vld [vmem:[%s17 + $0x20] sm:$0xff]
    %v2733 = vld [vmem:[%s17 + $0x28] sm:$0xff]
    %v2734 = vld [vmem:[%s17 + $0x30] sm:$0xff]
    %v2735 = vld [vmem:[%s17 + $0x38] sm:$0xff]
    %v2736 = vld [vmem:[%s17 + $0x40] sm:$0xff]
    %v2737 = vld [vmem:[%s17 + $0x48] sm:$0xff]
    %v2738 = vld [vmem:[%s17 + $0x50] sm:$0xff]
    %v2739 = vld [vmem:[%s17 + $0x58] sm:$0xff]
    %v2740 = vld [vmem:[%s17 + $0x60] sm:$0xff]
    %v2741 = vld [vmem:[%s17 + $0x68] sm:$0xff]
    %v2742 = vld [vmem:[%s17 + $0x70] sm:$0xff]
    %v2743 = vld [vmem:[%s17 + $0x78] sm:$0xff]
    %2744 = vmatprep.subr.mxu0 0.0
    %2745 = vmatpush1.msra.mxu0 %v2728
    %2746 = vmatprep.subr.mxu0 0.0
    %2747 = vmatpush1.msra.mxu0 %v2729
    %2748 = vmatprep.subr.mxu0 0.0
    %2749 = vmatpush1.msra.mxu0 %v2730
    %2750 = vmatprep.subr.mxu0 0.0
    %2751 = vmatpush1.msra.mxu0 %v2731
    %2752 = vmatprep.subr.mxu0 0.0
    %2753 = vmatpush1.msra.mxu0 %v2732
    %2754 = vmatprep.subr.mxu0 0.0
    %2755 = vmatpush1.msra.mxu0 %v2733
    %2756 = vmatprep.subr.mxu0 0.0
    %2757 = vmatpush1.msra.mxu0 %v2734
    %2758 = vmatprep.subr.mxu0 0.0
    %2759 = vmatpush1.msra.mxu0 %v2735
    %2760 = vmatprep.subr.mxu0 0.0
    %2761 = vmatpush1.msra.mxu0 %v2736
    %2762 = vmatprep.subr.mxu0 0.0
    %2763 = vmatpush1.msra.mxu0 %v2737
    %2764 = vmatprep.subr.mxu0 0.0
    %2765 = vmatpush1.msra.mxu0 %v2738
    %2766 = vmatprep.subr.mxu0 0.0
    %2767 = vmatpush1.msra.mxu0 %v2739
    %2768 = vmatprep.subr.mxu0 0.0
    %2769 = vmatpush1.msra.mxu0 %v2740
    %2770 = vmatprep.subr.mxu0 0.0
    %2771 = vmatpush1.msra.mxu0 %v2741
    %2772 = vmatprep.subr.mxu0 0.0
    %2773 = vmatpush1.msra.mxu0 %v2742
    %2774 = vmatprep.subr.mxu0 0.0
    %2775 = vmatpush1.msra.mxu0 %v2743
    %2776 = vmatprep.subr.mxu0 0.0
    %2777 = vmatpush1.msra.mxu0 0.0
    %2778 = vmatprep.subr.mxu0 0.0
    %2779 = vmatpush1.msra.mxu0 0.0
    %2780 = vmatprep.subr.mxu0 0.0
    %2781 = vmatpush1.msra.mxu0 0.0
    %2782 = vmatprep.subr.mxu0 0.0
    %2783 = vmatpush1.msra.mxu0 0.0
    %2784 = vmatprep.subr.mxu0 0.0
    %2785 = vmatpush1.msra.mxu0 0.0
    %2786 = vmatprep.subr.mxu0 0.0
    %2787 = vmatpush1.msra.mxu0 0.0
    %2788 = vmatprep.subr.mxu0 0.0
    %2789 = vmatpush1.msra.mxu0 0.0
    %2790 = vmatprep.subr.mxu0 0.0
    %2791 = vmatpush1.msra.mxu0 0.0
    %2792 = vmatprep.subr.mxu0 0.0
    %2793 = vmatpush1.msra.mxu0 0.0
    %2794 = vmatprep.subr.mxu0 0.0
    %2795 = vmatpush1.msra.mxu0 0.0
    %2796 = vmatprep.subr.mxu0 0.0
    %2797 = vmatpush1.msra.mxu0 0.0
    %2798 = vmatprep.subr.mxu0 0.0
    %2799 = vmatpush1.msra.mxu0 0.0
    %2800 = vmatprep.subr.mxu0 0.0
    %2801 = vmatpush1.msra.mxu0 0.0
    %2802 = vmatprep.subr.mxu0 0.0
    %2803 = vmatpush1.msra.mxu0 0.0
    %2804 = vmatprep.subr.mxu0 0.0
    %2805 = vmatpush1.msra.mxu0 0.0
    %2806 = vmatprep.subr.mxu0 0.0
    %2807 = vmatpush1.msra.mxu0 0.0
    %2808 = vmatprep.mubr.f32.mxu0 0.0
    %2809 = vmatmul.mubr.f32.gmra.mrb[0].mxu0 %v2726
    %v2810 = vpop.f32.mrb[0].mxu0
    %v2811 = vadd.f32 0.0, %v2810
    %v2812 = vpop.f32.mrb[0].mxu0
    %2813 = vmatprep.mubr.f32.mxu0 0.0
    %2814 = vmatmul.mubr.f32.gmra.mrb[0].mxu0 %v2727
    %v2815 = vpop.f32.mrb[0].mxu0
    %v2816 = vadd.f32 0.0, %v2815
    %v2817 = vpop.f32.mrb[0].mxu0
    %2818 = vdwg.mxu0
    %s2819 = scalar_lea.vmem %s17, 128
    %v2820 = vld [vmem:[%s2819] sm:$0xff]
    %v2821 = vld [vmem:[%s2819 + $0x8] sm:$0xff]
    %v2822 = vld [vmem:[%s2819 + $0x10] sm:$0xff]
    %v2823 = vld [vmem:[%s2819 + $0x18] sm:$0xff]
    %v2824 = vld [vmem:[%s2819 + $0x20] sm:$0xff]
    %v2825 = vld [vmem:[%s2819 + $0x28] sm:$0xff]
    %v2826 = vld [vmem:[%s2819 + $0x30] sm:$0xff]
    %v2827 = vld [vmem:[%s2819 + $0x38] sm:$0xff]
    %v2828 = vld [vmem:[%s2819 + $0x40] sm:$0xff]
    %v2829 = vld [vmem:[%s2819 + $0x48] sm:$0xff]
    %v2830 = vld [vmem:[%s2819 + $0x50] sm:$0xff]
    %v2831 = vld [vmem:[%s2819 + $0x58] sm:$0xff]
    %v2832 = vld [vmem:[%s2819 + $0x60] sm:$0xff]
    %v2833 = vld [vmem:[%s2819 + $0x68] sm:$0xff]
    %v2834 = vld [vmem:[%s2819 + $0x70] sm:$0xff]
    %v2835 = vld [vmem:[%s2819 + $0x78] sm:$0xff]
    %2836 = vmatprep.subr.mxu0 0.0
    %2837 = vmatpush1.msra.mxu0 %v2820
    %2838 = vmatprep.subr.mxu0 0.0
    %2839 = vmatpush1.msra.mxu0 %v2821
    %2840 = vmatprep.subr.mxu0 0.0
    %2841 = vmatpush1.msra.mxu0 %v2822
    %2842 = vmatprep.subr.mxu0 0.0
    %2843 = vmatpush1.msra.mxu0 %v2823
    %2844 = vmatprep.subr.mxu0 0.0
    %2845 = vmatpush1.msra.mxu0 %v2824
    %2846 = vmatprep.subr.mxu0 0.0
    %2847 = vmatpush1.msra.mxu0 %v2825
    %2848 = vmatprep.subr.mxu0 0.0
    %2849 = vmatpush1.msra.mxu0 %v2826
    %2850 = vmatprep.subr.mxu0 0.0
    %2851 = vmatpush1.msra.mxu0 %v2827
    %2852 = vmatprep.subr.mxu0 0.0
    %2853 = vmatpush1.msra.mxu0 %v2828
    %2854 = vmatprep.subr.mxu0 0.0
    %2855 = vmatpush1.msra.mxu0 %v2829
    %2856 = vmatprep.subr.mxu0 0.0
    %2857 = vmatpush1.msra.mxu0 %v2830
    %2858 = vmatprep.subr.mxu0 0.0
    %2859 = vmatpush1.msra.mxu0 %v2831
    %2860 = vmatprep.subr.mxu0 0.0
    %2861 = vmatpush1.msra.mxu0 %v2832
    %2862 = vmatprep.subr.mxu0 0.0
    %2863 = vmatpush1.msra.mxu0 %v2833
    %2864 = vmatprep.subr.mxu0 0.0
    %2865 = vmatpush1.msra.mxu0 %v2834
    %2866 = vmatprep.subr.mxu0 0.0
    %2867 = vmatpush1.msra.mxu0 %v2835
    %2868 = vmatprep.subr.mxu0 0.0
    %2869 = vmatpush1.msra.mxu0 0.0
    %2870 = vmatprep.subr.mxu0 0.0
    %2871 = vmatpush1.msra.mxu0 0.0
    %2872 = vmatprep.subr.mxu0 0.0
    %2873 = vmatpush1.msra.mxu0 0.0
    %2874 = vmatprep.subr.mxu0 0.0
    %2875 = vmatpush1.msra.mxu0 0.0
    %2876 = vmatprep.subr.mxu0 0.0
    %2877 = vmatpush1.msra.mxu0 0.0
    %2878 = vmatprep.subr.mxu0 0.0
    %2879 = vmatpush1.msra.mxu0 0.0
    %2880 = vmatprep.subr.mxu0 0.0
    %2881 = vmatpush1.msra.mxu0 0.0
    %2882 = vmatprep.subr.mxu0 0.0
    %2883 = vmatpush1.msra.mxu0 0.0
    %2884 = vmatprep.subr.mxu0 0.0
    %2885 = vmatpush1.msra.mxu0 0.0
    %2886 = vmatprep.subr.mxu0 0.0
    %2887 = vmatpush1.msra.mxu0 0.0
    %2888 = vmatprep.subr.mxu0 0.0
    %2889 = vmatpush1.msra.mxu0 0.0
    %2890 = vmatprep.subr.mxu0 0.0
    %2891 = vmatpush1.msra.mxu0 0.0
    %2892 = vmatprep.subr.mxu0 0.0
    %2893 = vmatpush1.msra.mxu0 0.0
    %2894 = vmatprep.subr.mxu0 0.0
    %2895 = vmatpush1.msra.mxu0 0.0
    %2896 = vmatprep.subr.mxu0 0.0
    %2897 = vmatpush1.msra.mxu0 0.0
    %2898 = vmatprep.subr.mxu0 0.0
    %2899 = vmatpush1.msra.mxu0 0.0
    %2900 = vmatprep.mubr.f32.mxu0 0.0
    %2901 = vmatmul.mubr.f32.gmra.mrb[0].mxu0 %v2726
    %v2902 = vpop.f32.mrb[0].mxu0
    %v2903 = vadd.f32 0.0, %v2902
    %v2904 = vpop.f32.mrb[0].mxu0
    %2905 = vmatprep.mubr.f32.mxu0 0.0
    %2906 = vmatmul.mubr.f32.gmra.mrb[0].mxu0 %v2727
    %v2907 = vpop.f32.mrb[0].mxu0
    %v2908 = vadd.f32 0.0, %v2907
    %v2909 = vpop.f32.mrb[0].mxu0
    %2910 = vdwg.mxu0
    %v2911 = vmax.f32 %v2811, %v2903
    %v2912 = vmax.f32 %v2816, %v2908
    %v2913 = vld [vmem:[#allocation7] sm:$0xff]
    %v2914 = vld [vmem:[#allocation7 + $0x8] sm:$0xff]
    %v2915 = vld [vmem:[#allocation7 + $0x10] sm:$0xff]
    %v2916 = vld [vmem:[#allocation7 + $0x18] sm:$0xff]
    %v2917 = vld [vmem:[#allocation7 + $0x20] sm:$0xff]
    %v2918 = vld [vmem:[#allocation7 + $0x28] sm:$0xff]
    %v2919 = vld [vmem:[#allocation7 + $0x30] sm:$0xff]
    %v2920 = vld [vmem:[#allocation7 + $0x38] sm:$0xff]
    %v2921 = vld [vmem:[#allocation9] sm:$0x1]
    %v2923 = vlaneseq
    %v2924 = vshrl.u32 %v2923, 7
    %v2925 = vsub.s32 0, %v2924
    %v2926 = vrot.slane %v2921, %v2925
    %v2929 = vsel %vm668, %v2911, 0
    %v2932 = vsel %vm668, %v2912, 0
    %2934 = vmatprep.subr.mxu0 0.0
    %2935 = vmatpush1.msra.mxu0 %v2913
    %2936 = vmatprep.subr.mxu0 0.0
    %2937 = vmatpush1.msra.mxu0 %v2914
    %2938 = vmatprep.subr.mxu0 0.0
    %2939 = vmatpush1.msra.mxu0 %v2915
    %2940 = vmatprep.subr.mxu0 0.0
    %2941 = vmatpush1.msra.mxu0 %v2916
    %2942 = vmatprep.subr.mxu0 0.0
    %2943 = vmatpush1.msra.mxu0 %v2917
    %2944 = vmatprep.subr.mxu0 0.0
    %2945 = vmatpush1.msra.mxu0 %v2918
    %2946 = vmatprep.subr.mxu0 0.0
    %2947 = vmatpush1.msra.mxu0 %v2919
    %2948 = vmatprep.subr.mxu0 0.0
    %2949 = vmatpush1.msra.mxu0 %v2920
    %2950 = vmatprep.subr.mxu0 0.0
    %2951 = vmatpush1.msra.mxu0 0.0
    %2952 = vmatprep.subr.mxu0 0.0
    %2953 = vmatpush1.msra.mxu0 0.0
    %2954 = vmatprep.subr.mxu0 0.0
    %2955 = vmatpush1.msra.mxu0 0.0
    %2956 = vmatprep.subr.mxu0 0.0
    %2957 = vmatpush1.msra.mxu0 0.0
    %2958 = vmatprep.subr.mxu0 0.0
    %2959 = vmatpush1.msra.mxu0 0.0
    %2960 = vmatprep.subr.mxu0 0.0
    %2961 = vmatpush1.msra.mxu0 0.0
    %2962 = vmatprep.subr.mxu0 0.0
    %2963 = vmatpush1.msra.mxu0 0.0
    %2964 = vmatprep.subr.mxu0 0.0
    %2965 = vmatpush1.msra.mxu0 0.0
    %2966 = vmatprep.subr.mxu0 0.0
    %2967 = vmatpush1.msra.mxu0 0.0
    %2968 = vmatprep.subr.mxu0 0.0
    %2969 = vmatpush1.msra.mxu0 0.0
    %2970 = vmatprep.subr.mxu0 0.0
    %2971 = vmatpush1.msra.mxu0 0.0
    %2972 = vmatprep.subr.mxu0 0.0
    %2973 = vmatpush1.msra.mxu0 0.0
    %2974 = vmatprep.subr.mxu0 0.0
    %2975 = vmatpush1.msra.mxu0 0.0
    %2976 = vmatprep.subr.mxu0 0.0
    %2977 = vmatpush1.msra.mxu0 0.0
    %2978 = vmatprep.subr.mxu0 0.0
    %2979 = vmatpush1.msra.mxu0 0.0
    %2980 = vmatprep.subr.mxu0 0.0
    %2981 = vmatpush1.msra.mxu0 0.0
    %2982 = vmatprep.subr.mxu0 0.0
    %2983 = vmatpush1.msra.mxu0 0.0
    %2984 = vmatprep.subr.mxu0 0.0
    %2985 = vmatpush1.msra.mxu0 0.0
    %2986 = vmatprep.subr.mxu0 0.0
    %2987 = vmatpush1.msra.mxu0 0.0
    %2988 = vmatprep.subr.mxu0 0.0
    %2989 = vmatpush1.msra.mxu0 0.0
    %2990 = vmatprep.subr.mxu0 0.0
    %2991 = vmatpush1.msra.mxu0 0.0
    %2992 = vmatprep.subr.mxu0 0.0
    %2993 = vmatpush1.msra.mxu0 0.0
    %2994 = vmatprep.subr.mxu0 0.0
    %2995 = vmatpush1.msra.mxu0 0.0
    %2996 = vmatprep.subr.mxu0 0.0
    %2997 = vmatpush1.msra.mxu0 0.0
    %2998 = vmatprep.mubr.f32.mxu0 0.0
    %2999 = vmatmul.mubr.f32.gmra.mrb[0].mxu0 %v2929
    %v3000 = vpop.f32.mrb[0].mxu0
    %v3001 = vadd.f32 %v2926, %v3000
    %v3002 = vpop.f32.mrb[0].mxu0
    %3003 = vmatprep.mubr.f32.mxu0 0.0
    %3004 = vmatmul.mubr.f32.gmra.mrb[0].mxu0 %v2932
    %v3005 = vpop.f32.mrb[0].mxu0
    %v3006 = vadd.f32 %v2926, %v3005
    %v3007 = vpop.f32.mrb[0].mxu0
    %3008 = vdwg.mxu0
    %v3009 = vld [vmem:[#allocation10] sm:$0xff]
    %v3010 = vld [vmem:[#allocation10 + $0x8] sm:$0xff]
    %vm3011 = vcmask 130048
    %v3013 = vsel %vm3011, %v3009, 0
    %v3016 = vsel %vm3011, %v3010, 0
    %3018 = vmatprep.subr.mxu0 0.0
    %3019 = vmatpush1.msra.mxu0 %v3001
    %3020 = vmatprep.subr.mxu0 0.0
    %3021 = vmatpush1.msra.mxu0 %v3006
    %3022 = vmatprep.subr.mxu0 0.0
    %3023 = vmatpush1.msra.mxu0 0.0
    %3024 = vmatprep.subr.mxu0 0.0
    %3025 = vmatpush1.msra.mxu0 0.0
    %3026 = vmatprep.subr.mxu0 0.0
    %3027 = vmatpush1.msra.mxu0 0.0
    %3028 = vmatprep.subr.mxu0 0.0
    %3029 = vmatpush1.msra.mxu0 0.0
    %3030 = vmatprep.subr.mxu0 0.0
    %3031 = vmatpush1.msra.mxu0 0.0
    %3032 = vmatprep.subr.mxu0 0.0
    %3033 = vmatpush1.msra.mxu0 0.0
    %3034 = vmatprep.subr.mxu0 0.0
    %3035 = vmatpush1.msra.mxu0 0.0
    %3036 = vmatprep.subr.mxu0 0.0
    %3037 = vmatpush1.msra.mxu0 0.0
    %3038 = vmatprep.subr.mxu0 0.0
    %3039 = vmatpush1.msra.mxu0 0.0
    %3040 = vmatprep.subr.mxu0 0.0
    %3041 = vmatpush1.msra.mxu0 0.0
    %3042 = vmatprep.subr.mxu0 0.0
    %3043 = vmatpush1.msra.mxu0 0.0
    %3044 = vmatprep.subr.mxu0 0.0
    %3045 = vmatpush1.msra.mxu0 0.0
    %3046 = vmatprep.subr.mxu0 0.0
    %3047 = vmatpush1.msra.mxu0 0.0
    %3048 = vmatprep.subr.mxu0 0.0
    %3049 = vmatpush1.msra.mxu0 0.0
    %3050 = vmatprep.subr.mxu0 0.0
    %3051 = vmatpush1.msra.mxu0 0.0
    %3052 = vmatprep.subr.mxu0 0.0
    %3053 = vmatpush1.msra.mxu0 0.0
    %3054 = vmatprep.subr.mxu0 0.0
    %3055 = vmatpush1.msra.mxu0 0.0
    %3056 = vmatprep.subr.mxu0 0.0
    %3057 = vmatpush1.msra.mxu0 0.0
    %3058 = vmatprep.subr.mxu0 0.0
    %3059 = vmatpush1.msra.mxu0 0.0
    %3060 = vmatprep.subr.mxu0 0.0
    %3061 = vmatpush1.msra.mxu0 0.0
    %3062 = vmatprep.subr.mxu0 0.0
    %3063 = vmatpush1.msra.mxu0 0.0
    %3064 = vmatprep.subr.mxu0 0.0
    %3065 = vmatpush1.msra.mxu0 0.0
    %3066 = vmatprep.subr.mxu0 0.0
    %3067 = vmatpush1.msra.mxu0 0.0
    %3068 = vmatprep.subr.mxu0 0.0
    %3069 = vmatpush1.msra.mxu0 0.0
    %3070 = vmatprep.subr.mxu0 0.0
    %3071 = vmatpush1.msra.mxu0 0.0
    %3072 = vmatprep.subr.mxu0 0.0
    %3073 = vmatpush1.msra.mxu0 0.0
    %3074 = vmatprep.subr.mxu0 0.0
    %3075 = vmatpush1.msra.mxu0 0.0
    %3076 = vmatprep.subr.mxu0 0.0
    %3077 = vmatpush1.msra.mxu0 0.0
    %3078 = vmatprep.subr.mxu0 0.0
    %3079 = vmatpush1.msra.mxu0 0.0
    %3080 = vmatprep.subr.mxu0 0.0
    %3081 = vmatpush1.msra.mxu0 0.0
    %3082 = vmatprep.mubr.f32.mxu0 0.0
    %3083 = vmatmul.mubr.f32.gmra.mrb[0].mxu0 %v3013
    %v3084 = vpop.f32.mrb[0].mxu0
    %v3085 = vadd.f32 0.0, %v3084
    %v3086 = vpop.f32.mrb[0].mxu0
    %3087 = vmatprep.mubr.f32.mxu0 0.0
    %3088 = vmatmul.mubr.f32.gmra.mrb[0].mxu0 %v3016
    %v3089 = vpop.f32.mrb[0].mxu0
    %v3090 = vadd.f32 0.0, %v3089
    %v3091 = vpop.f32.mrb[0].mxu0
    %3092 = vdwg.mxu0
    %v3093 = vld [vmem:[%s25] sm:$0xff]
    %v3094 = vld [vmem:[%s25 + $0x8] sm:$0xff]
    %v3095 = vld [vmem:[%s25 + $0x10] sm:$0xff]
    %v3096 = vld [vmem:[%s25 + $0x18] sm:$0xff]
    %v3097 = vld [vmem:[%s25 + $0x20] sm:$0xff]
    %v3098 = vld [vmem:[%s25 + $0x28] sm:$0xff]
    %v3099 = vld [vmem:[%s25 + $0x30] sm:$0xff]
    %v3100 = vld [vmem:[%s25 + $0x38] sm:$0xff]
    %s3101 = scalar_lea.vmem [#allocation10], 16
    %v3102 = vld [vmem:[%s3101] sm:$0xff]
    %v3103 = vld [vmem:[%s3101 + $0x8] sm:$0xff]
    %v3105 = vsel %vm3011, %v3102, 0
    %v3108 = vsel %vm3011, %v3103, 0
    %3110 = vmatprep.subr.mxu0 0.0
    %3111 = vmatpush1.msra.mxu0 %v3001
    %3112 = vmatprep.subr.mxu0 0.0
    %3113 = vmatpush1.msra.mxu0 %v3006
    %3114 = vmatprep.subr.mxu0 0.0
    %3115 = vmatpush1.msra.mxu0 0.0
    %3116 = vmatprep.subr.mxu0 0.0
    %3117 = vmatpush1.msra.mxu0 0.0
    %3118 = vmatprep.subr.mxu0 0.0
    %3119 = vmatpush1.msra.mxu0 0.0
    %3120 = vmatprep.subr.mxu0 0.0
    %3121 = vmatpush1.msra.mxu0 0.0
    %3122 = vmatprep.subr.mxu0 0.0
    %3123 = vmatpush1.msra.mxu0 0.0
    %3124 = vmatprep.subr.mxu0 0.0
    %3125 = vmatpush1.msra.mxu0 0.0
    %3126 = vmatprep.subr.mxu0 0.0
    %3127 = vmatpush1.msra.mxu0 0.0
    %3128 = vmatprep.subr.mxu0 0.0
    %3129 = vmatpush1.msra.mxu0 0.0
    %3130 = vmatprep.subr.mxu0 0.0
    %3131 = vmatpush1.msra.mxu0 0.0
    %3132 = vmatprep.subr.mxu0 0.0
    %3133 = vmatpush1.msra.mxu0 0.0
    %3134 = vmatprep.subr.mxu0 0.0
    %3135 = vmatpush1.msra.mxu0 0.0
    %3136 = vmatprep.subr.mxu0 0.0
    %3137 = vmatpush1.msra.mxu0 0.0
    %3138 = vmatprep.subr.mxu0 0.0
    %3139 = vmatpush1.msra.mxu0 0.0
    %3140 = vmatprep.subr.mxu0 0.0
    %3141 = vmatpush1.msra.mxu0 0.0
    %3142 = vmatprep.subr.mxu0 0.0
    %3143 = vmatpush1.msra.mxu0 0.0
    %3144 = vmatprep.subr.mxu0 0.0
    %3145 = vmatpush1.msra.mxu0 0.0
    %3146 = vmatprep.subr.mxu0 0.0
    %3147 = vmatpush1.msra.mxu0 0.0
    %3148 = vmatprep.subr.mxu0 0.0
    %3149 = vmatpush1.msra.mxu0 0.0
    %3150 = vmatprep.subr.mxu0 0.0
    %3151 = vmatpush1.msra.mxu0 0.0
    %3152 = vmatprep.subr.mxu0 0.0
    %3153 = vmatpush1.msra.mxu0 0.0
    %3154 = vmatprep.subr.mxu0 0.0
    %3155 = vmatpush1.msra.mxu0 0.0
    %3156 = vmatprep.subr.mxu0 0.0
    %3157 = vmatpush1.msra.mxu0 0.0
    %3158 = vmatprep.subr.mxu0 0.0
    %3159 = vmatpush1.msra.mxu0 0.0
    %3160 = vmatprep.subr.mxu0 0.0
    %3161 = vmatpush1.msra.mxu0 0.0
    %3162 = vmatprep.subr.mxu0 0.0
    %3163 = vmatpush1.msra.mxu0 0.0
    %3164 = vmatprep.subr.mxu0 0.0
    %3165 = vmatpush1.msra.mxu0 0.0
    %3166 = vmatprep.subr.mxu0 0.0
    %3167 = vmatpush1.msra.mxu0 0.0
    %3168 = vmatprep.subr.mxu0 0.0
    %3169 = vmatpush1.msra.mxu0 0.0
    %3170 = vmatprep.subr.mxu0 0.0
    %3171 = vmatpush1.msra.mxu0 0.0
    %3172 = vmatprep.subr.mxu0 0.0
    %3173 = vmatpush1.msra.mxu0 0.0
    %3174 = vmatprep.mubr.f32.mxu0 0.0
    %3175 = vmatmul.mubr.f32.gmra.mrb[0].mxu0 %v3105
    %v3176 = vpop.f32.mrb[0].mxu0
    %v3177 = vadd.f32 0.0, %v3176
    %v3178 = vpop.f32.mrb[0].mxu0
    %3179 = vmatprep.mubr.f32.mxu0 0.0
    %3180 = vmatmul.mubr.f32.gmra.mrb[0].mxu0 %v3108
    %v3181 = vpop.f32.mrb[0].mxu0
    %v3182 = vadd.f32 0.0, %v3181
    %v3183 = vpop.f32.mrb[0].mxu0
    %3184 = vdwg.mxu0
    %s3185 = scalar_lea.vmem %s25, 64
    %v3186 = vld [vmem:[%s3185] sm:$0xff]
    %v3187 = vld [vmem:[%s3185 + $0x8] sm:$0xff]
    %v3188 = vld [vmem:[%s3185 + $0x10] sm:$0xff]
    %v3189 = vld [vmem:[%s3185 + $0x18] sm:$0xff]
    %v3190 = vld [vmem:[%s3185 + $0x20] sm:$0xff]
    %v3191 = vld [vmem:[%s3185 + $0x28] sm:$0xff]
    %v3192 = vld [vmem:[%s3185 + $0x30] sm:$0xff]
    %v3193 = vld [vmem:[%s3185 + $0x38] sm:$0xff]
    %v3195 = vsel %vm668, %v3177, 0
    %v3198 = vsel %vm668, %v3182, 0
    %3200 = vmatprep.subr.mxu0 0.0
    %3201 = vmatpush1.msra.mxu0 %v3186
    %3202 = vmatprep.subr.mxu0 0.0
    %3203 = vmatpush1.msra.mxu0 %v3187
    %3204 = vmatprep.subr.mxu0 0.0
    %3205 = vmatpush1.msra.mxu0 %v3188
    %3206 = vmatprep.subr.mxu0 0.0
    %3207 = vmatpush1.msra.mxu0 %v3189
    %3208 = vmatprep.subr.mxu0 0.0
    %3209 = vmatpush1.msra.mxu0 %v3190
    %3210 = vmatprep.subr.mxu0 0.0
    %3211 = vmatpush1.msra.mxu0 %v3191
    %3212 = vmatprep.subr.mxu0 0.0
    %3213 = vmatpush1.msra.mxu0 %v3192
    %3214 = vmatprep.subr.mxu0 0.0
    %3215 = vmatpush1.msra.mxu0 %v3193
    %3216 = vmatprep.subr.mxu0 0.0
    %3217 = vmatpush1.msra.mxu0 0.0
    %3218 = vmatprep.subr.mxu0 0.0
    %3219 = vmatpush1.msra.mxu0 0.0
    %3220 = vmatprep.subr.mxu0 0.0
    %3221 = vmatpush1.msra.mxu0 0.0
    %3222 = vmatprep.subr.mxu0 0.0
    %3223 = vmatpush1.msra.mxu0 0.0
    %3224 = vmatprep.subr.mxu0 0.0
    %3225 = vmatpush1.msra.mxu0 0.0
    %3226 = vmatprep.subr.mxu0 0.0
    %3227 = vmatpush1.msra.mxu0 0.0
    %3228 = vmatprep.subr.mxu0 0.0
    %3229 = vmatpush1.msra.mxu0 0.0
    %3230 = vmatprep.subr.mxu0 0.0
    %3231 = vmatpush1.msra.mxu0 0.0
    %3232 = vmatprep.subr.mxu0 0.0
    %3233 = vmatpush1.msra.mxu0 0.0
    %3234 = vmatprep.subr.mxu0 0.0
    %3235 = vmatpush1.msra.mxu0 0.0
    %3236 = vmatprep.subr.mxu0 0.0
    %3237 = vmatpush1.msra.mxu0 0.0
    %3238 = vmatprep.subr.mxu0 0.0
    %3239 = vmatpush1.msra.mxu0 0.0
    %3240 = vmatprep.subr.mxu0 0.0
    %3241 = vmatpush1.msra.mxu0 0.0
    %3242 = vmatprep.subr.mxu0 0.0
    %3243 = vmatpush1.msra.mxu0 0.0
    %3244 = vmatprep.subr.mxu0 0.0
    %3245 = vmatpush1.msra.mxu0 0.0
    %3246 = vmatprep.subr.mxu0 0.0
    %3247 = vmatpush1.msra.mxu0 0.0
    %3248 = vmatprep.subr.mxu0 0.0
    %3249 = vmatpush1.msra.mxu0 0.0
    %3250 = vmatprep.subr.mxu0 0.0
    %3251 = vmatpush1.msra.mxu0 0.0
    %3252 = vmatprep.subr.mxu0 0.0
    %3253 = vmatpush1.msra.mxu0 0.0
    %3254 = vmatprep.subr.mxu0 0.0
    %3255 = vmatpush1.msra.mxu0 0.0
    %3256 = vmatprep.subr.mxu0 0.0
    %3257 = vmatpush1.msra.mxu0 0.0
    %3258 = vmatprep.subr.mxu0 0.0
    %3259 = vmatpush1.msra.mxu0 0.0
    %3260 = vmatprep.subr.mxu0 0.0
    %3261 = vmatpush1.msra.mxu0 0.0
    %3262 = vmatprep.subr.mxu0 0.0
    %3263 = vmatpush1.msra.mxu0 0.0
    %3264 = vmatprep.mubr.f32.mxu0 0.0
    %3265 = vmatmul.mubr.f32.gmra.mrb[0].mxu0 %v3195
    %v3266 = vpop.f32.mrb[0].mxu0
    %v3267 = vadd.f32 0.0, %v3266
    %v3268 = vpop.f32.mrb[0].mxu0
    %3269 = vmatprep.mubr.f32.mxu0 0.0
    %3270 = vmatmul.mubr.f32.gmra.mrb[0].mxu0 %v3198
    %v3271 = vpop.f32.mrb[0].mxu0
    %v3272 = vadd.f32 0.0, %v3271
    %v3273 = vpop.f32.mrb[0].mxu0
    %3274 = vdwg.mxu0
    %v3276 = vsel %vm668, %v3085, 0
    %v3279 = vsel %vm668, %v3090, 0
    %3281 = vmatprep.subr.mxu0 0.0
    %3282 = vmatpush1.msra.mxu0 %v3093
    %3283 = vmatprep.subr.mxu0 0.0
    %3284 = vmatpush1.msra.mxu0 %v3094
    %3285 = vmatprep.subr.mxu0 0.0
    %3286 = vmatpush1.msra.mxu0 %v3095
    %3287 = vmatprep.subr.mxu0 0.0
    %3288 = vmatpush1.msra.mxu0 %v3096
    %3289 = vmatprep.subr.mxu0 0.0
    %3290 = vmatpush1.msra.mxu0 %v3097
    %3291 = vmatprep.subr.mxu0 0.0
    %3292 = vmatpush1.msra.mxu0 %v3098
    %3293 = vmatprep.subr.mxu0 0.0
    %3294 = vmatpush1.msra.mxu0 %v3099
    %3295 = vmatprep.subr.mxu0 0.0
    %3296 = vmatpush1.msra.mxu0 %v3100
    %3297 = vmatprep.subr.mxu0 0.0
    %3298 = vmatpush1.msra.mxu0 0.0
    %3299 = vmatprep.subr.mxu0 0.0
    %3300 = vmatpush1.msra.mxu0 0.0
    %3301 = vmatprep.subr.mxu0 0.0
    %3302 = vmatpush1.msra.mxu0 0.0
    %3303 = vmatprep.subr.mxu0 0.0
    %3304 = vmatpush1.msra.mxu0 0.0
    %3305 = vmatprep.subr.mxu0 0.0
    %3306 = vmatpush1.msra.mxu0 0.0
    %3307 = vmatprep.subr.mxu0 0.0
    %3308 = vmatpush1.msra.mxu0 0.0
    %3309 = vmatprep.subr.mxu0 0.0
    %3310 = vmatpush1.msra.mxu0 0.0
    %3311 = vmatprep.subr.mxu0 0.0
    %3312 = vmatpush1.msra.mxu0 0.0
    %3313 = vmatprep.subr.mxu0 0.0
    %3314 = vmatpush1.msra.mxu0 0.0
    %3315 = vmatprep.subr.mxu0 0.0
    %3316 = vmatpush1.msra.mxu0 0.0
    %3317 = vmatprep.subr.mxu0 0.0
    %3318 = vmatpush1.msra.mxu0 0.0
    %3319 = vmatprep.subr.mxu0 0.0
    %3320 = vmatpush1.msra.mxu0 0.0
    %3321 = vmatprep.subr.mxu0 0.0
    %3322 = vmatpush1.msra.mxu0 0.0
    %3323 = vmatprep.subr.mxu0 0.0
    %3324 = vmatpush1.msra.mxu0 0.0
    %3325 = vmatprep.subr.mxu0 0.0
    %3326 = vmatpush1.msra.mxu0 0.0
    %3327 = vmatprep.subr.mxu0 0.0
    %3328 = vmatpush1.msra.mxu0 0.0
    %3329 = vmatprep.subr.mxu0 0.0
    %3330 = vmatpush1.msra.mxu0 0.0
    %3331 = vmatprep.subr.mxu0 0.0
    %3332 = vmatpush1.msra.mxu0 0.0
    %3333 = vmatprep.subr.mxu0 0.0
    %3334 = vmatpush1.msra.mxu0 0.0
    %3335 = vmatprep.subr.mxu0 0.0
    %3336 = vmatpush1.msra.mxu0 0.0
    %3337 = vmatprep.subr.mxu0 0.0
    %3338 = vmatpush1.msra.mxu0 0.0
    %3339 = vmatprep.subr.mxu0 0.0
    %3340 = vmatpush1.msra.mxu0 0.0
    %3341 = vmatprep.subr.mxu0 0.0
    %3342 = vmatpush1.msra.mxu0 0.0
    %3343 = vmatprep.subr.mxu0 0.0
    %3344 = vmatpush1.msra.mxu0 0.0
    %3345 = vmatprep.mubr.f32.mxu0 0.0
    %3346 = vmatmul.mubr.f32.gmra.mrb[0].mxu0 %v3276
    %v3347 = vpop.f32.mrb[0].mxu0
    %v3348 = vadd.f32 %v3267, %v3347
    %v3349 = vpop.f32.mrb[0].mxu0
    %3350 = vmatprep.mubr.f32.mxu0 0.0
    %3351 = vmatmul.mubr.f32.gmra.mrb[0].mxu0 %v3279
    %v3352 = vpop.f32.mrb[0].mxu0
    %v3353 = vadd.f32 %v3272, %v3352
    %v3354 = vpop.f32.mrb[0].mxu0
    %3355 = vdwg.mxu0
    %s3356 = scalar_lea.vmem [#allocation10], 32
    %v3357 = vld [vmem:[%s3356] sm:$0xff]
    %v3358 = vld [vmem:[%s3356 + $0x8] sm:$0xff]
    %v3360 = vsel %vm3011, %v3357, 0
    %v3363 = vsel %vm3011, %v3358, 0
    %3365 = vmatprep.subr.mxu0 0.0
    %3366 = vmatpush1.msra.mxu0 %v3001
    %3367 = vmatprep.subr.mxu0 0.0
    %3368 = vmatpush1.msra.mxu0 %v3006
    %3369 = vmatprep.subr.mxu0 0.0
    %3370 = vmatpush1.msra.mxu0 0.0
    %3371 = vmatprep.subr.mxu0 0.0
    %3372 = vmatpush1.msra.mxu0 0.0
    %3373 = vmatprep.subr.mxu0 0.0
    %3374 = vmatpush1.msra.mxu0 0.0
    %3375 = vmatprep.subr.mxu0 0.0
    %3376 = vmatpush1.msra.mxu0 0.0
    %3377 = vmatprep.subr.mxu0 0.0
    %3378 = vmatpush1.msra.mxu0 0.0
    %3379 = vmatprep.subr.mxu0 0.0
    %3380 = vmatpush1.msra.mxu0 0.0
    %3381 = vmatprep.subr.mxu0 0.0
    %3382 = vmatpush1.msra.mxu0 0.0
    %3383 = vmatprep.subr.mxu0 0.0
    %3384 = vmatpush1.msra.mxu0 0.0
    %3385 = vmatprep.subr.mxu0 0.0
    %3386 = vmatpush1.msra.mxu0 0.0
    %3387 = vmatprep.subr.mxu0 0.0
    %3388 = vmatpush1.msra.mxu0 0.0
    %3389 = vmatprep.subr.mxu0 0.0
    %3390 = vmatpush1.msra.mxu0 0.0
    %3391 = vmatprep.subr.mxu0 0.0
    %3392 = vmatpush1.msra.mxu0 0.0
    %3393 = vmatprep.subr.mxu0 0.0
    %3394 = vmatpush1.msra.mxu0 0.0
    %3395 = vmatprep.subr.mxu0 0.0
    %3396 = vmatpush1.msra.mxu0 0.0
    %3397 = vmatprep.subr.mxu0 0.0
    %3398 = vmatpush1.msra.mxu0 0.0
    %3399 = vmatprep.subr.mxu0 0.0
    %3400 = vmatpush1.msra.mxu0 0.0
    %3401 = vmatprep.subr.mxu0 0.0
    %3402 = vmatpush1.msra.mxu0 0.0
    %3403 = vmatprep.subr.mxu0 0.0
    %3404 = vmatpush1.msra.mxu0 0.0
    %3405 = vmatprep.subr.mxu0 0.0
    %3406 = vmatpush1.msra.mxu0 0.0
    %3407 = vmatprep.subr.mxu0 0.0
    %3408 = vmatpush1.msra.mxu0 0.0
    %3409 = vmatprep.subr.mxu0 0.0
    %3410 = vmatpush1.msra.mxu0 0.0
    %3411 = vmatprep.subr.mxu0 0.0
    %3412 = vmatpush1.msra.mxu0 0.0
    %3413 = vmatprep.subr.mxu0 0.0
    %3414 = vmatpush1.msra.mxu0 0.0
    %3415 = vmatprep.subr.mxu0 0.0
    %3416 = vmatpush1.msra.mxu0 0.0
    %3417 = vmatprep.subr.mxu0 0.0
    %3418 = vmatpush1.msra.mxu0 0.0
    %3419 = vmatprep.subr.mxu0 0.0
    %3420 = vmatpush1.msra.mxu0 0.0
    %3421 = vmatprep.subr.mxu0 0.0
    %3422 = vmatpush1.msra.mxu0 0.0
    %3423 = vmatprep.subr.mxu0 0.0
    %3424 = vmatpush1.msra.mxu0 0.0
    %3425 = vmatprep.subr.mxu0 0.0
    %3426 = vmatpush1.msra.mxu0 0.0
    %3427 = vmatprep.subr.mxu0 0.0
    %3428 = vmatpush1.msra.mxu0 0.0
    %3429 = vmatprep.mubr.f32.mxu0 0.0
    %3430 = vmatmul.mubr.f32.gmra.mrb[0].mxu0 %v3360
    %v3431 = vpop.f32.mrb[0].mxu0
    %v3432 = vadd.f32 0.0, %v3431
    %v3433 = vpop.f32.mrb[0].mxu0
    %3434 = vmatprep.mubr.f32.mxu0 0.0
    %3435 = vmatmul.mubr.f32.gmra.mrb[0].mxu0 %v3363
    %v3436 = vpop.f32.mrb[0].mxu0
    %v3437 = vadd.f32 0.0, %v3436
    %v3438 = vpop.f32.mrb[0].mxu0
    %3439 = vdwg.mxu0
    %s3440 = scalar_lea.vmem %s25, 128
    %v3441 = vld [vmem:[%s3440] sm:$0xff]
    %v3442 = vld [vmem:[%s3440 + $0x8] sm:$0xff]
    %v3443 = vld [vmem:[%s3440 + $0x10] sm:$0xff]
    %v3444 = vld [vmem:[%s3440 + $0x18] sm:$0xff]
    %v3445 = vld [vmem:[%s3440 + $0x20] sm:$0xff]
    %v3446 = vld [vmem:[%s3440 + $0x28] sm:$0xff]
    %v3447 = vld [vmem:[%s3440 + $0x30] sm:$0xff]
    %v3448 = vld [vmem:[%s3440 + $0x38] sm:$0xff]
    %v3450 = vsel %vm668, %v3432, 0
    %v3453 = vsel %vm668, %v3437, 0
    %3455 = vmatprep.subr.mxu0 0.0
    %3456 = vmatpush1.msra.mxu0 %v3441
    %3457 = vmatprep.subr.mxu0 0.0
    %3458 = vmatpush1.msra.mxu0 %v3442
    %3459 = vmatprep.subr.mxu0 0.0
    %3460 = vmatpush1.msra.mxu0 %v3443
    %3461 = vmatprep.subr.mxu0 0.0
    %3462 = vmatpush1.msra.mxu0 %v3444
    %3463 = vmatprep.subr.mxu0 0.0
    %3464 = vmatpush1.msra.mxu0 %v3445
    %3465 = vmatprep.subr.mxu0 0.0
    %3466 = vmatpush1.msra.mxu0 %v3446
    %3467 = vmatprep.subr.mxu0 0.0
    %3468 = vmatpush1.msra.mxu0 %v3447
    %3469 = vmatprep.subr.mxu0 0.0
    %3470 = vmatpush1.msra.mxu0 %v3448
    %3471 = vmatprep.subr.mxu0 0.0
    %3472 = vmatpush1.msra.mxu0 0.0
    %3473 = vmatprep.subr.mxu0 0.0
    %3474 = vmatpush1.msra.mxu0 0.0
    %3475 = vmatprep.subr.mxu0 0.0
    %3476 = vmatpush1.msra.mxu0 0.0
    %3477 = vmatprep.subr.mxu0 0.0
    %3478 = vmatpush1.msra.mxu0 0.0
    %3479 = vmatprep.subr.mxu0 0.0
    %3480 = vmatpush1.msra.mxu0 0.0
    %3481 = vmatprep.subr.mxu0 0.0
    %3482 = vmatpush1.msra.mxu0 0.0
    %3483 = vmatprep.subr.mxu0 0.0
    %3484 = vmatpush1.msra.mxu0 0.0
    %3485 = vmatprep.subr.mxu0 0.0
    %3486 = vmatpush1.msra.mxu0 0.0
    %3487 = vmatprep.subr.mxu0 0.0
    %3488 = vmatpush1.msra.mxu0 0.0
    %3489 = vmatprep.subr.mxu0 0.0
    %3490 = vmatpush1.msra.mxu0 0.0
    %3491 = vmatprep.subr.mxu0 0.0
    %3492 = vmatpush1.msra.mxu0 0.0
    %3493 = vmatprep.subr.mxu0 0.0
    %3494 = vmatpush1.msra.mxu0 0.0
    %3495 = vmatprep.subr.mxu0 0.0
    %3496 = vmatpush1.msra.mxu0 0.0
    %3497 = vmatprep.subr.mxu0 0.0
    %3498 = vmatpush1.msra.mxu0 0.0
    %3499 = vmatprep.subr.mxu0 0.0
    %3500 = vmatpush1.msra.mxu0 0.0
    %3501 = vmatprep.subr.mxu0 0.0
    %3502 = vmatpush1.msra.mxu0 0.0
    %3503 = vmatprep.subr.mxu0 0.0
    %3504 = vmatpush1.msra.mxu0 0.0
    %3505 = vmatprep.subr.mxu0 0.0
    %3506 = vmatpush1.msra.mxu0 0.0
    %3507 = vmatprep.subr.mxu0 0.0
    %3508 = vmatpush1.msra.mxu0 0.0
    %3509 = vmatprep.subr.mxu0 0.0
    %3510 = vmatpush1.msra.mxu0 0.0
    %3511 = vmatprep.subr.mxu0 0.0
    %3512 = vmatpush1.msra.mxu0 0.0
    %3513 = vmatprep.subr.mxu0 0.0
    %3514 = vmatpush1.msra.mxu0 0.0
    %3515 = vmatprep.subr.mxu0 0.0
    %3516 = vmatpush1.msra.mxu0 0.0
    %3517 = vmatprep.subr.mxu0 0.0
    %3518 = vmatpush1.msra.mxu0 0.0
    %3519 = vmatprep.mubr.f32.mxu0 0.0
    %3520 = vmatmul.mubr.f32.gmra.mrb[0].mxu0 %v3450
    %v3521 = vpop.f32.mrb[0].mxu0
    %v3522 = vadd.f32 0.0, %v3521
    %v3523 = vpop.f32.mrb[0].mxu0
    %3524 = vmatprep.mubr.f32.mxu0 0.0
    %3525 = vmatmul.mubr.f32.gmra.mrb[0].mxu0 %v3453
    %v3526 = vpop.f32.mrb[0].mxu0
    %v3527 = vadd.f32 0.0, %v3526
    %v3528 = vpop.f32.mrb[0].mxu0
    %3529 = vdwg.mxu0
    %v3530 = vadd.f32 %v3348, %v3522
    %v3531 = vadd.f32 %v3353, %v3527
    %v3532 = vld [vmem:[#allocation12] sm:$0x1]
    %v3534 = vlaneseq
    %v3535 = vshrl.u32 %v3534, 7
    %v3536 = vsub.s32 0, %v3535
    %v3537 = vrot.slane %v3532, %v3536
    %v3539 = vadd.f32 %v3530, %v3537
    %v3540 = vadd.f32 %v3531, %v3537
    %v3541 = vld [vmem:[#allocation13] sm:$0xff]
    %v3542 = vld [vmem:[#allocation13 + $0x8] sm:$0xff]
    %v3543 = vld [vmem:[#allocation13 + $0x10] sm:$0xff]
    %v3544 = vld [vmem:[#allocation13 + $0x18] sm:$0xff]
    %v3545 = vld [vmem:[#allocation13 + $0x20] sm:$0xff]
    %v3546 = vld [vmem:[#allocation13 + $0x28] sm:$0xff]
    %v3547 = vld [vmem:[#allocation13 + $0x30] sm:$0xff]
    %v3548 = vld [vmem:[#allocation13 + $0x38] sm:$0xff]
    %v3549 = vld [vmem:[#allocation15] sm:$0x1]
    %v3551 = vlaneseq
    %v3552 = vshrl.u32 %v3551, 7
    %v3553 = vsub.s32 0, %v3552
    %v3554 = vrot.slane %v3549, %v3553
    %v3557 = vsel %vm668, %v3539, 0
    %v3560 = vsel %vm668, %v3540, 0
    %3562 = vmatprep.subr.mxu0 0.0
    %3563 = vmatpush1.msra.mxu0 %v3541
    %3564 = vmatprep.subr.mxu0 0.0
    %3565 = vmatpush1.msra.mxu0 %v3542
    %3566 = vmatprep.subr.mxu0 0.0
    %3567 = vmatpush1.msra.mxu0 %v3543
    %3568 = vmatprep.subr.mxu0 0.0
    %3569 = vmatpush1.msra.mxu0 %v3544
    %3570 = vmatprep.subr.mxu0 0.0
    %3571 = vmatpush1.msra.mxu0 %v3545
    %3572 = vmatprep.subr.mxu0 0.0
    %3573 = vmatpush1.msra.mxu0 %v3546
    %3574 = vmatprep.subr.mxu0 0.0
    %3575 = vmatpush1.msra.mxu0 %v3547
    %3576 = vmatprep.subr.mxu0 0.0
    %3577 = vmatpush1.msra.mxu0 %v3548
    %3578 = vmatprep.subr.mxu0 0.0
    %3579 = vmatpush1.msra.mxu0 0.0
    %3580 = vmatprep.subr.mxu0 0.0
    %3581 = vmatpush1.msra.mxu0 0.0
    %3582 = vmatprep.subr.mxu0 0.0
    %3583 = vmatpush1.msra.mxu0 0.0
    %3584 = vmatprep.subr.mxu0 0.0
    %3585 = vmatpush1.msra.mxu0 0.0
    %3586 = vmatprep.subr.mxu0 0.0
    %3587 = vmatpush1.msra.mxu0 0.0
    %3588 = vmatprep.subr.mxu0 0.0
    %3589 = vmatpush1.msra.mxu0 0.0
    %3590 = vmatprep.subr.mxu0 0.0
    %3591 = vmatpush1.msra.mxu0 0.0
    %3592 = vmatprep.subr.mxu0 0.0
    %3593 = vmatpush1.msra.mxu0 0.0
    %3594 = vmatprep.subr.mxu0 0.0
    %3595 = vmatpush1.msra.mxu0 0.0
    %3596 = vmatprep.subr.mxu0 0.0
    %3597 = vmatpush1.msra.mxu0 0.0
    %3598 = vmatprep.subr.mxu0 0.0
    %3599 = vmatpush1.msra.mxu0 0.0
    %3600 = vmatprep.subr.mxu0 0.0
    %3601 = vmatpush1.msra.mxu0 0.0
    %3602 = vmatprep.subr.mxu0 0.0
    %3603 = vmatpush1.msra.mxu0 0.0
    %3604 = vmatprep.subr.mxu0 0.0
    %3605 = vmatpush1.msra.mxu0 0.0
    %3606 = vmatprep.subr.mxu0 0.0
    %3607 = vmatpush1.msra.mxu0 0.0
    %3608 = vmatprep.subr.mxu0 0.0
    %3609 = vmatpush1.msra.mxu0 0.0
    %3610 = vmatprep.subr.mxu0 0.0
    %3611 = vmatpush1.msra.mxu0 0.0
    %3612 = vmatprep.subr.mxu0 0.0
    %3613 = vmatpush1.msra.mxu0 0.0
    %3614 = vmatprep.subr.mxu0 0.0
    %3615 = vmatpush1.msra.mxu0 0.0
    %3616 = vmatprep.subr.mxu0 0.0
    %3617 = vmatpush1.msra.mxu0 0.0
    %3618 = vmatprep.subr.mxu0 0.0
    %3619 = vmatpush1.msra.mxu0 0.0
    %3620 = vmatprep.subr.mxu0 0.0
    %3621 = vmatpush1.msra.mxu0 0.0
    %3622 = vmatprep.subr.mxu0 0.0
    %3623 = vmatpush1.msra.mxu0 0.0
    %3624 = vmatprep.subr.mxu0 0.0
    %3625 = vmatpush1.msra.mxu0 0.0
    %3626 = vmatprep.mubr.f32.mxu0 0.0
    %3627 = vmatmul.mubr.f32.gmra.mrb[0].mxu0 %v3557
    %v3628 = vpop.f32.mrb[0].mxu0
    %v3629 = vadd.f32 %v3554, %v3628
    %v3630 = vpop.f32.mrb[0].mxu0
    %3631 = vmatprep.mubr.f32.mxu0 0.0
    %3632 = vmatmul.mubr.f32.gmra.mrb[0].mxu0 %v3560
    %v3633 = vpop.f32.mrb[0].mxu0
    %v3634 = vadd.f32 %v3554, %v3633
    %v3635 = vpop.f32.mrb[0].mxu0
    %3636 = vdwg.mxu0
    %v3637 = vadd.f32 %v3629, %v2911
    %v3638 = vadd.f32 %v3634, %v2912
    %v3639 = vld [vmem:[#allocation16] sm:$0xff]
    %v3640 = vld [vmem:[#allocation16 + $0x8] sm:$0xff]
    %v3641 = vld [vmem:[#allocation16 + $0x10] sm:$0xff]
    %v3642 = vld [vmem:[#allocation16 + $0x18] sm:$0xff]
    %v3643 = vld [vmem:[#allocation16 + $0x20] sm:$0xff]
    %v3644 = vld [vmem:[#allocation16 + $0x28] sm:$0xff]
    %v3645 = vld [vmem:[#allocation16 + $0x30] sm:$0xff]
    %v3646 = vld [vmem:[#allocation16 + $0x38] sm:$0xff]
    %v3647 = vld [vmem:[#allocation18] sm:$0x1]
    %v3649 = vlaneseq
    %v3650 = vshrl.u32 %v3649, 7
    %v3651 = vsub.s32 0, %v3650
    %v3652 = vrot.slane %v3647, %v3651
    %v3655 = vsel %vm668, %v3637, 0
    %v3658 = vsel %vm668, %v3638, 0
    %3660 = vmatprep.subr.mxu0 0.0
    %3661 = vmatpush1.msra.mxu0 %v3639
    %3662 = vmatprep.subr.mxu0 0.0
    %3663 = vmatpush1.msra.mxu0 %v3640
    %3664 = vmatprep.subr.mxu0 0.0
    %3665 = vmatpush1.msra.mxu0 %v3641
    %3666 = vmatprep.subr.mxu0 0.0
    %3667 = vmatpush1.msra.mxu0 %v3642
    %3668 = vmatprep.subr.mxu0 0.0
    %3669 = vmatpush1.msra.mxu0 %v3643
    %3670 = vmatprep.subr.mxu0 0.0
    %3671 = vmatpush1.msra.mxu0 %v3644
    %3672 = vmatprep.subr.mxu0 0.0
    %3673 = vmatpush1.msra.mxu0 %v3645
    %3674 = vmatprep.subr.mxu0 0.0
    %3675 = vmatpush1.msra.mxu0 %v3646
    %3676 = vmatprep.subr.mxu0 0.0
    %3677 = vmatpush1.msra.mxu0 0.0
    %3678 = vmatprep.subr.mxu0 0.0
    %3679 = vmatpush1.msra.mxu0 0.0
    %3680 = vmatprep.subr.mxu0 0.0
    %3681 = vmatpush1.msra.mxu0 0.0
    %3682 = vmatprep.subr.mxu0 0.0
    %3683 = vmatpush1.msra.mxu0 0.0
    %3684 = vmatprep.subr.mxu0 0.0
    %3685 = vmatpush1.msra.mxu0 0.0
    %3686 = vmatprep.subr.mxu0 0.0
    %3687 = vmatpush1.msra.mxu0 0.0
    %3688 = vmatprep.subr.mxu0 0.0
    %3689 = vmatpush1.msra.mxu0 0.0
    %3690 = vmatprep.subr.mxu0 0.0
    %3691 = vmatpush1.msra.mxu0 0.0
    %3692 = vmatprep.subr.mxu0 0.0
    %3693 = vmatpush1.msra.mxu0 0.0
    %3694 = vmatprep.subr.mxu0 0.0
    %3695 = vmatpush1.msra.mxu0 0.0
    %3696 = vmatprep.subr.mxu0 0.0
    %3697 = vmatpush1.msra.mxu0 0.0
    %3698 = vmatprep.subr.mxu0 0.0
    %3699 = vmatpush1.msra.mxu0 0.0
    %3700 = vmatprep.subr.mxu0 0.0
    %3701 = vmatpush1.msra.mxu0 0.0
    %3702 = vmatprep.subr.mxu0 0.0
    %3703 = vmatpush1.msra.mxu0 0.0
    %3704 = vmatprep.subr.mxu0 0.0
    %3705 = vmatpush1.msra.mxu0 0.0
    %3706 = vmatprep.subr.mxu0 0.0
    %3707 = vmatpush1.msra.mxu0 0.0
    %3708 = vmatprep.subr.mxu0 0.0
    %3709 = vmatpush1.msra.mxu0 0.0
    %3710 = vmatprep.subr.mxu0 0.0
    %3711 = vmatpush1.msra.mxu0 0.0
    %3712 = vmatprep.subr.mxu0 0.0
    %3713 = vmatpush1.msra.mxu0 0.0
    %3714 = vmatprep.subr.mxu0 0.0
    %3715 = vmatpush1.msra.mxu0 0.0
    %3716 = vmatprep.subr.mxu0 0.0
    %3717 = vmatpush1.msra.mxu0 0.0
    %3718 = vmatprep.subr.mxu0 0.0
    %3719 = vmatpush1.msra.mxu0 0.0
    %3720 = vmatprep.subr.mxu0 0.0
    %3721 = vmatpush1.msra.mxu0 0.0
    %3722 = vmatprep.subr.mxu0 0.0
    %3723 = vmatpush1.msra.mxu0 0.0
    %3724 = vmatprep.mubr.f32.mxu0 0.0
    %3725 = vmatmul.mubr.f32.gmra.mrb[0].mxu0 %v3655
    %v3726 = vpop.f32.mrb[0].mxu0
    %v3727 = vadd.f32 %v3652, %v3726
    %v3728 = vpop.f32.mrb[0].mxu0
    %3729 = vmatprep.mubr.f32.mxu0 0.0
    %3730 = vmatmul.mubr.f32.gmra.mrb[0].mxu0 %v3658
    %v3731 = vpop.f32.mrb[0].mxu0
    %v3732 = vadd.f32 %v3652, %v3731
    %v3733 = vpop.f32.mrb[0].mxu0
    %3734 = vdwg.mxu0
    %v3735 = vld [vmem:[#allocation19] sm:$0xff]
    %v3736 = vld [vmem:[#allocation19 + $0x8] sm:$0xff]
    %v3738 = vsel %vm3011, %v3735, 0
    %v3741 = vsel %vm3011, %v3736, 0
    %3743 = vmatprep.subr.mxu0 0.0
    %3744 = vmatpush1.msra.mxu0 %v3727
    %3745 = vmatprep.subr.mxu0 0.0
    %3746 = vmatpush1.msra.mxu0 %v3732
    %3747 = vmatprep.subr.mxu0 0.0
    %3748 = vmatpush1.msra.mxu0 0.0
    %3749 = vmatprep.subr.mxu0 0.0
    %3750 = vmatpush1.msra.mxu0 0.0
    %3751 = vmatprep.subr.mxu0 0.0
    %3752 = vmatpush1.msra.mxu0 0.0
    %3753 = vmatprep.subr.mxu0 0.0
    %3754 = vmatpush1.msra.mxu0 0.0
    %3755 = vmatprep.subr.mxu0 0.0
    %3756 = vmatpush1.msra.mxu0 0.0
    %3757 = vmatprep.subr.mxu0 0.0
    %3758 = vmatpush1.msra.mxu0 0.0
    %3759 = vmatprep.subr.mxu0 0.0
    %3760 = vmatpush1.msra.mxu0 0.0
    %3761 = vmatprep.subr.mxu0 0.0
    %3762 = vmatpush1.msra.mxu0 0.0
    %3763 = vmatprep.subr.mxu0 0.0
    %3764 = vmatpush1.msra.mxu0 0.0
    %3765 = vmatprep.subr.mxu0 0.0
    %3766 = vmatpush1.msra.mxu0 0.0
    %3767 = vmatprep.subr.mxu0 0.0
    %3768 = vmatpush1.msra.mxu0 0.0
    %3769 = vmatprep.subr.mxu0 0.0
    %3770 = vmatpush1.msra.mxu0 0.0
    %3771 = vmatprep.subr.mxu0 0.0
    %3772 = vmatpush1.msra.mxu0 0.0
    %3773 = vmatprep.subr.mxu0 0.0
    %3774 = vmatpush1.msra.mxu0 0.0
    %3775 = vmatprep.subr.mxu0 0.0
    %3776 = vmatpush1.msra.mxu0 0.0
    %3777 = vmatprep.subr.mxu0 0.0
    %3778 = vmatpush1.msra.mxu0 0.0
    %3779 = vmatprep.subr.mxu0 0.0
    %3780 = vmatpush1.msra.mxu0 0.0
    %3781 = vmatprep.subr.mxu0 0.0
    %3782 = vmatpush1.msra.mxu0 0.0
    %3783 = vmatprep.subr.mxu0 0.0
    %3784 = vmatpush1.msra.mxu0 0.0
    %3785 = vmatprep.subr.mxu0 0.0
    %3786 = vmatpush1.msra.mxu0 0.0
    %3787 = vmatprep.subr.mxu0 0.0
    %3788 = vmatpush1.msra.mxu0 0.0
    %3789 = vmatprep.subr.mxu0 0.0
    %3790 = vmatpush1.msra.mxu0 0.0
    %3791 = vmatprep.subr.mxu0 0.0
    %3792 = vmatpush1.msra.mxu0 0.0
    %3793 = vmatprep.subr.mxu0 0.0
    %3794 = vmatpush1.msra.mxu0 0.0
    %3795 = vmatprep.subr.mxu0 0.0
    %3796 = vmatpush1.msra.mxu0 0.0
    %3797 = vmatprep.subr.mxu0 0.0
    %3798 = vmatpush1.msra.mxu0 0.0
    %3799 = vmatprep.subr.mxu0 0.0
    %3800 = vmatpush1.msra.mxu0 0.0
    %3801 = vmatprep.subr.mxu0 0.0
    %3802 = vmatpush1.msra.mxu0 0.0
    %3803 = vmatprep.subr.mxu0 0.0
    %3804 = vmatpush1.msra.mxu0 0.0
    %3805 = vmatprep.subr.mxu0 0.0
    %3806 = vmatpush1.msra.mxu0 0.0
    %3807 = vmatprep.mubr.f32.mxu0 0.0
    %3808 = vmatmul.mubr.f32.gmra.mrb[0].mxu0 %v3738
    %v3809 = vpop.f32.mrb[0].mxu0
    %v3810 = vadd.f32 0.0, %v3809
    %v3811 = vpop.f32.mrb[0].mxu0
    %3812 = vmatprep.mubr.f32.mxu0 0.0
    %3813 = vmatmul.mubr.f32.gmra.mrb[0].mxu0 %v3741
    %v3814 = vpop.f32.mrb[0].mxu0
    %v3815 = vadd.f32 0.0, %v3814
    %v3816 = vpop.f32.mrb[0].mxu0
    %3817 = vdwg.mxu0
    %v3818 = vld [vmem:[#allocation21] sm:$0xff]
    %v3819 = vld [vmem:[#allocation21 + $0x8] sm:$0xff]
    %v3820 = vld [vmem:[#allocation21 + $0x10] sm:$0xff]
    %v3821 = vld [vmem:[#allocation21 + $0x18] sm:$0xff]
    %v3822 = vld [vmem:[#allocation21 + $0x20] sm:$0xff]
    %v3823 = vld [vmem:[#allocation21 + $0x28] sm:$0xff]
    %v3824 = vld [vmem:[#allocation21 + $0x30] sm:$0xff]
    %v3825 = vld [vmem:[#allocation21 + $0x38] sm:$0xff]
    %s3826 = scalar_lea.vmem [#allocation19], 16
    %v3827 = vld [vmem:[%s3826] sm:$0xff]
    %v3828 = vld [vmem:[%s3826 + $0x8] sm:$0xff]
    %v3830 = vsel %vm3011, %v3827, 0
    %v3833 = vsel %vm3011, %v3828, 0
    %3835 = vmatprep.subr.mxu0 0.0
    %3836 = vmatpush1.msra.mxu0 %v3727
    %3837 = vmatprep.subr.mxu0 0.0
    %3838 = vmatpush1.msra.mxu0 %v3732
    %3839 = vmatprep.subr.mxu0 0.0
    %3840 = vmatpush1.msra.mxu0 0.0
    %3841 = vmatprep.subr.mxu0 0.0
    %3842 = vmatpush1.msra.mxu0 0.0
    %3843 = vmatprep.subr.mxu0 0.0
    %3844 = vmatpush1.msra.mxu0 0.0
    %3845 = vmatprep.subr.mxu0 0.0
    %3846 = vmatpush1.msra.mxu0 0.0
    %3847 = vmatprep.subr.mxu0 0.0
    %3848 = vmatpush1.msra.mxu0 0.0
    %3849 = vmatprep.subr.mxu0 0.0
    %3850 = vmatpush1.msra.mxu0 0.0
    %3851 = vmatprep.subr.mxu0 0.0
    %3852 = vmatpush1.msra.mxu0 0.0
    %3853 = vmatprep.subr.mxu0 0.0
    %3854 = vmatpush1.msra.mxu0 0.0
    %3855 = vmatprep.subr.mxu0 0.0
    %3856 = vmatpush1.msra.mxu0 0.0
    %3857 = vmatprep.subr.mxu0 0.0
    %3858 = vmatpush1.msra.mxu0 0.0
    %3859 = vmatprep.subr.mxu0 0.0
    %3860 = vmatpush1.msra.mxu0 0.0
    %3861 = vmatprep.subr.mxu0 0.0
    %3862 = vmatpush1.msra.mxu0 0.0
    %3863 = vmatprep.subr.mxu0 0.0
    %3864 = vmatpush1.msra.mxu0 0.0
    %3865 = vmatprep.subr.mxu0 0.0
    %3866 = vmatpush1.msra.mxu0 0.0
    %3867 = vmatprep.subr.mxu0 0.0
    %3868 = vmatpush1.msra.mxu0 0.0
    %3869 = vmatprep.subr.mxu0 0.0
    %3870 = vmatpush1.msra.mxu0 0.0
    %3871 = vmatprep.subr.mxu0 0.0
    %3872 = vmatpush1.msra.mxu0 0.0
    %3873 = vmatprep.subr.mxu0 0.0
    %3874 = vmatpush1.msra.mxu0 0.0
    %3875 = vmatprep.subr.mxu0 0.0
    %3876 = vmatpush1.msra.mxu0 0.0
    %3877 = vmatprep.subr.mxu0 0.0
    %3878 = vmatpush1.msra.mxu0 0.0
    %3879 = vmatprep.subr.mxu0 0.0
    %3880 = vmatpush1.msra.mxu0 0.0
    %3881 = vmatprep.subr.mxu0 0.0
    %3882 = vmatpush1.msra.mxu0 0.0
    %3883 = vmatprep.subr.mxu0 0.0
    %3884 = vmatpush1.msra.mxu0 0.0
    %3885 = vmatprep.subr.mxu0 0.0
    %3886 = vmatpush1.msra.mxu0 0.0
    %3887 = vmatprep.subr.mxu0 0.0
    %3888 = vmatpush1.msra.mxu0 0.0
    %3889 = vmatprep.subr.mxu0 0.0
    %3890 = vmatpush1.msra.mxu0 0.0
    %3891 = vmatprep.subr.mxu0 0.0
    %3892 = vmatpush1.msra.mxu0 0.0
    %3893 = vmatprep.subr.mxu0 0.0
    %3894 = vmatpush1.msra.mxu0 0.0
    %3895 = vmatprep.subr.mxu0 0.0
    %3896 = vmatpush1.msra.mxu0 0.0
    %3897 = vmatprep.subr.mxu0 0.0
    %3898 = vmatpush1.msra.mxu0 0.0
    %3899 = vmatprep.mubr.f32.mxu0 0.0
    %3900 = vmatmul.mubr.f32.gmra.mrb[0].mxu0 %v3830
    %v3901 = vpop.f32.mrb[0].mxu0
    %v3902 = vadd.f32 0.0, %v3901
    %v3903 = vpop.f32.mrb[0].mxu0
    %3904 = vmatprep.mubr.f32.mxu0 0.0
    %3905 = vmatmul.mubr.f32.gmra.mrb[0].mxu0 %v3833
    %v3906 = vpop.f32.mrb[0].mxu0
    %v3907 = vadd.f32 0.0, %v3906
    %v3908 = vpop.f32.mrb[0].mxu0
    %3909 = vdwg.mxu0
    %s3910 = scalar_lea.vmem [#allocation21], 64
    %v3911 = vld [vmem:[%s3910] sm:$0xff]
    %v3912 = vld [vmem:[%s3910 + $0x8] sm:$0xff]
    %v3913 = vld [vmem:[%s3910 + $0x10] sm:$0xff]
    %v3914 = vld [vmem:[%s3910 + $0x18] sm:$0xff]
    %v3915 = vld [vmem:[%s3910 + $0x20] sm:$0xff]
    %v3916 = vld [vmem:[%s3910 + $0x28] sm:$0xff]
    %v3917 = vld [vmem:[%s3910 + $0x30] sm:$0xff]
    %v3918 = vld [vmem:[%s3910 + $0x38] sm:$0xff]
    %v3920 = vsel %vm668, %v3902, 0
    %v3923 = vsel %vm668, %v3907, 0
    %3925 = vmatprep.subr.mxu0 0.0
    %3926 = vmatpush1.msra.mxu0 %v3911
    %3927 = vmatprep.subr.mxu0 0.0
    %3928 = vmatpush1.msra.mxu0 %v3912
    %3929 = vmatprep.subr.mxu0 0.0
    %3930 = vmatpush1.msra.mxu0 %v3913
    %3931 = vmatprep.subr.mxu0 0.0
    %3932 = vmatpush1.msra.mxu0 %v3914
    %3933 = vmatprep.subr.mxu0 0.0
    %3934 = vmatpush1.msra.mxu0 %v3915
    %3935 = vmatprep.subr.mxu0 0.0
    %3936 = vmatpush1.msra.mxu0 %v3916
    %3937 = vmatprep.subr.mxu0 0.0
    %3938 = vmatpush1.msra.mxu0 %v3917
    %3939 = vmatprep.subr.mxu0 0.0
    %3940 = vmatpush1.msra.mxu0 %v3918
    %3941 = vmatprep.subr.mxu0 0.0
    %3942 = vmatpush1.msra.mxu0 0.0
    %3943 = vmatprep.subr.mxu0 0.0
    %3944 = vmatpush1.msra.mxu0 0.0
    %3945 = vmatprep.subr.mxu0 0.0
    %3946 = vmatpush1.msra.mxu0 0.0
    %3947 = vmatprep.subr.mxu0 0.0
    %3948 = vmatpush1.msra.mxu0 0.0
    %3949 = vmatprep.subr.mxu0 0.0
    %3950 = vmatpush1.msra.mxu0 0.0
    %3951 = vmatprep.subr.mxu0 0.0
    %3952 = vmatpush1.msra.mxu0 0.0
    %3953 = vmatprep.subr.mxu0 0.0
    %3954 = vmatpush1.msra.mxu0 0.0
    %3955 = vmatprep.subr.mxu0 0.0
    %3956 = vmatpush1.msra.mxu0 0.0
    %3957 = vmatprep.subr.mxu0 0.0
    %3958 = vmatpush1.msra.mxu0 0.0
    %3959 = vmatprep.subr.mxu0 0.0
    %3960 = vmatpush1.msra.mxu0 0.0
    %3961 = vmatprep.subr.mxu0 0.0
    %3962 = vmatpush1.msra.mxu0 0.0
    %3963 = vmatprep.subr.mxu0 0.0
    %3964 = vmatpush1.msra.mxu0 0.0
    %3965 = vmatprep.subr.mxu0 0.0
    %3966 = vmatpush1.msra.mxu0 0.0
    %3967 = vmatprep.subr.mxu0 0.0
    %3968 = vmatpush1.msra.mxu0 0.0
    %3969 = vmatprep.subr.mxu0 0.0
    %3970 = vmatpush1.msra.mxu0 0.0
    %3971 = vmatprep.subr.mxu0 0.0
    %3972 = vmatpush1.msra.mxu0 0.0
    %3973 = vmatprep.subr.mxu0 0.0
    %3974 = vmatpush1.msra.mxu0 0.0
    %3975 = vmatprep.subr.mxu0 0.0
    %3976 = vmatpush1.msra.mxu0 0.0
    %3977 = vmatprep.subr.mxu0 0.0
    %3978 = vmatpush1.msra.mxu0 0.0
    %3979 = vmatprep.subr.mxu0 0.0
    %3980 = vmatpush1.msra.mxu0 0.0
    %3981 = vmatprep.subr.mxu0 0.0
    %3982 = vmatpush1.msra.mxu0 0.0
    %3983 = vmatprep.subr.mxu0 0.0
    %3984 = vmatpush1.msra.mxu0 0.0
    %3985 = vmatprep.subr.mxu0 0.0
    %3986 = vmatpush1.msra.mxu0 0.0
    %3987 = vmatprep.subr.mxu0 0.0
    %3988 = vmatpush1.msra.mxu0 0.0
    %3989 = vmatprep.mubr.f32.mxu0 0.0
    %3990 = vmatmul.mubr.f32.gmra.mrb[0].mxu0 %v3920
    %v3991 = vpop.f32.mrb[0].mxu0
    %v3992 = vadd.f32 0.0, %v3991
    %v3993 = vpop.f32.mrb[0].mxu0
    %3994 = vmatprep.mubr.f32.mxu0 0.0
    %3995 = vmatmul.mubr.f32.gmra.mrb[0].mxu0 %v3923
    %v3996 = vpop.f32.mrb[0].mxu0
    %v3997 = vadd.f32 0.0, %v3996
    %v3998 = vpop.f32.mrb[0].mxu0
    %3999 = vdwg.mxu0
    %v4001 = vsel %vm668, %v3810, 0
    %v4004 = vsel %vm668, %v3815, 0
    %4006 = vmatprep.subr.mxu0 0.0
    %4007 = vmatpush1.msra.mxu0 %v3818
    %4008 = vmatprep.subr.mxu0 0.0
    %4009 = vmatpush1.msra.mxu0 %v3819
    %4010 = vmatprep.subr.mxu0 0.0
    %4011 = vmatpush1.msra.mxu0 %v3820
    %4012 = vmatprep.subr.mxu0 0.0
    %4013 = vmatpush1.msra.mxu0 %v3821
    %4014 = vmatprep.subr.mxu0 0.0
    %4015 = vmatpush1.msra.mxu0 %v3822
    %4016 = vmatprep.subr.mxu0 0.0
    %4017 = vmatpush1.msra.mxu0 %v3823
    %4018 = vmatprep.subr.mxu0 0.0
    %4019 = vmatpush1.msra.mxu0 %v3824
    %4020 = vmatprep.subr.mxu0 0.0
    %4021 = vmatpush1.msra.mxu0 %v3825
    %4022 = vmatprep.subr.mxu0 0.0
    %4023 = vmatpush1.msra.mxu0 0.0
    %4024 = vmatprep.subr.mxu0 0.0
    %4025 = vmatpush1.msra.mxu0 0.0
    %4026 = vmatprep.subr.mxu0 0.0
    %4027 = vmatpush1.msra.mxu0 0.0
    %4028 = vmatprep.subr.mxu0 0.0
    %4029 = vmatpush1.msra.mxu0 0.0
    %4030 = vmatprep.subr.mxu0 0.0
    %4031 = vmatpush1.msra.mxu0 0.0
    %4032 = vmatprep.subr.mxu0 0.0
    %4033 = vmatpush1.msra.mxu0 0.0
    %4034 = vmatprep.subr.mxu0 0.0
    %4035 = vmatpush1.msra.mxu0 0.0
    %4036 = vmatprep.subr.mxu0 0.0
    %4037 = vmatpush1.msra.mxu0 0.0
    %4038 = vmatprep.subr.mxu0 0.0
    %4039 = vmatpush1.msra.mxu0 0.0
    %4040 = vmatprep.subr.mxu0 0.0
    %4041 = vmatpush1.msra.mxu0 0.0
    %4042 = vmatprep.subr.mxu0 0.0
    %4043 = vmatpush1.msra.mxu0 0.0
    %4044 = vmatprep.subr.mxu0 0.0
    %4045 = vmatpush1.msra.mxu0 0.0
    %4046 = vmatprep.subr.mxu0 0.0
    %4047 = vmatpush1.msra.mxu0 0.0
    %4048 = vmatprep.subr.mxu0 0.0
    %4049 = vmatpush1.msra.mxu0 0.0
    %4050 = vmatprep.subr.mxu0 0.0
    %4051 = vmatpush1.msra.mxu0 0.0
    %4052 = vmatprep.subr.mxu0 0.0
    %4053 = vmatpush1.msra.mxu0 0.0
    %4054 = vmatprep.subr.mxu0 0.0
    %4055 = vmatpush1.msra.mxu0 0.0
    %4056 = vmatprep.subr.mxu0 0.0
    %4057 = vmatpush1.msra.mxu0 0.0
    %4058 = vmatprep.subr.mxu0 0.0
    %4059 = vmatpush1.msra.mxu0 0.0
    %4060 = vmatprep.subr.mxu0 0.0
    %4061 = vmatpush1.msra.mxu0 0.0
    %4062 = vmatprep.subr.mxu0 0.0
    %4063 = vmatpush1.msra.mxu0 0.0
    %4064 = vmatprep.subr.mxu0 0.0
    %4065 = vmatpush1.msra.mxu0 0.0
    %4066 = vmatprep.subr.mxu0 0.0
    %4067 = vmatpush1.msra.mxu0 0.0
    %4068 = vmatprep.subr.mxu0 0.0
    %4069 = vmatpush1.msra.mxu0 0.0
    %4070 = vmatprep.mubr.f32.mxu0 0.0
    %4071 = vmatmul.mubr.f32.gmra.mrb[0].mxu0 %v4001
    %v4072 = vpop.f32.mrb[0].mxu0
    %v4073 = vadd.f32 %v3992, %v4072
    %v4074 = vpop.f32.mrb[0].mxu0
    %4075 = vmatprep.mubr.f32.mxu0 0.0
    %4076 = vmatmul.mubr.f32.gmra.mrb[0].mxu0 %v4004
    %v4077 = vpop.f32.mrb[0].mxu0
    %v4078 = vadd.f32 %v3997, %v4077
    %v4079 = vpop.f32.mrb[0].mxu0
    %4080 = vdwg.mxu0
    %s4081 = scalar_lea.vmem [#allocation19], 32
    %v4082 = vld [vmem:[%s4081] sm:$0xff]
    %v4083 = vld [vmem:[%s4081 + $0x8] sm:$0xff]
    %v4085 = vsel %vm3011, %v4082, 0
    %v4088 = vsel %vm3011, %v4083, 0
    %4090 = vmatprep.subr.mxu0 0.0
    %4091 = vmatpush1.msra.mxu0 %v3727
    %4092 = vmatprep.subr.mxu0 0.0
    %4093 = vmatpush1.msra.mxu0 %v3732
    %4094 = vmatprep.subr.mxu0 0.0
    %4095 = vmatpush1.msra.mxu0 0.0
    %4096 = vmatprep.subr.mxu0 0.0
    %4097 = vmatpush1.msra.mxu0 0.0
    %4098 = vmatprep.subr.mxu0 0.0
    %4099 = vmatpush1.msra.mxu0 0.0
    %4100 = vmatprep.subr.mxu0 0.0
    %4101 = vmatpush1.msra.mxu0 0.0
    %4102 = vmatprep.subr.mxu0 0.0
    %4103 = vmatpush1.msra.mxu0 0.0
    %4104 = vmatprep.subr.mxu0 0.0
    %4105 = vmatpush1.msra.mxu0 0.0
    %4106 = vmatprep.subr.mxu0 0.0
    %4107 = vmatpush1.msra.mxu0 0.0
    %4108 = vmatprep.subr.mxu0 0.0
    %4109 = vmatpush1.msra.mxu0 0.0
    %4110 = vmatprep.subr.mxu0 0.0
    %4111 = vmatpush1.msra.mxu0 0.0
    %4112 = vmatprep.subr.mxu0 0.0
    %4113 = vmatpush1.msra.mxu0 0.0
    %4114 = vmatprep.subr.mxu0 0.0
    %4115 = vmatpush1.msra.mxu0 0.0
    %4116 = vmatprep.subr.mxu0 0.0
    %4117 = vmatpush1.msra.mxu0 0.0
    %4118 = vmatprep.subr.mxu0 0.0
    %4119 = vmatpush1.msra.mxu0 0.0
    %4120 = vmatprep.subr.mxu0 0.0
    %4121 = vmatpush1.msra.mxu0 0.0
    %4122 = vmatprep.subr.mxu0 0.0
    %4123 = vmatpush1.msra.mxu0 0.0
    %4124 = vmatprep.subr.mxu0 0.0
    %4125 = vmatpush1.msra.mxu0 0.0
    %4126 = vmatprep.subr.mxu0 0.0
    %4127 = vmatpush1.msra.mxu0 0.0
    %4128 = vmatprep.subr.mxu0 0.0
    %4129 = vmatpush1.msra.mxu0 0.0
    %4130 = vmatprep.subr.mxu0 0.0
    %4131 = vmatpush1.msra.mxu0 0.0
    %4132 = vmatprep.subr.mxu0 0.0
    %4133 = vmatpush1.msra.mxu0 0.0
    %4134 = vmatprep.subr.mxu0 0.0
    %4135 = vmatpush1.msra.mxu0 0.0
    %4136 = vmatprep.subr.mxu0 0.0
    %4137 = vmatpush1.msra.mxu0 0.0
    %4138 = vmatprep.subr.mxu0 0.0
    %4139 = vmatpush1.msra.mxu0 0.0
    %4140 = vmatprep.subr.mxu0 0.0
    %4141 = vmatpush1.msra.mxu0 0.0
    %4142 = vmatprep.subr.mxu0 0.0
    %4143 = vmatpush1.msra.mxu0 0.0
    %4144 = vmatprep.subr.mxu0 0.0
    %4145 = vmatpush1.msra.mxu0 0.0
    %4146 = vmatprep.subr.mxu0 0.0
    %4147 = vmatpush1.msra.mxu0 0.0
    %4148 = vmatprep.subr.mxu0 0.0
    %4149 = vmatpush1.msra.mxu0 0.0
    %4150 = vmatprep.subr.mxu0 0.0
    %4151 = vmatpush1.msra.mxu0 0.0
    %4152 = vmatprep.subr.mxu0 0.0
    %4153 = vmatpush1.msra.mxu0 0.0
    %4154 = vmatprep.mubr.f32.mxu0 0.0
    %4155 = vmatmul.mubr.f32.gmra.mrb[0].mxu0 %v4085
    %v4156 = vpop.f32.mrb[0].mxu0
    %v4157 = vadd.f32 0.0, %v4156
    %v4158 = vpop.f32.mrb[0].mxu0
    %4159 = vmatprep.mubr.f32.mxu0 0.0
    %4160 = vmatmul.mubr.f32.gmra.mrb[0].mxu0 %v4088
    %v4161 = vpop.f32.mrb[0].mxu0
    %v4162 = vadd.f32 0.0, %v4161
    %v4163 = vpop.f32.mrb[0].mxu0
    %4164 = vdwg.mxu0
    %s4165 = scalar_lea.vmem [#allocation21], 128
    %v4166 = vld [vmem:[%s4165] sm:$0xff]
    %v4167 = vld [vmem:[%s4165 + $0x8] sm:$0xff]
    %v4168 = vld [vmem:[%s4165 + $0x10] sm:$0xff]
    %v4169 = vld [vmem:[%s4165 + $0x18] sm:$0xff]
    %v4170 = vld [vmem:[%s4165 + $0x20] sm:$0xff]
    %v4171 = vld [vmem:[%s4165 + $0x28] sm:$0xff]
    %v4172 = vld [vmem:[%s4165 + $0x30] sm:$0xff]
    %v4173 = vld [vmem:[%s4165 + $0x38] sm:$0xff]
    %v4175 = vsel %vm668, %v4157, 0
    %v4178 = vsel %vm668, %v4162, 0
    %4180 = vmatprep.subr.mxu0 0.0
    %4181 = vmatpush1.msra.mxu0 %v4166
    %4182 = vmatprep.subr.mxu0 0.0
    %4183 = vmatpush1.msra.mxu0 %v4167
    %4184 = vmatprep.subr.mxu0 0.0
    %4185 = vmatpush1.msra.mxu0 %v4168
    %4186 = vmatprep.subr.mxu0 0.0
    %4187 = vmatpush1.msra.mxu0 %v4169
    %4188 = vmatprep.subr.mxu0 0.0
    %4189 = vmatpush1.msra.mxu0 %v4170
    %4190 = vmatprep.subr.mxu0 0.0
    %4191 = vmatpush1.msra.mxu0 %v4171
    %4192 = vmatprep.subr.mxu0 0.0
    %4193 = vmatpush1.msra.mxu0 %v4172
    %4194 = vmatprep.subr.mxu0 0.0
    %4195 = vmatpush1.msra.mxu0 %v4173
    %4196 = vmatprep.subr.mxu0 0.0
    %4197 = vmatpush1.msra.mxu0 0.0
    %4198 = vmatprep.subr.mxu0 0.0
    %4199 = vmatpush1.msra.mxu0 0.0
    %4200 = vmatprep.subr.mxu0 0.0
    %4201 = vmatpush1.msra.mxu0 0.0
    %4202 = vmatprep.subr.mxu0 0.0
    %4203 = vmatpush1.msra.mxu0 0.0
    %4204 = vmatprep.subr.mxu0 0.0
    %4205 = vmatpush1.msra.mxu0 0.0
    %4206 = vmatprep.subr.mxu0 0.0
    %4207 = vmatpush1.msra.mxu0 0.0
    %4208 = vmatprep.subr.mxu0 0.0
    %4209 = vmatpush1.msra.mxu0 0.0
    %4210 = vmatprep.subr.mxu0 0.0
    %4211 = vmatpush1.msra.mxu0 0.0
    %4212 = vmatprep.subr.mxu0 0.0
    %4213 = vmatpush1.msra.mxu0 0.0
    %4214 = vmatprep.subr.mxu0 0.0
    %4215 = vmatpush1.msra.mxu0 0.0
    %4216 = vmatprep.subr.mxu0 0.0
    %4217 = vmatpush1.msra.mxu0 0.0
    %4218 = vmatprep.subr.mxu0 0.0
    %4219 = vmatpush1.msra.mxu0 0.0
    %4220 = vmatprep.subr.mxu0 0.0
    %4221 = vmatpush1.msra.mxu0 0.0
    %4222 = vmatprep.subr.mxu0 0.0
    %4223 = vmatpush1.msra.mxu0 0.0
    %4224 = vmatprep.subr.mxu0 0.0
    %4225 = vmatpush1.msra.mxu0 0.0
    %4226 = vmatprep.subr.mxu0 0.0
    %4227 = vmatpush1.msra.mxu0 0.0
    %4228 = vmatprep.subr.mxu0 0.0
    %4229 = vmatpush1.msra.mxu0 0.0
    %4230 = vmatprep.subr.mxu0 0.0
    %4231 = vmatpush1.msra.mxu0 0.0
    %4232 = vmatprep.subr.mxu0 0.0
    %4233 = vmatpush1.msra.mxu0 0.0
    %4234 = vmatprep.subr.mxu0 0.0
    %4235 = vmatpush1.msra.mxu0 0.0
    %4236 = vmatprep.subr.mxu0 0.0
    %4237 = vmatpush1.msra.mxu0 0.0
    %4238 = vmatprep.subr.mxu0 0.0
    %4239 = vmatpush1.msra.mxu0 0.0
    %4240 = vmatprep.subr.mxu0 0.0
    %4241 = vmatpush1.msra.mxu0 0.0
    %4242 = vmatprep.subr.mxu0 0.0
    %4243 = vmatpush1.msra.mxu0 0.0
    %4244 = vmatprep.mubr.f32.mxu0 0.0
    %4245 = vmatmul.mubr.f32.gmra.mrb[0].mxu0 %v4175
    %v4246 = vpop.f32.mrb[0].mxu0
    %v4247 = vadd.f32 0.0, %v4246
    %v4248 = vpop.f32.mrb[0].mxu0
    %4249 = vmatprep.mubr.f32.mxu0 0.0
    %4250 = vmatmul.mubr.f32.gmra.mrb[0].mxu0 %v4178
    %v4251 = vpop.f32.mrb[0].mxu0
    %v4252 = vadd.f32 0.0, %v4251
    %v4253 = vpop.f32.mrb[0].mxu0
    %4254 = vdwg.mxu0
    %v4255 = vadd.f32 %v4073, %v4247
    %v4256 = vadd.f32 %v4078, %v4252
    %v4257 = vld [vmem:[#allocation22] sm:$0x1]
    %v4259 = vlaneseq
    %v4260 = vshrl.u32 %v4259, 7
    %v4261 = vsub.s32 0, %v4260
    %v4262 = vrot.slane %v4257, %v4261
    %v4264 = vadd.f32 %v4255, %v4262
    %v4265 = vadd.f32 %v4256, %v4262
    %v4266 = vld [vmem:[#allocation24] sm:$0xff]
    %v4267 = vld [vmem:[#allocation24 + $0x8] sm:$0xff]
    %v4268 = vld [vmem:[#allocation24 + $0x10] sm:$0xff]
    %v4269 = vld [vmem:[#allocation24 + $0x18] sm:$0xff]
    %v4270 = vld [vmem:[#allocation24 + $0x20] sm:$0xff]
    %v4271 = vld [vmem:[#allocation24 + $0x28] sm:$0xff]
    %v4272 = vld [vmem:[#allocation24 + $0x30] sm:$0xff]
    %v4273 = vld [vmem:[#allocation24 + $0x38] sm:$0xff]
    %v4274 = vld [vmem:[#allocation25] sm:$0x1]
    %v4276 = vlaneseq
    %v4277 = vshrl.u32 %v4276, 7
    %v4278 = vsub.s32 0, %v4277
    %v4279 = vrot.slane %v4274, %v4278
    %v4282 = vsel %vm668, %v4264, 0
    %v4285 = vsel %vm668, %v4265, 0
    %4287 = vmatprep.subr.mxu0 0.0
    %4288 = vmatpush1.msra.mxu0 %v4266
    %4289 = vmatprep.subr.mxu0 0.0
    %4290 = vmatpush1.msra.mxu0 %v4267
    %4291 = vmatprep.subr.mxu0 0.0
    %4292 = vmatpush1.msra.mxu0 %v4268
    %4293 = vmatprep.subr.mxu0 0.0
    %4294 = vmatpush1.msra.mxu0 %v4269
    %4295 = vmatprep.subr.mxu0 0.0
    %4296 = vmatpush1.msra.mxu0 %v4270
    %4297 = vmatprep.subr.mxu0 0.0
    %4298 = vmatpush1.msra.mxu0 %v4271
    %4299 = vmatprep.subr.mxu0 0.0
    %4300 = vmatpush1.msra.mxu0 %v4272
    %4301 = vmatprep.subr.mxu0 0.0
    %4302 = vmatpush1.msra.mxu0 %v4273
    %4303 = vmatprep.subr.mxu0 0.0
    %4304 = vmatpush1.msra.mxu0 0.0
    %4305 = vmatprep.subr.mxu0 0.0
    %4306 = vmatpush1.msra.mxu0 0.0
    %4307 = vmatprep.subr.mxu0 0.0
    %4308 = vmatpush1.msra.mxu0 0.0
    %4309 = vmatprep.subr.mxu0 0.0
    %4310 = vmatpush1.msra.mxu0 0.0
    %4311 = vmatprep.subr.mxu0 0.0
    %4312 = vmatpush1.msra.mxu0 0.0
    %4313 = vmatprep.subr.mxu0 0.0
    %4314 = vmatpush1.msra.mxu0 0.0
    %4315 = vmatprep.subr.mxu0 0.0
    %4316 = vmatpush1.msra.mxu0 0.0
    %4317 = vmatprep.subr.mxu0 0.0
    %4318 = vmatpush1.msra.mxu0 0.0
    %4319 = vmatprep.subr.mxu0 0.0
    %4320 = vmatpush1.msra.mxu0 0.0
    %4321 = vmatprep.subr.mxu0 0.0
    %4322 = vmatpush1.msra.mxu0 0.0
    %4323 = vmatprep.subr.mxu0 0.0
    %4324 = vmatpush1.msra.mxu0 0.0
    %4325 = vmatprep.subr.mxu0 0.0
    %4326 = vmatpush1.msra.mxu0 0.0
    %4327 = vmatprep.subr.mxu0 0.0
    %4328 = vmatpush1.msra.mxu0 0.0
    %4329 = vmatprep.subr.mxu0 0.0
    %4330 = vmatpush1.msra.mxu0 0.0
    %4331 = vmatprep.subr.mxu0 0.0
    %4332 = vmatpush1.msra.mxu0 0.0
    %4333 = vmatprep.subr.mxu0 0.0
    %4334 = vmatpush1.msra.mxu0 0.0
    %4335 = vmatprep.subr.mxu0 0.0
    %4336 = vmatpush1.msra.mxu0 0.0
    %4337 = vmatprep.subr.mxu0 0.0
    %4338 = vmatpush1.msra.mxu0 0.0
    %4339 = vmatprep.subr.mxu0 0.0
    %4340 = vmatpush1.msra.mxu0 0.0
    %4341 = vmatprep.subr.mxu0 0.0
    %4342 = vmatpush1.msra.mxu0 0.0
    %4343 = vmatprep.subr.mxu0 0.0
    %4344 = vmatpush1.msra.mxu0 0.0
    %4345 = vmatprep.subr.mxu0 0.0
    %4346 = vmatpush1.msra.mxu0 0.0
    %4347 = vmatprep.subr.mxu0 0.0
    %4348 = vmatpush1.msra.mxu0 0.0
    %4349 = vmatprep.subr.mxu0 0.0
    %4350 = vmatpush1.msra.mxu0 0.0
    %4351 = vmatprep.mubr.f32.mxu0 0.0
    %4352 = vmatmul.mubr.f32.gmra.mrb[0].mxu0 %v4282
    %v4353 = vpop.f32.mrb[0].mxu0
    %v4354 = vadd.f32 %v4279, %v4353
    %v4355 = vpop.f32.mrb[0].mxu0
    %4356 = vmatprep.mubr.f32.mxu0 0.0
    %4357 = vmatmul.mubr.f32.gmra.mrb[0].mxu0 %v4285
    %v4358 = vpop.f32.mrb[0].mxu0
    %v4359 = vadd.f32 %v4279, %v4358
    %v4360 = vpop.f32.mrb[0].mxu0
    %4361 = vdwg.mxu0
    %v4362 = vadd.f32 %v4354, %v3637
    %v4363 = vadd.f32 %v4359, %v3638
    %v4364 = vld [vmem:[#allocation27] sm:$0xff]
    %v4366 = vsel %vm3011, %v4364, 0
    %4368 = vmatprep.subr.mxu0 0.0
    %4369 = vmatpush1.msra.mxu0 %v4362
    %4370 = vmatprep.subr.mxu0 0.0
    %4371 = vmatpush1.msra.mxu0 %v4363
    %4372 = vmatprep.subr.mxu0 0.0
    %4373 = vmatpush1.msra.mxu0 0.0
    %4374 = vmatprep.subr.mxu0 0.0
    %4375 = vmatpush1.msra.mxu0 0.0
    %4376 = vmatprep.subr.mxu0 0.0
    %4377 = vmatpush1.msra.mxu0 0.0
    %4378 = vmatprep.subr.mxu0 0.0
    %4379 = vmatpush1.msra.mxu0 0.0
    %4380 = vmatprep.subr.mxu0 0.0
    %4381 = vmatpush1.msra.mxu0 0.0
    %4382 = vmatprep.subr.mxu0 0.0
    %4383 = vmatpush1.msra.mxu0 0.0
    %4384 = vmatprep.subr.mxu0 0.0
    %4385 = vmatpush1.msra.mxu0 0.0
    %4386 = vmatprep.subr.mxu0 0.0
    %4387 = vmatpush1.msra.mxu0 0.0
    %4388 = vmatprep.subr.mxu0 0.0
    %4389 = vmatpush1.msra.mxu0 0.0
    %4390 = vmatprep.subr.mxu0 0.0
    %4391 = vmatpush1.msra.mxu0 0.0
    %4392 = vmatprep.subr.mxu0 0.0
    %4393 = vmatpush1.msra.mxu0 0.0
    %4394 = vmatprep.subr.mxu0 0.0
    %4395 = vmatpush1.msra.mxu0 0.0
    %4396 = vmatprep.subr.mxu0 0.0
    %4397 = vmatpush1.msra.mxu0 0.0
    %4398 = vmatprep.subr.mxu0 0.0
    %4399 = vmatpush1.msra.mxu0 0.0
    %4400 = vmatprep.subr.mxu0 0.0
    %4401 = vmatpush1.msra.mxu0 0.0
    %4402 = vmatprep.subr.mxu0 0.0
    %4403 = vmatpush1.msra.mxu0 0.0
    %4404 = vmatprep.subr.mxu0 0.0
    %4405 = vmatpush1.msra.mxu0 0.0
    %4406 = vmatprep.subr.mxu0 0.0
    %4407 = vmatpush1.msra.mxu0 0.0
    %4408 = vmatprep.subr.mxu0 0.0
    %4409 = vmatpush1.msra.mxu0 0.0
    %4410 = vmatprep.subr.mxu0 0.0
    %4411 = vmatpush1.msra.mxu0 0.0
    %4412 = vmatprep.subr.mxu0 0.0
    %4413 = vmatpush1.msra.mxu0 0.0
    %4414 = vmatprep.subr.mxu0 0.0
    %4415 = vmatpush1.msra.mxu0 0.0
    %4416 = vmatprep.subr.mxu0 0.0
    %4417 = vmatpush1.msra.mxu0 0.0
    %4418 = vmatprep.subr.mxu0 0.0
    %4419 = vmatpush1.msra.mxu0 0.0
    %4420 = vmatprep.subr.mxu0 0.0
    %4421 = vmatpush1.msra.mxu0 0.0
    %4422 = vmatprep.subr.mxu0 0.0
    %4423 = vmatpush1.msra.mxu0 0.0
    %4424 = vmatprep.subr.mxu0 0.0
    %4425 = vmatpush1.msra.mxu0 0.0
    %4426 = vmatprep.subr.mxu0 0.0
    %4427 = vmatpush1.msra.mxu0 0.0
    %4428 = vmatprep.subr.mxu0 0.0
    %4429 = vmatpush1.msra.mxu0 0.0
    %4430 = vmatprep.subr.mxu0 0.0
    %4431 = vmatpush1.msra.mxu0 0.0
    %4432 = vmatprep.mubr.f32.mxu0 0.0
    %4433 = vmatmul.mubr.f32.gmra.mrb[0].mxu0 %v4366
    %v4434 = vpop.f32.mrb[0].mxu0
    %v4435 = vadd.f32 0.0, %v4434
    %v4436 = vpop.f32.mrb[0].mxu0
    %4437 = vdwg.mxu0
    %s4438 = scalar_lea.vmem [#allocation27], 8
    %v4439 = vld [vmem:[%s4438] sm:$0xff]
    %v4441 = vsel %vm3011, %v4439, 0
    %4443 = vmatprep.subr.mxu0 0.0
    %4444 = vmatpush1.msra.mxu0 %v4362
    %4445 = vmatprep.subr.mxu0 0.0
    %4446 = vmatpush1.msra.mxu0 %v4363
    %4447 = vmatprep.subr.mxu0 0.0
    %4448 = vmatpush1.msra.mxu0 0.0
    %4449 = vmatprep.subr.mxu0 0.0
    %4450 = vmatpush1.msra.mxu0 0.0
    %4451 = vmatprep.subr.mxu0 0.0
    %4452 = vmatpush1.msra.mxu0 0.0
    %4453 = vmatprep.subr.mxu0 0.0
    %4454 = vmatpush1.msra.mxu0 0.0
    %4455 = vmatprep.subr.mxu0 0.0
    %4456 = vmatpush1.msra.mxu0 0.0
    %4457 = vmatprep.subr.mxu0 0.0
    %4458 = vmatpush1.msra.mxu0 0.0
    %4459 = vmatprep.subr.mxu0 0.0
    %4460 = vmatpush1.msra.mxu0 0.0
    %4461 = vmatprep.subr.mxu0 0.0
    %4462 = vmatpush1.msra.mxu0 0.0
    %4463 = vmatprep.subr.mxu0 0.0
    %4464 = vmatpush1.msra.mxu0 0.0
    %4465 = vmatprep.subr.mxu0 0.0
    %4466 = vmatpush1.msra.mxu0 0.0
    %4467 = vmatprep.subr.mxu0 0.0
    %4468 = vmatpush1.msra.mxu0 0.0
    %4469 = vmatprep.subr.mxu0 0.0
    %4470 = vmatpush1.msra.mxu0 0.0
    %4471 = vmatprep.subr.mxu0 0.0
    %4472 = vmatpush1.msra.mxu0 0.0
    %4473 = vmatprep.subr.mxu0 0.0
    %4474 = vmatpush1.msra.mxu0 0.0
    %4475 = vmatprep.subr.mxu0 0.0
    %4476 = vmatpush1.msra.mxu0 0.0
    %4477 = vmatprep.subr.mxu0 0.0
    %4478 = vmatpush1.msra.mxu0 0.0
    %4479 = vmatprep.subr.mxu0 0.0
    %4480 = vmatpush1.msra.mxu0 0.0
    %4481 = vmatprep.subr.mxu0 0.0
    %4482 = vmatpush1.msra.mxu0 0.0
    %4483 = vmatprep.subr.mxu0 0.0
    %4484 = vmatpush1.msra.mxu0 0.0
    %4485 = vmatprep.subr.mxu0 0.0
    %4486 = vmatpush1.msra.mxu0 0.0
    %4487 = vmatprep.subr.mxu0 0.0
    %4488 = vmatpush1.msra.mxu0 0.0
    %4489 = vmatprep.subr.mxu0 0.0
    %4490 = vmatpush1.msra.mxu0 0.0
    %4491 = vmatprep.subr.mxu0 0.0
    %4492 = vmatpush1.msra.mxu0 0.0
    %4493 = vmatprep.subr.mxu0 0.0
    %4494 = vmatpush1.msra.mxu0 0.0
    %4495 = vmatprep.subr.mxu0 0.0
    %4496 = vmatpush1.msra.mxu0 0.0
    %4497 = vmatprep.subr.mxu0 0.0
    %4498 = vmatpush1.msra.mxu0 0.0
    %4499 = vmatprep.subr.mxu0 0.0
    %4500 = vmatpush1.msra.mxu0 0.0
    %4501 = vmatprep.subr.mxu0 0.0
    %4502 = vmatpush1.msra.mxu0 0.0
    %4503 = vmatprep.subr.mxu0 0.0
    %4504 = vmatpush1.msra.mxu0 0.0
    %4505 = vmatprep.subr.mxu0 0.0
    %4506 = vmatpush1.msra.mxu0 0.0
    %4507 = vmatprep.mubr.f32.mxu0 0.0
    %4508 = vmatmul.mubr.f32.gmra.mrb[0].mxu0 %v4441
    %v4509 = vpop.f32.mrb[0].mxu0
    %v4510 = vadd.f32 0.0, %v4509
    %v4511 = vpop.f32.mrb[0].mxu0
    %4512 = vdwg.mxu0
    %v4513 = vmax.f32 %v4435, %v4510
    %v4514 = vld [vmem:[%s49] sm:$0xff]
    %v4515 = vld [vmem:[%s49 + $0x8] sm:$0xff]
    %v4516 = vld [vmem:[%s49 + $0x10] sm:$0xff]
    %v4517 = vld [vmem:[%s49 + $0x18] sm:$0xff]
    %v4518 = vld [vmem:[%s49 + $0x20] sm:$0xff]
    %v4519 = vld [vmem:[%s49 + $0x28] sm:$0xff]
    %v4520 = vld [vmem:[%s49 + $0x30] sm:$0xff]
    %v4521 = vld [vmem:[%s49 + $0x38] sm:$0xff]
    %v4523 = vsel %vm668, %v4513, 0
    %4525 = vmatprep.subr.mxu0 0.0
    %4526 = vmatpush1.msra.mxu0 %v4514
    %4527 = vmatprep.subr.mxu0 0.0
    %4528 = vmatpush1.msra.mxu0 %v4515
    %4529 = vmatprep.subr.mxu0 0.0
    %4530 = vmatpush1.msra.mxu0 %v4516
    %4531 = vmatprep.subr.mxu0 0.0
    %4532 = vmatpush1.msra.mxu0 %v4517
    %4533 = vmatprep.subr.mxu0 0.0
    %4534 = vmatpush1.msra.mxu0 %v4518
    %4535 = vmatprep.subr.mxu0 0.0
    %4536 = vmatpush1.msra.mxu0 %v4519
    %4537 = vmatprep.subr.mxu0 0.0
    %4538 = vmatpush1.msra.mxu0 %v4520
    %4539 = vmatprep.subr.mxu0 0.0
    %4540 = vmatpush1.msra.mxu0 %v4521
    %4541 = vmatprep.subr.mxu0 0.0
    %4542 = vmatpush1.msra.mxu0 0.0
    %4543 = vmatprep.subr.mxu0 0.0
    %4544 = vmatpush1.msra.mxu0 0.0
    %4545 = vmatprep.subr.mxu0 0.0
    %4546 = vmatpush1.msra.mxu0 0.0
    %4547 = vmatprep.subr.mxu0 0.0
    %4548 = vmatpush1.msra.mxu0 0.0
    %4549 = vmatprep.subr.mxu0 0.0
    %4550 = vmatpush1.msra.mxu0 0.0
    %4551 = vmatprep.subr.mxu0 0.0
    %4552 = vmatpush1.msra.mxu0 0.0
    %4553 = vmatprep.subr.mxu0 0.0
    %4554 = vmatpush1.msra.mxu0 0.0
    %4555 = vmatprep.subr.mxu0 0.0
    %4556 = vmatpush1.msra.mxu0 0.0
    %4557 = vmatprep.subr.mxu0 0.0
    %4558 = vmatpush1.msra.mxu0 0.0
    %4559 = vmatprep.subr.mxu0 0.0
    %4560 = vmatpush1.msra.mxu0 0.0
    %4561 = vmatprep.subr.mxu0 0.0
    %4562 = vmatpush1.msra.mxu0 0.0
    %4563 = vmatprep.subr.mxu0 0.0
    %4564 = vmatpush1.msra.mxu0 0.0
    %4565 = vmatprep.subr.mxu0 0.0
    %4566 = vmatpush1.msra.mxu0 0.0
    %4567 = vmatprep.subr.mxu0 0.0
    %4568 = vmatpush1.msra.mxu0 0.0
    %4569 = vmatprep.subr.mxu0 0.0
    %4570 = vmatpush1.msra.mxu0 0.0
    %4571 = vmatprep.subr.mxu0 0.0
    %4572 = vmatpush1.msra.mxu0 0.0
    %4573 = vmatprep.subr.mxu0 0.0
    %4574 = vmatpush1.msra.mxu0 0.0
    %4575 = vmatprep.subr.mxu0 0.0
    %4576 = vmatpush1.msra.mxu0 0.0
    %4577 = vmatprep.subr.mxu0 0.0
    %4578 = vmatpush1.msra.mxu0 0.0
    %4579 = vmatprep.subr.mxu0 0.0
    %4580 = vmatpush1.msra.mxu0 0.0
    %4581 = vmatprep.subr.mxu0 0.0
    %4582 = vmatpush1.msra.mxu0 0.0
    %4583 = vmatprep.subr.mxu0 0.0
    %4584 = vmatpush1.msra.mxu0 0.0
    %4585 = vmatprep.subr.mxu0 0.0
    %4586 = vmatpush1.msra.mxu0 0.0
    %4587 = vmatprep.subr.mxu0 0.0
    %4588 = vmatpush1.msra.mxu0 0.0
    %4589 = vmatprep.mubr.f32.mxu0 0.0
    %4590 = vmatmul.mubr.f32.gmra.mrb[0].mxu0 %v4523
    %v4591 = vpop.f32.mrb[0].mxu0
    %v4592 = vadd.f32 0.0, %v4591
    %v4593 = vpop.f32.mrb[0].mxu0
    %4594 = vdwg.mxu0
    %s4595 = scalar_lea.vmem %s49, 64
    %v4596 = vld [vmem:[%s4595] sm:$0xff]
    %v4597 = vld [vmem:[%s4595 + $0x8] sm:$0xff]
    %v4598 = vld [vmem:[%s4595 + $0x10] sm:$0xff]
    %v4599 = vld [vmem:[%s4595 + $0x18] sm:$0xff]
    %v4600 = vld [vmem:[%s4595 + $0x20] sm:$0xff]
    %v4601 = vld [vmem:[%s4595 + $0x28] sm:$0xff]
    %v4602 = vld [vmem:[%s4595 + $0x30] sm:$0xff]
    %v4603 = vld [vmem:[%s4595 + $0x38] sm:$0xff]
    %4604 = vmatprep.subr.mxu0 0.0
    %4605 = vmatpush1.msra.mxu0 %v4596
    %4606 = vmatprep.subr.mxu0 0.0
    %4607 = vmatpush1.msra.mxu0 %v4597
    %4608 = vmatprep.subr.mxu0 0.0
    %4609 = vmatpush1.msra.mxu0 %v4598
    %4610 = vmatprep.subr.mxu0 0.0
    %4611 = vmatpush1.msra.mxu0 %v4599
    %4612 = vmatprep.subr.mxu0 0.0
    %4613 = vmatpush1.msra.mxu0 %v4600
    %4614 = vmatprep.subr.mxu0 0.0
    %4615 = vmatpush1.msra.mxu0 %v4601
    %4616 = vmatprep.subr.mxu0 0.0
    %4617 = vmatpush1.msra.mxu0 %v4602
    %4618 = vmatprep.subr.mxu0 0.0
    %4619 = vmatpush1.msra.mxu0 %v4603
    %4620 = vmatprep.subr.mxu0 0.0
    %4621 = vmatpush1.msra.mxu0 0.0
    %4622 = vmatprep.subr.mxu0 0.0
    %4623 = vmatpush1.msra.mxu0 0.0
    %4624 = vmatprep.subr.mxu0 0.0
    %4625 = vmatpush1.msra.mxu0 0.0
    %4626 = vmatprep.subr.mxu0 0.0
    %4627 = vmatpush1.msra.mxu0 0.0
    %4628 = vmatprep.subr.mxu0 0.0
    %4629 = vmatpush1.msra.mxu0 0.0
    %4630 = vmatprep.subr.mxu0 0.0
    %4631 = vmatpush1.msra.mxu0 0.0
    %4632 = vmatprep.subr.mxu0 0.0
    %4633 = vmatpush1.msra.mxu0 0.0
    %4634 = vmatprep.subr.mxu0 0.0
    %4635 = vmatpush1.msra.mxu0 0.0
    %4636 = vmatprep.subr.mxu0 0.0
    %4637 = vmatpush1.msra.mxu0 0.0
    %4638 = vmatprep.subr.mxu0 0.0
    %4639 = vmatpush1.msra.mxu0 0.0
    %4640 = vmatprep.subr.mxu0 0.0
    %4641 = vmatpush1.msra.mxu0 0.0
    %4642 = vmatprep.subr.mxu0 0.0
    %4643 = vmatpush1.msra.mxu0 0.0
    %4644 = vmatprep.subr.mxu0 0.0
    %4645 = vmatpush1.msra.mxu0 0.0
    %4646 = vmatprep.subr.mxu0 0.0
    %4647 = vmatpush1.msra.mxu0 0.0
    %4648 = vmatprep.subr.mxu0 0.0
    %4649 = vmatpush1.msra.mxu0 0.0
    %4650 = vmatprep.subr.mxu0 0.0
    %4651 = vmatpush1.msra.mxu0 0.0
    %4652 = vmatprep.subr.mxu0 0.0
    %4653 = vmatpush1.msra.mxu0 0.0
    %4654 = vmatprep.subr.mxu0 0.0
    %4655 = vmatpush1.msra.mxu0 0.0
    %4656 = vmatprep.subr.mxu0 0.0
    %4657 = vmatpush1.msra.mxu0 0.0
    %4658 = vmatprep.subr.mxu0 0.0
    %4659 = vmatpush1.msra.mxu0 0.0
    %4660 = vmatprep.subr.mxu0 0.0
    %4661 = vmatpush1.msra.mxu0 0.0
    %4662 = vmatprep.subr.mxu0 0.0
    %4663 = vmatpush1.msra.mxu0 0.0
    %4664 = vmatprep.subr.mxu0 0.0
    %4665 = vmatpush1.msra.mxu0 0.0
    %4666 = vmatprep.subr.mxu0 0.0
    %4667 = vmatpush1.msra.mxu0 0.0
    %4668 = vmatprep.mubr.f32.mxu0 0.0
    %4669 = vmatmul.mubr.f32.gmra.mrb[0].mxu0 %v4523
    %v4670 = vpop.f32.mrb[0].mxu0
    %v4671 = vadd.f32 0.0, %v4670
    %v4672 = vpop.f32.mrb[0].mxu0
    %4673 = vdwg.mxu0
    %v4674 = vmax.f32 %v4592, %v4671
    %v4675 = vld [vmem:[#allocation28] sm:$0xff]
    %v4676 = vld [vmem:[#allocation28 + $0x8] sm:$0xff]
    %v4677 = vld [vmem:[#allocation28 + $0x10] sm:$0xff]
    %v4678 = vld [vmem:[#allocation28 + $0x18] sm:$0xff]
    %v4679 = vld [vmem:[#allocation30] sm:$0x1]
    %v4681 = vlaneseq
    %v4682 = vshrl.u32 %v4681, 7
    %v4683 = vsub.s32 0, %v4682
    %v4684 = vrot.slane %v4679, %v4683
    %v4687 = vsel %vm451, %v4674, 0
    %4689 = vmatprep.subr.mxu0 0.0
    %4690 = vmatpush1.msra.mxu0 %v4675
    %4691 = vmatprep.subr.mxu0 0.0
    %4692 = vmatpush1.msra.mxu0 %v4676
    %4693 = vmatprep.subr.mxu0 0.0
    %4694 = vmatpush1.msra.mxu0 %v4677
    %4695 = vmatprep.subr.mxu0 0.0
    %4696 = vmatpush1.msra.mxu0 %v4678
    %4697 = vmatprep.subr.mxu0 0.0
    %4698 = vmatpush1.msra.mxu0 0.0
    %4699 = vmatprep.subr.mxu0 0.0
    %4700 = vmatpush1.msra.mxu0 0.0
    %4701 = vmatprep.subr.mxu0 0.0
    %4702 = vmatpush1.msra.mxu0 0.0
    %4703 = vmatprep.subr.mxu0 0.0
    %4704 = vmatpush1.msra.mxu0 0.0
    %4705 = vmatprep.subr.mxu0 0.0
    %4706 = vmatpush1.msra.mxu0 0.0
    %4707 = vmatprep.subr.mxu0 0.0
    %4708 = vmatpush1.msra.mxu0 0.0
    %4709 = vmatprep.subr.mxu0 0.0
    %4710 = vmatpush1.msra.mxu0 0.0
    %4711 = vmatprep.subr.mxu0 0.0
    %4712 = vmatpush1.msra.mxu0 0.0
    %4713 = vmatprep.subr.mxu0 0.0
    %4714 = vmatpush1.msra.mxu0 0.0
    %4715 = vmatprep.subr.mxu0 0.0
    %4716 = vmatpush1.msra.mxu0 0.0
    %4717 = vmatprep.subr.mxu0 0.0
    %4718 = vmatpush1.msra.mxu0 0.0
    %4719 = vmatprep.subr.mxu0 0.0
    %4720 = vmatpush1.msra.mxu0 0.0
    %4721 = vmatprep.subr.mxu0 0.0
    %4722 = vmatpush1.msra.mxu0 0.0
    %4723 = vmatprep.subr.mxu0 0.0
    %4724 = vmatpush1.msra.mxu0 0.0
    %4725 = vmatprep.subr.mxu0 0.0
    %4726 = vmatpush1.msra.mxu0 0.0
    %4727 = vmatprep.subr.mxu0 0.0
    %4728 = vmatpush1.msra.mxu0 0.0
    %4729 = vmatprep.subr.mxu0 0.0
    %4730 = vmatpush1.msra.mxu0 0.0
    %4731 = vmatprep.subr.mxu0 0.0
    %4732 = vmatpush1.msra.mxu0 0.0
    %4733 = vmatprep.subr.mxu0 0.0
    %4734 = vmatpush1.msra.mxu0 0.0
    %4735 = vmatprep.subr.mxu0 0.0
    %4736 = vmatpush1.msra.mxu0 0.0
    %4737 = vmatprep.subr.mxu0 0.0
    %4738 = vmatpush1.msra.mxu0 0.0
    %4739 = vmatprep.subr.mxu0 0.0
    %4740 = vmatpush1.msra.mxu0 0.0
    %4741 = vmatprep.subr.mxu0 0.0
    %4742 = vmatpush1.msra.mxu0 0.0
    %4743 = vmatprep.subr.mxu0 0.0
    %4744 = vmatpush1.msra.mxu0 0.0
    %4745 = vmatprep.subr.mxu0 0.0
    %4746 = vmatpush1.msra.mxu0 0.0
    %4747 = vmatprep.subr.mxu0 0.0
    %4748 = vmatpush1.msra.mxu0 0.0
    %4749 = vmatprep.subr.mxu0 0.0
    %4750 = vmatpush1.msra.mxu0 0.0
    %4751 = vmatprep.subr.mxu0 0.0
    %4752 = vmatpush1.msra.mxu0 0.0
    %4753 = vmatprep.mubr.f32.mxu0 0.0
    %4754 = vmatmul.mubr.f32.gmra.mrb[0].mxu0 %v4687
    %v4755 = vpop.f32.mrb[0].mxu0
    %v4756 = vadd.f32 %v4684, %v4755
    %v4757 = vpop.f32.mrb[0].mxu0
    %4758 = vdwg.mxu0
    %v4759 = vld [vmem:[#allocation31] sm:$0xff]
    %vm4760 = vcmask 64512
    %v4762 = vsel %vm4760, %v4759, 0
    %4764 = vmatprep.subr.mxu0 0.0
    %4765 = vmatpush1.msra.mxu0 %v4756
    %4766 = vmatprep.subr.mxu0 0.0
    %4767 = vmatpush1.msra.mxu0 0.0
    %4768 = vmatprep.subr.mxu0 0.0
    %4769 = vmatpush1.msra.mxu0 0.0
    %4770 = vmatprep.subr.mxu0 0.0
    %4771 = vmatpush1.msra.mxu0 0.0
    %4772 = vmatprep.subr.mxu0 0.0
    %4773 = vmatpush1.msra.mxu0 0.0
    %4774 = vmatprep.subr.mxu0 0.0
    %4775 = vmatpush1.msra.mxu0 0.0
    %4776 = vmatprep.subr.mxu0 0.0
    %4777 = vmatpush1.msra.mxu0 0.0
    %4778 = vmatprep.subr.mxu0 0.0
    %4779 = vmatpush1.msra.mxu0 0.0
    %4780 = vmatprep.subr.mxu0 0.0
    %4781 = vmatpush1.msra.mxu0 0.0
    %4782 = vmatprep.subr.mxu0 0.0
    %4783 = vmatpush1.msra.mxu0 0.0
    %4784 = vmatprep.subr.mxu0 0.0
    %4785 = vmatpush1.msra.mxu0 0.0
    %4786 = vmatprep.subr.mxu0 0.0
    %4787 = vmatpush1.msra.mxu0 0.0
    %4788 = vmatprep.subr.mxu0 0.0
    %4789 = vmatpush1.msra.mxu0 0.0
    %4790 = vmatprep.subr.mxu0 0.0
    %4791 = vmatpush1.msra.mxu0 0.0
    %4792 = vmatprep.subr.mxu0 0.0
    %4793 = vmatpush1.msra.mxu0 0.0
    %4794 = vmatprep.subr.mxu0 0.0
    %4795 = vmatpush1.msra.mxu0 0.0
    %4796 = vmatprep.subr.mxu0 0.0
    %4797 = vmatpush1.msra.mxu0 0.0
    %4798 = vmatprep.subr.mxu0 0.0
    %4799 = vmatpush1.msra.mxu0 0.0
    %4800 = vmatprep.subr.mxu0 0.0
    %4801 = vmatpush1.msra.mxu0 0.0
    %4802 = vmatprep.subr.mxu0 0.0
    %4803 = vmatpush1.msra.mxu0 0.0
    %4804 = vmatprep.subr.mxu0 0.0
    %4805 = vmatpush1.msra.mxu0 0.0
    %4806 = vmatprep.subr.mxu0 0.0
    %4807 = vmatpush1.msra.mxu0 0.0
    %4808 = vmatprep.subr.mxu0 0.0
    %4809 = vmatpush1.msra.mxu0 0.0
    %4810 = vmatprep.subr.mxu0 0.0
    %4811 = vmatpush1.msra.mxu0 0.0
    %4812 = vmatprep.subr.mxu0 0.0
    %4813 = vmatpush1.msra.mxu0 0.0
    %4814 = vmatprep.subr.mxu0 0.0
    %4815 = vmatpush1.msra.mxu0 0.0
    %4816 = vmatprep.subr.mxu0 0.0
    %4817 = vmatpush1.msra.mxu0 0.0
    %4818 = vmatprep.subr.mxu0 0.0
    %4819 = vmatpush1.msra.mxu0 0.0
    %4820 = vmatprep.subr.mxu0 0.0
    %4821 = vmatpush1.msra.mxu0 0.0
    %4822 = vmatprep.subr.mxu0 0.0
    %4823 = vmatpush1.msra.mxu0 0.0
    %4824 = vmatprep.subr.mxu0 0.0
    %4825 = vmatpush1.msra.mxu0 0.0
    %4826 = vmatprep.subr.mxu0 0.0
    %4827 = vmatpush1.msra.mxu0 0.0
    %4828 = vmatprep.mubr.f32.mxu0 0.0
    %4829 = vmatmul.mubr.f32.gmra.mrb[0].mxu0 %v4762
    %v4830 = vpop.f32.mrb[0].mxu0
    %v4831 = vadd.f32 0.0, %v4830
    %v4832 = vpop.f32.mrb[0].mxu0
    %4833 = vdwg.mxu0
    %v4834 = vld [vmem:[%s57] sm:$0xff]
    %v4835 = vld [vmem:[%s57 + $0x8] sm:$0xff]
    %v4836 = vld [vmem:[%s57 + $0x10] sm:$0xff]
    %v4837 = vld [vmem:[%s57 + $0x18] sm:$0xff]
    %s4838 = scalar_lea.vmem [#allocation31], 8
    %v4839 = vld [vmem:[%s4838] sm:$0xff]
    %v4841 = vsel %vm4760, %v4839, 0
    %4843 = vmatprep.subr.mxu0 0.0
    %4844 = vmatpush1.msra.mxu0 %v4756
    %4845 = vmatprep.subr.mxu0 0.0
    %4846 = vmatpush1.msra.mxu0 0.0
    %4847 = vmatprep.subr.mxu0 0.0
    %4848 = vmatpush1.msra.mxu0 0.0
    %4849 = vmatprep.subr.mxu0 0.0
    %4850 = vmatpush1.msra.mxu0 0.0
    %4851 = vmatprep.subr.mxu0 0.0
    %4852 = vmatpush1.msra.mxu0 0.0
    %4853 = vmatprep.subr.mxu0 0.0
    %4854 = vmatpush1.msra.mxu0 0.0
    %4855 = vmatprep.subr.mxu0 0.0
    %4856 = vmatpush1.msra.mxu0 0.0
    %4857 = vmatprep.subr.mxu0 0.0
    %4858 = vmatpush1.msra.mxu0 0.0
    %4859 = vmatprep.subr.mxu0 0.0
    %4860 = vmatpush1.msra.mxu0 0.0
    %4861 = vmatprep.subr.mxu0 0.0
    %4862 = vmatpush1.msra.mxu0 0.0
    %4863 = vmatprep.subr.mxu0 0.0
    %4864 = vmatpush1.msra.mxu0 0.0
    %4865 = vmatprep.subr.mxu0 0.0
    %4866 = vmatpush1.msra.mxu0 0.0
    %4867 = vmatprep.subr.mxu0 0.0
    %4868 = vmatpush1.msra.mxu0 0.0
    %4869 = vmatprep.subr.mxu0 0.0
    %4870 = vmatpush1.msra.mxu0 0.0
    %4871 = vmatprep.subr.mxu0 0.0
    %4872 = vmatpush1.msra.mxu0 0.0
    %4873 = vmatprep.subr.mxu0 0.0
    %4874 = vmatpush1.msra.mxu0 0.0
    %4875 = vmatprep.subr.mxu0 0.0
    %4876 = vmatpush1.msra.mxu0 0.0
    %4877 = vmatprep.subr.mxu0 0.0
    %4878 = vmatpush1.msra.mxu0 0.0
    %4879 = vmatprep.subr.mxu0 0.0
    %4880 = vmatpush1.msra.mxu0 0.0
    %4881 = vmatprep.subr.mxu0 0.0
    %4882 = vmatpush1.msra.mxu0 0.0
    %4883 = vmatprep.subr.mxu0 0.0
    %4884 = vmatpush1.msra.mxu0 0.0
    %4885 = vmatprep.subr.mxu0 0.0
    %4886 = vmatpush1.msra.mxu0 0.0
    %4887 = vmatprep.subr.mxu0 0.0
    %4888 = vmatpush1.msra.mxu0 0.0
    %4889 = vmatprep.subr.mxu0 0.0
    %4890 = vmatpush1.msra.mxu0 0.0
    %4891 = vmatprep.subr.mxu0 0.0
    %4892 = vmatpush1.msra.mxu0 0.0
    %4893 = vmatprep.subr.mxu0 0.0
    %4894 = vmatpush1.msra.mxu0 0.0
    %4895 = vmatprep.subr.mxu0 0.0
    %4896 = vmatpush1.msra.mxu0 0.0
    %4897 = vmatprep.subr.mxu0 0.0
    %4898 = vmatpush1.msra.mxu0 0.0
    %4899 = vmatprep.subr.mxu0 0.0
    %4900 = vmatpush1.msra.mxu0 0.0
    %4901 = vmatprep.subr.mxu0 0.0
    %4902 = vmatpush1.msra.mxu0 0.0
    %4903 = vmatprep.subr.mxu0 0.0
    %4904 = vmatpush1.msra.mxu0 0.0
    %4905 = vmatprep.subr.mxu0 0.0
    %4906 = vmatpush1.msra.mxu0 0.0
    %4907 = vmatprep.mubr.f32.mxu0 0.0
    %4908 = vmatmul.mubr.f32.gmra.mrb[0].mxu0 %v4841
    %v4909 = vpop.f32.mrb[0].mxu0
    %v4910 = vadd.f32 0.0, %v4909
    %v4911 = vpop.f32.mrb[0].mxu0
    %4912 = vdwg.mxu0
    %s4913 = scalar_lea.vmem %s57, 32
    %v4914 = vld [vmem:[%s4913] sm:$0xff]
    %v4915 = vld [vmem:[%s4913 + $0x8] sm:$0xff]
    %v4916 = vld [vmem:[%s4913 + $0x10] sm:$0xff]
    %v4917 = vld [vmem:[%s4913 + $0x18] sm:$0xff]
    %v4919 = vsel %vm451, %v4910, 0
    %4921 = vmatprep.subr.mxu0 0.0
    %4922 = vmatpush1.msra.mxu0 %v4914
    %4923 = vmatprep.subr.mxu0 0.0
    %4924 = vmatpush1.msra.mxu0 %v4915
    %4925 = vmatprep.subr.mxu0 0.0
    %4926 = vmatpush1.msra.mxu0 %v4916
    %4927 = vmatprep.subr.mxu0 0.0
    %4928 = vmatpush1.msra.mxu0 %v4917
    %4929 = vmatprep.subr.mxu0 0.0
    %4930 = vmatpush1.msra.mxu0 0.0
    %4931 = vmatprep.subr.mxu0 0.0
    %4932 = vmatpush1.msra.mxu0 0.0
    %4933 = vmatprep.subr.mxu0 0.0
    %4934 = vmatpush1.msra.mxu0 0.0
    %4935 = vmatprep.subr.mxu0 0.0
    %4936 = vmatpush1.msra.mxu0 0.0
    %4937 = vmatprep.subr.mxu0 0.0
    %4938 = vmatpush1.msra.mxu0 0.0
    %4939 = vmatprep.subr.mxu0 0.0
    %4940 = vmatpush1.msra.mxu0 0.0
    %4941 = vmatprep.subr.mxu0 0.0
    %4942 = vmatpush1.msra.mxu0 0.0
    %4943 = vmatprep.subr.mxu0 0.0
    %4944 = vmatpush1.msra.mxu0 0.0
    %4945 = vmatprep.subr.mxu0 0.0
    %4946 = vmatpush1.msra.mxu0 0.0
    %4947 = vmatprep.subr.mxu0 0.0
    %4948 = vmatpush1.msra.mxu0 0.0
    %4949 = vmatprep.subr.mxu0 0.0
    %4950 = vmatpush1.msra.mxu0 0.0
    %4951 = vmatprep.subr.mxu0 0.0
    %4952 = vmatpush1.msra.mxu0 0.0
    %4953 = vmatprep.subr.mxu0 0.0
    %4954 = vmatpush1.msra.mxu0 0.0
    %4955 = vmatprep.subr.mxu0 0.0
    %4956 = vmatpush1.msra.mxu0 0.0
    %4957 = vmatprep.subr.mxu0 0.0
    %4958 = vmatpush1.msra.mxu0 0.0
    %4959 = vmatprep.subr.mxu0 0.0
    %4960 = vmatpush1.msra.mxu0 0.0
    %4961 = vmatprep.subr.mxu0 0.0
    %4962 = vmatpush1.msra.mxu0 0.0
    %4963 = vmatprep.subr.mxu0 0.0
    %4964 = vmatpush1.msra.mxu0 0.0
    %4965 = vmatprep.subr.mxu0 0.0
    %4966 = vmatpush1.msra.mxu0 0.0
    %4967 = vmatprep.subr.mxu0 0.0
    %4968 = vmatpush1.msra.mxu0 0.0
    %4969 = vmatprep.subr.mxu0 0.0
    %4970 = vmatpush1.msra.mxu0 0.0
    %4971 = vmatprep.subr.mxu0 0.0
    %4972 = vmatpush1.msra.mxu0 0.0
    %4973 = vmatprep.subr.mxu0 0.0
    %4974 = vmatpush1.msra.mxu0 0.0
    %4975 = vmatprep.subr.mxu0 0.0
    %4976 = vmatpush1.msra.mxu0 0.0
    %4977 = vmatprep.subr.mxu0 0.0
    %4978 = vmatpush1.msra.mxu0 0.0
    %4979 = vmatprep.subr.mxu0 0.0
    %4980 = vmatpush1.msra.mxu0 0.0
    %4981 = vmatprep.subr.mxu0 0.0
    %4982 = vmatpush1.msra.mxu0 0.0
    %4983 = vmatprep.subr.mxu0 0.0
    %4984 = vmatpush1.msra.mxu0 0.0
    %4985 = vmatprep.mubr.f32.mxu0 0.0
    %4986 = vmatmul.mubr.f32.gmra.mrb[0].mxu0 %v4919
    %v4987 = vpop.f32.mrb[0].mxu0
    %v4988 = vadd.f32 0.0, %v4987
    %v4989 = vpop.f32.mrb[0].mxu0
    %4990 = vdwg.mxu0
    %v4992 = vsel %vm451, %v4831, 0
    %4994 = vmatprep.subr.mxu0 0.0
    %4995 = vmatpush1.msra.mxu0 %v4834
    %4996 = vmatprep.subr.mxu0 0.0
    %4997 = vmatpush1.msra.mxu0 %v4835
    %4998 = vmatprep.subr.mxu0 0.0
    %4999 = vmatpush1.msra.mxu0 %v4836
    %5000 = vmatprep.subr.mxu0 0.0
    %5001 = vmatpush1.msra.mxu0 %v4837
    %5002 = vmatprep.subr.mxu0 0.0
    %5003 = vmatpush1.msra.mxu0 0.0
    %5004 = vmatprep.subr.mxu0 0.0
    %5005 = vmatpush1.msra.mxu0 0.0
    %5006 = vmatprep.subr.mxu0 0.0
    %5007 = vmatpush1.msra.mxu0 0.0
    %5008 = vmatprep.subr.mxu0 0.0
    %5009 = vmatpush1.msra.mxu0 0.0
    %5010 = vmatprep.subr.mxu0 0.0
    %5011 = vmatpush1.msra.mxu0 0.0
    %5012 = vmatprep.subr.mxu0 0.0
    %5013 = vmatpush1.msra.mxu0 0.0
    %5014 = vmatprep.subr.mxu0 0.0
    %5015 = vmatpush1.msra.mxu0 0.0
    %5016 = vmatprep.subr.mxu0 0.0
    %5017 = vmatpush1.msra.mxu0 0.0
    %5018 = vmatprep.subr.mxu0 0.0
    %5019 = vmatpush1.msra.mxu0 0.0
    %5020 = vmatprep.subr.mxu0 0.0
    %5021 = vmatpush1.msra.mxu0 0.0
    %5022 = vmatprep.subr.mxu0 0.0
    %5023 = vmatpush1.msra.mxu0 0.0
    %5024 = vmatprep.subr.mxu0 0.0
    %5025 = vmatpush1.msra.mxu0 0.0
    %5026 = vmatprep.subr.mxu0 0.0
    %5027 = vmatpush1.msra.mxu0 0.0
    %5028 = vmatprep.subr.mxu0 0.0
    %5029 = vmatpush1.msra.mxu0 0.0
    %5030 = vmatprep.subr.mxu0 0.0
    %5031 = vmatpush1.msra.mxu0 0.0
    %5032 = vmatprep.subr.mxu0 0.0
    %5033 = vmatpush1.msra.mxu0 0.0
    %5034 = vmatprep.subr.mxu0 0.0
    %5035 = vmatpush1.msra.mxu0 0.0
    %5036 = vmatprep.subr.mxu0 0.0
    %5037 = vmatpush1.msra.mxu0 0.0
    %5038 = vmatprep.subr.mxu0 0.0
    %5039 = vmatpush1.msra.mxu0 0.0
    %5040 = vmatprep.subr.mxu0 0.0
    %5041 = vmatpush1.msra.mxu0 0.0
    %5042 = vmatprep.subr.mxu0 0.0
    %5043 = vmatpush1.msra.mxu0 0.0
    %5044 = vmatprep.subr.mxu0 0.0
    %5045 = vmatpush1.msra.mxu0 0.0
    %5046 = vmatprep.subr.mxu0 0.0
    %5047 = vmatpush1.msra.mxu0 0.0
    %5048 = vmatprep.subr.mxu0 0.0
    %5049 = vmatpush1.msra.mxu0 0.0
    %5050 = vmatprep.subr.mxu0 0.0
    %5051 = vmatpush1.msra.mxu0 0.0
    %5052 = vmatprep.subr.mxu0 0.0
    %5053 = vmatpush1.msra.mxu0 0.0
    %5054 = vmatprep.subr.mxu0 0.0
    %5055 = vmatpush1.msra.mxu0 0.0
    %5056 = vmatprep.subr.mxu0 0.0
    %5057 = vmatpush1.msra.mxu0 0.0
    %5058 = vmatprep.mubr.f32.mxu0 0.0
    %5059 = vmatmul.mubr.f32.gmra.mrb[0].mxu0 %v4992
    %v5060 = vpop.f32.mrb[0].mxu0
    %v5061 = vadd.f32 %v4988, %v5060
    %v5062 = vpop.f32.mrb[0].mxu0
    %5063 = vdwg.mxu0
    %s5064 = scalar_lea.vmem [#allocation31], 16
    %v5065 = vld [vmem:[%s5064] sm:$0xff]
    %v5067 = vsel %vm4760, %v5065, 0
    %5069 = vmatprep.subr.mxu0 0.0
    %5070 = vmatpush1.msra.mxu0 %v4756
    %5071 = vmatprep.subr.mxu0 0.0
    %5072 = vmatpush1.msra.mxu0 0.0
    %5073 = vmatprep.subr.mxu0 0.0
    %5074 = vmatpush1.msra.mxu0 0.0
    %5075 = vmatprep.subr.mxu0 0.0
    %5076 = vmatpush1.msra.mxu0 0.0
    %5077 = vmatprep.subr.mxu0 0.0
    %5078 = vmatpush1.msra.mxu0 0.0
    %5079 = vmatprep.subr.mxu0 0.0
    %5080 = vmatpush1.msra.mxu0 0.0
    %5081 = vmatprep.subr.mxu0 0.0
    %5082 = vmatpush1.msra.mxu0 0.0
    %5083 = vmatprep.subr.mxu0 0.0
    %5084 = vmatpush1.msra.mxu0 0.0
    %5085 = vmatprep.subr.mxu0 0.0
    %5086 = vmatpush1.msra.mxu0 0.0
    %5087 = vmatprep.subr.mxu0 0.0
    %5088 = vmatpush1.msra.mxu0 0.0
    %5089 = vmatprep.subr.mxu0 0.0
    %5090 = vmatpush1.msra.mxu0 0.0
    %5091 = vmatprep.subr.mxu0 0.0
    %5092 = vmatpush1.msra.mxu0 0.0
    %5093 = vmatprep.subr.mxu0 0.0
    %5094 = vmatpush1.msra.mxu0 0.0
    %5095 = vmatprep.subr.mxu0 0.0
    %5096 = vmatpush1.msra.mxu0 0.0
    %5097 = vmatprep.subr.mxu0 0.0
    %5098 = vmatpush1.msra.mxu0 0.0
    %5099 = vmatprep.subr.mxu0 0.0
    %5100 = vmatpush1.msra.mxu0 0.0
    %5101 = vmatprep.subr.mxu0 0.0
    %5102 = vmatpush1.msra.mxu0 0.0
    %5103 = vmatprep.subr.mxu0 0.0
    %5104 = vmatpush1.msra.mxu0 0.0
    %5105 = vmatprep.subr.mxu0 0.0
    %5106 = vmatpush1.msra.mxu0 0.0
    %5107 = vmatprep.subr.mxu0 0.0
    %5108 = vmatpush1.msra.mxu0 0.0
    %5109 = vmatprep.subr.mxu0 0.0
    %5110 = vmatpush1.msra.mxu0 0.0
    %5111 = vmatprep.subr.mxu0 0.0
    %5112 = vmatpush1.msra.mxu0 0.0
    %5113 = vmatprep.subr.mxu0 0.0
    %5114 = vmatpush1.msra.mxu0 0.0
    %5115 = vmatprep.subr.mxu0 0.0
    %5116 = vmatpush1.msra.mxu0 0.0
    %5117 = vmatprep.subr.mxu0 0.0
    %5118 = vmatpush1.msra.mxu0 0.0
    %5119 = vmatprep.subr.mxu0 0.0
    %5120 = vmatpush1.msra.mxu0 0.0
    %5121 = vmatprep.subr.mxu0 0.0
    %5122 = vmatpush1.msra.mxu0 0.0
    %5123 = vmatprep.subr.mxu0 0.0
    %5124 = vmatpush1.msra.mxu0 0.0
    %5125 = vmatprep.subr.mxu0 0.0
    %5126 = vmatpush1.msra.mxu0 0.0
    %5127 = vmatprep.subr.mxu0 0.0
    %5128 = vmatpush1.msra.mxu0 0.0
    %5129 = vmatprep.subr.mxu0 0.0
    %5130 = vmatpush1.msra.mxu0 0.0
    %5131 = vmatprep.subr.mxu0 0.0
    %5132 = vmatpush1.msra.mxu0 0.0
    %5133 = vmatprep.mubr.f32.mxu0 0.0
    %5134 = vmatmul.mubr.f32.gmra.mrb[0].mxu0 %v5067
    %v5135 = vpop.f32.mrb[0].mxu0
    %v5136 = vadd.f32 0.0, %v5135
    %v5137 = vpop.f32.mrb[0].mxu0
    %5138 = vdwg.mxu0
    %s5139 = scalar_lea.vmem %s57, 64
    %v5140 = vld [vmem:[%s5139] sm:$0xff]
    %v5141 = vld [vmem:[%s5139 + $0x8] sm:$0xff]
    %v5142 = vld [vmem:[%s5139 + $0x10] sm:$0xff]
    %v5143 = vld [vmem:[%s5139 + $0x18] sm:$0xff]
    %v5145 = vsel %vm451, %v5136, 0
    %5147 = vmatprep.subr.mxu0 0.0
    %5148 = vmatpush1.msra.mxu0 %v5140
    %5149 = vmatprep.subr.mxu0 0.0
    %5150 = vmatpush1.msra.mxu0 %v5141
    %5151 = vmatprep.subr.mxu0 0.0
    %5152 = vmatpush1.msra.mxu0 %v5142
    %5153 = vmatprep.subr.mxu0 0.0
    %5154 = vmatpush1.msra.mxu0 %v5143
    %5155 = vmatprep.subr.mxu0 0.0
    %5156 = vmatpush1.msra.mxu0 0.0
    %5157 = vmatprep.subr.mxu0 0.0
    %5158 = vmatpush1.msra.mxu0 0.0
    %5159 = vmatprep.subr.mxu0 0.0
    %5160 = vmatpush1.msra.mxu0 0.0
    %5161 = vmatprep.subr.mxu0 0.0
    %5162 = vmatpush1.msra.mxu0 0.0
    %5163 = vmatprep.subr.mxu0 0.0
    %5164 = vmatpush1.msra.mxu0 0.0
    %5165 = vmatprep.subr.mxu0 0.0
    %5166 = vmatpush1.msra.mxu0 0.0
    %5167 = vmatprep.subr.mxu0 0.0
    %5168 = vmatpush1.msra.mxu0 0.0
    %5169 = vmatprep.subr.mxu0 0.0
    %5170 = vmatpush1.msra.mxu0 0.0
    %5171 = vmatprep.subr.mxu0 0.0
    %5172 = vmatpush1.msra.mxu0 0.0
    %5173 = vmatprep.subr.mxu0 0.0
    %5174 = vmatpush1.msra.mxu0 0.0
    %5175 = vmatprep.subr.mxu0 0.0
    %5176 = vmatpush1.msra.mxu0 0.0
    %5177 = vmatprep.subr.mxu0 0.0
    %5178 = vmatpush1.msra.mxu0 0.0
    %5179 = vmatprep.subr.mxu0 0.0
    %5180 = vmatpush1.msra.mxu0 0.0
    %5181 = vmatprep.subr.mxu0 0.0
    %5182 = vmatpush1.msra.mxu0 0.0
    %5183 = vmatprep.subr.mxu0 0.0
    %5184 = vmatpush1.msra.mxu0 0.0
    %5185 = vmatprep.subr.mxu0 0.0
    %5186 = vmatpush1.msra.mxu0 0.0
    %5187 = vmatprep.subr.mxu0 0.0
    %5188 = vmatpush1.msra.mxu0 0.0
    %5189 = vmatprep.subr.mxu0 0.0
    %5190 = vmatpush1.msra.mxu0 0.0
    %5191 = vmatprep.subr.mxu0 0.0
    %5192 = vmatpush1.msra.mxu0 0.0
    %5193 = vmatprep.subr.mxu0 0.0
    %5194 = vmatpush1.msra.mxu0 0.0
    %5195 = vmatprep.subr.mxu0 0.0
    %5196 = vmatpush1.msra.mxu0 0.0
    %5197 = vmatprep.subr.mxu0 0.0
    %5198 = vmatpush1.msra.mxu0 0.0
    %5199 = vmatprep.subr.mxu0 0.0
    %5200 = vmatpush1.msra.mxu0 0.0
    %5201 = vmatprep.subr.mxu0 0.0
    %5202 = vmatpush1.msra.mxu0 0.0
    %5203 = vmatprep.subr.mxu0 0.0
    %5204 = vmatpush1.msra.mxu0 0.0
    %5205 = vmatprep.subr.mxu0 0.0
    %5206 = vmatpush1.msra.mxu0 0.0
    %5207 = vmatprep.subr.mxu0 0.0
    %5208 = vmatpush1.msra.mxu0 0.0
    %5209 = vmatprep.subr.mxu0 0.0
    %5210 = vmatpush1.msra.mxu0 0.0
    %5211 = vmatprep.mubr.f32.mxu0 0.0
    %5212 = vmatmul.mubr.f32.gmra.mrb[0].mxu0 %v5145
    %v5213 = vpop.f32.mrb[0].mxu0
    %v5214 = vadd.f32 0.0, %v5213
    %v5215 = vpop.f32.mrb[0].mxu0
    %5216 = vdwg.mxu0
    %v5217 = vadd.f32 %v5061, %v5214
    %v5218 = vld [vmem:[#allocation33] sm:$0x1]
    %v5220 = vlaneseq
    %v5221 = vshrl.u32 %v5220, 7
    %v5222 = vsub.s32 0, %v5221
    %v5223 = vrot.slane %v5218, %v5222
    %v5225 = vadd.f32 %v5217, %v5223
    %v5226 = vld [vmem:[#allocation34] sm:$0xff]
    %v5227 = vld [vmem:[#allocation34 + $0x8] sm:$0xff]
    %v5228 = vld [vmem:[#allocation34 + $0x10] sm:$0xff]
    %v5229 = vld [vmem:[#allocation34 + $0x18] sm:$0xff]
    %v5230 = vld [vmem:[%s63] sm:$0x1]
    %v5232 = vlaneseq
    %v5233 = vshrl.u32 %v5232, 7
    %v5234 = vsub.s32 0, %v5233
    %v5235 = vrot.slane %v5230, %v5234
    %v5238 = vsel %vm451, %v5225, 0
    %5240 = vmatprep.subr.mxu0 0.0
    %5241 = vmatpush1.msra.mxu0 %v5226
    %5242 = vmatprep.subr.mxu0 0.0
    %5243 = vmatpush1.msra.mxu0 %v5227
    %5244 = vmatprep.subr.mxu0 0.0
    %5245 = vmatpush1.msra.mxu0 %v5228
    %5246 = vmatprep.subr.mxu0 0.0
    %5247 = vmatpush1.msra.mxu0 %v5229
    %5248 = vmatprep.subr.mxu0 0.0
    %5249 = vmatpush1.msra.mxu0 0.0
    %5250 = vmatprep.subr.mxu0 0.0
    %5251 = vmatpush1.msra.mxu0 0.0
    %5252 = vmatprep.subr.mxu0 0.0
    %5253 = vmatpush1.msra.mxu0 0.0
    %5254 = vmatprep.subr.mxu0 0.0
    %5255 = vmatpush1.msra.mxu0 0.0
    %5256 = vmatprep.subr.mxu0 0.0
    %5257 = vmatpush1.msra.mxu0 0.0
    %5258 = vmatprep.subr.mxu0 0.0
    %5259 = vmatpush1.msra.mxu0 0.0
    %5260 = vmatprep.subr.mxu0 0.0
    %5261 = vmatpush1.msra.mxu0 0.0
    %5262 = vmatprep.subr.mxu0 0.0
    %5263 = vmatpush1.msra.mxu0 0.0
    %5264 = vmatprep.subr.mxu0 0.0
    %5265 = vmatpush1.msra.mxu0 0.0
    %5266 = vmatprep.subr.mxu0 0.0
    %5267 = vmatpush1.msra.mxu0 0.0
    %5268 = vmatprep.subr.mxu0 0.0
    %5269 = vmatpush1.msra.mxu0 0.0
    %5270 = vmatprep.subr.mxu0 0.0
    %5271 = vmatpush1.msra.mxu0 0.0
    %5272 = vmatprep.subr.mxu0 0.0
    %5273 = vmatpush1.msra.mxu0 0.0
    %5274 = vmatprep.subr.mxu0 0.0
    %5275 = vmatpush1.msra.mxu0 0.0
    %5276 = vmatprep.subr.mxu0 0.0
    %5277 = vmatpush1.msra.mxu0 0.0
    %5278 = vmatprep.subr.mxu0 0.0
    %5279 = vmatpush1.msra.mxu0 0.0
    %5280 = vmatprep.subr.mxu0 0.0
    %5281 = vmatpush1.msra.mxu0 0.0
    %5282 = vmatprep.subr.mxu0 0.0
    %5283 = vmatpush1.msra.mxu0 0.0
    %5284 = vmatprep.subr.mxu0 0.0
    %5285 = vmatpush1.msra.mxu0 0.0
    %5286 = vmatprep.subr.mxu0 0.0
    %5287 = vmatpush1.msra.mxu0 0.0
    %5288 = vmatprep.subr.mxu0 0.0
    %5289 = vmatpush1.msra.mxu0 0.0
    %5290 = vmatprep.subr.mxu0 0.0
    %5291 = vmatpush1.msra.mxu0 0.0
    %5292 = vmatprep.subr.mxu0 0.0
    %5293 = vmatpush1.msra.mxu0 0.0
    %5294 = vmatprep.subr.mxu0 0.0
    %5295 = vmatpush1.msra.mxu0 0.0
    %5296 = vmatprep.subr.mxu0 0.0
    %5297 = vmatpush1.msra.mxu0 0.0
    %5298 = vmatprep.subr.mxu0 0.0
    %5299 = vmatpush1.msra.mxu0 0.0
    %5300 = vmatprep.subr.mxu0 0.0
    %5301 = vmatpush1.msra.mxu0 0.0
    %5302 = vmatprep.subr.mxu0 0.0
    %5303 = vmatpush1.msra.mxu0 0.0
    %5304 = vmatprep.mubr.f32.mxu0 0.0
    %5305 = vmatmul.mubr.f32.gmra.mrb[0].mxu0 %v5238
    %v5306 = vpop.f32.mrb[0].mxu0
    %v5307 = vadd.f32 %v5235, %v5306
    %v5308 = vpop.f32.mrb[0].mxu0
    %5309 = vdwg.mxu0
    %v5310 = vld [vmem:[#allocation36] sm:$0xff]
    %v5311 = vld [vmem:[#allocation36 + $0x8] sm:$0xff]
    %v5312 = vld [vmem:[#allocation36 + $0x10] sm:$0xff]
    %v5313 = vld [vmem:[#allocation36 + $0x18] sm:$0xff]
    %5314 = vmatprep.subr.mxu0 0.0
    %5315 = vmatpush1.msra.mxu0 %v5310
    %5316 = vmatprep.subr.mxu0 0.0
    %5317 = vmatpush1.msra.mxu0 %v5311
    %5318 = vmatprep.subr.mxu0 0.0
    %5319 = vmatpush1.msra.mxu0 %v5312
    %5320 = vmatprep.subr.mxu0 0.0
    %5321 = vmatpush1.msra.mxu0 %v5313
    %5322 = vmatprep.subr.mxu0 0.0
    %5323 = vmatpush1.msra.mxu0 0.0
    %5324 = vmatprep.subr.mxu0 0.0
    %5325 = vmatpush1.msra.mxu0 0.0
    %5326 = vmatprep.subr.mxu0 0.0
    %5327 = vmatpush1.msra.mxu0 0.0
    %5328 = vmatprep.subr.mxu0 0.0
    %5329 = vmatpush1.msra.mxu0 0.0
    %5330 = vmatprep.subr.mxu0 0.0
    %5331 = vmatpush1.msra.mxu0 0.0
    %5332 = vmatprep.subr.mxu0 0.0
    %5333 = vmatpush1.msra.mxu0 0.0
    %5334 = vmatprep.subr.mxu0 0.0
    %5335 = vmatpush1.msra.mxu0 0.0
    %5336 = vmatprep.subr.mxu0 0.0
    %5337 = vmatpush1.msra.mxu0 0.0
    %5338 = vmatprep.subr.mxu0 0.0
    %5339 = vmatpush1.msra.mxu0 0.0
    %5340 = vmatprep.subr.mxu0 0.0
    %5341 = vmatpush1.msra.mxu0 0.0
    %5342 = vmatprep.subr.mxu0 0.0
    %5343 = vmatpush1.msra.mxu0 0.0
    %5344 = vmatprep.subr.mxu0 0.0
    %5345 = vmatpush1.msra.mxu0 0.0
    %5346 = vmatprep.subr.mxu0 0.0
    %5347 = vmatpush1.msra.mxu0 0.0
    %5348 = vmatprep.subr.mxu0 0.0
    %5349 = vmatpush1.msra.mxu0 0.0
    %5350 = vmatprep.subr.mxu0 0.0
    %5351 = vmatpush1.msra.mxu0 0.0
    %5352 = vmatprep.subr.mxu0 0.0
    %5353 = vmatpush1.msra.mxu0 0.0
    %5354 = vmatprep.subr.mxu0 0.0
    %5355 = vmatpush1.msra.mxu0 0.0
    %5356 = vmatprep.subr.mxu0 0.0
    %5357 = vmatpush1.msra.mxu0 0.0
    %5358 = vmatprep.subr.mxu0 0.0
    %5359 = vmatpush1.msra.mxu0 0.0
    %5360 = vmatprep.subr.mxu0 0.0
    %5361 = vmatpush1.msra.mxu0 0.0
    %5362 = vmatprep.subr.mxu0 0.0
    %5363 = vmatpush1.msra.mxu0 0.0
    %5364 = vmatprep.subr.mxu0 0.0
    %5365 = vmatpush1.msra.mxu0 0.0
    %5366 = vmatprep.subr.mxu0 0.0
    %5367 = vmatpush1.msra.mxu0 0.0
    %5368 = vmatprep.subr.mxu0 0.0
    %5369 = vmatpush1.msra.mxu0 0.0
    %5370 = vmatprep.subr.mxu0 0.0
    %5371 = vmatpush1.msra.mxu0 0.0
    %5372 = vmatprep.subr.mxu0 0.0
    %5373 = vmatpush1.msra.mxu0 0.0
    %5374 = vmatprep.subr.mxu0 0.0
    %5375 = vmatpush1.msra.mxu0 0.0
    %5376 = vmatprep.subr.mxu0 0.0
    %5377 = vmatpush1.msra.mxu0 0.0
    %5378 = vmatprep.mubr.f32.mxu0 0.0
    %5379 = vmatmul.mubr.f32.gmra.mrb[0].mxu0 %v4687
    %v5380 = vpop.f32.mrb[0].mxu0
    %v5381 = vadd.f32 0.0, %v5380
    %v5382 = vpop.f32.mrb[0].mxu0
    %5383 = vdwg.mxu0
    %v5384 = vadd.f32 %v5307, %v5381
    %v5385 = vld [vmem:[%s67] sm:$0x1]
    %v5387 = vlaneseq
    %v5388 = vshrl.u32 %v5387, 7
    %v5389 = vsub.s32 0, %v5388
    %v5390 = vrot.slane %v5385, %v5389
    %v5392 = vadd.f32 %v5384, %v5390
    %v5393 = vld [vmem:[%s69] sm:$0xf]
    %v5395 = vsel %vm4760, %v5393, 0
    %5397 = vmatprep.subr.mxu0 0.0
    %5398 = vmatpush1.msra.mxu0 %v5392
    %5399 = vmatprep.subr.mxu0 0.0
    %5400 = vmatpush1.msra.mxu0 0.0
    %5401 = vmatprep.subr.mxu0 0.0
    %5402 = vmatpush1.msra.mxu0 0.0
    %5403 = vmatprep.subr.mxu0 0.0
    %5404 = vmatpush1.msra.mxu0 0.0
    %5405 = vmatprep.subr.mxu0 0.0
    %5406 = vmatpush1.msra.mxu0 0.0
    %5407 = vmatprep.subr.mxu0 0.0
    %5408 = vmatpush1.msra.mxu0 0.0
    %5409 = vmatprep.subr.mxu0 0.0
    %5410 = vmatpush1.msra.mxu0 0.0
    %5411 = vmatprep.subr.mxu0 0.0
    %5412 = vmatpush1.msra.mxu0 0.0
    %5413 = vmatprep.subr.mxu0 0.0
    %5414 = vmatpush1.msra.mxu0 0.0
    %5415 = vmatprep.subr.mxu0 0.0
    %5416 = vmatpush1.msra.mxu0 0.0
    %5417 = vmatprep.subr.mxu0 0.0
    %5418 = vmatpush1.msra.mxu0 0.0
    %5419 = vmatprep.subr.mxu0 0.0
    %5420 = vmatpush1.msra.mxu0 0.0
    %5421 = vmatprep.subr.mxu0 0.0
    %5422 = vmatpush1.msra.mxu0 0.0
    %5423 = vmatprep.subr.mxu0 0.0
    %5424 = vmatpush1.msra.mxu0 0.0
    %5425 = vmatprep.subr.mxu0 0.0
    %5426 = vmatpush1.msra.mxu0 0.0
    %5427 = vmatprep.subr.mxu0 0.0
    %5428 = vmatpush1.msra.mxu0 0.0
    %5429 = vmatprep.subr.mxu0 0.0
    %5430 = vmatpush1.msra.mxu0 0.0
    %5431 = vmatprep.subr.mxu0 0.0
    %5432 = vmatpush1.msra.mxu0 0.0
    %5433 = vmatprep.subr.mxu0 0.0
    %5434 = vmatpush1.msra.mxu0 0.0
    %5435 = vmatprep.subr.mxu0 0.0
    %5436 = vmatpush1.msra.mxu0 0.0
    %5437 = vmatprep.subr.mxu0 0.0
    %5438 = vmatpush1.msra.mxu0 0.0
    %5439 = vmatprep.subr.mxu0 0.0
    %5440 = vmatpush1.msra.mxu0 0.0
    %5441 = vmatprep.subr.mxu0 0.0
    %5442 = vmatpush1.msra.mxu0 0.0
    %5443 = vmatprep.subr.mxu0 0.0
    %5444 = vmatpush1.msra.mxu0 0.0
    %5445 = vmatprep.subr.mxu0 0.0
    %5446 = vmatpush1.msra.mxu0 0.0
    %5447 = vmatprep.subr.mxu0 0.0
    %5448 = vmatpush1.msra.mxu0 0.0
    %5449 = vmatprep.subr.mxu0 0.0
    %5450 = vmatpush1.msra.mxu0 0.0
    %5451 = vmatprep.subr.mxu0 0.0
    %5452 = vmatpush1.msra.mxu0 0.0
    %5453 = vmatprep.subr.mxu0 0.0
    %5454 = vmatpush1.msra.mxu0 0.0
    %5455 = vmatprep.subr.mxu0 0.0
    %5456 = vmatpush1.msra.mxu0 0.0
    %5457 = vmatprep.subr.mxu0 0.0
    %5458 = vmatpush1.msra.mxu0 0.0
    %5459 = vmatprep.subr.mxu0 0.0
    %5460 = vmatpush1.msra.mxu0 0.0
    %5461 = vmatprep.mubr.f32.mxu0 0.0
    %5462 = vmatmul.mubr.f32.gmra.mrb[0].mxu0 %v5395
    %v5463 = vpop.f32.mrb[0].mxu0
    %v5464 = vadd.f32 0.0, %v5463
    %v5465 = vpop.f32.mrb[0].mxu0
    %5466 = vdwg.mxu0
    %s5467 = scalar_lea.vmem %s69, 4
    %v5468 = vld [vmem:[%s5467] sm:$0xf]
    %v5470 = vsel %vm4760, %v5468, 0
    %5472 = vmatprep.subr.mxu0 0.0
    %5473 = vmatpush1.msra.mxu0 %v5392
    %5474 = vmatprep.subr.mxu0 0.0
    %5475 = vmatpush1.msra.mxu0 0.0
    %5476 = vmatprep.subr.mxu0 0.0
    %5477 = vmatpush1.msra.mxu0 0.0
    %5478 = vmatprep.subr.mxu0 0.0
    %5479 = vmatpush1.msra.mxu0 0.0
    %5480 = vmatprep.subr.mxu0 0.0
    %5481 = vmatpush1.msra.mxu0 0.0
    %5482 = vmatprep.subr.mxu0 0.0
    %5483 = vmatpush1.msra.mxu0 0.0
    %5484 = vmatprep.subr.mxu0 0.0
    %5485 = vmatpush1.msra.mxu0 0.0
    %5486 = vmatprep.subr.mxu0 0.0
    %5487 = vmatpush1.msra.mxu0 0.0
    %5488 = vmatprep.subr.mxu0 0.0
    %5489 = vmatpush1.msra.mxu0 0.0
    %5490 = vmatprep.subr.mxu0 0.0
    %5491 = vmatpush1.msra.mxu0 0.0
    %5492 = vmatprep.subr.mxu0 0.0
    %5493 = vmatpush1.msra.mxu0 0.0
    %5494 = vmatprep.subr.mxu0 0.0
    %5495 = vmatpush1.msra.mxu0 0.0
    %5496 = vmatprep.subr.mxu0 0.0
    %5497 = vmatpush1.msra.mxu0 0.0
    %5498 = vmatprep.subr.mxu0 0.0
    %5499 = vmatpush1.msra.mxu0 0.0
    %5500 = vmatprep.subr.mxu0 0.0
    %5501 = vmatpush1.msra.mxu0 0.0
    %5502 = vmatprep.subr.mxu0 0.0
    %5503 = vmatpush1.msra.mxu0 0.0
    %5504 = vmatprep.subr.mxu0 0.0
    %5505 = vmatpush1.msra.mxu0 0.0
    %5506 = vmatprep.subr.mxu0 0.0
    %5507 = vmatpush1.msra.mxu0 0.0
    %5508 = vmatprep.subr.mxu0 0.0
    %5509 = vmatpush1.msra.mxu0 0.0
    %5510 = vmatprep.subr.mxu0 0.0
    %5511 = vmatpush1.msra.mxu0 0.0
    %5512 = vmatprep.subr.mxu0 0.0
    %5513 = vmatpush1.msra.mxu0 0.0
    %5514 = vmatprep.subr.mxu0 0.0
    %5515 = vmatpush1.msra.mxu0 0.0
    %5516 = vmatprep.subr.mxu0 0.0
    %5517 = vmatpush1.msra.mxu0 0.0
    %5518 = vmatprep.subr.mxu0 0.0
    %5519 = vmatpush1.msra.mxu0 0.0
    %5520 = vmatprep.subr.mxu0 0.0
    %5521 = vmatpush1.msra.mxu0 0.0
    %5522 = vmatprep.subr.mxu0 0.0
    %5523 = vmatpush1.msra.mxu0 0.0
    %5524 = vmatprep.subr.mxu0 0.0
    %5525 = vmatpush1.msra.mxu0 0.0
    %5526 = vmatprep.subr.mxu0 0.0
    %5527 = vmatpush1.msra.mxu0 0.0
    %5528 = vmatprep.subr.mxu0 0.0
    %5529 = vmatpush1.msra.mxu0 0.0
    %5530 = vmatprep.subr.mxu0 0.0
    %5531 = vmatpush1.msra.mxu0 0.0
    %5532 = vmatprep.subr.mxu0 0.0
    %5533 = vmatpush1.msra.mxu0 0.0
    %5534 = vmatprep.subr.mxu0 0.0
    %5535 = vmatpush1.msra.mxu0 0.0
    %5536 = vmatprep.mubr.f32.mxu0 0.0
    %5537 = vmatmul.mubr.f32.gmra.mrb[0].mxu0 %v5470
    %v5538 = vpop.f32.mrb[0].mxu0
    %v5539 = vadd.f32 0.0, %v5538
    %v5540 = vpop.f32.mrb[0].mxu0
    %5541 = vdwg.mxu0
    %v5542 = vmax.f32 %v5464, %v5539
    %v5543 = vld [vmem:[%s71] sm:$0xff]
    %v5544 = vld [vmem:[%s71 + $0x8] sm:$0xff]
    %v5545 = vld [vmem:[%s71 + $0x10] sm:$0xff]
    %v5546 = vld [vmem:[%s71 + $0x18] sm:$0xff]
    %v5547 = vld [vmem:[%s71 + $0x20] sm:$0xff]
    %v5548 = vld [vmem:[%s71 + $0x28] sm:$0xff]
    %v5549 = vld [vmem:[%s71 + $0x30] sm:$0xff]
    %v5550 = vld [vmem:[%s71 + $0x38] sm:$0xff]
    %v5552 = vsel %vm668, %v5542, 0
    %5554 = vmatprep.subr.mxu0 0.0
    %5555 = vmatpush1.msra.mxu0 %v5543
    %5556 = vmatprep.subr.mxu0 0.0
    %5557 = vmatpush1.msra.mxu0 %v5544
    %5558 = vmatprep.subr.mxu0 0.0
    %5559 = vmatpush1.msra.mxu0 %v5545
    %5560 = vmatprep.subr.mxu0 0.0
    %5561 = vmatpush1.msra.mxu0 %v5546
    %5562 = vmatprep.subr.mxu0 0.0
    %5563 = vmatpush1.msra.mxu0 %v5547
    %5564 = vmatprep.subr.mxu0 0.0
    %5565 = vmatpush1.msra.mxu0 %v5548
    %5566 = vmatprep.subr.mxu0 0.0
    %5567 = vmatpush1.msra.mxu0 %v5549
    %5568 = vmatprep.subr.mxu0 0.0
    %5569 = vmatpush1.msra.mxu0 %v5550
    %5570 = vmatprep.subr.mxu0 0.0
    %5571 = vmatpush1.msra.mxu0 0.0
    %5572 = vmatprep.subr.mxu0 0.0
    %5573 = vmatpush1.msra.mxu0 0.0
    %5574 = vmatprep.subr.mxu0 0.0
    %5575 = vmatpush1.msra.mxu0 0.0
    %5576 = vmatprep.subr.mxu0 0.0
    %5577 = vmatpush1.msra.mxu0 0.0
    %5578 = vmatprep.subr.mxu0 0.0
    %5579 = vmatpush1.msra.mxu0 0.0
    %5580 = vmatprep.subr.mxu0 0.0
    %5581 = vmatpush1.msra.mxu0 0.0
    %5582 = vmatprep.subr.mxu0 0.0
    %5583 = vmatpush1.msra.mxu0 0.0
    %5584 = vmatprep.subr.mxu0 0.0
    %5585 = vmatpush1.msra.mxu0 0.0
    %5586 = vmatprep.subr.mxu0 0.0
    %5587 = vmatpush1.msra.mxu0 0.0
    %5588 = vmatprep.subr.mxu0 0.0
    %5589 = vmatpush1.msra.mxu0 0.0
    %5590 = vmatprep.subr.mxu0 0.0
    %5591 = vmatpush1.msra.mxu0 0.0
    %5592 = vmatprep.subr.mxu0 0.0
    %5593 = vmatpush1.msra.mxu0 0.0
    %5594 = vmatprep.subr.mxu0 0.0
    %5595 = vmatpush1.msra.mxu0 0.0
    %5596 = vmatprep.subr.mxu0 0.0
    %5597 = vmatpush1.msra.mxu0 0.0
    %5598 = vmatprep.subr.mxu0 0.0
    %5599 = vmatpush1.msra.mxu0 0.0
    %5600 = vmatprep.subr.mxu0 0.0
    %5601 = vmatpush1.msra.mxu0 0.0
    %5602 = vmatprep.subr.mxu0 0.0
    %5603 = vmatpush1.msra.mxu0 0.0
    %5604 = vmatprep.subr.mxu0 0.0
    %5605 = vmatpush1.msra.mxu0 0.0
    %5606 = vmatprep.subr.mxu0 0.0
    %5607 = vmatpush1.msra.mxu0 0.0
    %5608 = vmatprep.subr.mxu0 0.0
    %5609 = vmatpush1.msra.mxu0 0.0
    %5610 = vmatprep.subr.mxu0 0.0
    %5611 = vmatpush1.msra.mxu0 0.0
    %5612 = vmatprep.subr.mxu0 0.0
    %5613 = vmatpush1.msra.mxu0 0.0
    %5614 = vmatprep.subr.mxu0 0.0
    %5615 = vmatpush1.msra.mxu0 0.0
    %5616 = vmatprep.subr.mxu0 0.0
    %5617 = vmatpush1.msra.mxu0 0.0
    %5618 = vmatprep.mubr.f32.mxu0 0.0
    %5619 = vmatmul.mubr.f32.gmra.mrb[0].mxu0 %v5552
    %v5620 = vpop.f32.mrb[0].mxu0
    %v5621 = vadd.f32 0.0, %v5620
    %v5622 = vpop.f32.mrb[0].mxu0
    %5623 = vdwg.mxu0
    %s5624 = scalar_lea.vmem %s71, 64
    %v5625 = vld [vmem:[%s5624] sm:$0xff]
    %v5626 = vld [vmem:[%s5624 + $0x8] sm:$0xff]
    %v5627 = vld [vmem:[%s5624 + $0x10] sm:$0xff]
    %v5628 = vld [vmem:[%s5624 + $0x18] sm:$0xff]
    %v5629 = vld [vmem:[%s5624 + $0x20] sm:$0xff]
    %v5630 = vld [vmem:[%s5624 + $0x28] sm:$0xff]
    %v5631 = vld [vmem:[%s5624 + $0x30] sm:$0xff]
    %v5632 = vld [vmem:[%s5624 + $0x38] sm:$0xff]
    %5633 = vmatprep.subr.mxu0 0.0
    %5634 = vmatpush1.msra.mxu0 %v5625
    %5635 = vmatprep.subr.mxu0 0.0
    %5636 = vmatpush1.msra.mxu0 %v5626
    %5637 = vmatprep.subr.mxu0 0.0
    %5638 = vmatpush1.msra.mxu0 %v5627
    %5639 = vmatprep.subr.mxu0 0.0
    %5640 = vmatpush1.msra.mxu0 %v5628
    %5641 = vmatprep.subr.mxu0 0.0
    %5642 = vmatpush1.msra.mxu0 %v5629
    %5643 = vmatprep.subr.mxu0 0.0
    %5644 = vmatpush1.msra.mxu0 %v5630
    %5645 = vmatprep.subr.mxu0 0.0
    %5646 = vmatpush1.msra.mxu0 %v5631
    %5647 = vmatprep.subr.mxu0 0.0
    %5648 = vmatpush1.msra.mxu0 %v5632
    %5649 = vmatprep.subr.mxu0 0.0
    %5650 = vmatpush1.msra.mxu0 0.0
    %5651 = vmatprep.subr.mxu0 0.0
    %5652 = vmatpush1.msra.mxu0 0.0
    %5653 = vmatprep.subr.mxu0 0.0
    %5654 = vmatpush1.msra.mxu0 0.0
    %5655 = vmatprep.subr.mxu0 0.0
    %5656 = vmatpush1.msra.mxu0 0.0
    %5657 = vmatprep.subr.mxu0 0.0
    %5658 = vmatpush1.msra.mxu0 0.0
    %5659 = vmatprep.subr.mxu0 0.0
    %5660 = vmatpush1.msra.mxu0 0.0
    %5661 = vmatprep.subr.mxu0 0.0
    %5662 = vmatpush1.msra.mxu0 0.0
    %5663 = vmatprep.subr.mxu0 0.0
    %5664 = vmatpush1.msra.mxu0 0.0
    %5665 = vmatprep.subr.mxu0 0.0
    %5666 = vmatpush1.msra.mxu0 0.0
    %5667 = vmatprep.subr.mxu0 0.0
    %5668 = vmatpush1.msra.mxu0 0.0
    %5669 = vmatprep.subr.mxu0 0.0
    %5670 = vmatpush1.msra.mxu0 0.0
    %5671 = vmatprep.subr.mxu0 0.0
    %5672 = vmatpush1.msra.mxu0 0.0
    %5673 = vmatprep.subr.mxu0 0.0
    %5674 = vmatpush1.msra.mxu0 0.0
    %5675 = vmatprep.subr.mxu0 0.0
    %5676 = vmatpush1.msra.mxu0 0.0
    %5677 = vmatprep.subr.mxu0 0.0
    %5678 = vmatpush1.msra.mxu0 0.0
    %5679 = vmatprep.subr.mxu0 0.0
    %5680 = vmatpush1.msra.mxu0 0.0
    %5681 = vmatprep.subr.mxu0 0.0
    %5682 = vmatpush1.msra.mxu0 0.0
    %5683 = vmatprep.subr.mxu0 0.0
    %5684 = vmatpush1.msra.mxu0 0.0
    %5685 = vmatprep.subr.mxu0 0.0
    %5686 = vmatpush1.msra.mxu0 0.0
    %5687 = vmatprep.subr.mxu0 0.0
    %5688 = vmatpush1.msra.mxu0 0.0
    %5689 = vmatprep.subr.mxu0 0.0
    %5690 = vmatpush1.msra.mxu0 0.0
    %5691 = vmatprep.subr.mxu0 0.0
    %5692 = vmatpush1.msra.mxu0 0.0
    %5693 = vmatprep.subr.mxu0 0.0
    %5694 = vmatpush1.msra.mxu0 0.0
    %5695 = vmatprep.subr.mxu0 0.0
    %5696 = vmatpush1.msra.mxu0 0.0
    %5697 = vmatprep.mubr.f32.mxu0 0.0
    %5698 = vmatmul.mubr.f32.gmra.mrb[0].mxu0 %v5552
    %v5699 = vpop.f32.mrb[0].mxu0
    %v5700 = vadd.f32 0.0, %v5699
    %v5701 = vpop.f32.mrb[0].mxu0
    %5702 = vdwg.mxu0
    %v5703 = vmax.f32 %v5621, %v5700
    %vm5704 = vcmask 257024
    %5705 = vst.msk [vmem:[%s73] sm:$0xf] %vm5704, %v5703
    // Predicated region
    $region238: #{backbone_forward.1} parent=1 // pred_check
      _
    $region239: #{backbone_forward.1} parent=1 // pred_check_branch
      %5707 = sbr.rel (0) target = $region241
    $region240: #{backbone_forward.1} parent=1 // pred_region
      _
    $region241: #{backbone_forward.1} parent=1 // pred_fallthru
      _
    // Predicated region
    $region242: #{backbone_forward.1} parent=1 // pred_check
      _
    $region243: #{backbone_forward.1} parent=1 // pred_check_branch
      %5709 = sbr.rel (0) target = $region245
    $region244: #{backbone_forward.1} parent=1 // pred_region
      _
    $region245: #{backbone_forward.1} parent=1 // pred_fallthru
      _
    %5710 = vsyncpa [#allocation3], 1
    %5711 = vsyncpa [#allocation5], 1
    %5712 = vsyncpa [#allocation8], 1
    %5713 = vsyncpa [#allocation11], 1
    %5714 = vsyncpa [#allocation14], 1
    %5715 = vsyncpa [#allocation17], 1
    %5716 = vsyncpa [#allocation20], 1
    %5717 = vsyncpa [#allocation23], 1
    %5718 = vsyncpa [#allocation26], 1
    %5719 = vsyncpa [#allocation29], 1
    %5720 = vsyncpa [#allocation32], 1
    %5721 = vsyncpa [#allocation35], 1

</llo_original>
